<compile_context>
chip_gen: v7x
topology: tpu7x:2x2x1
jax: 0.10.0
libtpu: 0.0.40
codegen_flags: <defaults>
</compile_context>

<pallas_src>
import functools

import jax
import jax.numpy as jnp
from jax import lax
from jax.experimental import pallas as pl
from jax.experimental.pallas import tpu as pltpu


# ----------------------------- in-kernel helpers ----------------------------

def _erf_approx(x):
    # Abramowitz & Stegun 7.1.26, |err| < 1.5e-7: matches exact-erf GELU at f32.
    a1, a2, a3, a4, a5 = 0.254829592, -0.284496736, 1.421413741, -1.453152027, 1.061405429
    p = 0.3275911
    s = jnp.where(x >= 0.0, 1.0, -1.0)
    ax = jnp.abs(x)
    t = 1.0 / (1.0 + p * ax)
    poly = ((((a5 * t + a4) * t + a3) * t + a2) * t + a1) * t
    return s * (1.0 - poly * jnp.exp(-ax * ax))


def _layernorm(x, gamma, beta, eps):
    # channels-first LayerNorm (mean / biased var over the channel axis = last here)
    u = jnp.mean(x, axis=-1, keepdims=True)
    d = x - u
    s = jnp.mean(d * d, axis=-1, keepdims=True)
    return gamma * (d / jnp.sqrt(s + eps)) + beta


# ------------------------------- Pallas kernels ------------------------------

def _pos_ln_kernel(xp_ref, w_ref, b_ref, g_ref, be_ref, res_ref, n_ref, *, ksize, eps):
    # Fused: depthwise KxK conv (+bias) + residual add + norm1 LayerNorm.
    # xp: (N, H+2p, W+2p, C) zero-padded input; w: (k*k, C); b/g/be: (1, C).
    # TODO(synk): padding is still done with jnp.pad outside (one tiny extra HBM
    # array); in-kernel masked shifts / pltpu.roll would remove it.
    N, H, W, C = res_ref.shape
    pad = (ksize - 1) // 2
    xp = xp_ref[...]
    w = w_ref[...]
    acc = xp[:, pad:pad + H, pad:pad + W, :] + b_ref[...].reshape(1, 1, 1, C)
    for ky in range(ksize):
        for kx in range(ksize):
            idx = ky * ksize + kx
            wk = w[idx:idx + 1, :].reshape(1, 1, 1, C)
            acc = acc + xp[:, ky:ky + H, kx:kx + W, :] * wk
    res_ref[...] = acc
    n_ref[...] = _layernorm(acc, g_ref[...].reshape(1, 1, 1, C),
                            be_ref[...].reshape(1, 1, 1, C), eps)


def _qkv_os_kernel(tok_ref, qw_ref, qb_ref, pool_ref, osw_ref, osb_ref,
                   qkv_ref, os_ref):
    # Shared-weight qkv 1x1 conv on one branch's tokens, plus the (tiny, replicated
    # per grid step) LeakyReLU + fused sampling_offsets/sampling_scales 1x1 conv.
    t = tok_ref[...]
    qkv_ref[...] = (jnp.dot(t, qw_ref[...], preferred_element_type=jnp.float32)
                    + qb_ref[...])
    p = pool_ref[...]
    p = jnp.where(p >= 0.0, p, 0.01 * p)                    # nn.LeakyReLU()
    os_ref[...] = (jnp.dot(p, osw_ref[...], preferred_element_type=jnp.float32)
                   + osb_ref[...])


def _grid_sample_kernel(kv_ref, gx_ref, gy_ref, o_ref, *, H, W):
    # F.grid_sample(bilinear, padding_mode='zeros', align_corners=True) as a
    # (P, H*W) interpolation-weight-matrix matmul, heads batched inside.
    # kv: (nh, H*W, 2*hd) [K||V concatenated], gx/gy: (nh, P), out: (nh, P, 2*hd).
    nh, HW, D2 = kv_ref.shape
    P = gx_ref.shape[-1]
    gx = gx_ref[...]
    gy = gy_ref[...]
    ix = (gx + 1.0) * (0.5 * (W - 1))
    iy = (gy + 1.0) * (0.5 * (H - 1))
    ix0 = jnp.floor(ix)
    iy0 = jnp.floor(iy)
    wx1 = ix - ix0
    wx0 = 1.0 - wx1
    wy1 = iy - iy0
    wy0 = 1.0 - wy1
    # flattened spatial column index -> (row, col); done in f32 where all values
    # are small exact integers, so the corner-match equality below is exact.
    colf = lax.broadcasted_iota(jnp.int32, (nh, P, HW), 2).astype(jnp.float32)
    cyf = jnp.floor((colf + 0.5) * (1.0 / W))
    cxf = colf - cyf * W
    # out-of-range corners match no column -> contribute zero (zeros padding).
    wxm = (wx0[..., None] * (cxf == ix0[..., None]).astype(jnp.float32)
           + wx1[..., None] * (cxf == ix0[..., None] + 1.0).astype(jnp.float32))
    wym = (wy0[..., None] * (cyf == iy0[..., None]).astype(jnp.float32)
           + wy1[..., None] * (cyf == iy0[..., None] + 1.0).astype(jnp.float32))
    wmat = wxm * wym                                        # (nh, P, HW)
    o_ref[...] = jnp.einsum("npq,nqd->npd", wmat, kv_ref[...],
                            preferred_element_type=jnp.float32)


def _dual_attn_kernel(qp_ref, ql_ref, k_ref, v_ref, bias_ref, op_ref, ol_ref, *, scale):
    # Window attention for pan & lms queries sharing K, V and the relative-position
    # bias.  Layout puts the window*head batch N on lanes: q/k/v are (L, hd, N),
    # bias is (Lq, Lk, N) -> QK^T and AV are lane-parallel VPU mul + sublane
    # reduces (no 128-way loop of degenerate MXU matmuls), softmax uses EUP.
    k = k_ref[...]
    v = v_ref[...]
    bias = bias_ref[...]

    def attend(q):
        dots = jnp.sum(q[:, None, :, :] * k[None, :, :, :], axis=2) * scale + bias
        m = jnp.max(dots, axis=1, keepdims=True)
        e = jnp.exp(dots - m)
        s = jnp.sum(e, axis=1, keepdims=True)
        attn = e * pl.reciprocal(s, approx=True)
        return jnp.sum(attn[:, :, None, :] * v[None, :, :, :], axis=1)

    op_ref[...] = attend(qp_ref[...])
    ol_ref[...] = attend(ql_ref[...])


def _proj_mlp_kernel(res_ref, at_ref, pw_ref, pb_ref, g_ref, be_ref,
                     w1_ref, b1_ref, w2_ref, b2_ref, out_ref, *, eps):
    # Per branch: x = residual + attn @ proj_w + proj_b  (identity "proj" for lms),
    # then y = x + fc2(GELU(fc1(LN(x)))) -- the MLP hidden never leaves VMEM.
    x = (res_ref[...]
         + jnp.dot(at_ref[...], pw_ref[...], preferred_element_type=jnp.float32)
         + pb_ref[...])
    h = _layernorm(x, g_ref[...], be_ref[...], eps)
    h1 = jnp.dot(h, w1_ref[...], preferred_element_type=jnp.float32) + b1_ref[...]
    h1 = 0.5 * h1 * (1.0 + _erf_approx(h1 * 0.7071067811865476))   # exact-erf GELU
    h2 = jnp.dot(h1, w2_ref[...], preferred_element_type=jnp.float32) + b2_ref[...]
    out_ref[...] = x + h2


# ------------------------------ kernel wrappers ------------------------------

def _pos_ln(x, w, b, gamma, beta, ksize, eps):
    # x: (2B, H, W, C) stacked [pan; lms]; returns (x + pos(x), norm1(x + pos(x))).
    N, H, W, C = x.shape
    half = N // 2
    pad = (ksize - 1) // 2
    Hp, Wp = H + 2 * pad, W + 2 * pad
    xp = jnp.pad(x, ((0, 0), (pad, pad), (pad, pad), (0, 0)))
    return pl.pallas_call(
        functools.partial(_pos_ln_kernel, ksize=ksize, eps=eps),
        out_shape=(jax.ShapeDtypeStruct((N, H, W, C), jnp.float32),
                   jax.ShapeDtypeStruct((N, H, W, C), jnp.float32)),
        grid=(2,),
        in_specs=[pl.BlockSpec((half, Hp, Wp, C), lambda i: (i, 0, 0, 0)),
                  pl.BlockSpec((ksize * ksize, C), lambda i: (0, 0)),
                  pl.BlockSpec((1, C), lambda i: (0, 0)),
                  pl.BlockSpec((1, C), lambda i: (0, 0)),
                  pl.BlockSpec((1, C), lambda i: (0, 0))],
        out_specs=(pl.BlockSpec((half, H, W, C), lambda i: (i, 0, 0, 0)),
                   pl.BlockSpec((half, H, W, C), lambda i: (i, 0, 0, 0))),
        compiler_params=pltpu.CompilerParams(dimension_semantics=("parallel",)),
    )(xp, w, b.reshape(1, C), gamma.reshape(1, C), beta.reshape(1, C))


def _qkv_offscale(tok, qkv_w, qkv_b, pooled, os_w, os_b):
    # tok: (2M, C) = [pan tokens; lms tokens]; pooled: (Np, C) window-pooled pan.
    M2, C = tok.shape
    M = M2 // 2
    C3 = qkv_w.shape[1]
    Np = pooled.shape[0]
    Co = os_w.shape[1]
    qkv, os2 = pl.pallas_call(
        _qkv_os_kernel,
        out_shape=(jax.ShapeDtypeStruct((M2, C3), jnp.float32),
                   jax.ShapeDtypeStruct((2, Np, Co), jnp.float32)),
        grid=(2,),
        in_specs=[pl.BlockSpec((M, C), lambda i: (i, 0)),
                  pl.BlockSpec((C, C3), lambda i: (0, 0)),
                  pl.BlockSpec((1, C3), lambda i: (0, 0)),
                  pl.BlockSpec((Np, C), lambda i: (0, 0)),
                  pl.BlockSpec((C, Co), lambda i: (0, 0)),
                  pl.BlockSpec((1, Co), lambda i: (0, 0))],
        out_specs=(pl.BlockSpec((M, C3), lambda i: (i, 0)),
                   pl.BlockSpec((None, Np, Co), lambda i: (i, 0, 0))),
        compiler_params=pltpu.CompilerParams(dimension_semantics=("parallel",)),
    )(tok, qkv_w, qkv_b.reshape(1, C3), pooled, os_w, os_b.reshape(1, Co))
    return qkv, os2[0]


def _grid_sample(kv, gx, gy, H, W):
    # kv: (B, nh, H*W, 2*hd); gx/gy: (B, nh, P) -> (B, nh, P, 2*hd).
    B, nh, HW, D2 = kv.shape
    P = gx.shape[-1]
    return pl.pallas_call(
        functools.partial(_grid_sample_kernel, H=H, W=W),
        out_shape=jax.ShapeDtypeStruct((B, nh, P, D2), jnp.float32),
        grid=(B,),
        in_specs=[pl.BlockSpec((None, nh, HW, D2), lambda i: (i, 0, 0, 0)),
                  pl.BlockSpec((None, nh, P), lambda i: (i, 0, 0)),
                  pl.BlockSpec((None, nh, P), lambda i: (i, 0, 0))],
        out_specs=pl.BlockSpec((None, nh, P, D2), lambda i: (i, 0, 0, 0)),
        compiler_params=pltpu.CompilerParams(dimension_semantics=("parallel",)),
    )(kv, gx, gy)


def _dual_window_attention(qp, ql, k, v, bias, scale):
    Lq, hd, N = qp.shape
    Lk = k.shape[0]

    def full(shape):
        nd = len(shape)
        return pl.BlockSpec(shape, lambda i, _nd=nd: (0,) * _nd)

    return pl.pallas_call(
        functools.partial(_dual_attn_kernel, scale=scale),
        out_shape=(jax.ShapeDtypeStruct((Lq, hd, N), jnp.float32),
                   jax.ShapeDtypeStruct((Lq, hd, N), jnp.float32)),
        grid=(1,),
        in_specs=[full((Lq, hd, N)), full((Lq, hd, N)), full((Lk, hd, N)),
                  full((Lk, hd, N)), full((Lq, Lk, N))],
        out_specs=(full((Lq, hd, N)), full((Lq, hd, N))),
    )(qp, ql, k, v, bias)


def _proj_mlp(res, attn, pw, pb, gamma, beta, w1, b1, w2, b2, eps):
    # res/attn: (2, M, C) per-branch; pw: (2, C, C); LN params: (2, 1, C).
    _, M, C = res.shape
    Hd = w1.shape[1]
    Co = w2.shape[1]
    return pl.pallas_call(
        functools.partial(_proj_mlp_kernel, eps=eps),
        out_shape=jax.ShapeDtypeStruct((2, M, Co), jnp.float32),
        grid=(2,),
        in_specs=[pl.BlockSpec((None, M, C), lambda i: (i, 0, 0)),
                  pl.BlockSpec((None, M, C), lambda i: (i, 0, 0)),
                  pl.BlockSpec((None, C, C), lambda i: (i, 0, 0)),
                  pl.BlockSpec((None, 1, C), lambda i: (i, 0, 0)),
                  pl.BlockSpec((None, 1, C), lambda i: (i, 0, 0)),
                  pl.BlockSpec((None, 1, C), lambda i: (i, 0, 0)),
                  pl.BlockSpec((C, Hd), lambda i: (0, 0)),
                  pl.BlockSpec((1, Hd), lambda i: (0, 0)),
                  pl.BlockSpec((Hd, Co), lambda i: (0, 0)),
                  pl.BlockSpec((1, Co), lambda i: (0, 0))],
        out_specs=pl.BlockSpec((None, M, Co), lambda i: (i, 0, 0)),
        compiler_params=pltpu.CompilerParams(dimension_semantics=("parallel",)),
    )(res, attn, pw, pb, gamma, beta, w1, b1, w2, b2)


# ---------------------------- module forward (glue) ---------------------------

@functools.partial(jax.jit, static_argnames=("num_heads", "window_size"))
def attention_transformer_block(pan_nchw, lms_nchw, params, *, num_heads, window_size):
    B, C, H, W = pan_nchw.shape
    nh = num_heads
    hd = C // nh
    ws = window_size
    aws = ws                                # attn_window_size=None -> attn_ws == ws
    assert H % ws == 0 and W % ws == 0
    # TODO(synk): non-divisible spatial sizes would need the module's pad/crop path.
    wnh, wnw = H // ws, W // ws
    ksz = ws // 2 * 2 + 1
    scale = hd ** (-0.5)
    eps = 1e-5
    M = B * H * W
    nwin = B * wnh * wnw
    N = nwin * nh                           # window*head lane batch for attention
    Lq = ws * ws
    Lk = aws * aws
    P = wnh * aws * wnw * aws

    pan = jnp.transpose(pan_nchw, (0, 2, 3, 1)).astype(jnp.float32)
    lms = jnp.transpose(lms_nchw, (0, 2, 3, 1)).astype(jnp.float32)
    x = jnp.concatenate([pan, lms], axis=0)                         # (2B, H, W, C)

    # --- kernel 1: x + pos(x) and norm1(x + pos(x)), both branches in one call ---
    res, n = _pos_ln(x, params["pos_w"], params["pos_b"],
                     params["norm1_w"], params["norm1_b"], ksz, eps)

    # AvgPool(ws) over normalized pan windows (input to offsets/scales convs).
    pooled = (n[:B].reshape(B, wnh, ws, wnw, ws, C).mean(axis=(2, 4))
              .reshape(B * wnh * wnw, C))

    # --- kernel 2: shared-weight qkv on [pan; lms] tokens + fused offsets/scales ---
    os_w = jnp.concatenate([params["off_w"], params["scl_w"]], axis=1)   # (C, 4*nh)
    os_b = jnp.concatenate([params["off_b"], params["scl_b"]], axis=0)
    qkv_tok, os = _qkv_offscale(n.reshape(2 * M, C), params["qkv_w"],
                                params["qkv_b"], pooled, os_w, os_b)
    off = (os[:, :2 * nh].reshape(B, wnh, wnw, nh, 2)
           .transpose(0, 3, 1, 2, 4).reshape(B * nh, wnh, wnw, 2))
    scl = (os[:, 2 * nh:].reshape(B, wnh, wnw, nh, 2)
           .transpose(0, 3, 1, 2, 4).reshape(B * nh, wnh, wnw, 2))
    off_x = off[..., 0] / wnw
    off_y = off[..., 1] / wnh
    scl_x = scl[..., 0]
    scl_y = scl[..., 1]

    base_h = jnp.arange(aws, dtype=jnp.float32) * 2.0 * ws / aws / (H - 1)
    base_h = base_h - base_h.mean()
    base_w = jnp.arange(aws, dtype=jnp.float32) * 2.0 * ws / aws / (W - 1)
    base_w = base_w - base_w.mean()
    # restart_regression=None -> window-center image reference is NOT added (as in PyTorch).
    gx = (base_w[None, None, None, None, :] * (1.0 + scl_x[:, :, None, :, None])
          + off_x[:, :, None, :, None])
    gy = (base_h[None, None, :, None, None] * (1.0 + scl_y[:, :, None, :, None])
          + off_y[:, :, None, :, None])
    gx = jnp.broadcast_to(gx, (B * nh, wnh, aws, wnw, aws)).reshape(B, nh, P)
    gy = jnp.broadcast_to(gy, (B * nh, wnh, aws, wnw, aws)).reshape(B, nh, P)

    # qkv channel split matches PyTorch's channel-first reshape (3, nh, hd).
    qkv = qkv_tok.reshape(2, B, H, W, 3, nh, hd)
    q_pan = qkv[0, :, :, :, 0]                                      # (B, H, W, nh, hd)
    q_lms = qkv[1, :, :, :, 0]
    kv = jnp.concatenate([qkv[0, :, :, :, 1], qkv[0, :, :, :, 2]], axis=-1)
    kv = kv.transpose(0, 3, 1, 2, 4).reshape(B, nh, H * W, 2 * hd)  # K||V per (b, head)

    # --- kernel 3: deformable bilinear sampling of K, V ---
    kv_sel = _grid_sample(kv, gx, gy, H, W)                         # (B, nh, P, 2hd)

    # window partition into the lanes-batched attention layout (L, hd, N),
    # lane index = ((b*wnh + wh)*wnw + ww)*nh + head.
    def q_lanes(qt):
        return (qt.reshape(B, wnh, ws, wnw, ws, nh, hd)
                  .transpose(2, 4, 6, 0, 1, 3, 5)
                  .reshape(Lq, hd, N))

    kv_l = (kv_sel.reshape(B, nh, wnh, aws, wnw, aws, 2 * hd)
                  .transpose(3, 5, 6, 0, 2, 4, 1)
                  .reshape(Lk, 2 * hd, N))
    k_l = kv_l[:, :hd, :]
    v_l = kv_l[:, hd:, :]
    qp_l = q_lanes(q_pan)
    ql_l = q_lanes(q_lms)

    # relative position bias (head-dependent only), replicated over windows on lanes.
    # note: table is sized from ws; valid while attn_ws == ws (true for this config).
    ch, cw = jnp.meshgrid(jnp.arange(aws), jnp.arange(aws), indexing="ij")
    flat = jnp.stack([ch, cw]).reshape(2, -1)
    rel = (flat[:, :, None] - flat[:, None, :]).transpose(1, 2, 0) + (aws - 1)
    rp_idx = rel[:, :, 0] * (2 * aws - 1) + rel[:, :, 1]
    bias3 = params["rel_bias_table"][rp_idx.reshape(-1)].reshape(Lq, Lk, nh)
    bias_l = jnp.broadcast_to(bias3[:, :, None, :], (Lq, Lk, nwin, nh)).reshape(Lq, Lk, N)

    # --- kernel 4: dual-branch window attention (shared K/V/bias) ---
    op_l, ol_l = _dual_window_attention(qp_l, ql_l, k_l, v_l, bias_l, scale)

    def lanes_to_tokens(o):
        return (o.reshape(ws, ws, hd, B, wnh, wnw, nh)
                 .transpose(3, 4, 0, 5, 1, 6, 2)
                 .reshape(M, C))

    attn_tok = jnp.stack([lanes_to_tokens(op_l), lanes_to_tokens(ol_l)], axis=0)

    # --- kernel 5: proj (pan only; identity for lms, as in PyTorch where out_lms
    # is returned un-projected) + residual + norm3/norm3_2 LN + shared MLP + residual.
    eye = jnp.eye(C, dtype=jnp.float32)
    pw = jnp.stack([params["proj_w"], eye], axis=0)
    pb = jnp.stack([params["proj_b"], jnp.zeros((C,), jnp.float32)], axis=0).reshape(2, 1, C)
    g3 = jnp.stack([params["norm3_w"], params["norm3_2_w"]], axis=0).reshape(2, 1, C)
    b3 = jnp.stack([params["norm3_b"], params["norm3_2_b"]], axis=0).reshape(2, 1, C)
    y = _proj_mlp(res.reshape(2, M, C), attn_tok, pw, pb, g3, b3,
                  params["fc1_w"], params["fc1_b"].reshape(1, -1),
                  params["fc2_w"], params["fc2_b"].reshape(1, -1), eps)

    out_dim = params["fc2_w"].shape[1]
    pan_atten = y[0].reshape(B, H, W, out_dim)
    lms_atten = y[1].reshape(B, H, W, out_dim)
    return (jnp.transpose(pan_atten, (0, 3, 1, 2)),
            jnp.transpose(lms_atten, (0, 3, 1, 2)))


# -------------------------------- parameter init ------------------------------

def init_params(key, dim, num_heads, window_size, mlp_hidden, out_dim):
    ks = jax.random.split(key, 21)

    def nrm(k, shape, std=0.02):
        return jax.random.normal(k, shape, jnp.float32) * std

    ksz = window_size // 2 * 2 + 1
    return dict(
        pos_w=nrm(ks[0], (ksz * ksz, dim)),                  # depthwise conv (ky*kx, C)
        pos_b=nrm(ks[1], (dim,)),
        norm1_w=1.0 + nrm(ks[2], (dim,)),
        norm1_b=nrm(ks[3], (dim,)),
        off_w=nrm(ks[4], (dim, 2 * num_heads)),
        off_b=nrm(ks[5], (2 * num_heads,)),
        scl_w=nrm(ks[6], (dim, 2 * num_heads)),
        scl_b=nrm(ks[7], (2 * num_heads,)),
        qkv_w=nrm(ks[8], (dim, 3 * dim)),
        qkv_b=nrm(ks[9], (3 * dim,)),
        proj_w=nrm(ks[10], (dim, dim)),
        proj_b=nrm(ks[11], (dim,)),
        rel_bias_table=nrm(ks[12], ((2 * window_size - 1) ** 2, num_heads)),
        norm3_w=1.0 + nrm(ks[13], (dim,)),
        norm3_b=nrm(ks[14], (dim,)),
        norm3_2_w=1.0 + nrm(ks[15], (dim,)),
        norm3_2_b=nrm(ks[16], (dim,)),
        fc1_w=nrm(ks[17], (dim, mlp_hidden)),
        fc1_b=nrm(ks[18], (mlp_hidden,)),
        fc2_w=nrm(ks[19], (mlp_hidden, out_dim)),
        fc2_b=nrm(ks[20], (out_dim,)),
    )


if __name__ == "__main__":
    B, dim, H, W = 2, 32, 8, 8
    num_heads, window_size = 4, 2
    out_dim = dim
    mlp_hidden = int(dim * 4.0)

    key = jax.random.PRNGKey(0)
    kp, kx, kl = jax.random.split(key, 3)
    params = init_params(kp, dim, num_heads, window_size, mlp_hidden, out_dim)
    pan = jax.random.normal(kx, (B, dim, H, W), jnp.float32)
    lms = jax.random.normal(kl, (B, dim, H, W), jnp.float32)

    pan_out, lms_out = attention_transformer_block(
        pan, lms, params, num_heads=num_heads, window_size=window_size)
    jax.block_until_ready((pan_out, lms_out))
    assert pan_out.shape == (B, out_dim, H, W)
    assert lms_out.shape == (B, out_dim, H, W)
    print("KERNEL_OK")
</pallas_src>

<mosaic_0001>
module attributes {stable_mosaic.version = 11 : i64} {
  func.func @_pos_ln_kernel(%arg0: i32, %arg1: memref<2x10x10x32xf32, #tpu.memory_space<vmem>>, %arg2: memref<9x32xf32, #tpu.memory_space<vmem>>, %arg3: memref<1x32xf32, #tpu.memory_space<vmem>>, %arg4: memref<1x32xf32, #tpu.memory_space<vmem>>, %arg5: memref<1x32xf32, #tpu.memory_space<vmem>>, %arg6: memref<2x8x8x32xf32, #tpu.memory_space<vmem>>, %arg7: memref<2x8x8x32xf32, #tpu.memory_space<vmem>>) attributes {dimension_semantics = [#tpu.dimension_semantics<parallel>], iteration_bounds = array<i64: 2>, scalar_prefetch = 0 : i64, scratch_operands = 0 : i64, tpu.core_type = #tpu.core_type<tc>, window_params = [{transform_indices = @transform_0, window_bounds = array<i64: 2, 10, 10, 32>}, {pipeline_mode = #tpu.pipeline_mode<synchronous>, transform_indices = @transform_1, window_bounds = array<i64: 9, 32>}, {pipeline_mode = #tpu.pipeline_mode<synchronous>, transform_indices = @transform_2, window_bounds = array<i64: 1, 32>}, {pipeline_mode = #tpu.pipeline_mode<synchronous>, transform_indices = @transform_3, window_bounds = array<i64: 1, 32>}, {pipeline_mode = #tpu.pipeline_mode<synchronous>, transform_indices = @transform_4, window_bounds = array<i64: 1, 32>}, {transform_indices = @transform_5, window_bounds = array<i64: 2, 8, 8, 32>}, {transform_indices = @transform_6, window_bounds = array<i64: 2, 8, 8, 32>}]} {
    %c0 = arith.constant 0 : index
    %c0_0 = arith.constant 0 : index
    %c0_1 = arith.constant 0 : index
    %c0_2 = arith.constant 0 : index
    %0 = vector.load %arg1[%c0, %c0_0, %c0_1, %c0_2] : memref<2x10x10x32xf32, #tpu.memory_space<vmem>>, vector<2x10x10x32xf32>
    %c0_3 = arith.constant 0 : index
    %c0_4 = arith.constant 0 : index
    %1 = vector.load %arg2[%c0_3, %c0_4] : memref<9x32xf32, #tpu.memory_space<vmem>>, vector<9x32xf32>
    %2 = vector.extract_strided_slice %0 {offsets = [0, 1, 1, 0], sizes = [2, 8, 8, 32], strides = [1, 1, 1, 1]} : vector<2x10x10x32xf32> to vector<2x8x8x32xf32>
    %c0_5 = arith.constant 0 : index
    %c0_6 = arith.constant 0 : index
    %3 = vector.load %arg3[%c0_5, %c0_6] : memref<1x32xf32, #tpu.memory_space<vmem>>, vector<1x32xf32>
    %4 = vector.shape_cast %3 : vector<1x32xf32> to vector<1x1x1x32xf32>
    %5 = vector.broadcast %4 : vector<1x1x1x32xf32> to vector<2x8x8x32xf32>
    %6 = arith.addf %2, %5 : vector<2x8x8x32xf32>
    %7 = vector.extract_strided_slice %1 {offsets = [0, 0], sizes = [1, 32], strides = [1, 1]} : vector<9x32xf32> to vector<1x32xf32>
    %8 = vector.shape_cast %7 : vector<1x32xf32> to vector<1x1x1x32xf32>
    %9 = vector.extract_strided_slice %0 {offsets = [0, 0, 0, 0], sizes = [2, 8, 8, 32], strides = [1, 1, 1, 1]} : vector<2x10x10x32xf32> to vector<2x8x8x32xf32>
    %10 = vector.broadcast %8 : vector<1x1x1x32xf32> to vector<2x8x8x32xf32>
    %11 = arith.mulf %9, %10 : vector<2x8x8x32xf32>
    %12 = arith.addf %6, %11 : vector<2x8x8x32xf32>
    %13 = vector.extract_strided_slice %1 {offsets = [1, 0], sizes = [1, 32], strides = [1, 1]} : vector<9x32xf32> to vector<1x32xf32>
    %14 = vector.shape_cast %13 : vector<1x32xf32> to vector<1x1x1x32xf32>
    %15 = vector.extract_strided_slice %0 {offsets = [0, 0, 1, 0], sizes = [2, 8, 8, 32], strides = [1, 1, 1, 1]} : vector<2x10x10x32xf32> to vector<2x8x8x32xf32>
    %16 = vector.broadcast %14 : vector<1x1x1x32xf32> to vector<2x8x8x32xf32>
    %17 = arith.mulf %15, %16 : vector<2x8x8x32xf32>
    %18 = arith.addf %12, %17 : vector<2x8x8x32xf32>
    %19 = vector.extract_strided_slice %1 {offsets = [2, 0], sizes = [1, 32], strides = [1, 1]} : vector<9x32xf32> to vector<1x32xf32>
    %20 = vector.shape_cast %19 : vector<1x32xf32> to vector<1x1x1x32xf32>
    %21 = vector.extract_strided_slice %0 {offsets = [0, 0, 2, 0], sizes = [2, 8, 8, 32], strides = [1, 1, 1, 1]} : vector<2x10x10x32xf32> to vector<2x8x8x32xf32>
    %22 = vector.broadcast %20 : vector<1x1x1x32xf32> to vector<2x8x8x32xf32>
    %23 = arith.mulf %21, %22 : vector<2x8x8x32xf32>
    %24 = arith.addf %18, %23 : vector<2x8x8x32xf32>
    %25 = vector.extract_strided_slice %1 {offsets = [3, 0], sizes = [1, 32], strides = [1, 1]} : vector<9x32xf32> to vector<1x32xf32>
    %26 = vector.shape_cast %25 : vector<1x32xf32> to vector<1x1x1x32xf32>
    %27 = vector.extract_strided_slice %0 {offsets = [0, 1, 0, 0], sizes = [2, 8, 8, 32], strides = [1, 1, 1, 1]} : vector<2x10x10x32xf32> to vector<2x8x8x32xf32>
    %28 = vector.broadcast %26 : vector<1x1x1x32xf32> to vector<2x8x8x32xf32>
    %29 = arith.mulf %27, %28 : vector<2x8x8x32xf32>
    %30 = arith.addf %24, %29 : vector<2x8x8x32xf32>
    %31 = vector.extract_strided_slice %1 {offsets = [4, 0], sizes = [1, 32], strides = [1, 1]} : vector<9x32xf32> to vector<1x32xf32>
    %32 = vector.shape_cast %31 : vector<1x32xf32> to vector<1x1x1x32xf32>
    %33 = vector.extract_strided_slice %0 {offsets = [0, 1, 1, 0], sizes = [2, 8, 8, 32], strides = [1, 1, 1, 1]} : vector<2x10x10x32xf32> to vector<2x8x8x32xf32>
    %34 = vector.broadcast %32 : vector<1x1x1x32xf32> to vector<2x8x8x32xf32>
    %35 = arith.mulf %33, %34 : vector<2x8x8x32xf32>
    %36 = arith.addf %30, %35 : vector<2x8x8x32xf32>
    %37 = vector.extract_strided_slice %1 {offsets = [5, 0], sizes = [1, 32], strides = [1, 1]} : vector<9x32xf32> to vector<1x32xf32>
    %38 = vector.shape_cast %37 : vector<1x32xf32> to vector<1x1x1x32xf32>
    %39 = vector.extract_strided_slice %0 {offsets = [0, 1, 2, 0], sizes = [2, 8, 8, 32], strides = [1, 1, 1, 1]} : vector<2x10x10x32xf32> to vector<2x8x8x32xf32>
    %40 = vector.broadcast %38 : vector<1x1x1x32xf32> to vector<2x8x8x32xf32>
    %41 = arith.mulf %39, %40 : vector<2x8x8x32xf32>
    %42 = arith.addf %36, %41 : vector<2x8x8x32xf32>
    %43 = vector.extract_strided_slice %1 {offsets = [6, 0], sizes = [1, 32], strides = [1, 1]} : vector<9x32xf32> to vector<1x32xf32>
    %44 = vector.shape_cast %43 : vector<1x32xf32> to vector<1x1x1x32xf32>
    %45 = vector.extract_strided_slice %0 {offsets = [0, 2, 0, 0], sizes = [2, 8, 8, 32], strides = [1, 1, 1, 1]} : vector<2x10x10x32xf32> to vector<2x8x8x32xf32>
    %46 = vector.broadcast %44 : vector<1x1x1x32xf32> to vector<2x8x8x32xf32>
    %47 = arith.mulf %45, %46 : vector<2x8x8x32xf32>
    %48 = arith.addf %42, %47 : vector<2x8x8x32xf32>
    %49 = vector.extract_strided_slice %1 {offsets = [7, 0], sizes = [1, 32], strides = [1, 1]} : vector<9x32xf32> to vector<1x32xf32>
    %50 = vector.shape_cast %49 : vector<1x32xf32> to vector<1x1x1x32xf32>
    %51 = vector.extract_strided_slice %0 {offsets = [0, 2, 1, 0], sizes = [2, 8, 8, 32], strides = [1, 1, 1, 1]} : vector<2x10x10x32xf32> to vector<2x8x8x32xf32>
    %52 = vector.broadcast %50 : vector<1x1x1x32xf32> to vector<2x8x8x32xf32>
    %53 = arith.mulf %51, %52 : vector<2x8x8x32xf32>
    %54 = arith.addf %48, %53 : vector<2x8x8x32xf32>
    %55 = vector.extract_strided_slice %1 {offsets = [8, 0], sizes = [1, 32], strides = [1, 1]} : vector<9x32xf32> to vector<1x32xf32>
    %56 = vector.shape_cast %55 : vector<1x32xf32> to vector<1x1x1x32xf32>
    %57 = vector.extract_strided_slice %0 {offsets = [0, 2, 2, 0], sizes = [2, 8, 8, 32], strides = [1, 1, 1, 1]} : vector<2x10x10x32xf32> to vector<2x8x8x32xf32>
    %58 = vector.broadcast %56 : vector<1x1x1x32xf32> to vector<2x8x8x32xf32>
    %59 = arith.mulf %57, %58 : vector<2x8x8x32xf32>
    %60 = arith.addf %54, %59 : vector<2x8x8x32xf32>
    %c0_7 = arith.constant 0 : index
    %c0_8 = arith.constant 0 : index
    %c0_9 = arith.constant 0 : index
    %c0_10 = arith.constant 0 : index
    %61 = vector.load %arg6[%c0_7, %c0_8, %c0_9, %c0_10] : memref<2x8x8x32xf32, #tpu.memory_space<vmem>>, vector<2x8x8x32xf32>
    tpu.vector_store %arg6[%c0_7, %c0_8, %c0_9, %c0_10], %60 {strides = array<i32>} : memref<2x8x8x32xf32, #tpu.memory_space<vmem>>, vector<2x8x8x32xf32>,
    %c0_11 = arith.constant 0 : index
    %c0_12 = arith.constant 0 : index
    %62 = vector.load %arg4[%c0_11, %c0_12] : memref<1x32xf32, #tpu.memory_space<vmem>>, vector<1x32xf32>
    %63 = vector.shape_cast %62 : vector<1x32xf32> to vector<1x1x1x32xf32>
    %c0_13 = arith.constant 0 : index
    %c0_14 = arith.constant 0 : index
    %64 = vector.load %arg5[%c0_13, %c0_14] : memref<1x32xf32, #tpu.memory_space<vmem>>, vector<1x32xf32>
    %65 = vector.shape_cast %64 : vector<1x32xf32> to vector<1x1x1x32xf32>
    %cst = arith.constant dense<0.000000e+00> : vector<2x8x8xf32>
    %66 = vector.multi_reduction <add>, %60, %cst [3] : vector<2x8x8x32xf32> to vector<2x8x8xf32>
    %67 = vector.shape_cast %66 : vector<2x8x8xf32> to vector<2x8x8x1xf32>
    %cst_15 = arith.constant 3.200000e+01 : f32
    %68 = vector.broadcast %cst_15 : f32 to vector<2x8x8x1xf32>
    %69 = arith.divf %67, %68 : vector<2x8x8x1xf32>
    %70 = vector.broadcast %69 : vector<2x8x8x1xf32> to vector<2x8x8x32xf32>
    %71 = arith.subf %60, %70 : vector<2x8x8x32xf32>
    %72 = arith.mulf %71, %71 : vector<2x8x8x32xf32>
    %cst_16 = arith.constant dense<0.000000e+00> : vector<2x8x8xf32>
    %73 = vector.multi_reduction <add>, %72, %cst_16 [3] : vector<2x8x8x32xf32> to vector<2x8x8xf32>
    %74 = vector.shape_cast %73 : vector<2x8x8xf32> to vector<2x8x8x1xf32>
    %cst_17 = arith.constant 3.200000e+01 : f32
    %75 = vector.broadcast %cst_17 : f32 to vector<2x8x8x1xf32>
    %76 = arith.divf %74, %75 : vector<2x8x8x1xf32>
    %cst_18 = arith.constant 9.99999974E-6 : f32
    %77 = vector.broadcast %cst_18 : f32 to vector<2x8x8x1xf32>
    %78 = arith.addf %76, %77 : vector<2x8x8x1xf32>
    %79 = math.sqrt %78 : vector<2x8x8x1xf32>
    %80 = vector.broadcast %79 : vector<2x8x8x1xf32> to vector<2x8x8x32xf32>
    %81 = arith.divf %71, %80 : vector<2x8x8x32xf32>
    %82 = vector.broadcast %63 : vector<1x1x1x32xf32> to vector<2x8x8x32xf32>
    %83 = arith.mulf %82, %81 : vector<2x8x8x32xf32>
    %84 = vector.broadcast %65 : vector<1x1x1x32xf32> to vector<2x8x8x32xf32>
    %85 = arith.addf %83, %84 : vector<2x8x8x32xf32>
    %c0_19 = arith.constant 0 : index
    %c0_20 = arith.constant 0 : index
    %c0_21 = arith.constant 0 : index
    %c0_22 = arith.constant 0 : index
    %86 = vector.load %arg7[%c0_19, %c0_20, %c0_21, %c0_22] : memref<2x8x8x32xf32, #tpu.memory_space<vmem>>, vector<2x8x8x32xf32>
    tpu.vector_store %arg7[%c0_19, %c0_20, %c0_21, %c0_22], %85 {strides = array<i32>} : memref<2x8x8x32xf32, #tpu.memory_space<vmem>>, vector<2x8x8x32xf32>,
    return
  }
  func.func @transform_0(%arg0: i32) -> (i32, i32, i32, i32) {
    %c0_i32 = arith.constant 0 : i32
    %c0_i32_0 = arith.constant 0 : i32
    %c0_i32_1 = arith.constant 0 : i32
    %c0_i32_2 = arith.constant 0 : i32
    return %arg0, %c0_i32, %c0_i32_0, %c0_i32_1 : i32, i32, i32, i32
  }
  func.func @transform_1(%arg0: i32) -> (i32, i32) {
    %c0_i32 = arith.constant 0 : i32
    %c0_i32_0 = arith.constant 0 : i32
    %c0_i32_1 = arith.constant 0 : i32
    return %c0_i32, %c0_i32_0 : i32, i32
  }
  func.func @transform_2(%arg0: i32) -> (i32, i32) {
    %c0_i32 = arith.constant 0 : i32
    %c0_i32_0 = arith.constant 0 : i32
    %c0_i32_1 = arith.constant 0 : i32
    return %c0_i32, %c0_i32_0 : i32, i32
  }
  func.func @transform_3(%arg0: i32) -> (i32, i32) {
    %c0_i32 = arith.constant 0 : i32
    %c0_i32_0 = arith.constant 0 : i32
    %c0_i32_1 = arith.constant 0 : i32
    return %c0_i32, %c0_i32_0 : i32, i32
  }
  func.func @transform_4(%arg0: i32) -> (i32, i32) {
    %c0_i32 = arith.constant 0 : i32
    %c0_i32_0 = arith.constant 0 : i32
    %c0_i32_1 = arith.constant 0 : i32
    return %c0_i32, %c0_i32_0 : i32, i32
  }
  func.func @transform_5(%arg0: i32) -> (i32, i32, i32, i32) {
    %c0_i32 = arith.constant 0 : i32
    %c0_i32_0 = arith.constant 0 : i32
    %c0_i32_1 = arith.constant 0 : i32
    %c0_i32_2 = arith.constant 0 : i32
    return %arg0, %c0_i32, %c0_i32_0, %c0_i32_1 : i32, i32, i32, i32
  }
  func.func @transform_6(%arg0: i32) -> (i32, i32, i32, i32) {
    %c0_i32 = arith.constant 0 : i32
    %c0_i32_0 = arith.constant 0 : i32
    %c0_i32_1 = arith.constant 0 : i32
    %c0_i32_2 = arith.constant 0 : i32
    return %arg0, %c0_i32, %c0_i32_0, %c0_i32_1 : i32, i32, i32, i32
  }
}

module attributes {stable_mosaic.version = 11 : i64} {
  func.func @_qkv_os_kernel(%arg0: i32, %arg1: memref<128x32xf32, #tpu.memory_space<vmem>>, %arg2: memref<32x96xf32, #tpu.memory_space<vmem>>, %arg3: memref<1x96xf32, #tpu.memory_space<vmem>>, %arg4: memref<32x32xf32, #tpu.memory_space<vmem>>, %arg5: memref<32x16xf32, #tpu.memory_space<vmem>>, %arg6: memref<1x16xf32, #tpu.memory_space<vmem>>, %arg7: memref<128x96xf32, #tpu.memory_space<vmem>>, %arg8: memref<1x32x16xf32, #tpu.memory_space<vmem>>) attributes {dimension_semantics = [#tpu.dimension_semantics<parallel>], iteration_bounds = array<i64: 2>, scalar_prefetch = 0 : i64, scratch_operands = 0 : i64, tpu.core_type = #tpu.core_type<tc>, window_params = [{transform_indices = @transform_0, window_bounds = array<i64: 128, 32>}, {pipeline_mode = #tpu.pipeline_mode<synchronous>, transform_indices = @transform_1, window_bounds = array<i64: 32, 96>}, {pipeline_mode = #tpu.pipeline_mode<synchronous>, transform_indices = @transform_2, window_bounds = array<i64: 1, 96>}, {pipeline_mode = #tpu.pipeline_mode<synchronous>, transform_indices = @transform_3, window_bounds = array<i64: 32, 32>}, {pipeline_mode = #tpu.pipeline_mode<synchronous>, transform_indices = @transform_4, window_bounds = array<i64: 32, 16>}, {pipeline_mode = #tpu.pipeline_mode<synchronous>, transform_indices = @transform_5, window_bounds = array<i64: 1, 16>}, {transform_indices = @transform_6, window_bounds = array<i64: 128, 96>}, {transform_indices = @transform_7, window_bounds = array<i64: 1, 32, 16>}]} {
    %c0 = arith.constant 0 : index
    %c0_0 = arith.constant 0 : index
    %0 = vector.load %arg1[%c0, %c0_0] : memref<128x32xf32, #tpu.memory_space<vmem>>, vector<128x32xf32>
    %c0_1 = arith.constant 0 : index
    %c0_2 = arith.constant 0 : index
    %1 = vector.load %arg2[%c0_1, %c0_2] : memref<32x96xf32, #tpu.memory_space<vmem>>, vector<32x96xf32>
    %cst = arith.constant dense<0.000000e+00> : vector<128x96xf32>
    %2 = tpu.matmul %0, %1, %cst {dimension_numbers = #tpu.dot_dimension_numbers<[1], [0], [0], [1], [0, 0, 1, 1], [], []>} : vector<128x32xf32>, vector<32x96xf32>, vector<128x96xf32> -> vector<128x96xf32>
    %c0_3 = arith.constant 0 : index
    %c0_4 = arith.constant 0 : index
    %3 = vector.load %arg3[%c0_3, %c0_4] : memref<1x96xf32, #tpu.memory_space<vmem>>, vector<1x96xf32>
    %4 = vector.broadcast %3 : vector<1x96xf32> to vector<128x96xf32>
    %5 = arith.addf %2, %4 : vector<128x96xf32>
    %c0_5 = arith.constant 0 : index
    %c0_6 = arith.constant 0 : index
    %6 = vector.load %arg7[%c0_5, %c0_6] : memref<128x96xf32, #tpu.memory_space<vmem>>, vector<128x96xf32>
    tpu.vector_store %arg7[%c0_5, %c0_6], %5 {strides = array<i32>} : memref<128x96xf32, #tpu.memory_space<vmem>>, vector<128x96xf32>,
    %c0_7 = arith.constant 0 : index
    %c0_8 = arith.constant 0 : index
    %7 = vector.load %arg4[%c0_7, %c0_8] : memref<32x32xf32, #tpu.memory_space<vmem>>, vector<32x32xf32>
    %cst_9 = arith.constant 0.000000e+00 : f32
    %8 = vector.broadcast %cst_9 : f32 to vector<32x32xf32>
    %9 = arith.cmpf oge, %7, %8 : vector<32x32xf32>
    %cst_10 = arith.constant 0.00999999977 : f32
    %10 = vector.broadcast %cst_10 : f32 to vector<32x32xf32>
    %11 = arith.mulf %10, %7 : vector<32x32xf32>
    %12 = arith.select %9, %7, %11 : vector<32x32xi1>, vector<32x32xf32>
    %c0_11 = arith.constant 0 : index
    %c0_12 = arith.constant 0 : index
    %13 = vector.load %arg5[%c0_11, %c0_12] : memref<32x16xf32, #tpu.memory_space<vmem>>, vector<32x16xf32>
    %cst_13 = arith.constant dense<0.000000e+00> : vector<32x16xf32>
    %14 = tpu.matmul %12, %13, %cst_13 {dimension_numbers = #tpu.dot_dimension_numbers<[1], [0], [0], [1], [0, 0, 1, 1], [], []>} : vector<32x32xf32>, vector<32x16xf32>, vector<32x16xf32> -> vector<32x16xf32>
    %c0_14 = arith.constant 0 : index
    %c0_15 = arith.constant 0 : index
    %15 = vector.load %arg6[%c0_14, %c0_15] : memref<1x16xf32, #tpu.memory_space<vmem>>, vector<1x16xf32>
    %16 = vector.broadcast %15 : vector<1x16xf32> to vector<32x16xf32>
    %17 = arith.addf %14, %16 : vector<32x16xf32>
    %c0_16 = arith.constant 0 : index
    %c0_17 = arith.constant 0 : index
    %c0_18 = arith.constant 0 : index
    %18 = vector.load %arg8[%c0_16, %c0_17, %c0_18] : memref<1x32x16xf32, #tpu.memory_space<vmem>>, vector<1x32x16xf32>
    %19 = vector.shape_cast %18 : vector<1x32x16xf32> to vector<32x16xf32>
    %20 = vector.shape_cast %17 : vector<32x16xf32> to vector<1x32x16xf32>
    tpu.vector_store %arg8[%c0_16, %c0_17, %c0_18], %20 {strides = array<i32>} : memref<1x32x16xf32, #tpu.memory_space<vmem>>, vector<1x32x16xf32>,
    return
  }
  func.func @transform_0(%arg0: i32) -> (i32, i32) {
    %c0_i32 = arith.constant 0 : i32
    %c0_i32_0 = arith.constant 0 : i32
    return %arg0, %c0_i32 : i32, i32
  }
  func.func @transform_1(%arg0: i32) -> (i32, i32) {
    %c0_i32 = arith.constant 0 : i32
    %c0_i32_0 = arith.constant 0 : i32
    %c0_i32_1 = arith.constant 0 : i32
    return %c0_i32, %c0_i32_0 : i32, i32
  }
  func.func @transform_2(%arg0: i32) -> (i32, i32) {
    %c0_i32 = arith.constant 0 : i32
    %c0_i32_0 = arith.constant 0 : i32
    %c0_i32_1 = arith.constant 0 : i32
    return %c0_i32, %c0_i32_0 : i32, i32
  }
  func.func @transform_3(%arg0: i32) -> (i32, i32) {
    %c0_i32 = arith.constant 0 : i32
    %c0_i32_0 = arith.constant 0 : i32
    %c0_i32_1 = arith.constant 0 : i32
    return %c0_i32, %c0_i32_0 : i32, i32
  }
  func.func @transform_4(%arg0: i32) -> (i32, i32) {
    %c0_i32 = arith.constant 0 : i32
    %c0_i32_0 = arith.constant 0 : i32
    %c0_i32_1 = arith.constant 0 : i32
    return %c0_i32, %c0_i32_0 : i32, i32
  }
  func.func @transform_5(%arg0: i32) -> (i32, i32) {
    %c0_i32 = arith.constant 0 : i32
    %c0_i32_0 = arith.constant 0 : i32
    %c0_i32_1 = arith.constant 0 : i32
    return %c0_i32, %c0_i32_0 : i32, i32
  }
  func.func @transform_6(%arg0: i32) -> (i32, i32) {
    %c0_i32 = arith.constant 0 : i32
    %c0_i32_0 = arith.constant 0 : i32
    return %arg0, %c0_i32 : i32, i32
  }
  func.func @transform_7(%arg0: i32) -> (i32, i32, i32) {
    %c0_i32 = arith.constant 0 : i32
    %c0_i32_0 = arith.constant 0 : i32
    %c0_i32_1 = arith.constant 0 : i32
    return %arg0, %c0_i32, %c0_i32_0 : i32, i32, i32
  }
}

module attributes {stable_mosaic.version = 11 : i64} {
  func.func @_grid_sample_kernel(%arg0: i32, %arg1: memref<1x4x64x16xf32, #tpu.memory_space<vmem>>, %arg2: memref<1x4x64xf32, #tpu.memory_space<vmem>>, %arg3: memref<1x4x64xf32, #tpu.memory_space<vmem>>, %arg4: memref<1x4x64x16xf32, #tpu.memory_space<vmem>>) attributes {dimension_semantics = [#tpu.dimension_semantics<parallel>], iteration_bounds = array<i64: 2>, scalar_prefetch = 0 : i64, scratch_operands = 0 : i64, tpu.core_type = #tpu.core_type<tc>, window_params = [{transform_indices = @transform_0, window_bounds = array<i64: 1, 4, 64, 16>}, {transform_indices = @transform_1, window_bounds = array<i64: 1, 4, 64>}, {transform_indices = @transform_2, window_bounds = array<i64: 1, 4, 64>}, {transform_indices = @transform_3, window_bounds = array<i64: 1, 4, 64, 16>}]} {
    %c0 = arith.constant 0 : index
    %c0_0 = arith.constant 0 : index
    %c0_1 = arith.constant 0 : index
    %0 = vector.load %arg2[%c0, %c0_0, %c0_1] : memref<1x4x64xf32, #tpu.memory_space<vmem>>, vector<1x4x64xf32>
    %1 = vector.shape_cast %0 : vector<1x4x64xf32> to vector<4x64xf32>
    %c0_2 = arith.constant 0 : index
    %c0_3 = arith.constant 0 : index
    %c0_4 = arith.constant 0 : index
    %2 = vector.load %arg3[%c0_2, %c0_3, %c0_4] : memref<1x4x64xf32, #tpu.memory_space<vmem>>, vector<1x4x64xf32>
    %3 = vector.shape_cast %2 : vector<1x4x64xf32> to vector<4x64xf32>
    %cst = arith.constant 1.000000e+00 : f32
    %4 = vector.broadcast %cst : f32 to vector<4x64xf32>
    %5 = arith.addf %1, %4 : vector<4x64xf32>
    %cst_5 = arith.constant 3.500000e+00 : f32
    %6 = vector.broadcast %cst_5 : f32 to vector<4x64xf32>
    %7 = arith.mulf %5, %6 : vector<4x64xf32>
    %cst_6 = arith.constant 1.000000e+00 : f32
    %8 = vector.broadcast %cst_6 : f32 to vector<4x64xf32>
    %9 = arith.addf %3, %8 : vector<4x64xf32>
    %cst_7 = arith.constant 3.500000e+00 : f32
    %10 = vector.broadcast %cst_7 : f32 to vector<4x64xf32>
    %11 = arith.mulf %9, %10 : vector<4x64xf32>
    %12 = math.floor %7 : vector<4x64xf32>
    %13 = math.floor %11 : vector<4x64xf32>
    %14 = arith.subf %7, %12 : vector<4x64xf32>
    %cst_8 = arith.constant 1.000000e+00 : f32
    %15 = vector.broadcast %cst_8 : f32 to vector<4x64xf32>
    %16 = arith.subf %15, %14 : vector<4x64xf32>
    %17 = arith.subf %11, %13 : vector<4x64xf32>
    %cst_9 = arith.constant 1.000000e+00 : f32
    %18 = vector.broadcast %cst_9 : f32 to vector<4x64xf32>
    %19 = arith.subf %18, %17 : vector<4x64xf32>
    %20 = tpu.iota {dimensions = array<i32: 2>} : vector<4x64x64xi32>
    %21 = arith.sitofp %20 : vector<4x64x64xi32> to vector<4x64x64xf32>
    %cst_10 = arith.constant 5.000000e-01 : f32
    %22 = vector.broadcast %cst_10 : f32 to vector<4x64x64xf32>
    %23 = arith.addf %21, %22 : vector<4x64x64xf32>
    %cst_11 = arith.constant 1.250000e-01 : f32
    %24 = vector.broadcast %cst_11 : f32 to vector<4x64x64xf32>
    %25 = arith.mulf %23, %24 : vector<4x64x64xf32>
    %26 = math.floor %25 : vector<4x64x64xf32>
    %cst_12 = arith.constant 8.000000e+00 : f32
    %27 = vector.broadcast %cst_12 : f32 to vector<4x64x64xf32>
    %28 = arith.mulf %26, %27 : vector<4x64x64xf32>
    %29 = arith.subf %21, %28 : vector<4x64x64xf32>
    %30 = vector.shape_cast %16 : vector<4x64xf32> to vector<4x64x1xf32>
    %31 = vector.shape_cast %12 : vector<4x64xf32> to vector<4x64x1xf32>
    %32 = vector.broadcast %31 : vector<4x64x1xf32> to vector<4x64x64xf32>
    %33 = arith.cmpf oeq, %29, %32 : vector<4x64x64xf32>
    %34 = arith.extui %33 : vector<4x64x64xi1> to vector<4x64x64xi32>
    %35 = arith.sitofp %34 : vector<4x64x64xi32> to vector<4x64x64xf32>
    %36 = vector.broadcast %30 : vector<4x64x1xf32> to vector<4x64x64xf32>
    %37 = arith.mulf %36, %35 : vector<4x64x64xf32>
    %38 = vector.shape_cast %14 : vector<4x64xf32> to vector<4x64x1xf32>
    %39 = vector.shape_cast %12 : vector<4x64xf32> to vector<4x64x1xf32>
    %cst_13 = arith.constant 1.000000e+00 : f32
    %40 = vector.broadcast %cst_13 : f32 to vector<4x64x1xf32>
    %41 = arith.addf %39, %40 : vector<4x64x1xf32>
    %42 = vector.broadcast %41 : vector<4x64x1xf32> to vector<4x64x64xf32>
    %43 = arith.cmpf oeq, %29, %42 : vector<4x64x64xf32>
    %44 = arith.extui %43 : vector<4x64x64xi1> to vector<4x64x64xi32>
    %45 = arith.sitofp %44 : vector<4x64x64xi32> to vector<4x64x64xf32>
    %46 = vector.broadcast %38 : vector<4x64x1xf32> to vector<4x64x64xf32>
    %47 = arith.mulf %46, %45 : vector<4x64x64xf32>
    %48 = arith.addf %37, %47 : vector<4x64x64xf32>
    %49 = vector.shape_cast %19 : vector<4x64xf32> to vector<4x64x1xf32>
    %50 = vector.shape_cast %13 : vector<4x64xf32> to vector<4x64x1xf32>
    %51 = vector.broadcast %50 : vector<4x64x1xf32> to vector<4x64x64xf32>
    %52 = arith.cmpf oeq, %26, %51 : vector<4x64x64xf32>
    %53 = arith.extui %52 : vector<4x64x64xi1> to vector<4x64x64xi32>
    %54 = arith.sitofp %53 : vector<4x64x64xi32> to vector<4x64x64xf32>
    %55 = vector.broadcast %49 : vector<4x64x1xf32> to vector<4x64x64xf32>
    %56 = arith.mulf %55, %54 : vector<4x64x64xf32>
    %57 = vector.shape_cast %17 : vector<4x64xf32> to vector<4x64x1xf32>
    %58 = vector.shape_cast %13 : vector<4x64xf32> to vector<4x64x1xf32>
    %cst_14 = arith.constant 1.000000e+00 : f32
    %59 = vector.broadcast %cst_14 : f32 to vector<4x64x1xf32>
    %60 = arith.addf %58, %59 : vector<4x64x1xf32>
    %61 = vector.broadcast %60 : vector<4x64x1xf32> to vector<4x64x64xf32>
    %62 = arith.cmpf oeq, %26, %61 : vector<4x64x64xf32>
    %63 = arith.extui %62 : vector<4x64x64xi1> to vector<4x64x64xi32>
    %64 = arith.sitofp %63 : vector<4x64x64xi32> to vector<4x64x64xf32>
    %65 = vector.broadcast %57 : vector<4x64x1xf32> to vector<4x64x64xf32>
    %66 = arith.mulf %65, %64 : vector<4x64x64xf32>
    %67 = arith.addf %56, %66 : vector<4x64x64xf32>
    %68 = arith.mulf %48, %67 : vector<4x64x64xf32>
    %c0_15 = arith.constant 0 : index
    %c0_16 = arith.constant 0 : index
    %c0_17 = arith.constant 0 : index
    %c0_18 = arith.constant 0 : index
    %69 = vector.load %arg1[%c0_15, %c0_16, %c0_17, %c0_18] : memref<1x4x64x16xf32, #tpu.memory_space<vmem>>, vector<1x4x64x16xf32>
    %70 = vector.shape_cast %69 : vector<1x4x64x16xf32> to vector<4x64x16xf32>
    "tpu.trace_start"() <{level = 10 : i32, message = "npq,nqd->npd"}> : () -> ()
    %cst_19 = arith.constant dense<0.000000e+00> : vector<4x64x16xf32>
    %71 = tpu.matmul %68, %70, %cst_19 {dimension_numbers = #tpu.dot_dimension_numbers<[2], [1], [1], [2], [0, 0, 0, 1, 1, 2], [0], [0]>} : vector<4x64x64xf32>, vector<4x64x16xf32>, vector<4x64x16xf32> -> vector<4x64x16xf32>
    "tpu.trace_stop"() : () -> ()
    %c0_20 = arith.constant 0 : index
    %c0_21 = arith.constant 0 : index
    %c0_22 = arith.constant 0 : index
    %c0_23 = arith.constant 0 : index
    %72 = vector.load %arg4[%c0_20, %c0_21, %c0_22, %c0_23] : memref<1x4x64x16xf32, #tpu.memory_space<vmem>>, vector<1x4x64x16xf32>
    %73 = vector.shape_cast %72 : vector<1x4x64x16xf32> to vector<4x64x16xf32>
    %74 = vector.shape_cast %71 : vector<4x64x16xf32> to vector<1x4x64x16xf32>
    tpu.vector_store %arg4[%c0_20, %c0_21, %c0_22, %c0_23], %74 {strides = array<i32>} : memref<1x4x64x16xf32, #tpu.memory_space<vmem>>, vector<1x4x64x16xf32>,
    return
  }
  func.func @transform_0(%arg0: i32) -> (i32, i32, i32, i32) {
    %c0_i32 = arith.constant 0 : i32
    %c0_i32_0 = arith.constant 0 : i32
    %c0_i32_1 = arith.constant 0 : i32
    %c0_i32_2 = arith.constant 0 : i32
    return %arg0, %c0_i32, %c0_i32_0, %c0_i32_1 : i32, i32, i32, i32
  }
  func.func @transform_1(%arg0: i32) -> (i32, i32, i32) {
    %c0_i32 = arith.constant 0 : i32
    %c0_i32_0 = arith.constant 0 : i32
    %c0_i32_1 = arith.constant 0 : i32
    return %arg0, %c0_i32, %c0_i32_0 : i32, i32, i32
  }
  func.func @transform_2(%arg0: i32) -> (i32, i32, i32) {
    %c0_i32 = arith.constant 0 : i32
    %c0_i32_0 = arith.constant 0 : i32
    %c0_i32_1 = arith.constant 0 : i32
    return %arg0, %c0_i32, %c0_i32_0 : i32, i32, i32
  }
  func.func @transform_3(%arg0: i32) -> (i32, i32, i32, i32) {
    %c0_i32 = arith.constant 0 : i32
    %c0_i32_0 = arith.constant 0 : i32
    %c0_i32_1 = arith.constant 0 : i32
    %c0_i32_2 = arith.constant 0 : i32
    return %arg0, %c0_i32, %c0_i32_0, %c0_i32_1 : i32, i32, i32, i32
  }
}

module attributes {stable_mosaic.version = 11 : i64} {
  func.func @_dual_attn_kernel(%arg0: i32, %arg1: memref<4x8x128xf32, #tpu.memory_space<vmem>>, %arg2: memref<4x8x128xf32, #tpu.memory_space<vmem>>, %arg3: memref<4x8x128xf32, #tpu.memory_space<vmem>>, %arg4: memref<4x8x128xf32, #tpu.memory_space<vmem>>, %arg5: memref<4x4x128xf32, #tpu.memory_space<vmem>>, %arg6: memref<4x8x128xf32, #tpu.memory_space<vmem>>, %arg7: memref<4x8x128xf32, #tpu.memory_space<vmem>>) attributes {dimension_semantics = [#tpu.dimension_semantics<arbitrary>], iteration_bounds = array<i64: 1>, scalar_prefetch = 0 : i64, scratch_operands = 0 : i64, tpu.core_type = #tpu.core_type<tc>, window_params = [{pipeline_mode = #tpu.pipeline_mode<synchronous>, transform_indices = @transform_0, window_bounds = array<i64: 4, 8, 128>}, {pipeline_mode = #tpu.pipeline_mode<synchronous>, transform_indices = @transform_1, window_bounds = array<i64: 4, 8, 128>}, {pipeline_mode = #tpu.pipeline_mode<synchronous>, transform_indices = @transform_2, window_bounds = array<i64: 4, 8, 128>}, {pipeline_mode = #tpu.pipeline_mode<synchronous>, transform_indices = @transform_3, window_bounds = array<i64: 4, 8, 128>}, {pipeline_mode = #tpu.pipeline_mode<synchronous>, transform_indices = @transform_4, window_bounds = array<i64: 4, 4, 128>}, {pipeline_mode = #tpu.pipeline_mode<synchronous>, transform_indices = @transform_5, window_bounds = array<i64: 4, 8, 128>}, {pipeline_mode = #tpu.pipeline_mode<synchronous>, transform_indices = @transform_6, window_bounds = array<i64: 4, 8, 128>}]} {
    %c0 = arith.constant 0 : index
    %c0_0 = arith.constant 0 : index
    %c0_1 = arith.constant 0 : index
    %0 = vector.load %arg3[%c0, %c0_0, %c0_1] : memref<4x8x128xf32, #tpu.memory_space<vmem>>, vector<4x8x128xf32>
    %c0_2 = arith.constant 0 : index
    %c0_3 = arith.constant 0 : index
    %c0_4 = arith.constant 0 : index
    %1 = vector.load %arg4[%c0_2, %c0_3, %c0_4] : memref<4x8x128xf32, #tpu.memory_space<vmem>>, vector<4x8x128xf32>
    %c0_5 = arith.constant 0 : index
    %c0_6 = arith.constant 0 : index
    %c0_7 = arith.constant 0 : index
    %2 = vector.load %arg5[%c0_5, %c0_6, %c0_7] : memref<4x4x128xf32, #tpu.memory_space<vmem>>, vector<4x4x128xf32>
    %c0_8 = arith.constant 0 : index
    %c0_9 = arith.constant 0 : index
    %c0_10 = arith.constant 0 : index
    %3 = vector.load %arg1[%c0_8, %c0_9, %c0_10] : memref<4x8x128xf32, #tpu.memory_space<vmem>>, vector<4x8x128xf32>
    %4 = vector.shape_cast %3 : vector<4x8x128xf32> to vector<4x1x8x128xf32>
    %5 = vector.shape_cast %0 : vector<4x8x128xf32> to vector<1x4x8x128xf32>
    %6 = vector.broadcast %4 : vector<4x1x8x128xf32> to vector<4x4x8x128xf32>
    %7 = vector.broadcast %5 : vector<1x4x8x128xf32> to vector<4x4x8x128xf32>
    %8 = arith.mulf %6, %7 : vector<4x4x8x128xf32>
    %cst = arith.constant dense<0.000000e+00> : vector<4x4x128xf32>
    %9 = vector.multi_reduction <add>, %8, %cst [2] : vector<4x4x8x128xf32> to vector<4x4x128xf32>
    %cst_11 = arith.constant 0.353553385 : f32
    %10 = vector.broadcast %cst_11 : f32 to vector<4x4x128xf32>
    %11 = arith.mulf %9, %10 : vector<4x4x128xf32>
    %12 = arith.addf %11, %2 : vector<4x4x128xf32>
    %cst_12 = arith.constant dense<0xFF800000> : vector<4x128xf32>
    %13 = vector.multi_reduction <maximumf>, %12, %cst_12 [1] : vector<4x4x128xf32> to vector<4x128xf32>
    %14 = vector.shape_cast %13 : vector<4x128xf32> to vector<4x1x128xf32>
    %15 = vector.broadcast %14 : vector<4x1x128xf32> to vector<4x4x128xf32>
    %16 = arith.subf %12, %15 : vector<4x4x128xf32>
    %17 = math.exp %16 : vector<4x4x128xf32>
    %cst_13 = arith.constant dense<0.000000e+00> : vector<4x128xf32>
    %18 = vector.multi_reduction <add>, %17, %cst_13 [1] : vector<4x4x128xf32> to vector<4x128xf32>
    %19 = vector.shape_cast %18 : vector<4x128xf32> to vector<4x1x128xf32>
    %20 = tpu.reciprocal %19 {approx = true} : vector<4x1x128xf32> -> vector<4x1x128xf32>
    %21 = vector.broadcast %20 : vector<4x1x128xf32> to vector<4x4x128xf32>
    %22 = arith.mulf %17, %21 : vector<4x4x128xf32>
    %23 = vector.shape_cast %22 : vector<4x4x128xf32> to vector<4x4x1x128xf32>
    %24 = vector.shape_cast %1 : vector<4x8x128xf32> to vector<1x4x8x128xf32>
    %25 = vector.broadcast %23 : vector<4x4x1x128xf32> to vector<4x4x8x128xf32>
    %26 = vector.broadcast %24 : vector<1x4x8x128xf32> to vector<4x4x8x128xf32>
    %27 = arith.mulf %25, %26 : vector<4x4x8x128xf32>
    %cst_14 = arith.constant dense<0.000000e+00> : vector<4x8x128xf32>
    %28 = vector.multi_reduction <add>, %27, %cst_14 [1] : vector<4x4x8x128xf32> to vector<4x8x128xf32>
    %c0_15 = arith.constant 0 : index
    %c0_16 = arith.constant 0 : index
    %c0_17 = arith.constant 0 : index
    %29 = vector.load %arg6[%c0_15, %c0_16, %c0_17] : memref<4x8x128xf32, #tpu.memory_space<vmem>>, vector<4x8x128xf32>
    tpu.vector_store %arg6[%c0_15, %c0_16, %c0_17], %28 {strides = array<i32>} : memref<4x8x128xf32, #tpu.memory_space<vmem>>, vector<4x8x128xf32>,
    %c0_18 = arith.constant 0 : index
    %c0_19 = arith.constant 0 : index
    %c0_20 = arith.constant 0 : index
    %30 = vector.load %arg2[%c0_18, %c0_19, %c0_20] : memref<4x8x128xf32, #tpu.memory_space<vmem>>, vector<4x8x128xf32>
    %31 = vector.shape_cast %30 : vector<4x8x128xf32> to vector<4x1x8x128xf32>
    %32 = vector.shape_cast %0 : vector<4x8x128xf32> to vector<1x4x8x128xf32>
    %33 = vector.broadcast %31 : vector<4x1x8x128xf32> to vector<4x4x8x128xf32>
    %34 = vector.broadcast %32 : vector<1x4x8x128xf32> to vector<4x4x8x128xf32>
    %35 = arith.mulf %33, %34 : vector<4x4x8x128xf32>
    %cst_21 = arith.constant dense<0.000000e+00> : vector<4x4x128xf32>
    %36 = vector.multi_reduction <add>, %35, %cst_21 [2] : vector<4x4x8x128xf32> to vector<4x4x128xf32>
    %cst_22 = arith.constant 0.353553385 : f32
    %37 = vector.broadcast %cst_22 : f32 to vector<4x4x128xf32>
    %38 = arith.mulf %36, %37 : vector<4x4x128xf32>
    %39 = arith.addf %38, %2 : vector<4x4x128xf32>
    %cst_23 = arith.constant dense<0xFF800000> : vector<4x128xf32>
    %40 = vector.multi_reduction <maximumf>, %39, %cst_23 [1] : vector<4x4x128xf32> to vector<4x128xf32>
    %41 = vector.shape_cast %40 : vector<4x128xf32> to vector<4x1x128xf32>
    %42 = vector.broadcast %41 : vector<4x1x128xf32> to vector<4x4x128xf32>
    %43 = arith.subf %39, %42 : vector<4x4x128xf32>
    %44 = math.exp %43 : vector<4x4x128xf32>
    %cst_24 = arith.constant dense<0.000000e+00> : vector<4x128xf32>
    %45 = vector.multi_reduction <add>, %44, %cst_24 [1] : vector<4x4x128xf32> to vector<4x128xf32>
    %46 = vector.shape_cast %45 : vector<4x128xf32> to vector<4x1x128xf32>
    %47 = tpu.reciprocal %46 {approx = true} : vector<4x1x128xf32> -> vector<4x1x128xf32>
    %48 = vector.broadcast %47 : vector<4x1x128xf32> to vector<4x4x128xf32>
    %49 = arith.mulf %44, %48 : vector<4x4x128xf32>
    %50 = vector.shape_cast %49 : vector<4x4x128xf32> to vector<4x4x1x128xf32>
    %51 = vector.shape_cast %1 : vector<4x8x128xf32> to vector<1x4x8x128xf32>
    %52 = vector.broadcast %50 : vector<4x4x1x128xf32> to vector<4x4x8x128xf32>
    %53 = vector.broadcast %51 : vector<1x4x8x128xf32> to vector<4x4x8x128xf32>
    %54 = arith.mulf %52, %53 : vector<4x4x8x128xf32>
    %cst_25 = arith.constant dense<0.000000e+00> : vector<4x8x128xf32>
    %55 = vector.multi_reduction <add>, %54, %cst_25 [1] : vector<4x4x8x128xf32> to vector<4x8x128xf32>
    %c0_26 = arith.constant 0 : index
    %c0_27 = arith.constant 0 : index
    %c0_28 = arith.constant 0 : index
    %56 = vector.load %arg7[%c0_26, %c0_27, %c0_28] : memref<4x8x128xf32, #tpu.memory_space<vmem>>, vector<4x8x128xf32>
    tpu.vector_store %arg7[%c0_26, %c0_27, %c0_28], %55 {strides = array<i32>} : memref<4x8x128xf32, #tpu.memory_space<vmem>>, vector<4x8x128xf32>,
    return
  }
  func.func @transform_0(%arg0: i32) -> (i32, i32, i32) {
    %c0_i32 = arith.constant 0 : i32
    %c0_i32_0 = arith.constant 0 : i32
    %c0_i32_1 = arith.constant 0 : i32
    %c0_i32_2 = arith.constant 0 : i32
    return %c0_i32, %c0_i32_0, %c0_i32_1 : i32, i32, i32
  }
  func.func @transform_1(%arg0: i32) -> (i32, i32, i32) {
    %c0_i32 = arith.constant 0 : i32
    %c0_i32_0 = arith.constant 0 : i32
    %c0_i32_1 = arith.constant 0 : i32
    %c0_i32_2 = arith.constant 0 : i32
    return %c0_i32, %c0_i32_0, %c0_i32_1 : i32, i32, i32
  }
  func.func @transform_2(%arg0: i32) -> (i32, i32, i32) {
    %c0_i32 = arith.constant 0 : i32
    %c0_i32_0 = arith.constant 0 : i32
    %c0_i32_1 = arith.constant 0 : i32
    %c0_i32_2 = arith.constant 0 : i32
    return %c0_i32, %c0_i32_0, %c0_i32_1 : i32, i32, i32
  }
  func.func @transform_3(%arg0: i32) -> (i32, i32, i32) {
    %c0_i32 = arith.constant 0 : i32
    %c0_i32_0 = arith.constant 0 : i32
    %c0_i32_1 = arith.constant 0 : i32
    %c0_i32_2 = arith.constant 0 : i32
    return %c0_i32, %c0_i32_0, %c0_i32_1 : i32, i32, i32
  }
  func.func @transform_4(%arg0: i32) -> (i32, i32, i32) {
    %c0_i32 = arith.constant 0 : i32
    %c0_i32_0 = arith.constant 0 : i32
    %c0_i32_1 = arith.constant 0 : i32
    %c0_i32_2 = arith.constant 0 : i32
    return %c0_i32, %c0_i32_0, %c0_i32_1 : i32, i32, i32
  }
  func.func @transform_5(%arg0: i32) -> (i32, i32, i32) {
    %c0_i32 = arith.constant 0 : i32
    %c0_i32_0 = arith.constant 0 : i32
    %c0_i32_1 = arith.constant 0 : i32
    %c0_i32_2 = arith.constant 0 : i32
    return %c0_i32, %c0_i32_0, %c0_i32_1 : i32, i32, i32
  }
  func.func @transform_6(%arg0: i32) -> (i32, i32, i32) {
    %c0_i32 = arith.constant 0 : i32
    %c0_i32_0 = arith.constant 0 : i32
    %c0_i32_1 = arith.constant 0 : i32
    %c0_i32_2 = arith.constant 0 : i32
    return %c0_i32, %c0_i32_0, %c0_i32_1 : i32, i32, i32
  }
}

module attributes {stable_mosaic.version = 11 : i64} {
  func.func @_proj_mlp_kernel(%arg0: i32, %arg1: memref<1x128x32xf32, #tpu.memory_space<vmem>>, %arg2: memref<1x128x32xf32, #tpu.memory_space<vmem>>, %arg3: memref<1x32x32xf32, #tpu.memory_space<vmem>>, %arg4: memref<1x1x32xf32, #tpu.memory_space<vmem>>, %arg5: memref<1x1x32xf32, #tpu.memory_space<vmem>>, %arg6: memref<1x1x32xf32, #tpu.memory_space<vmem>>, %arg7: memref<32x128xf32, #tpu.memory_space<vmem>>, %arg8: memref<1x128xf32, #tpu.memory_space<vmem>>, %arg9: memref<128x32xf32, #tpu.memory_space<vmem>>, %arg10: memref<1x32xf32, #tpu.memory_space<vmem>>, %arg11: memref<1x128x32xf32, #tpu.memory_space<vmem>>) attributes {dimension_semantics = [#tpu.dimension_semantics<parallel>], iteration_bounds = array<i64: 2>, scalar_prefetch = 0 : i64, scratch_operands = 0 : i64, tpu.core_type = #tpu.core_type<tc>, window_params = [{transform_indices = @transform_0, window_bounds = array<i64: 1, 128, 32>}, {transform_indices = @transform_1, window_bounds = array<i64: 1, 128, 32>}, {transform_indices = @transform_2, window_bounds = array<i64: 1, 32, 32>}, {transform_indices = @transform_3, window_bounds = array<i64: 1, 1, 32>}, {transform_indices = @transform_4, window_bounds = array<i64: 1, 1, 32>}, {transform_indices = @transform_5, window_bounds = array<i64: 1, 1, 32>}, {pipeline_mode = #tpu.pipeline_mode<synchronous>, transform_indices = @transform_6, window_bounds = array<i64: 32, 128>}, {pipeline_mode = #tpu.pipeline_mode<synchronous>, transform_indices = @transform_7, window_bounds = array<i64: 1, 128>}, {pipeline_mode = #tpu.pipeline_mode<synchronous>, transform_indices = @transform_8, window_bounds = array<i64: 128, 32>}, {pipeline_mode = #tpu.pipeline_mode<synchronous>, transform_indices = @transform_9, window_bounds = array<i64: 1, 32>}, {transform_indices = @transform_10, window_bounds = array<i64: 1, 128, 32>}]} {
    %c0 = arith.constant 0 : index
    %c0_0 = arith.constant 0 : index
    %c0_1 = arith.constant 0 : index
    %0 = vector.load %arg1[%c0, %c0_0, %c0_1] : memref<1x128x32xf32, #tpu.memory_space<vmem>>, vector<1x128x32xf32>
    %1 = vector.shape_cast %0 : vector<1x128x32xf32> to vector<128x32xf32>
    %c0_2 = arith.constant 0 : index
    %c0_3 = arith.constant 0 : index
    %c0_4 = arith.constant 0 : index
    %2 = vector.load %arg2[%c0_2, %c0_3, %c0_4] : memref<1x128x32xf32, #tpu.memory_space<vmem>>, vector<1x128x32xf32>
    %3 = vector.shape_cast %2 : vector<1x128x32xf32> to vector<128x32xf32>
    %c0_5 = arith.constant 0 : index
    %c0_6 = arith.constant 0 : index
    %c0_7 = arith.constant 0 : index
    %4 = vector.load %arg3[%c0_5, %c0_6, %c0_7] : memref<1x32x32xf32, #tpu.memory_space<vmem>>, vector<1x32x32xf32>
    %5 = vector.shape_cast %4 : vector<1x32x32xf32> to vector<32x32xf32>
    %cst = arith.constant dense<0.000000e+00> : vector<128x32xf32>
    %6 = tpu.matmul %3, %5, %cst {dimension_numbers = #tpu.dot_dimension_numbers<[1], [0], [0], [1], [0, 0, 1, 1], [], []>} : vector<128x32xf32>, vector<32x32xf32>, vector<128x32xf32> -> vector<128x32xf32>
    %7 = arith.addf %1, %6 : vector<128x32xf32>
    %c0_8 = arith.constant 0 : index
    %c0_9 = arith.constant 0 : index
    %c0_10 = arith.constant 0 : index
    %8 = vector.load %arg4[%c0_8, %c0_9, %c0_10] : memref<1x1x32xf32, #tpu.memory_space<vmem>>, vector<1x1x32xf32>
    %9 = vector.shape_cast %8 : vector<1x1x32xf32> to vector<1x32xf32>
    %10 = vector.broadcast %9 : vector<1x32xf32> to vector<128x32xf32>
    %11 = arith.addf %7, %10 : vector<128x32xf32>
    %c0_11 = arith.constant 0 : index
    %c0_12 = arith.constant 0 : index
    %c0_13 = arith.constant 0 : index
    %12 = vector.load %arg5[%c0_11, %c0_12, %c0_13] : memref<1x1x32xf32, #tpu.memory_space<vmem>>, vector<1x1x32xf32>
    %13 = vector.shape_cast %12 : vector<1x1x32xf32> to vector<1x32xf32>
    %c0_14 = arith.constant 0 : index
    %c0_15 = arith.constant 0 : index
    %c0_16 = arith.constant 0 : index
    %14 = vector.load %arg6[%c0_14, %c0_15, %c0_16] : memref<1x1x32xf32, #tpu.memory_space<vmem>>, vector<1x1x32xf32>
    %15 = vector.shape_cast %14 : vector<1x1x32xf32> to vector<1x32xf32>
    %cst_17 = arith.constant dense<0.000000e+00> : vector<128xf32>
    %16 = vector.multi_reduction <add>, %11, %cst_17 [1] : vector<128x32xf32> to vector<128xf32>
    %17 = vector.shape_cast %16 : vector<128xf32> to vector<128x1xf32>
    %cst_18 = arith.constant 3.200000e+01 : f32
    %18 = vector.broadcast %cst_18 : f32 to vector<128x1xf32>
    %19 = arith.divf %17, %18 : vector<128x1xf32>
    %20 = vector.broadcast %19 : vector<128x1xf32> to vector<128x32xf32>
    %21 = arith.subf %11, %20 : vector<128x32xf32>
    %22 = arith.mulf %21, %21 : vector<128x32xf32>
    %cst_19 = arith.constant dense<0.000000e+00> : vector<128xf32>
    %23 = vector.multi_reduction <add>, %22, %cst_19 [1] : vector<128x32xf32> to vector<128xf32>
    %24 = vector.shape_cast %23 : vector<128xf32> to vector<128x1xf32>
    %cst_20 = arith.constant 3.200000e+01 : f32
    %25 = vector.broadcast %cst_20 : f32 to vector<128x1xf32>
    %26 = arith.divf %24, %25 : vector<128x1xf32>
    %cst_21 = arith.constant 9.99999974E-6 : f32
    %27 = vector.broadcast %cst_21 : f32 to vector<128x1xf32>
    %28 = arith.addf %26, %27 : vector<128x1xf32>
    %29 = math.sqrt %28 : vector<128x1xf32>
    %30 = vector.broadcast %29 : vector<128x1xf32> to vector<128x32xf32>
    %31 = arith.divf %21, %30 : vector<128x32xf32>
    %32 = vector.broadcast %13 : vector<1x32xf32> to vector<128x32xf32>
    %33 = arith.mulf %32, %31 : vector<128x32xf32>
    %34 = vector.broadcast %15 : vector<1x32xf32> to vector<128x32xf32>
    %35 = arith.addf %33, %34 : vector<128x32xf32>
    %c0_22 = arith.constant 0 : index
    %c0_23 = arith.constant 0 : index
    %36 = vector.load %arg7[%c0_22, %c0_23] : memref<32x128xf32, #tpu.memory_space<vmem>>, vector<32x128xf32>
    %cst_24 = arith.constant dense<0.000000e+00> : vector<128x128xf32>
    %37 = tpu.matmul %35, %36, %cst_24 {dimension_numbers = #tpu.dot_dimension_numbers<[1], [0], [0], [1], [0, 0, 1, 1], [], []>} : vector<128x32xf32>, vector<32x128xf32>, vector<128x128xf32> -> vector<128x128xf32>
    %c0_25 = arith.constant 0 : index
    %c0_26 = arith.constant 0 : index
    %38 = vector.load %arg8[%c0_25, %c0_26] : memref<1x128xf32, #tpu.memory_space<vmem>>, vector<1x128xf32>
    %39 = vector.broadcast %38 : vector<1x128xf32> to vector<128x128xf32>
    %40 = arith.addf %37, %39 : vector<128x128xf32>
    %cst_27 = arith.constant 5.000000e-01 : f32
    %41 = vector.broadcast %cst_27 : f32 to vector<128x128xf32>
    %42 = arith.mulf %41, %40 : vector<128x128xf32>
    %cst_28 = arith.constant 0.707106769 : f32
    %43 = vector.broadcast %cst_28 : f32 to vector<128x128xf32>
    %44 = arith.mulf %40, %43 : vector<128x128xf32>
    %cst_29 = arith.constant 0.000000e+00 : f32
    %45 = vector.broadcast %cst_29 : f32 to vector<128x128xf32>
    %46 = arith.cmpf oge, %44, %45 : vector<128x128xf32>
    %cst_30 = arith.constant 1.000000e+00 : f32
    %cst_31 = arith.constant -1.000000e+00 : f32
    %47 = vector.broadcast %cst_30 : f32 to vector<128x128xf32>
    %48 = vector.broadcast %cst_31 : f32 to vector<128x128xf32>
    %49 = arith.select %46, %47, %48 : vector<128x128xi1>, vector<128x128xf32>
    %50 = math.absf %44 : vector<128x128xf32>
    %cst_32 = arith.constant 0.327591091 : f32
    %51 = vector.broadcast %cst_32 : f32 to vector<128x128xf32>
    %52 = arith.mulf %51, %50 : vector<128x128xf32>
    %cst_33 = arith.constant 1.000000e+00 : f32
    %53 = vector.broadcast %cst_33 : f32 to vector<128x128xf32>
    %54 = arith.addf %53, %52 : vector<128x128xf32>
    %cst_34 = arith.constant 1.000000e+00 : f32
    %55 = vector.broadcast %cst_34 : f32 to vector<128x128xf32>
    %56 = arith.divf %55, %54 : vector<128x128xf32>
    %cst_35 = arith.constant 1.06140542 : f32
    %57 = vector.broadcast %cst_35 : f32 to vector<128x128xf32>
    %58 = arith.mulf %57, %56 : vector<128x128xf32>
    %cst_36 = arith.constant -1.45315206 : f32
    %59 = vector.broadcast %cst_36 : f32 to vector<128x128xf32>
    %60 = arith.addf %58, %59 : vector<128x128xf32>
    %61 = arith.mulf %60, %56 : vector<128x128xf32>
    %cst_37 = arith.constant 1.42141378 : f32
    %62 = vector.broadcast %cst_37 : f32 to vector<128x128xf32>
    %63 = arith.addf %61, %62 : vector<128x128xf32>
    %64 = arith.mulf %63, %56 : vector<128x128xf32>
    %cst_38 = arith.constant -0.284496725 : f32
    %65 = vector.broadcast %cst_38 : f32 to vector<128x128xf32>
    %66 = arith.addf %64, %65 : vector<128x128xf32>
    %67 = arith.mulf %66, %56 : vector<128x128xf32>
    %cst_39 = arith.constant 0.254829586 : f32
    %68 = vector.broadcast %cst_39 : f32 to vector<128x128xf32>
    %69 = arith.addf %67, %68 : vector<128x128xf32>
    %70 = arith.mulf %69, %56 : vector<128x128xf32>
    %cst_40 = arith.constant 0.000000e+00 : f32
    %71 = vector.broadcast %cst_40 : f32 to vector<128x128xf32>
    %72 = arith.subf %71, %50 : vector<128x128xf32>
    %73 = arith.mulf %72, %50 : vector<128x128xf32>
    %74 = math.exp %73 : vector<128x128xf32>
    %75 = arith.mulf %70, %74 : vector<128x128xf32>
    %cst_41 = arith.constant 1.000000e+00 : f32
    %76 = vector.broadcast %cst_41 : f32 to vector<128x128xf32>
    %77 = arith.subf %76, %75 : vector<128x128xf32>
    %78 = arith.mulf %49, %77 : vector<128x128xf32>
    %cst_42 = arith.constant 1.000000e+00 : f32
    %79 = vector.broadcast %cst_42 : f32 to vector<128x128xf32>
    %80 = arith.addf %79, %78 : vector<128x128xf32>
    %81 = arith.mulf %42, %80 : vector<128x128xf32>
    %c0_43 = arith.constant 0 : index
    %c0_44 = arith.constant 0 : index
    %82 = vector.load %arg9[%c0_43, %c0_44] : memref<128x32xf32, #tpu.memory_space<vmem>>, vector<128x32xf32>
    %cst_45 = arith.constant dense<0.000000e+00> : vector<128x32xf32>
    %83 = tpu.matmul %81, %82, %cst_45 {dimension_numbers = #tpu.dot_dimension_numbers<[1], [0], [0], [1], [0, 0, 1, 1], [], []>} : vector<128x128xf32>, vector<128x32xf32>, vector<128x32xf32> -> vector<128x32xf32>
    %c0_46 = arith.constant 0 : index
    %c0_47 = arith.constant 0 : index
    %84 = vector.load %arg10[%c0_46, %c0_47] : memref<1x32xf32, #tpu.memory_space<vmem>>, vector<1x32xf32>
    %85 = vector.broadcast %84 : vector<1x32xf32> to vector<128x32xf32>
    %86 = arith.addf %83, %85 : vector<128x32xf32>
    %87 = arith.addf %11, %86 : vector<128x32xf32>
    %c0_48 = arith.constant 0 : index
    %c0_49 = arith.constant 0 : index
    %c0_50 = arith.constant 0 : index
    %88 = vector.load %arg11[%c0_48, %c0_49, %c0_50] : memref<1x128x32xf32, #tpu.memory_space<vmem>>, vector<1x128x32xf32>
    %89 = vector.shape_cast %88 : vector<1x128x32xf32> to vector<128x32xf32>
    %90 = vector.shape_cast %87 : vector<128x32xf32> to vector<1x128x32xf32>
    tpu.vector_store %arg11[%c0_48, %c0_49, %c0_50], %90 {strides = array<i32>} : memref<1x128x32xf32, #tpu.memory_space<vmem>>, vector<1x128x32xf32>,
    return
  }
  func.func @transform_0(%arg0: i32) -> (i32, i32, i32) {
    %c0_i32 = arith.constant 0 : i32
    %c0_i32_0 = arith.constant 0 : i32
    %c0_i32_1 = arith.constant 0 : i32
    return %arg0, %c0_i32, %c0_i32_0 : i32, i32, i32
  }
  func.func @transform_1(%arg0: i32) -> (i32, i32, i32) {
    %c0_i32 = arith.constant 0 : i32
    %c0_i32_0 = arith.constant 0 : i32
    %c0_i32_1 = arith.constant 0 : i32
    return %arg0, %c0_i32, %c0_i32_0 : i32, i32, i32
  }
  func.func @transform_2(%arg0: i32) -> (i32, i32, i32) {
    %c0_i32 = arith.constant 0 : i32
    %c0_i32_0 = arith.constant 0 : i32
    %c0_i32_1 = arith.constant 0 : i32
    return %arg0, %c0_i32, %c0_i32_0 : i32, i32, i32
  }
  func.func @transform_3(%arg0: i32) -> (i32, i32, i32) {
    %c0_i32 = arith.constant 0 : i32
    %c0_i32_0 = arith.constant 0 : i32
    %c0_i32_1 = arith.constant 0 : i32
    return %arg0, %c0_i32, %c0_i32_0 : i32, i32, i32
  }
  func.func @transform_4(%arg0: i32) -> (i32, i32, i32) {
    %c0_i32 = arith.constant 0 : i32
    %c0_i32_0 = arith.constant 0 : i32
    %c0_i32_1 = arith.constant 0 : i32
    return %arg0, %c0_i32, %c0_i32_0 : i32, i32, i32
  }
  func.func @transform_5(%arg0: i32) -> (i32, i32, i32) {
    %c0_i32 = arith.constant 0 : i32
    %c0_i32_0 = arith.constant 0 : i32
    %c0_i32_1 = arith.constant 0 : i32
    return %arg0, %c0_i32, %c0_i32_0 : i32, i32, i32
  }
  func.func @transform_6(%arg0: i32) -> (i32, i32) {
    %c0_i32 = arith.constant 0 : i32
    %c0_i32_0 = arith.constant 0 : i32
    %c0_i32_1 = arith.constant 0 : i32
    return %c0_i32, %c0_i32_0 : i32, i32
  }
  func.func @transform_7(%arg0: i32) -> (i32, i32) {
    %c0_i32 = arith.constant 0 : i32
    %c0_i32_0 = arith.constant 0 : i32
    %c0_i32_1 = arith.constant 0 : i32
    return %c0_i32, %c0_i32_0 : i32, i32
  }
  func.func @transform_8(%arg0: i32) -> (i32, i32) {
    %c0_i32 = arith.constant 0 : i32
    %c0_i32_0 = arith.constant 0 : i32
    %c0_i32_1 = arith.constant 0 : i32
    return %c0_i32, %c0_i32_0 : i32, i32
  }
  func.func @transform_9(%arg0: i32) -> (i32, i32) {
    %c0_i32 = arith.constant 0 : i32
    %c0_i32_0 = arith.constant 0 : i32
    %c0_i32_1 = arith.constant 0 : i32
    return %c0_i32, %c0_i32_0 : i32, i32
  }
  func.func @transform_10(%arg0: i32) -> (i32, i32, i32) {
    %c0_i32 = arith.constant 0 : i32
    %c0_i32_0 = arith.constant 0 : i32
    %c0_i32_1 = arith.constant 0 : i32
    return %arg0, %c0_i32, %c0_i32_0 : i32, i32, i32
  }
}

</mosaic_0001>

<llo_original>
// kernel: attention_transformer_block.6
$region0: #{attention_transformer_block.6}
  #allocation0 [shape = 'u32[]', space=smem, size = 0x4, offset = 0x4, fixed_abs, tag = 'smem constant byte address 0x4 - core index']
  #allocation1 [shape = 'u32[144,128]{1,0:T(1,128)}', space=vmem, size = 0x12000, scoped, tag = 'internal scratch']
  %s0 = inlined_call_operand.vmem [shape: f32[256,32], index: 0, kind: input, shape index: {}]
  %s1 = inlined_call_operand.hbm [shape: f32[32,96], index: 1, kind: input, shape index: {}]
  %s2 = inlined_call_operand.hbm [shape: f32[1,96], index: 2, kind: input, shape index: {}]
  %s3 = inlined_call_operand.vmem [shape: f32[32,32], index: 3, kind: input, shape index: {}]
  %s4 = inlined_call_operand.vmem [shape: f32[32,16], index: 4, kind: input, shape index: {}]
  %s5 = inlined_call_operand.vmem [shape: f32[1,16], index: 5, kind: input, shape index: {}]
  %s6 = inlined_call_operand.vmem [shape: f32[256,96], index: 6, kind: output, shape index: {0}]
  %s7 = inlined_call_operand.vmem [shape: f32[2,32,16], index: 7, kind: output, shape index: {1}]
  %8 = xla_tuple %s6, %s7
  %s9 = sld [smem:[#allocation0]]
  $region73: #{attention_transformer_block.6} parent=0
    _
  %s11 = ssub.s32 1, %s9
  %s12 = scalar_select 0, %s11, %s9
  $region1: #{attention_transformer_block.6} parent=0
    #allocation2 [shape = 'u8[16384]{0}', space=vmem, size = 0x4000, scoped, tag = 'input window, operand 1, single buffered']
    #allocation3 [shape = 's32[2]{0}', space=sflag, size = 0x8, scoped, tag = 'scoped memory for attention_transformer_block.6']
    #allocation4 [shape = 'u8[512]{0}', space=vmem, size = 0x400, scoped, tag = 'input window, operand 2, single buffered']
    #allocation5 [shape = 's32[1]{0}', space=sflag, size = 0x4, scoped, tag = 'scoped memory for attention_transformer_block.6']
    %13 = vsyncpa [#allocation3], 0
    %14 = vsyncpa [#allocation5], 0
    loop: start=0, step=1, limit=4
    $region2: #{attention_transformer_block.6} parent=1 // loop_pre_header
      _
    $region3: #{attention_transformer_block.6} parent=1 // loop_header
      %s16 = sphi 0, %s20
      %p17 = scmp.ge.s32.totalorder %s16, 4
      %s26 = sphi 0, %s28
      %s29 = sphi 0, %s26
      %s30 = sphi 0, %s29
      %s46 = sphi 0, %s30
      %s50 = sphi 0, %s50
      %s52 = sphi 0, %s50
      %s53 = sphi 0, %s52
      %s67 = sphi 0, %s53
      %s71 = sphi 0, %s71
      %s73 = sphi 0, %s71
      %s74 = sphi 0, %s73
      %s88 = sphi 0, %s74
      %s92 = sphi 0, %s92
      %s94 = sphi 0, %s92
      %s95 = sphi 0, %s94
      %s109 = sphi 0, %s95
      %s113 = sphi 0, %s113
      %s115 = sphi 0, %s113
      %s116 = sphi 0, %s115
      %s130 = sphi 0, %s116
      %s134 = sphi 0, %s134
      %s136 = sphi 0, %s134
      %s137 = sphi 0, %s136
      %s151 = sphi 0, %s137
      %s157 = sphi 0, %s159
      %s160 = sphi 0, %s157
      %s161 = sphi 0, %s160
      %s177 = sphi 0, %s161
      %s183 = sphi 0, %s185
      %s186 = sphi 0, %s183
      %s187 = sphi 0, %s186
      %s203 = sphi 0, %s187
    $region4: #{attention_transformer_block.6} parent=1 // loop_header_branch
      %19 = sbr.rel (%p17) target = $region8
    $region5: #{attention_transformer_block.6} parent=1 // loop_body
      %s21 = ssub.s32 %s16, 1
      %s22 = ssub.s32 %s16, 2
      %s23 = sadd.s32 %s16, 1
      %s24 = ssub.s32 %s16, %s23
      %p25 = scmp.eq.s32.totalorder %s24, 0
      %s27 = sadd.s32 %s26, 1
      %s28 = scalar_select %p25, %s26, %s27
      %p31 = pneg %p25
      %p32 = scmp.eq.s32.totalorder %s16, 1
      %p33 = por %p31, %p32
      %p34 = scmp.ne.s32.totalorder %s26, %s29
      %p35 = scmp.eq.s32.totalorder %s16, 0
      %p36 = por %p34, %p35
      %p37 = scmp.ne.s32.totalorder %s26, %s29
      %p38 = scmp.eq.s32.totalorder %s21, 1
      %p39 = por %p37, %p38
      %p40 = scmp.ne.s32.totalorder %s29, %s30
      %p41 = scmp.eq.s32.totalorder %s21, 0
      %p42 = por %p40, %p41
      %p43 = scmp.ne.s32.totalorder %s29, %s30
      %p44 = scmp.eq.s32.totalorder %s22, 1
      %p45 = por %p43, %p44
      %p47 = scmp.ne.s32.totalorder %s30, %s46
      %p48 = scmp.eq.s32.totalorder %s22, 0
      %p49 = por %p47, %p48
      %s51 = sadd.s32 %s50, 1
      %p54 = scmp.eq.s32.totalorder %s16, 1
      %p55 = scmp.ne.s32.totalorder %s50, %s52
      %p56 = scmp.eq.s32.totalorder %s16, 0
      %p57 = por %p55, %p56
      %p58 = scmp.ne.s32.totalorder %s50, %s52
      %p59 = scmp.eq.s32.totalorder %s21, 1
      %p60 = por %p58, %p59
      %p61 = scmp.ne.s32.totalorder %s52, %s53
      %p62 = scmp.eq.s32.totalorder %s21, 0
      %p63 = por %p61, %p62
      %p64 = scmp.ne.s32.totalorder %s52, %s53
      %p65 = scmp.eq.s32.totalorder %s22, 1
      %p66 = por %p64, %p65
      %p68 = scmp.ne.s32.totalorder %s53, %s67
      %p69 = scmp.eq.s32.totalorder %s22, 0
      %p70 = por %p68, %p69
      %s72 = sadd.s32 %s71, 1
      %p75 = scmp.eq.s32.totalorder %s16, 1
      %p76 = scmp.ne.s32.totalorder %s71, %s73
      %p77 = scmp.eq.s32.totalorder %s16, 0
      %p78 = por %p76, %p77
      %p79 = scmp.ne.s32.totalorder %s71, %s73
      %p80 = scmp.eq.s32.totalorder %s21, 1
      %p81 = por %p79, %p80
      %p82 = scmp.ne.s32.totalorder %s73, %s74
      %p83 = scmp.eq.s32.totalorder %s21, 0
      %p84 = por %p82, %p83
      %p85 = scmp.ne.s32.totalorder %s73, %s74
      %p86 = scmp.eq.s32.totalorder %s22, 1
      %p87 = por %p85, %p86
      %p89 = scmp.ne.s32.totalorder %s74, %s88
      %p90 = scmp.eq.s32.totalorder %s22, 0
      %p91 = por %p89, %p90
      %s93 = sadd.s32 %s92, 1
      %p96 = scmp.eq.s32.totalorder %s16, 1
      %p97 = scmp.ne.s32.totalorder %s92, %s94
      %p98 = scmp.eq.s32.totalorder %s16, 0
      %p99 = por %p97, %p98
      %p100 = scmp.ne.s32.totalorder %s92, %s94
      %p101 = scmp.eq.s32.totalorder %s21, 1
      %p102 = por %p100, %p101
      %p103 = scmp.ne.s32.totalorder %s94, %s95
      %p104 = scmp.eq.s32.totalorder %s21, 0
      %p105 = por %p103, %p104
      %p106 = scmp.ne.s32.totalorder %s94, %s95
      %p107 = scmp.eq.s32.totalorder %s22, 1
      %p108 = por %p106, %p107
      %p110 = scmp.ne.s32.totalorder %s95, %s109
      %p111 = scmp.eq.s32.totalorder %s22, 0
      %p112 = por %p110, %p111
      %s114 = sadd.s32 %s113, 1
      %p117 = scmp.eq.s32.totalorder %s16, 1
      %p118 = scmp.ne.s32.totalorder %s113, %s115
      %p119 = scmp.eq.s32.totalorder %s16, 0
      %p120 = por %p118, %p119
      %p121 = scmp.ne.s32.totalorder %s113, %s115
      %p122 = scmp.eq.s32.totalorder %s21, 1
      %p123 = por %p121, %p122
      %p124 = scmp.ne.s32.totalorder %s115, %s116
      %p125 = scmp.eq.s32.totalorder %s21, 0
      %p126 = por %p124, %p125
      %p127 = scmp.ne.s32.totalorder %s115, %s116
      %p128 = scmp.eq.s32.totalorder %s22, 1
      %p129 = por %p127, %p128
      %p131 = scmp.ne.s32.totalorder %s116, %s130
      %p132 = scmp.eq.s32.totalorder %s22, 0
      %p133 = por %p131, %p132
      %s135 = sadd.s32 %s134, 1
      %p138 = scmp.eq.s32.totalorder %s16, 1
      %p139 = scmp.ne.s32.totalorder %s134, %s136
      %p140 = scmp.eq.s32.totalorder %s16, 0
      %p141 = por %p139, %p140
      %p142 = scmp.ne.s32.totalorder %s134, %s136
      %p143 = scmp.eq.s32.totalorder %s21, 1
      %p144 = por %p142, %p143
      %p145 = scmp.ne.s32.totalorder %s136, %s137
      %p146 = scmp.eq.s32.totalorder %s21, 0
      %p147 = por %p145, %p146
      %p148 = scmp.ne.s32.totalorder %s136, %s137
      %p149 = scmp.eq.s32.totalorder %s22, 1
      %p150 = por %p148, %p149
      %p152 = scmp.ne.s32.totalorder %s137, %s151
      %p153 = scmp.eq.s32.totalorder %s22, 0
      %p154 = por %p152, %p153
      %s155 = ssub.s32 %s16, %s23
      %p156 = scmp.eq.s32.totalorder %s155, 0
      %s158 = sadd.s32 %s157, 1
      %s159 = scalar_select %p156, %s157, %s158
      %p162 = pneg %p156
      %p163 = scmp.eq.s32.totalorder %s16, 1
      %p164 = por %p162, %p163
      %p165 = scmp.ne.s32.totalorder %s157, %s160
      %p166 = scmp.eq.s32.totalorder %s16, 0
      %p167 = por %p165, %p166
      %p168 = scmp.ne.s32.totalorder %s157, %s160
      %p169 = scmp.eq.s32.totalorder %s21, 1
      %p170 = por %p168, %p169
      %p171 = scmp.ne.s32.totalorder %s160, %s161
      %p172 = scmp.eq.s32.totalorder %s21, 0
      %p173 = por %p171, %p172
      %p174 = scmp.ne.s32.totalorder %s160, %s161
      %p175 = scmp.eq.s32.totalorder %s22, 1
      %p176 = por %p174, %p175
      %p178 = scmp.ne.s32.totalorder %s161, %s177
      %p179 = scmp.eq.s32.totalorder %s22, 0
      %p180 = por %p178, %p179
      %s181 = ssub.s32 %s16, %s23
      %p182 = scmp.eq.s32.totalorder %s181, 0
      %s184 = sadd.s32 %s183, 1
      %s185 = scalar_select %p182, %s183, %s184
      %p188 = pneg %p182
      %p189 = scmp.eq.s32.totalorder %s16, 1
      %p190 = por %p188, %p189
      %p191 = scmp.ne.s32.totalorder %s183, %s186
      %p192 = scmp.eq.s32.totalorder %s16, 0
      %p193 = por %p191, %p192
      %p194 = scmp.ne.s32.totalorder %s183, %s186
      %p195 = scmp.eq.s32.totalorder %s21, 1
      %p196 = por %p194, %p195
      %p197 = scmp.ne.s32.totalorder %s186, %s187
      %p198 = scmp.eq.s32.totalorder %s21, 0
      %p199 = por %p197, %p198
      %p200 = scmp.ne.s32.totalorder %s186, %s187
      %p201 = scmp.eq.s32.totalorder %s22, 1
      %p202 = por %p200, %p201
      %p204 = scmp.ne.s32.totalorder %s187, %s203
      %p205 = scmp.eq.s32.totalorder %s22, 0
      %p206 = por %p204, %p205
      %p207 = scmp.le.s32.totalorder 1, %s16
      %p208 = scmp.lt.s32.totalorder %s16, 3
      %p209 = pnand %p207, %p208
      %p210 = pneg %p209
      // Predicated region
      $region9: #{attention_transformer_block.6} parent=5 // pred_check
        _
      $region10: #{attention_transformer_block.6} parent=5 // pred_check_branch
        %212 = sbr.rel (%p209) target = $region12
      $region11: #{attention_transformer_block.6} parent=5 // pred_region
        %s213 = ssub.s32 %s16, 1
        // Predicated region
        $region13: #{attention_transformer_block.6} parent=11 // pred_check
          %p214 = pneg %p63
        $region14: #{attention_transformer_block.6} parent=11 // pred_check_branch
          %216 = sbr.rel (%p214) target = $region16
        $region15: #{attention_transformer_block.6} parent=11 // pred_region
          %s218 = ssub.s32 512, 512
          %219 = vsyncadd [#allocation3], %s218
          %s220 = sshll.u32 [#allocation2], 4
          %s221 = int_to_ptr.vmem [resolvable:$true] %s220
          %226 = dma.hbm_to_vmem [thread:$0]  %s1, 512, %s221, [#allocation3], 128, 128, 8
        $region16: #{attention_transformer_block.6} parent=11 // pred_fallthru
          _
        // Predicated region
        $region17: #{attention_transformer_block.6} parent=11 // pred_check
          %p227 = pneg %p84
        $region18: #{attention_transformer_block.6} parent=11 // pred_check_branch
          %229 = sbr.rel (%p227) target = $region20
        $region19: #{attention_transformer_block.6} parent=11 // pred_region
          %s231 = ssub.s32 16, 16
          %232 = vsyncadd [#allocation5], %s231
          %s234 = sshll.u32 [#allocation4], 4
          %s235 = int_to_ptr.vmem [resolvable:$true] %s234
          %237 = dma.hbm_to_vmem [thread:$0]  %s2, 16, %s235, [#allocation5]
        $region20: #{attention_transformer_block.6} parent=11 // pred_fallthru
          _
        // Predicated region
        $region21: #{attention_transformer_block.6} parent=11 // pred_check
          %p238 = pneg %p105
        $region22: #{attention_transformer_block.6} parent=11 // pred_check_branch
          %240 = sbr.rel (%p238) target = $region24
        $region23: #{attention_transformer_block.6} parent=11 // pred_region
          _
        $region24: #{attention_transformer_block.6} parent=11 // pred_fallthru
          _
        // Predicated region
        $region25: #{attention_transformer_block.6} parent=11 // pred_check
          %p241 = pneg %p126
        $region26: #{attention_transformer_block.6} parent=11 // pred_check_branch
          %243 = sbr.rel (%p241) target = $region28
        $region27: #{attention_transformer_block.6} parent=11 // pred_region
          _
        $region28: #{attention_transformer_block.6} parent=11 // pred_fallthru
          _
        // Predicated region
        $region29: #{attention_transformer_block.6} parent=11 // pred_check
          %p244 = pneg %p147
        $region30: #{attention_transformer_block.6} parent=11 // pred_check_branch
          %246 = sbr.rel (%p244) target = $region32
        $region31: #{attention_transformer_block.6} parent=11 // pred_region
          _
        $region32: #{attention_transformer_block.6} parent=11 // pred_fallthru
          _
      $region12: #{attention_transformer_block.6} parent=5 // pred_fallthru
        _
      %p247 = scmp.lt.s32.totalorder %s16, 2
      // Predicated region
      $region33: #{attention_transformer_block.6} parent=5 // pred_check
        %p248 = pneg %p247
      $region34: #{attention_transformer_block.6} parent=5 // pred_check_branch
        %250 = sbr.rel (%p248) target = $region36
      $region35: #{attention_transformer_block.6} parent=5 // pred_region
        // Predicated region
        $region37: #{attention_transformer_block.6} parent=35 // pred_check
          %p251 = pneg %p36
        $region38: #{attention_transformer_block.6} parent=35 // pred_check_branch
          %253 = sbr.rel (%p251) target = $region40
        $region39: #{attention_transformer_block.6} parent=35 // pred_region
          %s254 = smul.u32 16, %s16
          %p255 = scmp.lt.s32.totalorder %s254, 31
          %s256 = scalar_select %p255, %s254, 31
          %s257 = smul.addr %s256, 8
          %s258 = scalar_lea.vmem %s0, %s257
          %s259 = smul.u32 16, %s16
        $region40: #{attention_transformer_block.6} parent=35 // pred_fallthru
          _
      $region36: #{attention_transformer_block.6} parent=5 // pred_fallthru
        _
      %p260 = scmp.le.s32.totalorder 1, %s16
      %p261 = scmp.lt.s32.totalorder %s16, 3
      %p262 = pnand %p260, %p261
      %p263 = pneg %p262
      // Predicated region
      $region41: #{attention_transformer_block.6} parent=5 // pred_check
        _
      $region42: #{attention_transformer_block.6} parent=5 // pred_check_branch
        %265 = sbr.rel (%p262) target = $region44
      $region43: #{attention_transformer_block.6} parent=5 // pred_region
        %s266 = ssub.s32 %s16, 1
        // Predicated region
        $region45: #{attention_transformer_block.6} parent=43 // pred_check
          %p267 = pneg %p63
        $region46: #{attention_transformer_block.6} parent=43 // pred_check_branch
          %269 = sbr.rel (%p267) target = $region48
        $region47: #{attention_transformer_block.6} parent=43 // pred_region
          %270 = dma.done [#allocation3], 512
        $region48: #{attention_transformer_block.6} parent=43 // pred_fallthru
          _
        // Predicated region
        $region49: #{attention_transformer_block.6} parent=43 // pred_check
          %p271 = pneg %p84
        $region50: #{attention_transformer_block.6} parent=43 // pred_check_branch
          %273 = sbr.rel (%p271) target = $region52
        $region51: #{attention_transformer_block.6} parent=43 // pred_region
          %274 = dma.done [#allocation5], 16
        $region52: #{attention_transformer_block.6} parent=43 // pred_fallthru
          _
        %s275 = smul.u32 16, %s21
        %p276 = scmp.lt.s32.totalorder %s275, 31
        %s277 = scalar_select %p276, %s275, 31
        %s278 = smul.addr %s277, 8
        %s279 = scalar_lea.vmem %s0, %s278
        %p280 = pneg %p42
        %p281 = pneg %p39
        %p282 = pneg %p63
        %p283 = pneg %p60
        %p284 = pneg %p84
        %p285 = pneg %p81
        %p286 = pneg %p105
        %p287 = pneg %p102
        %p288 = pneg %p126
        %p289 = pneg %p123
        %p290 = pneg %p147
        %p291 = pneg %p144
        %p292 = pneg %p173
        %p293 = pneg %p170
        %s294 = smul.u32 16, %s21
        %p295 = scmp.lt.s32.totalorder %s294, 31
        %s296 = scalar_select %p295, %s294, 31
        %s297 = smul.addr %s296, 8
        %s298 = scalar_lea.vmem %s6, %s297
        %p299 = pneg %p199
        %p300 = pneg %p196
        %p301 = scmp.lt.s32.totalorder %s21, 1
        %s302 = scalar_select %p301, %s21, 1
        %s303 = smul.addr %s302, 4
        %s304 = smul.addr %s303, 8
        %s305 = scalar_lea.vmem %s7, %s304
        %s306 = smul.u32 16, %s21
        %p307 = scmp.lt.s32.totalorder %s306, 31
        %s308 = scalar_select %p307, %s306, 31
        %s309 = smul.addr %s308, 8
        %s310 = scalar_lea.vmem %s0, %s309
        %s311 = smul.u32 16, %s21
        %s312 = smul.u32 16, %s21
        %p313 = scmp.lt.s32.totalorder %s312, 31
        %s314 = scalar_select %p313, %s312, 31
        %s315 = smul.addr %s314, 8
        %s316 = scalar_lea.vmem %s6, %s315
        %s317 = smul.u32 16, %s21
        %p318 = scmp.lt.s32.totalorder %s21, 1
        %s319 = scalar_select %p318, %s21, 1
        %s320 = smul.addr %s319, 4
        %s321 = smul.addr %s320, 8
        %s322 = scalar_lea.vmem %s7, %s321
        %v323 = vld [vmem:[%s310] sm:$0xff]
        %v324 = vld [vmem:[%s310 + $0x8] sm:$0xff]
        %v325 = vld [vmem:[%s310 + $0x10] sm:$0xff]
        %v326 = vld [vmem:[%s310 + $0x18] sm:$0xff]
        %v327 = vld [vmem:[%s310 + $0x20] sm:$0xff]
        %v328 = vld [vmem:[%s310 + $0x28] sm:$0xff]
        %v329 = vld [vmem:[%s310 + $0x30] sm:$0xff]
        %v330 = vld [vmem:[%s310 + $0x38] sm:$0xff]
        %v331 = vld [vmem:[%s310 + $0x40] sm:$0xff]
        %v332 = vld [vmem:[%s310 + $0x48] sm:$0xff]
        %v333 = vld [vmem:[%s310 + $0x50] sm:$0xff]
        %v334 = vld [vmem:[%s310 + $0x58] sm:$0xff]
        %v335 = vld [vmem:[%s310 + $0x60] sm:$0xff]
        %v336 = vld [vmem:[%s310 + $0x68] sm:$0xff]
        %v337 = vld [vmem:[%s310 + $0x70] sm:$0xff]
        %v338 = vld [vmem:[%s310 + $0x78] sm:$0xff]
        %v339 = vld [vmem:[#allocation2] sm:$0xff]
        %v340 = vld [vmem:[#allocation2 + $0x8] sm:$0xff]
        %v341 = vld [vmem:[#allocation2 + $0x10] sm:$0xff]
        %v342 = vld [vmem:[#allocation2 + $0x18] sm:$0xff]
        %v343 = vld [vmem:[#allocation4] sm:$0x1]
        %v345 = vlaneseq
        %v346 = vshrl.u32 %v345, 7
        %v347 = vsub.s32 0, %v346
        %v348 = vrot.slane %v343, %v347
        %vm350 = vcmask 261120
        %v352 = vsel %vm350, %v323, 0
        %v355 = vsel %vm350, %v324, 0
        %v358 = vsel %vm350, %v325, 0
        %v361 = vsel %vm350, %v326, 0
        %v364 = vsel %vm350, %v327, 0
        %v367 = vsel %vm350, %v328, 0
        %v370 = vsel %vm350, %v329, 0
        %v373 = vsel %vm350, %v330, 0
        %v376 = vsel %vm350, %v331, 0
        %v379 = vsel %vm350, %v332, 0
        %v382 = vsel %vm350, %v333, 0
        %v385 = vsel %vm350, %v334, 0
        %v388 = vsel %vm350, %v335, 0
        %v391 = vsel %vm350, %v336, 0
        %v394 = vsel %vm350, %v337, 0
        %v397 = vsel %vm350, %v338, 0
        %399 = vmatprep.subr.mxu0 0.0
        %400 = vmatpush1.msra.mxu0 %v339
        %401 = vmatprep.subr.mxu0 0.0
        %402 = vmatpush1.msra.mxu0 %v340
        %403 = vmatprep.subr.mxu0 0.0
        %404 = vmatpush1.msra.mxu0 %v341
        %405 = vmatprep.subr.mxu0 0.0
        %406 = vmatpush1.msra.mxu0 %v342
        %407 = vmatprep.subr.mxu0 0.0
        %408 = vmatpush1.msra.mxu0 0.0
        %409 = vmatprep.subr.mxu0 0.0
        %410 = vmatpush1.msra.mxu0 0.0
        %411 = vmatprep.subr.mxu0 0.0
        %412 = vmatpush1.msra.mxu0 0.0
        %413 = vmatprep.subr.mxu0 0.0
        %414 = vmatpush1.msra.mxu0 0.0
        %415 = vmatprep.subr.mxu0 0.0
        %416 = vmatpush1.msra.mxu0 0.0
        %417 = vmatprep.subr.mxu0 0.0
        %418 = vmatpush1.msra.mxu0 0.0
        %419 = vmatprep.subr.mxu0 0.0
        %420 = vmatpush1.msra.mxu0 0.0
        %421 = vmatprep.subr.mxu0 0.0
        %422 = vmatpush1.msra.mxu0 0.0
        %423 = vmatprep.subr.mxu0 0.0
        %424 = vmatpush1.msra.mxu0 0.0
        %425 = vmatprep.subr.mxu0 0.0
        %426 = vmatpush1.msra.mxu0 0.0
        %427 = vmatprep.subr.mxu0 0.0
        %428 = vmatpush1.msra.mxu0 0.0
        %429 = vmatprep.subr.mxu0 0.0
        %430 = vmatpush1.msra.mxu0 0.0
        %431 = vmatprep.subr.mxu0 0.0
        %432 = vmatpush1.msra.mxu0 0.0
        %433 = vmatprep.subr.mxu0 0.0
        %434 = vmatpush1.msra.mxu0 0.0
        %435 = vmatprep.subr.mxu0 0.0
        %436 = vmatpush1.msra.mxu0 0.0
        %437 = vmatprep.subr.mxu0 0.0
        %438 = vmatpush1.msra.mxu0 0.0
        %439 = vmatprep.subr.mxu0 0.0
        %440 = vmatpush1.msra.mxu0 0.0
        %441 = vmatprep.subr.mxu0 0.0
        %442 = vmatpush1.msra.mxu0 0.0
        %443 = vmatprep.subr.mxu0 0.0
        %444 = vmatpush1.msra.mxu0 0.0
        %445 = vmatprep.subr.mxu0 0.0
        %446 = vmatpush1.msra.mxu0 0.0
        %447 = vmatprep.subr.mxu0 0.0
        %448 = vmatpush1.msra.mxu0 0.0
        %449 = vmatprep.subr.mxu0 0.0
        %450 = vmatpush1.msra.mxu0 0.0
        %451 = vmatprep.subr.mxu0 0.0
        %452 = vmatpush1.msra.mxu0 0.0
        %453 = vmatprep.subr.mxu0 0.0
        %454 = vmatpush1.msra.mxu0 0.0
        %455 = vmatprep.subr.mxu0 0.0
        %456 = vmatpush1.msra.mxu0 0.0
        %457 = vmatprep.subr.mxu0 0.0
        %458 = vmatpush1.msra.mxu0 0.0
        %459 = vmatprep.subr.mxu0 0.0
        %460 = vmatpush1.msra.mxu0 0.0
        %461 = vmatprep.subr.mxu0 0.0
        %462 = vmatpush1.msra.mxu0 0.0
        %463 = vmatprep.mubr.f32.mxu0 0.0
        %464 = vmatmul.mubr.f32.gmra.mrb[0].mxu0 %v352
        %v465 = vpop.f32.mrb[0].mxu0
        %v466 = vadd.f32 %v348, %v465
        %v467 = vpop.f32.mrb[0].mxu0
        %468 = vmatprep.mubr.f32.mxu0 0.0
        %469 = vmatmul.mubr.f32.gmra.mrb[0].mxu0 %v355
        %v470 = vpop.f32.mrb[0].mxu0
        %v471 = vadd.f32 %v348, %v470
        %v472 = vpop.f32.mrb[0].mxu0
        %473 = vmatprep.mubr.f32.mxu0 0.0
        %474 = vmatmul.mubr.f32.gmra.mrb[0].mxu0 %v358
        %v475 = vpop.f32.mrb[0].mxu0
        %v476 = vadd.f32 %v348, %v475
        %v477 = vpop.f32.mrb[0].mxu0
        %478 = vmatprep.mubr.f32.mxu0 0.0
        %479 = vmatmul.mubr.f32.gmra.mrb[0].mxu0 %v361
        %v480 = vpop.f32.mrb[0].mxu0
        %v481 = vadd.f32 %v348, %v480
        %v482 = vpop.f32.mrb[0].mxu0
        %483 = vmatprep.mubr.f32.mxu0 0.0
        %484 = vmatmul.mubr.f32.gmra.mrb[0].mxu0 %v364
        %v485 = vpop.f32.mrb[0].mxu0
        %v486 = vadd.f32 %v348, %v485
        %v487 = vpop.f32.mrb[0].mxu0
        %488 = vmatprep.mubr.f32.mxu0 0.0
        %489 = vmatmul.mubr.f32.gmra.mrb[0].mxu0 %v367
        %v490 = vpop.f32.mrb[0].mxu0
        %v491 = vadd.f32 %v348, %v490
        %v492 = vpop.f32.mrb[0].mxu0
        %493 = vmatprep.mubr.f32.mxu0 0.0
        %494 = vmatmul.mubr.f32.gmra.mrb[0].mxu0 %v370
        %v495 = vpop.f32.mrb[0].mxu0
        %v496 = vadd.f32 %v348, %v495
        %v497 = vpop.f32.mrb[0].mxu0
        %498 = vmatprep.mubr.f32.mxu0 0.0
        %499 = vmatmul.mubr.f32.gmra.mrb[0].mxu0 %v373
        %v500 = vpop.f32.mrb[0].mxu0
        %v501 = vadd.f32 %v348, %v500
        %v502 = vpop.f32.mrb[0].mxu0
        %503 = vmatprep.mubr.f32.mxu0 0.0
        %504 = vmatmul.mubr.f32.gmra.mrb[0].mxu0 %v376
        %v505 = vpop.f32.mrb[0].mxu0
        %v506 = vadd.f32 %v348, %v505
        %v507 = vpop.f32.mrb[0].mxu0
        %508 = vmatprep.mubr.f32.mxu0 0.0
        %509 = vmatmul.mubr.f32.gmra.mrb[0].mxu0 %v379
        %v510 = vpop.f32.mrb[0].mxu0
        %v511 = vadd.f32 %v348, %v510
        %v512 = vpop.f32.mrb[0].mxu0
        %513 = vmatprep.mubr.f32.mxu0 0.0
        %514 = vmatmul.mubr.f32.gmra.mrb[0].mxu0 %v382
        %v515 = vpop.f32.mrb[0].mxu0
        %v516 = vadd.f32 %v348, %v515
        %v517 = vpop.f32.mrb[0].mxu0
        %518 = vmatprep.mubr.f32.mxu0 0.0
        %519 = vmatmul.mubr.f32.gmra.mrb[0].mxu0 %v385
        %v520 = vpop.f32.mrb[0].mxu0
        %v521 = vadd.f32 %v348, %v520
        %v522 = vpop.f32.mrb[0].mxu0
        %523 = vmatprep.mubr.f32.mxu0 0.0
        %524 = vmatmul.mubr.f32.gmra.mrb[0].mxu0 %v388
        %v525 = vpop.f32.mrb[0].mxu0
        %v526 = vadd.f32 %v348, %v525
        %v527 = vpop.f32.mrb[0].mxu0
        %528 = vmatprep.mubr.f32.mxu0 0.0
        %529 = vmatmul.mubr.f32.gmra.mrb[0].mxu0 %v391
        %v530 = vpop.f32.mrb[0].mxu0
        %v531 = vadd.f32 %v348, %v530
        %v532 = vpop.f32.mrb[0].mxu0
        %533 = vmatprep.mubr.f32.mxu0 0.0
        %534 = vmatmul.mubr.f32.gmra.mrb[0].mxu0 %v394
        %v535 = vpop.f32.mrb[0].mxu0
        %v536 = vadd.f32 %v348, %v535
        %v537 = vpop.f32.mrb[0].mxu0
        %538 = vmatprep.mubr.f32.mxu0 0.0
        %539 = vmatmul.mubr.f32.gmra.mrb[0].mxu0 %v397
        %v540 = vpop.f32.mrb[0].mxu0
        %v541 = vadd.f32 %v348, %v540
        %v542 = vpop.f32.mrb[0].mxu0
        %543 = vdwg.mxu0
        %vm544 = vcmask 785408
        %545 = vst.msk [vmem:[%s316] sm:$0xff] %vm544, %v466
        %546 = vst.msk [vmem:[%s316 + $0x8] sm:$0xff] %vm544, %v471
        %547 = vst.msk [vmem:[%s316 + $0x10] sm:$0xff] %vm544, %v476
        %548 = vst.msk [vmem:[%s316 + $0x18] sm:$0xff] %vm544, %v481
        %549 = vst.msk [vmem:[%s316 + $0x20] sm:$0xff] %vm544, %v486
        %550 = vst.msk [vmem:[%s316 + $0x28] sm:$0xff] %vm544, %v491
        %551 = vst.msk [vmem:[%s316 + $0x30] sm:$0xff] %vm544, %v496
        %552 = vst.msk [vmem:[%s316 + $0x38] sm:$0xff] %vm544, %v501
        %553 = vst.msk [vmem:[%s316 + $0x40] sm:$0xff] %vm544, %v506
        %554 = vst.msk [vmem:[%s316 + $0x48] sm:$0xff] %vm544, %v511
        %555 = vst.msk [vmem:[%s316 + $0x50] sm:$0xff] %vm544, %v516
        %556 = vst.msk [vmem:[%s316 + $0x58] sm:$0xff] %vm544, %v521
        %557 = vst.msk [vmem:[%s316 + $0x60] sm:$0xff] %vm544, %v526
        %558 = vst.msk [vmem:[%s316 + $0x68] sm:$0xff] %vm544, %v531
        %559 = vst.msk [vmem:[%s316 + $0x70] sm:$0xff] %vm544, %v536
        %560 = vst.msk [vmem:[%s316 + $0x78] sm:$0xff] %vm544, %v541
        %v561 = vld [vmem:[%s3] sm:$0xff]
        %v562 = vld [vmem:[%s3 + $0x8] sm:$0xff]
        %v563 = vld [vmem:[%s3 + $0x10] sm:$0xff]
        %v564 = vld [vmem:[%s3 + $0x18] sm:$0xff]
        %vm565 = vcmp.ge.f32.partialorder %v561, 0.0
        %vm566 = vcmp.ge.f32.partialorder %v562, 0.0
        %vm567 = vcmp.ge.f32.partialorder %v563, 0.0
        %vm568 = vcmp.ge.f32.partialorder %v564, 0.0
        %v569 = vmul.f32 %v561, 0.01
        %v570 = vmul.f32 %v562, 0.01
        %v571 = vmul.f32 %v563, 0.01
        %v572 = vmul.f32 %v564, 0.01
        %v573 = vsel %vm565, %v561, %v569
        %v574 = vsel %vm566, %v562, %v570
        %v575 = vsel %vm567, %v563, %v571
        %v576 = vsel %vm568, %v564, %v572
        %v577 = vld [vmem:[%s4] sm:$0xff]
        %v578 = vld [vmem:[%s4 + $0x8] sm:$0xff]
        %v579 = vld [vmem:[%s4 + $0x10] sm:$0xff]
        %v580 = vld [vmem:[%s4 + $0x18] sm:$0xff]
        %v581 = vld [vmem:[%s5] sm:$0x1]
        %v583 = vlaneseq
        %v584 = vshrl.u32 %v583, 7
        %v585 = vsub.s32 0, %v584
        %v586 = vrot.slane %v581, %v585
        %v589 = vsel %vm350, %v573, 0
        %v592 = vsel %vm350, %v574, 0
        %v595 = vsel %vm350, %v575, 0
        %v598 = vsel %vm350, %v576, 0
        %600 = vmatprep.subr.mxu0 0.0
        %601 = vmatpush1.msra.mxu0 %v577
        %602 = vmatprep.subr.mxu0 0.0
        %603 = vmatpush1.msra.mxu0 %v578
        %604 = vmatprep.subr.mxu0 0.0
        %605 = vmatpush1.msra.mxu0 %v579
        %606 = vmatprep.subr.mxu0 0.0
        %607 = vmatpush1.msra.mxu0 %v580
        %608 = vmatprep.subr.mxu0 0.0
        %609 = vmatpush1.msra.mxu0 0.0
        %610 = vmatprep.subr.mxu0 0.0
        %611 = vmatpush1.msra.mxu0 0.0
        %612 = vmatprep.subr.mxu0 0.0
        %613 = vmatpush1.msra.mxu0 0.0
        %614 = vmatprep.subr.mxu0 0.0
        %615 = vmatpush1.msra.mxu0 0.0
        %616 = vmatprep.subr.mxu0 0.0
        %617 = vmatpush1.msra.mxu0 0.0
        %618 = vmatprep.subr.mxu0 0.0
        %619 = vmatpush1.msra.mxu0 0.0
        %620 = vmatprep.subr.mxu0 0.0
        %621 = vmatpush1.msra.mxu0 0.0
        %622 = vmatprep.subr.mxu0 0.0
        %623 = vmatpush1.msra.mxu0 0.0
        %624 = vmatprep.subr.mxu0 0.0
        %625 = vmatpush1.msra.mxu0 0.0
        %626 = vmatprep.subr.mxu0 0.0
        %627 = vmatpush1.msra.mxu0 0.0
        %628 = vmatprep.subr.mxu0 0.0
        %629 = vmatpush1.msra.mxu0 0.0
        %630 = vmatprep.subr.mxu0 0.0
        %631 = vmatpush1.msra.mxu0 0.0
        %632 = vmatprep.subr.mxu0 0.0
        %633 = vmatpush1.msra.mxu0 0.0
        %634 = vmatprep.subr.mxu0 0.0
        %635 = vmatpush1.msra.mxu0 0.0
        %636 = vmatprep.subr.mxu0 0.0
        %637 = vmatpush1.msra.mxu0 0.0
        %638 = vmatprep.subr.mxu0 0.0
        %639 = vmatpush1.msra.mxu0 0.0
        %640 = vmatprep.subr.mxu0 0.0
        %641 = vmatpush1.msra.mxu0 0.0
        %642 = vmatprep.subr.mxu0 0.0
        %643 = vmatpush1.msra.mxu0 0.0
        %644 = vmatprep.subr.mxu0 0.0
        %645 = vmatpush1.msra.mxu0 0.0
        %646 = vmatprep.subr.mxu0 0.0
        %647 = vmatpush1.msra.mxu0 0.0
        %648 = vmatprep.subr.mxu0 0.0
        %649 = vmatpush1.msra.mxu0 0.0
        %650 = vmatprep.subr.mxu0 0.0
        %651 = vmatpush1.msra.mxu0 0.0
        %652 = vmatprep.subr.mxu0 0.0
        %653 = vmatpush1.msra.mxu0 0.0
        %654 = vmatprep.subr.mxu0 0.0
        %655 = vmatpush1.msra.mxu0 0.0
        %656 = vmatprep.subr.mxu0 0.0
        %657 = vmatpush1.msra.mxu0 0.0
        %658 = vmatprep.subr.mxu0 0.0
        %659 = vmatpush1.msra.mxu0 0.0
        %660 = vmatprep.subr.mxu0 0.0
        %661 = vmatpush1.msra.mxu0 0.0
        %662 = vmatprep.subr.mxu0 0.0
        %663 = vmatpush1.msra.mxu0 0.0
        %664 = vmatprep.mubr.f32.mxu0 0.0
        %665 = vmatmul.mubr.f32.gmra.mrb[0].mxu0 %v589
        %v666 = vpop.f32.mrb[0].mxu0
        %v667 = vadd.f32 %v586, %v666
        %v668 = vpop.f32.mrb[0].mxu0
        %669 = vmatprep.mubr.f32.mxu0 0.0
        %670 = vmatmul.mubr.f32.gmra.mrb[0].mxu0 %v592
        %v671 = vpop.f32.mrb[0].mxu0
        %v672 = vadd.f32 %v586, %v671
        %v673 = vpop.f32.mrb[0].mxu0
        %674 = vmatprep.mubr.f32.mxu0 0.0
        %675 = vmatmul.mubr.f32.gmra.mrb[0].mxu0 %v595
        %v676 = vpop.f32.mrb[0].mxu0
        %v677 = vadd.f32 %v586, %v676
        %v678 = vpop.f32.mrb[0].mxu0
        %679 = vmatprep.mubr.f32.mxu0 0.0
        %680 = vmatmul.mubr.f32.gmra.mrb[0].mxu0 %v598
        %v681 = vpop.f32.mrb[0].mxu0
        %v682 = vadd.f32 %v586, %v681
        %v683 = vpop.f32.mrb[0].mxu0
        %684 = vdwg.mxu0
        %vm685 = vcmask 130048
        %686 = vst.msk [vmem:[%s322] sm:$0xff] %vm685, %v667
        %687 = vst.msk [vmem:[%s322 + $0x8] sm:$0xff] %vm685, %v672
        %688 = vst.msk [vmem:[%s322 + $0x10] sm:$0xff] %vm685, %v677
        %689 = vst.msk [vmem:[%s322 + $0x18] sm:$0xff] %vm685, %v682
        %s690 = smul.u32 16, %s21
        %p691 = scmp.lt.s32.totalorder %s690, 31
        %s692 = scalar_select %p691, %s690, 31
        %s693 = smul.addr %s692, 8
        %s694 = scalar_lea.vmem %s6, %s693
        %p695 = scmp.lt.s32.totalorder %s21, 1
        %s696 = scalar_select %p695, %s21, 1
        %s697 = smul.addr %s696, 4
        %s698 = smul.addr %s697, 8
        %s699 = scalar_lea.vmem %s7, %s698
        // Predicated region
        $region53: #{attention_transformer_block.6} parent=43 // pred_check
          %p700 = pneg %p170
        $region54: #{attention_transformer_block.6} parent=43 // pred_check_branch
          %702 = sbr.rel (%p700) target = $region56
        $region55: #{attention_transformer_block.6} parent=43 // pred_region
          %s703 = smul.u32 16, %s21
        $region56: #{attention_transformer_block.6} parent=43 // pred_fallthru
          _
        // Predicated region
        $region57: #{attention_transformer_block.6} parent=43 // pred_check
          %p704 = pneg %p196
        $region58: #{attention_transformer_block.6} parent=43 // pred_check_branch
          %706 = sbr.rel (%p704) target = $region60
        $region59: #{attention_transformer_block.6} parent=43 // pred_region
          _
        $region60: #{attention_transformer_block.6} parent=43 // pred_fallthru
          _
      $region44: #{attention_transformer_block.6} parent=5 // pred_fallthru
        _
      %p707 = scmp.le.s32.totalorder 2, %s16
      // Predicated region
      $region61: #{attention_transformer_block.6} parent=5 // pred_check
        %p708 = pneg %p707
      $region62: #{attention_transformer_block.6} parent=5 // pred_check_branch
        %710 = sbr.rel (%p708) target = $region64
      $region63: #{attention_transformer_block.6} parent=5 // pred_region
        %s711 = ssub.s32 %s16, 2
        // Predicated region
        $region65: #{attention_transformer_block.6} parent=63 // pred_check
          %p712 = pneg %p176
        $region66: #{attention_transformer_block.6} parent=63 // pred_check_branch
          %714 = sbr.rel (%p712) target = $region68
        $region67: #{attention_transformer_block.6} parent=63 // pred_region
          %s715 = smul.u32 16, %s22
          %p716 = scmp.lt.s32.totalorder %s715, 31
          %s717 = scalar_select %p716, %s715, 31
          %s718 = smul.addr %s717, 8
          %s719 = scalar_lea.vmem %s6, %s718
        $region68: #{attention_transformer_block.6} parent=63 // pred_fallthru
          _
        // Predicated region
        $region69: #{attention_transformer_block.6} parent=63 // pred_check
          %p720 = pneg %p202
        $region70: #{attention_transformer_block.6} parent=63 // pred_check_branch
          %722 = sbr.rel (%p720) target = $region72
        $region71: #{attention_transformer_block.6} parent=63 // pred_region
          %p723 = scmp.lt.s32.totalorder %s22, 1
          %s724 = scalar_select %p723, %s22, 1
          %s725 = smul.addr %s724, 4
          %s726 = smul.addr %s725, 8
          %s727 = scalar_lea.vmem %s7, %s726
        $region72: #{attention_transformer_block.6} parent=63 // pred_fallthru
          _
      $region64: #{attention_transformer_block.6} parent=5 // pred_fallthru
        _
    $region6: #{attention_transformer_block.6} parent=1 // loop_footer
      %s20 = sadd.s32 1, %s16
    $region7: #{attention_transformer_block.6} parent=1 // loop_footer_branch
      %15 = sbr.rel target = $region3
    $region8: #{attention_transformer_block.6} parent=1 // loop_exit
      _
    %728 = vsyncpa [#allocation3], 1
    %s729 = scalar_lea.sflag [#allocation3], 1
    %730 = vsyncpa %s729, 1
    %731 = vsyncpa [#allocation5], 1

// kernel: attention_transformer_block.5
$region0: #{attention_transformer_block.5}
  #allocation0 [shape = 'u32[]', space=smem, size = 0x4, offset = 0x4, fixed_abs, tag = 'smem constant byte address 0x4 - core index']
  #allocation1 [shape = 'u32[144,128]{1,0:T(1,128)}', space=vmem, size = 0x12000, scoped, tag = 'internal scratch']
  %s0 = inlined_call_operand.vmem [shape: f32[4,10,10,32], index: 0, kind: input, shape index: {}]
  %s1 = inlined_call_operand.hbm [shape: f32[9,32], index: 1, kind: input, shape index: {}]
  %s2 = inlined_call_operand.hbm [shape: f32[1,32], index: 2, kind: input, shape index: {}]
  %s3 = inlined_call_operand.hbm [shape: f32[1,32], index: 3, kind: input, shape index: {}]
  %s4 = inlined_call_operand.hbm [shape: f32[1,32], index: 4, kind: input, shape index: {}]
  %s5 = inlined_call_operand.vmem [shape: f32[4,8,8,32], index: 5, kind: output, shape index: {0}]
  %s6 = inlined_call_operand.vmem [shape: f32[4,8,8,32], index: 6, kind: output, shape index: {1}]
  %7 = xla_tuple %s5, %s6
  %s8 = sld [smem:[#allocation0]]
  $region77: #{attention_transformer_block.5} parent=0
    _
  %s10 = ssub.s32 1, %s8
  %s11 = scalar_select 0, %s10, %s8
  $region1: #{attention_transformer_block.5} parent=0
    #allocation2 [shape = 'u8[8192]{0}', space=vmem, size = 0x2000, scoped, tag = 'input window, operand 1, single buffered']
    #allocation3 [shape = 's32[2]{0}', space=sflag, size = 0x8, scoped, tag = 'scoped memory for attention_transformer_block.5']
    #allocation4 [shape = 'u8[512]{0}', space=vmem, size = 0x400, scoped, tag = 'input window, operand 2, single buffered']
    #allocation5 [shape = 's32[1]{0}', space=sflag, size = 0x4, scoped, tag = 'scoped memory for attention_transformer_block.5']
    #allocation6 [shape = 'u8[512]{0}', space=vmem, size = 0x400, scoped, tag = 'input window, operand 3, single buffered']
    #allocation7 [shape = 'u8[512]{0}', space=vmem, size = 0x400, scoped, tag = 'input window, operand 4, single buffered']
    #allocation8 [shape = 's32[1]{0}', space=sflag, size = 0x4, scoped, tag = 'scoped memory for attention_transformer_block.5']
    %12 = vsyncpa [#allocation3], 0
    %13 = vsyncpa [#allocation5], 0
    %14 = vsyncpa [#allocation8], 0
    loop: start=0, step=1, limit=4
    $region2: #{attention_transformer_block.5} parent=1 // loop_pre_header
      _
    $region3: #{attention_transformer_block.5} parent=1 // loop_header
      %s16 = sphi 0, %s20
      %p17 = scmp.ge.s32.totalorder %s16, 4
      %s26 = sphi 0, %s28
      %s29 = sphi 0, %s26
      %s30 = sphi 0, %s29
      %s46 = sphi 0, %s30
      %s50 = sphi 0, %s50
      %s52 = sphi 0, %s50
      %s53 = sphi 0, %s52
      %s67 = sphi 0, %s53
      %s71 = sphi 0, %s71
      %s73 = sphi 0, %s71
      %s74 = sphi 0, %s73
      %s88 = sphi 0, %s74
      %s92 = sphi 0, %s92
      %s94 = sphi 0, %s92
      %s95 = sphi 0, %s94
      %s109 = sphi 0, %s95
      %s113 = sphi 0, %s113
      %s115 = sphi 0, %s113
      %s116 = sphi 0, %s115
      %s130 = sphi 0, %s116
      %s136 = sphi 0, %s138
      %s139 = sphi 0, %s136
      %s140 = sphi 0, %s139
      %s156 = sphi 0, %s140
      %s162 = sphi 0, %s164
      %s165 = sphi 0, %s162
      %s166 = sphi 0, %s165
      %s182 = sphi 0, %s166
    $region4: #{attention_transformer_block.5} parent=1 // loop_header_branch
      %19 = sbr.rel (%p17) target = $region8
    $region5: #{attention_transformer_block.5} parent=1 // loop_body
      %s21 = ssub.s32 %s16, 1
      %s22 = ssub.s32 %s16, 2
      %s23 = sadd.s32 %s16, 1
      %s24 = ssub.s32 %s16, %s23
      %p25 = scmp.eq.s32.totalorder %s24, 0
      %s27 = sadd.s32 %s26, 1
      %s28 = scalar_select %p25, %s26, %s27
      %p31 = pneg %p25
      %p32 = scmp.eq.s32.totalorder %s16, 1
      %p33 = por %p31, %p32
      %p34 = scmp.ne.s32.totalorder %s26, %s29
      %p35 = scmp.eq.s32.totalorder %s16, 0
      %p36 = por %p34, %p35
      %p37 = scmp.ne.s32.totalorder %s26, %s29
      %p38 = scmp.eq.s32.totalorder %s21, 1
      %p39 = por %p37, %p38
      %p40 = scmp.ne.s32.totalorder %s29, %s30
      %p41 = scmp.eq.s32.totalorder %s21, 0
      %p42 = por %p40, %p41
      %p43 = scmp.ne.s32.totalorder %s29, %s30
      %p44 = scmp.eq.s32.totalorder %s22, 1
      %p45 = por %p43, %p44
      %p47 = scmp.ne.s32.totalorder %s30, %s46
      %p48 = scmp.eq.s32.totalorder %s22, 0
      %p49 = por %p47, %p48
      %s51 = sadd.s32 %s50, 1
      %p54 = scmp.eq.s32.totalorder %s16, 1
      %p55 = scmp.ne.s32.totalorder %s50, %s52
      %p56 = scmp.eq.s32.totalorder %s16, 0
      %p57 = por %p55, %p56
      %p58 = scmp.ne.s32.totalorder %s50, %s52
      %p59 = scmp.eq.s32.totalorder %s21, 1
      %p60 = por %p58, %p59
      %p61 = scmp.ne.s32.totalorder %s52, %s53
      %p62 = scmp.eq.s32.totalorder %s21, 0
      %p63 = por %p61, %p62
      %p64 = scmp.ne.s32.totalorder %s52, %s53
      %p65 = scmp.eq.s32.totalorder %s22, 1
      %p66 = por %p64, %p65
      %p68 = scmp.ne.s32.totalorder %s53, %s67
      %p69 = scmp.eq.s32.totalorder %s22, 0
      %p70 = por %p68, %p69
      %s72 = sadd.s32 %s71, 1
      %p75 = scmp.eq.s32.totalorder %s16, 1
      %p76 = scmp.ne.s32.totalorder %s71, %s73
      %p77 = scmp.eq.s32.totalorder %s16, 0
      %p78 = por %p76, %p77
      %p79 = scmp.ne.s32.totalorder %s71, %s73
      %p80 = scmp.eq.s32.totalorder %s21, 1
      %p81 = por %p79, %p80
      %p82 = scmp.ne.s32.totalorder %s73, %s74
      %p83 = scmp.eq.s32.totalorder %s21, 0
      %p84 = por %p82, %p83
      %p85 = scmp.ne.s32.totalorder %s73, %s74
      %p86 = scmp.eq.s32.totalorder %s22, 1
      %p87 = por %p85, %p86
      %p89 = scmp.ne.s32.totalorder %s74, %s88
      %p90 = scmp.eq.s32.totalorder %s22, 0
      %p91 = por %p89, %p90
      %s93 = sadd.s32 %s92, 1
      %p96 = scmp.eq.s32.totalorder %s16, 1
      %p97 = scmp.ne.s32.totalorder %s92, %s94
      %p98 = scmp.eq.s32.totalorder %s16, 0
      %p99 = por %p97, %p98
      %p100 = scmp.ne.s32.totalorder %s92, %s94
      %p101 = scmp.eq.s32.totalorder %s21, 1
      %p102 = por %p100, %p101
      %p103 = scmp.ne.s32.totalorder %s94, %s95
      %p104 = scmp.eq.s32.totalorder %s21, 0
      %p105 = por %p103, %p104
      %p106 = scmp.ne.s32.totalorder %s94, %s95
      %p107 = scmp.eq.s32.totalorder %s22, 1
      %p108 = por %p106, %p107
      %p110 = scmp.ne.s32.totalorder %s95, %s109
      %p111 = scmp.eq.s32.totalorder %s22, 0
      %p112 = por %p110, %p111
      %s114 = sadd.s32 %s113, 1
      %p117 = scmp.eq.s32.totalorder %s16, 1
      %p118 = scmp.ne.s32.totalorder %s113, %s115
      %p119 = scmp.eq.s32.totalorder %s16, 0
      %p120 = por %p118, %p119
      %p121 = scmp.ne.s32.totalorder %s113, %s115
      %p122 = scmp.eq.s32.totalorder %s21, 1
      %p123 = por %p121, %p122
      %p124 = scmp.ne.s32.totalorder %s115, %s116
      %p125 = scmp.eq.s32.totalorder %s21, 0
      %p126 = por %p124, %p125
      %p127 = scmp.ne.s32.totalorder %s115, %s116
      %p128 = scmp.eq.s32.totalorder %s22, 1
      %p129 = por %p127, %p128
      %p131 = scmp.ne.s32.totalorder %s116, %s130
      %p132 = scmp.eq.s32.totalorder %s22, 0
      %p133 = por %p131, %p132
      %s134 = ssub.s32 %s16, %s23
      %p135 = scmp.eq.s32.totalorder %s134, 0
      %s137 = sadd.s32 %s136, 1
      %s138 = scalar_select %p135, %s136, %s137
      %p141 = pneg %p135
      %p142 = scmp.eq.s32.totalorder %s16, 1
      %p143 = por %p141, %p142
      %p144 = scmp.ne.s32.totalorder %s136, %s139
      %p145 = scmp.eq.s32.totalorder %s16, 0
      %p146 = por %p144, %p145
      %p147 = scmp.ne.s32.totalorder %s136, %s139
      %p148 = scmp.eq.s32.totalorder %s21, 1
      %p149 = por %p147, %p148
      %p150 = scmp.ne.s32.totalorder %s139, %s140
      %p151 = scmp.eq.s32.totalorder %s21, 0
      %p152 = por %p150, %p151
      %p153 = scmp.ne.s32.totalorder %s139, %s140
      %p154 = scmp.eq.s32.totalorder %s22, 1
      %p155 = por %p153, %p154
      %p157 = scmp.ne.s32.totalorder %s140, %s156
      %p158 = scmp.eq.s32.totalorder %s22, 0
      %p159 = por %p157, %p158
      %s160 = ssub.s32 %s16, %s23
      %p161 = scmp.eq.s32.totalorder %s160, 0
      %s163 = sadd.s32 %s162, 1
      %s164 = scalar_select %p161, %s162, %s163
      %p167 = pneg %p161
      %p168 = scmp.eq.s32.totalorder %s16, 1
      %p169 = por %p167, %p168
      %p170 = scmp.ne.s32.totalorder %s162, %s165
      %p171 = scmp.eq.s32.totalorder %s16, 0
      %p172 = por %p170, %p171
      %p173 = scmp.ne.s32.totalorder %s162, %s165
      %p174 = scmp.eq.s32.totalorder %s21, 1
      %p175 = por %p173, %p174
      %p176 = scmp.ne.s32.totalorder %s165, %s166
      %p177 = scmp.eq.s32.totalorder %s21, 0
      %p178 = por %p176, %p177
      %p179 = scmp.ne.s32.totalorder %s165, %s166
      %p180 = scmp.eq.s32.totalorder %s22, 1
      %p181 = por %p179, %p180
      %p183 = scmp.ne.s32.totalorder %s166, %s182
      %p184 = scmp.eq.s32.totalorder %s22, 0
      %p185 = por %p183, %p184
      %p186 = scmp.le.s32.totalorder 1, %s16
      %p187 = scmp.lt.s32.totalorder %s16, 3
      %p188 = pnand %p186, %p187
      %p189 = pneg %p188
      // Predicated region
      $region9: #{attention_transformer_block.5} parent=5 // pred_check
        _
      $region10: #{attention_transformer_block.5} parent=5 // pred_check_branch
        %191 = sbr.rel (%p188) target = $region12
      $region11: #{attention_transformer_block.5} parent=5 // pred_region
        %s192 = ssub.s32 %s16, 1
        // Predicated region
        $region13: #{attention_transformer_block.5} parent=11 // pred_check
          %p193 = pneg %p63
        $region14: #{attention_transformer_block.5} parent=11 // pred_check_branch
          %195 = sbr.rel (%p193) target = $region16
        $region15: #{attention_transformer_block.5} parent=11 // pred_region
          %s197 = ssub.s32 256, 256
          %198 = vsyncadd [#allocation3], %s197
          %s199 = sshll.u32 [#allocation2], 4
          %s200 = int_to_ptr.vmem [resolvable:$true] %s199
          %205 = dma.hbm_to_vmem [thread:$0]  %s1, 256, %s200, [#allocation3], 128, 128, 8
        $region16: #{attention_transformer_block.5} parent=11 // pred_fallthru
          _
        // Predicated region
        $region17: #{attention_transformer_block.5} parent=11 // pred_check
          %p206 = pneg %p84
        $region18: #{attention_transformer_block.5} parent=11 // pred_check_branch
          %208 = sbr.rel (%p206) target = $region20
        $region19: #{attention_transformer_block.5} parent=11 // pred_region
          %s210 = ssub.s32 16, 16
          %211 = vsyncadd [#allocation5], %s210
          %s213 = sshll.u32 [#allocation4], 4
          %s214 = int_to_ptr.vmem [resolvable:$true] %s213
          %216 = dma.hbm_to_vmem [thread:$0]  %s2, 16, %s214, [#allocation5]
        $region20: #{attention_transformer_block.5} parent=11 // pred_fallthru
          _
        // Predicated region
        $region21: #{attention_transformer_block.5} parent=11 // pred_check
          %p217 = pneg %p105
        $region22: #{attention_transformer_block.5} parent=11 // pred_check_branch
          %219 = sbr.rel (%p217) target = $region24
        $region23: #{attention_transformer_block.5} parent=11 // pred_region
          %s221 = ssub.s32 16, 16
          %222 = vsyncadd [#allocation5], %s221
          %s224 = sshll.u32 [#allocation6], 4
          %s225 = int_to_ptr.vmem [resolvable:$true] %s224
          %227 = dma.hbm_to_vmem [thread:$0]  %s3, 16, %s225, [#allocation5]
        $region24: #{attention_transformer_block.5} parent=11 // pred_fallthru
          _
        // Predicated region
        $region25: #{attention_transformer_block.5} parent=11 // pred_check
          %p228 = pneg %p126
        $region26: #{attention_transformer_block.5} parent=11 // pred_check_branch
          %230 = sbr.rel (%p228) target = $region28
        $region27: #{attention_transformer_block.5} parent=11 // pred_region
          %s232 = ssub.s32 16, 16
          %233 = vsyncadd [#allocation8], %s232
          %s235 = sshll.u32 [#allocation7], 4
          %s236 = int_to_ptr.vmem [resolvable:$true] %s235
          %238 = dma.hbm_to_vmem [thread:$0]  %s4, 16, %s236, [#allocation8]
        $region28: #{attention_transformer_block.5} parent=11 // pred_fallthru
          _
      $region12: #{attention_transformer_block.5} parent=5 // pred_fallthru
        _
      %p239 = scmp.lt.s32.totalorder %s16, 2
      // Predicated region
      $region29: #{attention_transformer_block.5} parent=5 // pred_check
        %p240 = pneg %p239
      $region30: #{attention_transformer_block.5} parent=5 // pred_check_branch
        %242 = sbr.rel (%p240) target = $region32
      $region31: #{attention_transformer_block.5} parent=5 // pred_region
        // Predicated region
        $region33: #{attention_transformer_block.5} parent=31 // pred_check
          %p243 = pneg %p36
        $region34: #{attention_transformer_block.5} parent=31 // pred_check_branch
          %245 = sbr.rel (%p243) target = $region36
        $region35: #{attention_transformer_block.5} parent=31 // pred_region
          %s246 = smul.u32 2, %s16
          %p247 = scmp.lt.s32.totalorder %s246, 3
          %s248 = scalar_select %p247, %s246, 3
          %s249 = smul.addr %s248, 20
          %s250 = smul.addr %s249, 8
          %s251 = scalar_lea.vmem %s0, %s250
          %s252 = smul.u32 2, %s16
        $region36: #{attention_transformer_block.5} parent=31 // pred_fallthru
          _
      $region32: #{attention_transformer_block.5} parent=5 // pred_fallthru
        _
      %p253 = scmp.le.s32.totalorder 1, %s16
      %p254 = scmp.lt.s32.totalorder %s16, 3
      %p255 = pnand %p253, %p254
      %p256 = pneg %p255
      // Predicated region
      $region37: #{attention_transformer_block.5} parent=5 // pred_check
        _
      $region38: #{attention_transformer_block.5} parent=5 // pred_check_branch
        %258 = sbr.rel (%p255) target = $region40
      $region39: #{attention_transformer_block.5} parent=5 // pred_region
        %s259 = ssub.s32 %s16, 1
        // Predicated region
        $region41: #{attention_transformer_block.5} parent=39 // pred_check
          %p260 = pneg %p63
        $region42: #{attention_transformer_block.5} parent=39 // pred_check_branch
          %262 = sbr.rel (%p260) target = $region44
        $region43: #{attention_transformer_block.5} parent=39 // pred_region
          %263 = dma.done [#allocation3], 256
        $region44: #{attention_transformer_block.5} parent=39 // pred_fallthru
          _
        // Predicated region
        $region45: #{attention_transformer_block.5} parent=39 // pred_check
          %p264 = pneg %p84
        $region46: #{attention_transformer_block.5} parent=39 // pred_check_branch
          %266 = sbr.rel (%p264) target = $region48
        $region47: #{attention_transformer_block.5} parent=39 // pred_region
          %267 = dma.done [#allocation5], 16
        $region48: #{attention_transformer_block.5} parent=39 // pred_fallthru
          _
        // Predicated region
        $region49: #{attention_transformer_block.5} parent=39 // pred_check
          %p268 = pneg %p105
        $region50: #{attention_transformer_block.5} parent=39 // pred_check_branch
          %270 = sbr.rel (%p268) target = $region52
        $region51: #{attention_transformer_block.5} parent=39 // pred_region
          %271 = dma.done [#allocation5], 16
        $region52: #{attention_transformer_block.5} parent=39 // pred_fallthru
          _
        // Predicated region
        $region53: #{attention_transformer_block.5} parent=39 // pred_check
          %p272 = pneg %p126
        $region54: #{attention_transformer_block.5} parent=39 // pred_check_branch
          %274 = sbr.rel (%p272) target = $region56
        $region55: #{attention_transformer_block.5} parent=39 // pred_region
          %275 = dma.done [#allocation8], 16
        $region56: #{attention_transformer_block.5} parent=39 // pred_fallthru
          _
        %s276 = smul.u32 2, %s21
        %p277 = scmp.lt.s32.totalorder %s276, 3
        %s278 = scalar_select %p277, %s276, 3
        %s279 = smul.addr %s278, 20
        %s280 = smul.addr %s279, 8
        %s281 = scalar_lea.vmem %s0, %s280
        %p282 = pneg %p42
        %p283 = pneg %p39
        %p284 = pneg %p63
        %p285 = pneg %p60
        %p286 = pneg %p84
        %p287 = pneg %p81
        %p288 = pneg %p105
        %p289 = pneg %p102
        %p290 = pneg %p126
        %p291 = pneg %p123
        %p292 = pneg %p152
        %p293 = pneg %p149
        %s294 = smul.u32 2, %s21
        %p295 = scmp.lt.s32.totalorder %s294, 3
        %s296 = scalar_select %p295, %s294, 3
        %s297 = smul.addr %s296, 8
        %s298 = smul.addr %s297, 8
        %s299 = scalar_lea.vmem %s5, %s298
        %p300 = pneg %p178
        %p301 = pneg %p175
        %s302 = smul.u32 2, %s21
        %p303 = scmp.lt.s32.totalorder %s302, 3
        %s304 = scalar_select %p303, %s302, 3
        %s305 = smul.addr %s304, 8
        %s306 = smul.addr %s305, 8
        %s307 = scalar_lea.vmem %s6, %s306
        %s308 = smul.u32 2, %s21
        %p309 = scmp.lt.s32.totalorder %s308, 3
        %s310 = scalar_select %p309, %s308, 3
        %s311 = smul.addr %s310, 20
        %s312 = smul.addr %s311, 8
        %s313 = scalar_lea.vmem %s0, %s312
        %s314 = smul.u32 2, %s21
        %s315 = smul.u32 2, %s21
        %p316 = scmp.lt.s32.totalorder %s315, 3
        %s317 = scalar_select %p316, %s315, 3
        %s318 = smul.addr %s317, 8
        %s319 = smul.addr %s318, 8
        %s320 = scalar_lea.vmem %s5, %s319
        %s321 = smul.u32 2, %s21
        %s322 = smul.u32 2, %s21
        %p323 = scmp.lt.s32.totalorder %s322, 3
        %s324 = scalar_select %p323, %s322, 3
        %s325 = smul.addr %s324, 8
        %s326 = smul.addr %s325, 8
        %s327 = scalar_lea.vmem %s6, %s326
        %s328 = smul.u32 2, %s21
        %v329 = vld [vmem:[%s313] sm:$0xff]
        %v330 = vld [vmem:[%s313 + $0x8] sm:$0x3]
        %v331 = vld [vmem:[%s313 + $0x10] sm:$0xff]
        %v332 = vld [vmem:[%s313 + $0x18] sm:$0x3]
        %v333 = vld [vmem:[%s313 + $0x20] sm:$0xff]
        %v334 = vld [vmem:[%s313 + $0x28] sm:$0x3]
        %v335 = vld [vmem:[%s313 + $0x30] sm:$0xff]
        %v336 = vld [vmem:[%s313 + $0x38] sm:$0x3]
        %v337 = vld [vmem:[%s313 + $0x40] sm:$0xff]
        %v338 = vld [vmem:[%s313 + $0x48] sm:$0x3]
        %v339 = vld [vmem:[%s313 + $0x50] sm:$0xff]
        %v340 = vld [vmem:[%s313 + $0x58] sm:$0x3]
        %v341 = vld [vmem:[%s313 + $0x60] sm:$0xff]
        %v342 = vld [vmem:[%s313 + $0x68] sm:$0x3]
        %v343 = vld [vmem:[%s313 + $0x70] sm:$0xff]
        %v344 = vld [vmem:[%s313 + $0x78] sm:$0x3]
        %v345 = vld [vmem:[%s313 + $0x80] sm:$0xff]
        %v346 = vld [vmem:[%s313 + $0x88] sm:$0x3]
        %v347 = vld [vmem:[%s313 + $0x90] sm:$0xff]
        %v348 = vld [vmem:[%s313 + $0x98] sm:$0x3]
        %v349 = vld [vmem:[%s313 + $0xa0] sm:$0xff]
        %v350 = vld [vmem:[%s313 + $0xa8] sm:$0x3]
        %v351 = vld [vmem:[%s313 + $0xb0] sm:$0xff]
        %v352 = vld [vmem:[%s313 + $0xb8] sm:$0x3]
        %v353 = vld [vmem:[%s313 + $0xc0] sm:$0xff]
        %v354 = vld [vmem:[%s313 + $0xc8] sm:$0x3]
        %v355 = vld [vmem:[%s313 + $0xd0] sm:$0xff]
        %v356 = vld [vmem:[%s313 + $0xd8] sm:$0x3]
        %v357 = vld [vmem:[%s313 + $0xe0] sm:$0xff]
        %v358 = vld [vmem:[%s313 + $0xe8] sm:$0x3]
        %v359 = vld [vmem:[%s313 + $0xf0] sm:$0xff]
        %v360 = vld [vmem:[%s313 + $0xf8] sm:$0x3]
        %v361 = vld [vmem:[%s313 + $0x100] sm:$0xff]
        %v362 = vld [vmem:[%s313 + $0x108] sm:$0x3]
        %v363 = vld [vmem:[%s313 + $0x110] sm:$0xff]
        %v364 = vld [vmem:[%s313 + $0x118] sm:$0x3]
        %v365 = vld [vmem:[%s313 + $0x120] sm:$0xff]
        %v366 = vld [vmem:[%s313 + $0x128] sm:$0x3]
        %v367 = vld [vmem:[%s313 + $0x130] sm:$0xff]
        %v368 = vld [vmem:[%s313 + $0x138] sm:$0x3]
        %v369 = vld [vmem:[#allocation2] sm:$0xff]
        %v370 = vld [vmem:[#allocation2 + $0x8] sm:$0x1]
        %v371 = vld [vmem:[#allocation4] sm:$0x1]
        %v373 = vlaneseq
        %v374 = vshrl.u32 %v373, 7
        %v375 = vsub.s32 0, %v374
        %v376 = vrot.slane %v371, %v375
        %v378 = vadd.f32 %v331, %v376
        %v379 = vadd.f32 %v332, %v376
        %v380 = vadd.f32 %v333, %v376
        %v381 = vadd.f32 %v334, %v376
        %v382 = vadd.f32 %v335, %v376
        %v383 = vadd.f32 %v336, %v376
        %v384 = vadd.f32 %v337, %v376
        %v385 = vadd.f32 %v338, %v376
        %v386 = vadd.f32 %v339, %v376
        %v387 = vadd.f32 %v340, %v376
        %v388 = vadd.f32 %v341, %v376
        %v389 = vadd.f32 %v342, %v376
        %v390 = vadd.f32 %v343, %v376
        %v391 = vadd.f32 %v344, %v376
        %v392 = vadd.f32 %v345, %v376
        %v393 = vadd.f32 %v346, %v376
        %v394 = vadd.f32 %v351, %v376
        %v395 = vadd.f32 %v352, %v376
        %v396 = vadd.f32 %v353, %v376
        %v397 = vadd.f32 %v354, %v376
        %v398 = vadd.f32 %v355, %v376
        %v399 = vadd.f32 %v356, %v376
        %v400 = vadd.f32 %v357, %v376
        %v401 = vadd.f32 %v358, %v376
        %v402 = vadd.f32 %v359, %v376
        %v403 = vadd.f32 %v360, %v376
        %v404 = vadd.f32 %v361, %v376
        %v405 = vadd.f32 %v362, %v376
        %v406 = vadd.f32 %v363, %v376
        %v407 = vadd.f32 %v364, %v376
        %v408 = vadd.f32 %v365, %v376
        %v409 = vadd.f32 %v366, %v376
        %v410 = vlaneseq
        %v411 = vshrl.u32 %v410, 7
        %v412 = vsub.s32 0, %v411
        %v413 = vrot.slane %v369, %v412
        %v414 = vmul.f32 %v329, %v413
        %v415 = vmul.f32 %v331, %v413
        %v416 = vmul.f32 %v333, %v413
        %v417 = vmul.f32 %v335, %v413
        %v418 = vmul.f32 %v337, %v413
        %v419 = vmul.f32 %v339, %v413
        %v420 = vmul.f32 %v341, %v413
        %v421 = vmul.f32 %v343, %v413
        %v422 = vmul.f32 %v349, %v413
        %v423 = vmul.f32 %v351, %v413
        %v424 = vmul.f32 %v353, %v413
        %v425 = vmul.f32 %v355, %v413
        %v426 = vmul.f32 %v357, %v413
        %v427 = vmul.f32 %v359, %v413
        %v428 = vmul.f32 %v361, %v413
        %v429 = vmul.f32 %v363, %v413
        %v446 = vrot.slane %v414, 7
        %v447 = vrot.slane %v415, 7
        %v448 = vrot.slane %v416, 7
        %v449 = vrot.slane %v417, 7
        %v450 = vrot.slane %v418, 7
        %v451 = vrot.slane %v419, 7
        %v452 = vrot.slane %v420, 7
        %v453 = vrot.slane %v421, 7
        %v454 = vrot.slane %v422, 7
        %v455 = vrot.slane %v423, 7
        %v456 = vrot.slane %v424, 7
        %v457 = vrot.slane %v425, 7
        %v458 = vrot.slane %v426, 7
        %v459 = vrot.slane %v427, 7
        %v460 = vrot.slane %v428, 7
        %v461 = vrot.slane %v429, 7
        %v478 = vadd.f32 %v378, %v446
        %v479 = vadd.f32 %v379, %v446
        %v480 = vadd.f32 %v380, %v447
        %v481 = vadd.f32 %v381, %v447
        %v482 = vadd.f32 %v382, %v448
        %v483 = vadd.f32 %v383, %v448
        %v484 = vadd.f32 %v384, %v449
        %v485 = vadd.f32 %v385, %v449
        %v486 = vadd.f32 %v386, %v450
        %v487 = vadd.f32 %v387, %v450
        %v488 = vadd.f32 %v388, %v451
        %v489 = vadd.f32 %v389, %v451
        %v490 = vadd.f32 %v390, %v452
        %v491 = vadd.f32 %v391, %v452
        %v492 = vadd.f32 %v392, %v453
        %v493 = vadd.f32 %v393, %v453
        %v494 = vadd.f32 %v394, %v454
        %v495 = vadd.f32 %v395, %v454
        %v496 = vadd.f32 %v396, %v455
        %v497 = vadd.f32 %v397, %v455
        %v498 = vadd.f32 %v398, %v456
        %v499 = vadd.f32 %v399, %v456
        %v500 = vadd.f32 %v400, %v457
        %v501 = vadd.f32 %v401, %v457
        %v502 = vadd.f32 %v402, %v458
        %v503 = vadd.f32 %v403, %v458
        %v504 = vadd.f32 %v404, %v459
        %v505 = vadd.f32 %v405, %v459
        %v506 = vadd.f32 %v406, %v460
        %v507 = vadd.f32 %v407, %v460
        %v508 = vadd.f32 %v408, %v461
        %v509 = vadd.f32 %v409, %v461
        %v510 = vlaneseq
        %v511 = vshrl.u32 %v510, 7
        %v512 = vsub.s32 1, %v511
        %v513 = vrot.slane %v369, %v512
        %v514 = vmul.f32 %v329, %v513
        %v515 = vmul.f32 %v330, %v513
        %v516 = vmul.f32 %v331, %v513
        %v517 = vmul.f32 %v332, %v513
        %v518 = vmul.f32 %v333, %v513
        %v519 = vmul.f32 %v334, %v513
        %v520 = vmul.f32 %v335, %v513
        %v521 = vmul.f32 %v336, %v513
        %v522 = vmul.f32 %v337, %v513
        %v523 = vmul.f32 %v338, %v513
        %v524 = vmul.f32 %v339, %v513
        %v525 = vmul.f32 %v340, %v513
        %v526 = vmul.f32 %v341, %v513
        %v527 = vmul.f32 %v342, %v513
        %v528 = vmul.f32 %v343, %v513
        %v529 = vmul.f32 %v344, %v513
        %v530 = vmul.f32 %v349, %v513
        %v531 = vmul.f32 %v350, %v513
        %v532 = vmul.f32 %v351, %v513
        %v533 = vmul.f32 %v352, %v513
        %v534 = vmul.f32 %v353, %v513
        %v535 = vmul.f32 %v354, %v513
        %v536 = vmul.f32 %v355, %v513
        %v537 = vmul.f32 %v356, %v513
        %v538 = vmul.f32 %v357, %v513
        %v539 = vmul.f32 %v358, %v513
        %v540 = vmul.f32 %v359, %v513
        %v541 = vmul.f32 %v360, %v513
        %v542 = vmul.f32 %v361, %v513
        %v543 = vmul.f32 %v362, %v513
        %v544 = vmul.f32 %v363, %v513
        %v545 = vmul.f32 %v364, %v513
        %v546 = vadd.f32 %v478, %v514
        %v547 = vadd.f32 %v479, %v515
        %v548 = vadd.f32 %v480, %v516
        %v549 = vadd.f32 %v481, %v517
        %v550 = vadd.f32 %v482, %v518
        %v551 = vadd.f32 %v483, %v519
        %v552 = vadd.f32 %v484, %v520
        %v553 = vadd.f32 %v485, %v521
        %v554 = vadd.f32 %v486, %v522
        %v555 = vadd.f32 %v487, %v523
        %v556 = vadd.f32 %v488, %v524
        %v557 = vadd.f32 %v489, %v525
        %v558 = vadd.f32 %v490, %v526
        %v559 = vadd.f32 %v491, %v527
        %v560 = vadd.f32 %v492, %v528
        %v561 = vadd.f32 %v493, %v529
        %v562 = vadd.f32 %v494, %v530
        %v563 = vadd.f32 %v495, %v531
        %v564 = vadd.f32 %v496, %v532
        %v565 = vadd.f32 %v497, %v533
        %v566 = vadd.f32 %v498, %v534
        %v567 = vadd.f32 %v499, %v535
        %v568 = vadd.f32 %v500, %v536
        %v569 = vadd.f32 %v501, %v537
        %v570 = vadd.f32 %v502, %v538
        %v571 = vadd.f32 %v503, %v539
        %v572 = vadd.f32 %v504, %v540
        %v573 = vadd.f32 %v505, %v541
        %v574 = vadd.f32 %v506, %v542
        %v575 = vadd.f32 %v507, %v543
        %v576 = vadd.f32 %v508, %v544
        %v577 = vadd.f32 %v509, %v545
        %v578 = vlaneseq
        %v579 = vshrl.u32 %v578, 7
        %v580 = vsub.s32 2, %v579
        %v581 = vrot.slane %v369, %v580
        %v582 = vmul.f32 %v329, %v581
        %v583 = vmul.f32 %v330, %v581
        %v584 = vmul.f32 %v331, %v581
        %v585 = vmul.f32 %v332, %v581
        %v586 = vmul.f32 %v333, %v581
        %v587 = vmul.f32 %v334, %v581
        %v588 = vmul.f32 %v335, %v581
        %v589 = vmul.f32 %v336, %v581
        %v590 = vmul.f32 %v337, %v581
        %v591 = vmul.f32 %v338, %v581
        %v592 = vmul.f32 %v339, %v581
        %v593 = vmul.f32 %v340, %v581
        %v594 = vmul.f32 %v341, %v581
        %v595 = vmul.f32 %v342, %v581
        %v596 = vmul.f32 %v343, %v581
        %v597 = vmul.f32 %v344, %v581
        %v598 = vmul.f32 %v349, %v581
        %v599 = vmul.f32 %v350, %v581
        %v600 = vmul.f32 %v351, %v581
        %v601 = vmul.f32 %v352, %v581
        %v602 = vmul.f32 %v353, %v581
        %v603 = vmul.f32 %v354, %v581
        %v604 = vmul.f32 %v355, %v581
        %v605 = vmul.f32 %v356, %v581
        %v606 = vmul.f32 %v357, %v581
        %v607 = vmul.f32 %v358, %v581
        %v608 = vmul.f32 %v359, %v581
        %v609 = vmul.f32 %v360, %v581
        %v610 = vmul.f32 %v361, %v581
        %v611 = vmul.f32 %v362, %v581
        %v612 = vmul.f32 %v363, %v581
        %v613 = vmul.f32 %v364, %v581
        %vm646 = vcmask 1046528
        %v647 = vrot.slane %v582, 1
        %v648 = vrot.slane %v583, 1
        %v649 = vsel %vm646, %v647, %v648
        %v650 = vrot.slane %v584, 1
        %v651 = vrot.slane %v585, 1
        %v652 = vsel %vm646, %v650, %v651
        %v653 = vrot.slane %v586, 1
        %v654 = vrot.slane %v587, 1
        %v655 = vsel %vm646, %v653, %v654
        %v656 = vrot.slane %v588, 1
        %v657 = vrot.slane %v589, 1
        %v658 = vsel %vm646, %v656, %v657
        %v659 = vrot.slane %v590, 1
        %v660 = vrot.slane %v591, 1
        %v661 = vsel %vm646, %v659, %v660
        %v662 = vrot.slane %v592, 1
        %v663 = vrot.slane %v593, 1
        %v664 = vsel %vm646, %v662, %v663
        %v665 = vrot.slane %v594, 1
        %v666 = vrot.slane %v595, 1
        %v667 = vsel %vm646, %v665, %v666
        %v668 = vrot.slane %v596, 1
        %v669 = vrot.slane %v597, 1
        %v670 = vsel %vm646, %v668, %v669
        %v671 = vrot.slane %v598, 1
        %v672 = vrot.slane %v599, 1
        %v673 = vsel %vm646, %v671, %v672
        %v674 = vrot.slane %v600, 1
        %v675 = vrot.slane %v601, 1
        %v676 = vsel %vm646, %v674, %v675
        %v677 = vrot.slane %v602, 1
        %v678 = vrot.slane %v603, 1
        %v679 = vsel %vm646, %v677, %v678
        %v680 = vrot.slane %v604, 1
        %v681 = vrot.slane %v605, 1
        %v682 = vsel %vm646, %v680, %v681
        %v683 = vrot.slane %v606, 1
        %v684 = vrot.slane %v607, 1
        %v685 = vsel %vm646, %v683, %v684
        %v686 = vrot.slane %v608, 1
        %v687 = vrot.slane %v609, 1
        %v688 = vsel %vm646, %v686, %v687
        %v689 = vrot.slane %v610, 1
        %v690 = vrot.slane %v611, 1
        %v691 = vsel %vm646, %v689, %v690
        %v692 = vrot.slane %v612, 1
        %v693 = vrot.slane %v613, 1
        %v694 = vsel %vm646, %v692, %v693
        %v727 = vadd.f32 %v546, %v649
        %v728 = vadd.f32 %v547, %v648
        %v729 = vadd.f32 %v548, %v652
        %v730 = vadd.f32 %v549, %v651
        %v731 = vadd.f32 %v550, %v655
        %v732 = vadd.f32 %v551, %v654
        %v733 = vadd.f32 %v552, %v658
        %v734 = vadd.f32 %v553, %v657
        %v735 = vadd.f32 %v554, %v661
        %v736 = vadd.f32 %v555, %v660
        %v737 = vadd.f32 %v556, %v664
        %v738 = vadd.f32 %v557, %v663
        %v739 = vadd.f32 %v558, %v667
        %v740 = vadd.f32 %v559, %v666
        %v741 = vadd.f32 %v560, %v670
        %v742 = vadd.f32 %v561, %v669
        %v743 = vadd.f32 %v562, %v673
        %v744 = vadd.f32 %v563, %v672
        %v745 = vadd.f32 %v564, %v676
        %v746 = vadd.f32 %v565, %v675
        %v747 = vadd.f32 %v566, %v679
        %v748 = vadd.f32 %v567, %v678
        %v749 = vadd.f32 %v568, %v682
        %v750 = vadd.f32 %v569, %v681
        %v751 = vadd.f32 %v570, %v685
        %v752 = vadd.f32 %v571, %v684
        %v753 = vadd.f32 %v572, %v688
        %v754 = vadd.f32 %v573, %v687
        %v755 = vadd.f32 %v574, %v691
        %v756 = vadd.f32 %v575, %v690
        %v757 = vadd.f32 %v576, %v694
        %v758 = vadd.f32 %v577, %v693
        %v759 = vlaneseq
        %v760 = vshrl.u32 %v759, 7
        %v761 = vsub.s32 3, %v760
        %v762 = vrot.slane %v369, %v761
        %v763 = vmul.f32 %v331, %v762
        %v764 = vmul.f32 %v333, %v762
        %v765 = vmul.f32 %v335, %v762
        %v766 = vmul.f32 %v337, %v762
        %v767 = vmul.f32 %v339, %v762
        %v768 = vmul.f32 %v341, %v762
        %v769 = vmul.f32 %v343, %v762
        %v770 = vmul.f32 %v345, %v762
        %v771 = vmul.f32 %v351, %v762
        %v772 = vmul.f32 %v353, %v762
        %v773 = vmul.f32 %v355, %v762
        %v774 = vmul.f32 %v357, %v762
        %v775 = vmul.f32 %v359, %v762
        %v776 = vmul.f32 %v361, %v762
        %v777 = vmul.f32 %v363, %v762
        %v778 = vmul.f32 %v365, %v762
        %v795 = vrot.slane %v763, 7
        %v796 = vrot.slane %v764, 7
        %v797 = vrot.slane %v765, 7
        %v798 = vrot.slane %v766, 7
        %v799 = vrot.slane %v767, 7
        %v800 = vrot.slane %v768, 7
        %v801 = vrot.slane %v769, 7
        %v802 = vrot.slane %v770, 7
        %v803 = vrot.slane %v771, 7
        %v804 = vrot.slane %v772, 7
        %v805 = vrot.slane %v773, 7
        %v806 = vrot.slane %v774, 7
        %v807 = vrot.slane %v775, 7
        %v808 = vrot.slane %v776, 7
        %v809 = vrot.slane %v777, 7
        %v810 = vrot.slane %v778, 7
        %v827 = vadd.f32 %v727, %v795
        %v828 = vadd.f32 %v728, %v795
        %v829 = vadd.f32 %v729, %v796
        %v830 = vadd.f32 %v730, %v796
        %v831 = vadd.f32 %v731, %v797
        %v832 = vadd.f32 %v732, %v797
        %v833 = vadd.f32 %v733, %v798
        %v834 = vadd.f32 %v734, %v798
        %v835 = vadd.f32 %v735, %v799
        %v836 = vadd.f32 %v736, %v799
        %v837 = vadd.f32 %v737, %v800
        %v838 = vadd.f32 %v738, %v800
        %v839 = vadd.f32 %v739, %v801
        %v840 = vadd.f32 %v740, %v801
        %v841 = vadd.f32 %v741, %v802
        %v842 = vadd.f32 %v742, %v802
        %v843 = vadd.f32 %v743, %v803
        %v844 = vadd.f32 %v744, %v803
        %v845 = vadd.f32 %v745, %v804
        %v846 = vadd.f32 %v746, %v804
        %v847 = vadd.f32 %v747, %v805
        %v848 = vadd.f32 %v748, %v805
        %v849 = vadd.f32 %v749, %v806
        %v850 = vadd.f32 %v750, %v806
        %v851 = vadd.f32 %v751, %v807
        %v852 = vadd.f32 %v752, %v807
        %v853 = vadd.f32 %v753, %v808
        %v854 = vadd.f32 %v754, %v808
        %v855 = vadd.f32 %v755, %v809
        %v856 = vadd.f32 %v756, %v809
        %v857 = vadd.f32 %v757, %v810
        %v858 = vadd.f32 %v758, %v810
        %v859 = vlaneseq
        %v860 = vshrl.u32 %v859, 7
        %v861 = vsub.s32 4, %v860
        %v862 = vrot.slane %v369, %v861
        %v863 = vmul.f32 %v331, %v862
        %v864 = vmul.f32 %v332, %v862
        %v865 = vmul.f32 %v333, %v862
        %v866 = vmul.f32 %v334, %v862
        %v867 = vmul.f32 %v335, %v862
        %v868 = vmul.f32 %v336, %v862
        %v869 = vmul.f32 %v337, %v862
        %v870 = vmul.f32 %v338, %v862
        %v871 = vmul.f32 %v339, %v862
        %v872 = vmul.f32 %v340, %v862
        %v873 = vmul.f32 %v341, %v862
        %v874 = vmul.f32 %v342, %v862
        %v875 = vmul.f32 %v343, %v862
        %v876 = vmul.f32 %v344, %v862
        %v877 = vmul.f32 %v345, %v862
        %v878 = vmul.f32 %v346, %v862
        %v879 = vmul.f32 %v351, %v862
        %v880 = vmul.f32 %v352, %v862
        %v881 = vmul.f32 %v353, %v862
        %v882 = vmul.f32 %v354, %v862
        %v883 = vmul.f32 %v355, %v862
        %v884 = vmul.f32 %v356, %v862
        %v885 = vmul.f32 %v357, %v862
        %v886 = vmul.f32 %v358, %v862
        %v887 = vmul.f32 %v359, %v862
        %v888 = vmul.f32 %v360, %v862
        %v889 = vmul.f32 %v361, %v862
        %v890 = vmul.f32 %v362, %v862
        %v891 = vmul.f32 %v363, %v862
        %v892 = vmul.f32 %v364, %v862
        %v893 = vmul.f32 %v365, %v862
        %v894 = vmul.f32 %v366, %v862
        %v895 = vadd.f32 %v827, %v863
        %v896 = vadd.f32 %v828, %v864
        %v897 = vadd.f32 %v829, %v865
        %v898 = vadd.f32 %v830, %v866
        %v899 = vadd.f32 %v831, %v867
        %v900 = vadd.f32 %v832, %v868
        %v901 = vadd.f32 %v833, %v869
        %v902 = vadd.f32 %v834, %v870
        %v903 = vadd.f32 %v835, %v871
        %v904 = vadd.f32 %v836, %v872
        %v905 = vadd.f32 %v837, %v873
        %v906 = vadd.f32 %v838, %v874
        %v907 = vadd.f32 %v839, %v875
        %v908 = vadd.f32 %v840, %v876
        %v909 = vadd.f32 %v841, %v877
        %v910 = vadd.f32 %v842, %v878
        %v911 = vadd.f32 %v843, %v879
        %v912 = vadd.f32 %v844, %v880
        %v913 = vadd.f32 %v845, %v881
        %v914 = vadd.f32 %v846, %v882
        %v915 = vadd.f32 %v847, %v883
        %v916 = vadd.f32 %v848, %v884
        %v917 = vadd.f32 %v849, %v885
        %v918 = vadd.f32 %v850, %v886
        %v919 = vadd.f32 %v851, %v887
        %v920 = vadd.f32 %v852, %v888
        %v921 = vadd.f32 %v853, %v889
        %v922 = vadd.f32 %v854, %v890
        %v923 = vadd.f32 %v855, %v891
        %v924 = vadd.f32 %v856, %v892
        %v925 = vadd.f32 %v857, %v893
        %v926 = vadd.f32 %v858, %v894
        %v927 = vlaneseq
        %v928 = vshrl.u32 %v927, 7
        %v929 = vsub.s32 5, %v928
        %v930 = vrot.slane %v369, %v929
        %v931 = vmul.f32 %v331, %v930
        %v932 = vmul.f32 %v332, %v930
        %v933 = vmul.f32 %v333, %v930
        %v934 = vmul.f32 %v334, %v930
        %v935 = vmul.f32 %v335, %v930
        %v936 = vmul.f32 %v336, %v930
        %v937 = vmul.f32 %v337, %v930
        %v938 = vmul.f32 %v338, %v930
        %v939 = vmul.f32 %v339, %v930
        %v940 = vmul.f32 %v340, %v930
        %v941 = vmul.f32 %v341, %v930
        %v942 = vmul.f32 %v342, %v930
        %v943 = vmul.f32 %v343, %v930
        %v944 = vmul.f32 %v344, %v930
        %v945 = vmul.f32 %v345, %v930
        %v946 = vmul.f32 %v346, %v930
        %v947 = vmul.f32 %v351, %v930
        %v948 = vmul.f32 %v352, %v930
        %v949 = vmul.f32 %v353, %v930
        %v950 = vmul.f32 %v354, %v930
        %v951 = vmul.f32 %v355, %v930
        %v952 = vmul.f32 %v356, %v930
        %v953 = vmul.f32 %v357, %v930
        %v954 = vmul.f32 %v358, %v930
        %v955 = vmul.f32 %v359, %v930
        %v956 = vmul.f32 %v360, %v930
        %v957 = vmul.f32 %v361, %v930
        %v958 = vmul.f32 %v362, %v930
        %v959 = vmul.f32 %v363, %v930
        %v960 = vmul.f32 %v364, %v930
        %v961 = vmul.f32 %v365, %v930
        %v962 = vmul.f32 %v366, %v930
        %v995 = vrot.slane %v931, 1
        %v996 = vrot.slane %v932, 1
        %v997 = vsel %vm646, %v995, %v996
        %v998 = vrot.slane %v933, 1
        %v999 = vrot.slane %v934, 1
        %v1000 = vsel %vm646, %v998, %v999
        %v1001 = vrot.slane %v935, 1
        %v1002 = vrot.slane %v936, 1
        %v1003 = vsel %vm646, %v1001, %v1002
        %v1004 = vrot.slane %v937, 1
        %v1005 = vrot.slane %v938, 1
        %v1006 = vsel %vm646, %v1004, %v1005
        %v1007 = vrot.slane %v939, 1
        %v1008 = vrot.slane %v940, 1
        %v1009 = vsel %vm646, %v1007, %v1008
        %v1010 = vrot.slane %v941, 1
        %v1011 = vrot.slane %v942, 1
        %v1012 = vsel %vm646, %v1010, %v1011
        %v1013 = vrot.slane %v943, 1
        %v1014 = vrot.slane %v944, 1
        %v1015 = vsel %vm646, %v1013, %v1014
        %v1016 = vrot.slane %v945, 1
        %v1017 = vrot.slane %v946, 1
        %v1018 = vsel %vm646, %v1016, %v1017
        %v1019 = vrot.slane %v947, 1
        %v1020 = vrot.slane %v948, 1
        %v1021 = vsel %vm646, %v1019, %v1020
        %v1022 = vrot.slane %v949, 1
        %v1023 = vrot.slane %v950, 1
        %v1024 = vsel %vm646, %v1022, %v1023
        %v1025 = vrot.slane %v951, 1
        %v1026 = vrot.slane %v952, 1
        %v1027 = vsel %vm646, %v1025, %v1026
        %v1028 = vrot.slane %v953, 1
        %v1029 = vrot.slane %v954, 1
        %v1030 = vsel %vm646, %v1028, %v1029
        %v1031 = vrot.slane %v955, 1
        %v1032 = vrot.slane %v956, 1
        %v1033 = vsel %vm646, %v1031, %v1032
        %v1034 = vrot.slane %v957, 1
        %v1035 = vrot.slane %v958, 1
        %v1036 = vsel %vm646, %v1034, %v1035
        %v1037 = vrot.slane %v959, 1
        %v1038 = vrot.slane %v960, 1
        %v1039 = vsel %vm646, %v1037, %v1038
        %v1040 = vrot.slane %v961, 1
        %v1041 = vrot.slane %v962, 1
        %v1042 = vsel %vm646, %v1040, %v1041
        %v1075 = vadd.f32 %v895, %v997
        %v1076 = vadd.f32 %v896, %v996
        %v1077 = vadd.f32 %v897, %v1000
        %v1078 = vadd.f32 %v898, %v999
        %v1079 = vadd.f32 %v899, %v1003
        %v1080 = vadd.f32 %v900, %v1002
        %v1081 = vadd.f32 %v901, %v1006
        %v1082 = vadd.f32 %v902, %v1005
        %v1083 = vadd.f32 %v903, %v1009
        %v1084 = vadd.f32 %v904, %v1008
        %v1085 = vadd.f32 %v905, %v1012
        %v1086 = vadd.f32 %v906, %v1011
        %v1087 = vadd.f32 %v907, %v1015
        %v1088 = vadd.f32 %v908, %v1014
        %v1089 = vadd.f32 %v909, %v1018
        %v1090 = vadd.f32 %v910, %v1017
        %v1091 = vadd.f32 %v911, %v1021
        %v1092 = vadd.f32 %v912, %v1020
        %v1093 = vadd.f32 %v913, %v1024
        %v1094 = vadd.f32 %v914, %v1023
        %v1095 = vadd.f32 %v915, %v1027
        %v1096 = vadd.f32 %v916, %v1026
        %v1097 = vadd.f32 %v917, %v1030
        %v1098 = vadd.f32 %v918, %v1029
        %v1099 = vadd.f32 %v919, %v1033
        %v1100 = vadd.f32 %v920, %v1032
        %v1101 = vadd.f32 %v921, %v1036
        %v1102 = vadd.f32 %v922, %v1035
        %v1103 = vadd.f32 %v923, %v1039
        %v1104 = vadd.f32 %v924, %v1038
        %v1105 = vadd.f32 %v925, %v1042
        %v1106 = vadd.f32 %v926, %v1041
        %v1107 = vlaneseq
        %v1108 = vshrl.u32 %v1107, 7
        %v1109 = vsub.s32 6, %v1108
        %v1110 = vrot.slane %v369, %v1109
        %v1111 = vmul.f32 %v333, %v1110
        %v1112 = vmul.f32 %v335, %v1110
        %v1113 = vmul.f32 %v337, %v1110
        %v1114 = vmul.f32 %v339, %v1110
        %v1115 = vmul.f32 %v341, %v1110
        %v1116 = vmul.f32 %v343, %v1110
        %v1117 = vmul.f32 %v345, %v1110
        %v1118 = vmul.f32 %v347, %v1110
        %v1119 = vmul.f32 %v353, %v1110
        %v1120 = vmul.f32 %v355, %v1110
        %v1121 = vmul.f32 %v357, %v1110
        %v1122 = vmul.f32 %v359, %v1110
        %v1123 = vmul.f32 %v361, %v1110
        %v1124 = vmul.f32 %v363, %v1110
        %v1125 = vmul.f32 %v365, %v1110
        %v1126 = vmul.f32 %v367, %v1110
        %v1143 = vrot.slane %v1111, 7
        %v1144 = vrot.slane %v1112, 7
        %v1145 = vrot.slane %v1113, 7
        %v1146 = vrot.slane %v1114, 7
        %v1147 = vrot.slane %v1115, 7
        %v1148 = vrot.slane %v1116, 7
        %v1149 = vrot.slane %v1117, 7
        %v1150 = vrot.slane %v1118, 7
        %v1151 = vrot.slane %v1119, 7
        %v1152 = vrot.slane %v1120, 7
        %v1153 = vrot.slane %v1121, 7
        %v1154 = vrot.slane %v1122, 7
        %v1155 = vrot.slane %v1123, 7
        %v1156 = vrot.slane %v1124, 7
        %v1157 = vrot.slane %v1125, 7
        %v1158 = vrot.slane %v1126, 7
        %v1175 = vadd.f32 %v1075, %v1143
        %v1176 = vadd.f32 %v1076, %v1143
        %v1177 = vadd.f32 %v1077, %v1144
        %v1178 = vadd.f32 %v1078, %v1144
        %v1179 = vadd.f32 %v1079, %v1145
        %v1180 = vadd.f32 %v1080, %v1145
        %v1181 = vadd.f32 %v1081, %v1146
        %v1182 = vadd.f32 %v1082, %v1146
        %v1183 = vadd.f32 %v1083, %v1147
        %v1184 = vadd.f32 %v1084, %v1147
        %v1185 = vadd.f32 %v1085, %v1148
        %v1186 = vadd.f32 %v1086, %v1148
        %v1187 = vadd.f32 %v1087, %v1149
        %v1188 = vadd.f32 %v1088, %v1149
        %v1189 = vadd.f32 %v1089, %v1150
        %v1190 = vadd.f32 %v1090, %v1150
        %v1191 = vadd.f32 %v1091, %v1151
        %v1192 = vadd.f32 %v1092, %v1151
        %v1193 = vadd.f32 %v1093, %v1152
        %v1194 = vadd.f32 %v1094, %v1152
        %v1195 = vadd.f32 %v1095, %v1153
        %v1196 = vadd.f32 %v1096, %v1153
        %v1197 = vadd.f32 %v1097, %v1154
        %v1198 = vadd.f32 %v1098, %v1154
        %v1199 = vadd.f32 %v1099, %v1155
        %v1200 = vadd.f32 %v1100, %v1155
        %v1201 = vadd.f32 %v1101, %v1156
        %v1202 = vadd.f32 %v1102, %v1156
        %v1203 = vadd.f32 %v1103, %v1157
        %v1204 = vadd.f32 %v1104, %v1157
        %v1205 = vadd.f32 %v1105, %v1158
        %v1206 = vadd.f32 %v1106, %v1158
        %v1207 = vlaneseq
        %v1208 = vshrl.u32 %v1207, 7
        %v1209 = vsub.s32 7, %v1208
        %v1210 = vrot.slane %v369, %v1209
        %v1211 = vmul.f32 %v333, %v1210
        %v1212 = vmul.f32 %v334, %v1210
        %v1213 = vmul.f32 %v335, %v1210
        %v1214 = vmul.f32 %v336, %v1210
        %v1215 = vmul.f32 %v337, %v1210
        %v1216 = vmul.f32 %v338, %v1210
        %v1217 = vmul.f32 %v339, %v1210
        %v1218 = vmul.f32 %v340, %v1210
        %v1219 = vmul.f32 %v341, %v1210
        %v1220 = vmul.f32 %v342, %v1210
        %v1221 = vmul.f32 %v343, %v1210
        %v1222 = vmul.f32 %v344, %v1210
        %v1223 = vmul.f32 %v345, %v1210
        %v1224 = vmul.f32 %v346, %v1210
        %v1225 = vmul.f32 %v347, %v1210
        %v1226 = vmul.f32 %v348, %v1210
        %v1227 = vmul.f32 %v353, %v1210
        %v1228 = vmul.f32 %v354, %v1210
        %v1229 = vmul.f32 %v355, %v1210
        %v1230 = vmul.f32 %v356, %v1210
        %v1231 = vmul.f32 %v357, %v1210
        %v1232 = vmul.f32 %v358, %v1210
        %v1233 = vmul.f32 %v359, %v1210
        %v1234 = vmul.f32 %v360, %v1210
        %v1235 = vmul.f32 %v361, %v1210
        %v1236 = vmul.f32 %v362, %v1210
        %v1237 = vmul.f32 %v363, %v1210
        %v1238 = vmul.f32 %v364, %v1210
        %v1239 = vmul.f32 %v365, %v1210
        %v1240 = vmul.f32 %v366, %v1210
        %v1241 = vmul.f32 %v367, %v1210
        %v1242 = vmul.f32 %v368, %v1210
        %v1243 = vadd.f32 %v1175, %v1211
        %v1244 = vadd.f32 %v1176, %v1212
        %v1245 = vadd.f32 %v1177, %v1213
        %v1246 = vadd.f32 %v1178, %v1214
        %v1247 = vadd.f32 %v1179, %v1215
        %v1248 = vadd.f32 %v1180, %v1216
        %v1249 = vadd.f32 %v1181, %v1217
        %v1250 = vadd.f32 %v1182, %v1218
        %v1251 = vadd.f32 %v1183, %v1219
        %v1252 = vadd.f32 %v1184, %v1220
        %v1253 = vadd.f32 %v1185, %v1221
        %v1254 = vadd.f32 %v1186, %v1222
        %v1255 = vadd.f32 %v1187, %v1223
        %v1256 = vadd.f32 %v1188, %v1224
        %v1257 = vadd.f32 %v1189, %v1225
        %v1258 = vadd.f32 %v1190, %v1226
        %v1259 = vadd.f32 %v1191, %v1227
        %v1260 = vadd.f32 %v1192, %v1228
        %v1261 = vadd.f32 %v1193, %v1229
        %v1262 = vadd.f32 %v1194, %v1230
        %v1263 = vadd.f32 %v1195, %v1231
        %v1264 = vadd.f32 %v1196, %v1232
        %v1265 = vadd.f32 %v1197, %v1233
        %v1266 = vadd.f32 %v1198, %v1234
        %v1267 = vadd.f32 %v1199, %v1235
        %v1268 = vadd.f32 %v1200, %v1236
        %v1269 = vadd.f32 %v1201, %v1237
        %v1270 = vadd.f32 %v1202, %v1238
        %v1271 = vadd.f32 %v1203, %v1239
        %v1272 = vadd.f32 %v1204, %v1240
        %v1273 = vadd.f32 %v1205, %v1241
        %v1274 = vadd.f32 %v1206, %v1242
        %v1275 = vlaneseq
        %v1276 = vshrl.u32 %v1275, 7
        %v1277 = vsub.s32 0, %v1276
        %v1278 = vrot.slane %v370, %v1277
        %v1279 = vmul.f32 %v333, %v1278
        %v1280 = vmul.f32 %v334, %v1278
        %v1281 = vmul.f32 %v335, %v1278
        %v1282 = vmul.f32 %v336, %v1278
        %v1283 = vmul.f32 %v337, %v1278
        %v1284 = vmul.f32 %v338, %v1278
        %v1285 = vmul.f32 %v339, %v1278
        %v1286 = vmul.f32 %v340, %v1278
        %v1287 = vmul.f32 %v341, %v1278
        %v1288 = vmul.f32 %v342, %v1278
        %v1289 = vmul.f32 %v343, %v1278
        %v1290 = vmul.f32 %v344, %v1278
        %v1291 = vmul.f32 %v345, %v1278
        %v1292 = vmul.f32 %v346, %v1278
        %v1293 = vmul.f32 %v347, %v1278
        %v1294 = vmul.f32 %v348, %v1278
        %v1295 = vmul.f32 %v353, %v1278
        %v1296 = vmul.f32 %v354, %v1278
        %v1297 = vmul.f32 %v355, %v1278
        %v1298 = vmul.f32 %v356, %v1278
        %v1299 = vmul.f32 %v357, %v1278
        %v1300 = vmul.f32 %v358, %v1278
        %v1301 = vmul.f32 %v359, %v1278
        %v1302 = vmul.f32 %v360, %v1278
        %v1303 = vmul.f32 %v361, %v1278
        %v1304 = vmul.f32 %v362, %v1278
        %v1305 = vmul.f32 %v363, %v1278
        %v1306 = vmul.f32 %v364, %v1278
        %v1307 = vmul.f32 %v365, %v1278
        %v1308 = vmul.f32 %v366, %v1278
        %v1309 = vmul.f32 %v367, %v1278
        %v1310 = vmul.f32 %v368, %v1278
        %v1343 = vrot.slane %v1279, 1
        %v1344 = vrot.slane %v1280, 1
        %v1345 = vsel %vm646, %v1343, %v1344
        %v1346 = vrot.slane %v1281, 1
        %v1347 = vrot.slane %v1282, 1
        %v1348 = vsel %vm646, %v1346, %v1347
        %v1349 = vrot.slane %v1283, 1
        %v1350 = vrot.slane %v1284, 1
        %v1351 = vsel %vm646, %v1349, %v1350
        %v1352 = vrot.slane %v1285, 1
        %v1353 = vrot.slane %v1286, 1
        %v1354 = vsel %vm646, %v1352, %v1353
        %v1355 = vrot.slane %v1287, 1
        %v1356 = vrot.slane %v1288, 1
        %v1357 = vsel %vm646, %v1355, %v1356
        %v1358 = vrot.slane %v1289, 1
        %v1359 = vrot.slane %v1290, 1
        %v1360 = vsel %vm646, %v1358, %v1359
        %v1361 = vrot.slane %v1291, 1
        %v1362 = vrot.slane %v1292, 1
        %v1363 = vsel %vm646, %v1361, %v1362
        %v1364 = vrot.slane %v1293, 1
        %v1365 = vrot.slane %v1294, 1
        %v1366 = vsel %vm646, %v1364, %v1365
        %v1367 = vrot.slane %v1295, 1
        %v1368 = vrot.slane %v1296, 1
        %v1369 = vsel %vm646, %v1367, %v1368
        %v1370 = vrot.slane %v1297, 1
        %v1371 = vrot.slane %v1298, 1
        %v1372 = vsel %vm646, %v1370, %v1371
        %v1373 = vrot.slane %v1299, 1
        %v1374 = vrot.slane %v1300, 1
        %v1375 = vsel %vm646, %v1373, %v1374
        %v1376 = vrot.slane %v1301, 1
        %v1377 = vrot.slane %v1302, 1
        %v1378 = vsel %vm646, %v1376, %v1377
        %v1379 = vrot.slane %v1303, 1
        %v1380 = vrot.slane %v1304, 1
        %v1381 = vsel %vm646, %v1379, %v1380
        %v1382 = vrot.slane %v1305, 1
        %v1383 = vrot.slane %v1306, 1
        %v1384 = vsel %vm646, %v1382, %v1383
        %v1385 = vrot.slane %v1307, 1
        %v1386 = vrot.slane %v1308, 1
        %v1387 = vsel %vm646, %v1385, %v1386
        %v1388 = vrot.slane %v1309, 1
        %v1389 = vrot.slane %v1310, 1
        %v1390 = vsel %vm646, %v1388, %v1389
        %v1423 = vadd.f32 %v1243, %v1345
        %v1424 = vadd.f32 %v1244, %v1344
        %v1425 = vadd.f32 %v1245, %v1348
        %v1426 = vadd.f32 %v1246, %v1347
        %v1427 = vadd.f32 %v1247, %v1351
        %v1428 = vadd.f32 %v1248, %v1350
        %v1429 = vadd.f32 %v1249, %v1354
        %v1430 = vadd.f32 %v1250, %v1353
        %v1431 = vadd.f32 %v1251, %v1357
        %v1432 = vadd.f32 %v1252, %v1356
        %v1433 = vadd.f32 %v1253, %v1360
        %v1434 = vadd.f32 %v1254, %v1359
        %v1435 = vadd.f32 %v1255, %v1363
        %v1436 = vadd.f32 %v1256, %v1362
        %v1437 = vadd.f32 %v1257, %v1366
        %v1438 = vadd.f32 %v1258, %v1365
        %v1439 = vadd.f32 %v1259, %v1369
        %v1440 = vadd.f32 %v1260, %v1368
        %v1441 = vadd.f32 %v1261, %v1372
        %v1442 = vadd.f32 %v1262, %v1371
        %v1443 = vadd.f32 %v1263, %v1375
        %v1444 = vadd.f32 %v1264, %v1374
        %v1445 = vadd.f32 %v1265, %v1378
        %v1446 = vadd.f32 %v1266, %v1377
        %v1447 = vadd.f32 %v1267, %v1381
        %v1448 = vadd.f32 %v1268, %v1380
        %v1449 = vadd.f32 %v1269, %v1384
        %v1450 = vadd.f32 %v1270, %v1383
        %v1451 = vadd.f32 %v1271, %v1387
        %v1452 = vadd.f32 %v1272, %v1386
        %v1453 = vadd.f32 %v1273, %v1390
        %v1454 = vadd.f32 %v1274, %v1389
        %vm1455 = vcmask 261121
        %1456 = vst.msk [vmem:[%s320 - $0x1] sm:$0xfe] %vm1455, %v1423
        %vm1457 = vcmask 253952
        %1458 = vst.msk [vmem:[%s320 + $0x7] sm:$0x1] %vm1457, %v1424
        %1459 = vst.msk [vmem:[%s320 + $0x7] sm:$0xfe] %vm1455, %v1425
        %1460 = vst.msk [vmem:[%s320 + $0xf] sm:$0x1] %vm1457, %v1426
        %1461 = vst.msk [vmem:[%s320 + $0xf] sm:$0xfe] %vm1455, %v1427
        %1462 = vst.msk [vmem:[%s320 + $0x17] sm:$0x1] %vm1457, %v1428
        %1463 = vst.msk [vmem:[%s320 + $0x17] sm:$0xfe] %vm1455, %v1429
        %1464 = vst.msk [vmem:[%s320 + $0x1f] sm:$0x1] %vm1457, %v1430
        %1465 = vst.msk [vmem:[%s320 + $0x1f] sm:$0xfe] %vm1455, %v1431
        %1466 = vst.msk [vmem:[%s320 + $0x27] sm:$0x1] %vm1457, %v1432
        %1467 = vst.msk [vmem:[%s320 + $0x27] sm:$0xfe] %vm1455, %v1433
        %1468 = vst.msk [vmem:[%s320 + $0x2f] sm:$0x1] %vm1457, %v1434
        %1469 = vst.msk [vmem:[%s320 + $0x2f] sm:$0xfe] %vm1455, %v1435
        %1470 = vst.msk [vmem:[%s320 + $0x37] sm:$0x1] %vm1457, %v1436
        %1471 = vst.msk [vmem:[%s320 + $0x37] sm:$0xfe] %vm1455, %v1437
        %1472 = vst.msk [vmem:[%s320 + $0x3f] sm:$0x1] %vm1457, %v1438
        %1473 = vst.msk [vmem:[%s320 + $0x3f] sm:$0xfe] %vm1455, %v1439
        %1474 = vst.msk [vmem:[%s320 + $0x47] sm:$0x1] %vm1457, %v1440
        %1475 = vst.msk [vmem:[%s320 + $0x47] sm:$0xfe] %vm1455, %v1441
        %1476 = vst.msk [vmem:[%s320 + $0x4f] sm:$0x1] %vm1457, %v1442
        %1477 = vst.msk [vmem:[%s320 + $0x4f] sm:$0xfe] %vm1455, %v1443
        %1478 = vst.msk [vmem:[%s320 + $0x57] sm:$0x1] %vm1457, %v1444
        %1479 = vst.msk [vmem:[%s320 + $0x57] sm:$0xfe] %vm1455, %v1445
        %1480 = vst.msk [vmem:[%s320 + $0x5f] sm:$0x1] %vm1457, %v1446
        %1481 = vst.msk [vmem:[%s320 + $0x5f] sm:$0xfe] %vm1455, %v1447
        %1482 = vst.msk [vmem:[%s320 + $0x67] sm:$0x1] %vm1457, %v1448
        %1483 = vst.msk [vmem:[%s320 + $0x67] sm:$0xfe] %vm1455, %v1449
        %1484 = vst.msk [vmem:[%s320 + $0x6f] sm:$0x1] %vm1457, %v1450
        %1485 = vst.msk [vmem:[%s320 + $0x6f] sm:$0xfe] %vm1455, %v1451
        %1486 = vst.msk [vmem:[%s320 + $0x77] sm:$0x1] %vm1457, %v1452
        %1487 = vst.msk [vmem:[%s320 + $0x77] sm:$0xfe] %vm1455, %v1453
        %1488 = vst.msk [vmem:[%s320 + $0x7f] sm:$0x1] %vm1457, %v1454
        %v1489 = vld [vmem:[#allocation6] sm:$0x1]
        %v1490 = vld [vmem:[#allocation7] sm:$0x1]
        %v1491 = vsel %vm1455, %v1423, 0.0
        %1492 = vadd.xlane.f32.xlu0 %v1491
        %v1493 = vpop.xlane.xlu0 %1492
        %v1494 = vsel %vm1457, %v1424, 0.0
        %1495 = vadd.xlane.f32.xlu0 %v1494
        %v1496 = vpop.xlane.xlu0 %1495
        %v1497 = vsel %vm1455, %v1425, 0.0
        %1498 = vadd.xlane.f32.xlu0 %v1497
        %v1499 = vpop.xlane.xlu0 %1498
        %v1500 = vsel %vm1457, %v1426, 0.0
        %1501 = vadd.xlane.f32.xlu0 %v1500
        %v1502 = vpop.xlane.xlu0 %1501
        %v1503 = vsel %vm1455, %v1427, 0.0
        %1504 = vadd.xlane.f32.xlu0 %v1503
        %v1505 = vpop.xlane.xlu0 %1504
        %v1506 = vsel %vm1457, %v1428, 0.0
        %1507 = vadd.xlane.f32.xlu0 %v1506
        %v1508 = vpop.xlane.xlu0 %1507
        %v1509 = vsel %vm1455, %v1429, 0.0
        %1510 = vadd.xlane.f32.xlu0 %v1509
        %v1511 = vpop.xlane.xlu0 %1510
        %v1512 = vsel %vm1457, %v1430, 0.0
        %1513 = vadd.xlane.f32.xlu0 %v1512
        %v1514 = vpop.xlane.xlu0 %1513
        %v1515 = vsel %vm1455, %v1431, 0.0
        %1516 = vadd.xlane.f32.xlu0 %v1515
        %v1517 = vpop.xlane.xlu0 %1516
        %v1518 = vsel %vm1457, %v1432, 0.0
        %1519 = vadd.xlane.f32.xlu0 %v1518
        %v1520 = vpop.xlane.xlu0 %1519
        %v1521 = vsel %vm1455, %v1433, 0.0
        %1522 = vadd.xlane.f32.xlu0 %v1521
        %v1523 = vpop.xlane.xlu0 %1522
        %v1524 = vsel %vm1457, %v1434, 0.0
        %1525 = vadd.xlane.f32.xlu0 %v1524
        %v1526 = vpop.xlane.xlu0 %1525
        %v1527 = vsel %vm1455, %v1435, 0.0
        %1528 = vadd.xlane.f32.xlu0 %v1527
        %v1529 = vpop.xlane.xlu0 %1528
        %v1530 = vsel %vm1457, %v1436, 0.0
        %1531 = vadd.xlane.f32.xlu0 %v1530
        %v1532 = vpop.xlane.xlu0 %1531
        %v1533 = vsel %vm1455, %v1437, 0.0
        %1534 = vadd.xlane.f32.xlu0 %v1533
        %v1535 = vpop.xlane.xlu0 %1534
        %v1536 = vsel %vm1457, %v1438, 0.0
        %1537 = vadd.xlane.f32.xlu0 %v1536
        %v1538 = vpop.xlane.xlu0 %1537
        %v1539 = vsel %vm1455, %v1439, 0.0
        %1540 = vadd.xlane.f32.xlu0 %v1539
        %v1541 = vpop.xlane.xlu0 %1540
        %v1542 = vsel %vm1457, %v1440, 0.0
        %1543 = vadd.xlane.f32.xlu0 %v1542
        %v1544 = vpop.xlane.xlu0 %1543
        %v1545 = vsel %vm1455, %v1441, 0.0
        %1546 = vadd.xlane.f32.xlu0 %v1545
        %v1547 = vpop.xlane.xlu0 %1546
        %v1548 = vsel %vm1457, %v1442, 0.0
        %1549 = vadd.xlane.f32.xlu0 %v1548
        %v1550 = vpop.xlane.xlu0 %1549
        %v1551 = vsel %vm1455, %v1443, 0.0
        %1552 = vadd.xlane.f32.xlu0 %v1551
        %v1553 = vpop.xlane.xlu0 %1552
        %v1554 = vsel %vm1457, %v1444, 0.0
        %1555 = vadd.xlane.f32.xlu0 %v1554
        %v1556 = vpop.xlane.xlu0 %1555
        %v1557 = vsel %vm1455, %v1445, 0.0
        %1558 = vadd.xlane.f32.xlu0 %v1557
        %v1559 = vpop.xlane.xlu0 %1558
        %v1560 = vsel %vm1457, %v1446, 0.0
        %1561 = vadd.xlane.f32.xlu0 %v1560
        %v1562 = vpop.xlane.xlu0 %1561
        %v1563 = vsel %vm1455, %v1447, 0.0
        %1564 = vadd.xlane.f32.xlu0 %v1563
        %v1565 = vpop.xlane.xlu0 %1564
        %v1566 = vsel %vm1457, %v1448, 0.0
        %1567 = vadd.xlane.f32.xlu0 %v1566
        %v1568 = vpop.xlane.xlu0 %1567
        %v1569 = vsel %vm1455, %v1449, 0.0
        %1570 = vadd.xlane.f32.xlu0 %v1569
        %v1571 = vpop.xlane.xlu0 %1570
        %v1572 = vsel %vm1457, %v1450, 0.0
        %1573 = vadd.xlane.f32.xlu0 %v1572
        %v1574 = vpop.xlane.xlu0 %1573
        %v1575 = vsel %vm1455, %v1451, 0.0
        %1576 = vadd.xlane.f32.xlu0 %v1575
        %v1577 = vpop.xlane.xlu0 %1576
        %v1578 = vsel %vm1457, %v1452, 0.0
        %1579 = vadd.xlane.f32.xlu0 %v1578
        %v1580 = vpop.xlane.xlu0 %1579
        %v1581 = vsel %vm1455, %v1453, 0.0
        %1582 = vadd.xlane.f32.xlu0 %v1581
        %v1583 = vpop.xlane.xlu0 %1582
        %v1584 = vsel %vm1457, %v1454, 0.0
        %1585 = vadd.xlane.f32.xlu0 %v1584
        %v1586 = vpop.xlane.xlu0 %1585
        %v1587 = vrcp.pop 32.0
        %v1588 = vmul.f32 %v1493, %v1587
        %v1589 = vmul.f32 %v1496, %v1587
        %v1590 = vmul.f32 %v1499, %v1587
        %v1591 = vmul.f32 %v1502, %v1587
        %v1592 = vmul.f32 %v1505, %v1587
        %v1593 = vmul.f32 %v1508, %v1587
        %v1594 = vmul.f32 %v1511, %v1587
        %v1595 = vmul.f32 %v1514, %v1587
        %v1596 = vmul.f32 %v1517, %v1587
        %v1597 = vmul.f32 %v1520, %v1587
        %v1598 = vmul.f32 %v1523, %v1587
        %v1599 = vmul.f32 %v1526, %v1587
        %v1600 = vmul.f32 %v1529, %v1587
        %v1601 = vmul.f32 %v1532, %v1587
        %v1602 = vmul.f32 %v1535, %v1587
        %v1603 = vmul.f32 %v1538, %v1587
        %v1604 = vmul.f32 %v1541, %v1587
        %v1605 = vmul.f32 %v1544, %v1587
        %v1606 = vmul.f32 %v1547, %v1587
        %v1607 = vmul.f32 %v1550, %v1587
        %v1608 = vmul.f32 %v1553, %v1587
        %v1609 = vmul.f32 %v1556, %v1587
        %v1610 = vmul.f32 %v1559, %v1587
        %v1611 = vmul.f32 %v1562, %v1587
        %v1612 = vmul.f32 %v1565, %v1587
        %v1613 = vmul.f32 %v1568, %v1587
        %v1614 = vmul.f32 %v1571, %v1587
        %v1615 = vmul.f32 %v1574, %v1587
        %v1616 = vmul.f32 %v1577, %v1587
        %v1617 = vmul.f32 %v1580, %v1587
        %v1618 = vmul.f32 %v1583, %v1587
        %v1619 = vmul.f32 %v1586, %v1587
        %v1620 = vsub.f32 %v1423, %v1588
        %v1621 = vsub.f32 %v1424, %v1589
        %v1622 = vsub.f32 %v1425, %v1590
        %v1623 = vsub.f32 %v1426, %v1591
        %v1624 = vsub.f32 %v1427, %v1592
        %v1625 = vsub.f32 %v1428, %v1593
        %v1626 = vsub.f32 %v1429, %v1594
        %v1627 = vsub.f32 %v1430, %v1595
        %v1628 = vsub.f32 %v1431, %v1596
        %v1629 = vsub.f32 %v1432, %v1597
        %v1630 = vsub.f32 %v1433, %v1598
        %v1631 = vsub.f32 %v1434, %v1599
        %v1632 = vsub.f32 %v1435, %v1600
        %v1633 = vsub.f32 %v1436, %v1601
        %v1634 = vsub.f32 %v1437, %v1602
        %v1635 = vsub.f32 %v1438, %v1603
        %v1636 = vsub.f32 %v1439, %v1604
        %v1637 = vsub.f32 %v1440, %v1605
        %v1638 = vsub.f32 %v1441, %v1606
        %v1639 = vsub.f32 %v1442, %v1607
        %v1640 = vsub.f32 %v1443, %v1608
        %v1641 = vsub.f32 %v1444, %v1609
        %v1642 = vsub.f32 %v1445, %v1610
        %v1643 = vsub.f32 %v1446, %v1611
        %v1644 = vsub.f32 %v1447, %v1612
        %v1645 = vsub.f32 %v1448, %v1613
        %v1646 = vsub.f32 %v1449, %v1614
        %v1647 = vsub.f32 %v1450, %v1615
        %v1648 = vsub.f32 %v1451, %v1616
        %v1649 = vsub.f32 %v1452, %v1617
        %v1650 = vsub.f32 %v1453, %v1618
        %v1651 = vsub.f32 %v1454, %v1619
        %v1652 = vmul.f32 %v1620, %v1620
        %v1653 = vmul.f32 %v1621, %v1621
        %v1654 = vmul.f32 %v1622, %v1622
        %v1655 = vmul.f32 %v1623, %v1623
        %v1656 = vmul.f32 %v1624, %v1624
        %v1657 = vmul.f32 %v1625, %v1625
        %v1658 = vmul.f32 %v1626, %v1626
        %v1659 = vmul.f32 %v1627, %v1627
        %v1660 = vmul.f32 %v1628, %v1628
        %v1661 = vmul.f32 %v1629, %v1629
        %v1662 = vmul.f32 %v1630, %v1630
        %v1663 = vmul.f32 %v1631, %v1631
        %v1664 = vmul.f32 %v1632, %v1632
        %v1665 = vmul.f32 %v1633, %v1633
        %v1666 = vmul.f32 %v1634, %v1634
        %v1667 = vmul.f32 %v1635, %v1635
        %v1668 = vmul.f32 %v1636, %v1636
        %v1669 = vmul.f32 %v1637, %v1637
        %v1670 = vmul.f32 %v1638, %v1638
        %v1671 = vmul.f32 %v1639, %v1639
        %v1672 = vmul.f32 %v1640, %v1640
        %v1673 = vmul.f32 %v1641, %v1641
        %v1674 = vmul.f32 %v1642, %v1642
        %v1675 = vmul.f32 %v1643, %v1643
        %v1676 = vmul.f32 %v1644, %v1644
        %v1677 = vmul.f32 %v1645, %v1645
        %v1678 = vmul.f32 %v1646, %v1646
        %v1679 = vmul.f32 %v1647, %v1647
        %v1680 = vmul.f32 %v1648, %v1648
        %v1681 = vmul.f32 %v1649, %v1649
        %v1682 = vmul.f32 %v1650, %v1650
        %v1683 = vmul.f32 %v1651, %v1651
        %v1684 = vsel %vm1455, %v1652, 0.0
        %1685 = vadd.xlane.f32.xlu0 %v1684
        %v1686 = vpop.xlane.xlu0 %1685
        %v1687 = vsel %vm1457, %v1653, 0.0
        %1688 = vadd.xlane.f32.xlu0 %v1687
        %v1689 = vpop.xlane.xlu0 %1688
        %v1690 = vsel %vm1455, %v1654, 0.0
        %1691 = vadd.xlane.f32.xlu0 %v1690
        %v1692 = vpop.xlane.xlu0 %1691
        %v1693 = vsel %vm1457, %v1655, 0.0
        %1694 = vadd.xlane.f32.xlu0 %v1693
        %v1695 = vpop.xlane.xlu0 %1694
        %v1696 = vsel %vm1455, %v1656, 0.0
        %1697 = vadd.xlane.f32.xlu0 %v1696
        %v1698 = vpop.xlane.xlu0 %1697
        %v1699 = vsel %vm1457, %v1657, 0.0
        %1700 = vadd.xlane.f32.xlu0 %v1699
        %v1701 = vpop.xlane.xlu0 %1700
        %v1702 = vsel %vm1455, %v1658, 0.0
        %1703 = vadd.xlane.f32.xlu0 %v1702
        %v1704 = vpop.xlane.xlu0 %1703
        %v1705 = vsel %vm1457, %v1659, 0.0
        %1706 = vadd.xlane.f32.xlu0 %v1705
        %v1707 = vpop.xlane.xlu0 %1706
        %v1708 = vsel %vm1455, %v1660, 0.0
        %1709 = vadd.xlane.f32.xlu0 %v1708
        %v1710 = vpop.xlane.xlu0 %1709
        %v1711 = vsel %vm1457, %v1661, 0.0
        %1712 = vadd.xlane.f32.xlu0 %v1711
        %v1713 = vpop.xlane.xlu0 %1712
        %v1714 = vsel %vm1455, %v1662, 0.0
        %1715 = vadd.xlane.f32.xlu0 %v1714
        %v1716 = vpop.xlane.xlu0 %1715
        %v1717 = vsel %vm1457, %v1663, 0.0
        %1718 = vadd.xlane.f32.xlu0 %v1717
        %v1719 = vpop.xlane.xlu0 %1718
        %v1720 = vsel %vm1455, %v1664, 0.0
        %1721 = vadd.xlane.f32.xlu0 %v1720
        %v1722 = vpop.xlane.xlu0 %1721
        %v1723 = vsel %vm1457, %v1665, 0.0
        %1724 = vadd.xlane.f32.xlu0 %v1723
        %v1725 = vpop.xlane.xlu0 %1724
        %v1726 = vsel %vm1455, %v1666, 0.0
        %1727 = vadd.xlane.f32.xlu0 %v1726
        %v1728 = vpop.xlane.xlu0 %1727
        %v1729 = vsel %vm1457, %v1667, 0.0
        %1730 = vadd.xlane.f32.xlu0 %v1729
        %v1731 = vpop.xlane.xlu0 %1730
        %v1732 = vsel %vm1455, %v1668, 0.0
        %1733 = vadd.xlane.f32.xlu0 %v1732
        %v1734 = vpop.xlane.xlu0 %1733
        %v1735 = vsel %vm1457, %v1669, 0.0
        %1736 = vadd.xlane.f32.xlu0 %v1735
        %v1737 = vpop.xlane.xlu0 %1736
        %v1738 = vsel %vm1455, %v1670, 0.0
        %1739 = vadd.xlane.f32.xlu0 %v1738
        %v1740 = vpop.xlane.xlu0 %1739
        %v1741 = vsel %vm1457, %v1671, 0.0
        %1742 = vadd.xlane.f32.xlu0 %v1741
        %v1743 = vpop.xlane.xlu0 %1742
        %v1744 = vsel %vm1455, %v1672, 0.0
        %1745 = vadd.xlane.f32.xlu0 %v1744
        %v1746 = vpop.xlane.xlu0 %1745
        %v1747 = vsel %vm1457, %v1673, 0.0
        %1748 = vadd.xlane.f32.xlu0 %v1747
        %v1749 = vpop.xlane.xlu0 %1748
        %v1750 = vsel %vm1455, %v1674, 0.0
        %1751 = vadd.xlane.f32.xlu0 %v1750
        %v1752 = vpop.xlane.xlu0 %1751
        %v1753 = vsel %vm1457, %v1675, 0.0
        %1754 = vadd.xlane.f32.xlu0 %v1753
        %v1755 = vpop.xlane.xlu0 %1754
        %v1756 = vsel %vm1455, %v1676, 0.0
        %1757 = vadd.xlane.f32.xlu0 %v1756
        %v1758 = vpop.xlane.xlu0 %1757
        %v1759 = vsel %vm1457, %v1677, 0.0
        %1760 = vadd.xlane.f32.xlu0 %v1759
        %v1761 = vpop.xlane.xlu0 %1760
        %v1762 = vsel %vm1455, %v1678, 0.0
        %1763 = vadd.xlane.f32.xlu0 %v1762
        %v1764 = vpop.xlane.xlu0 %1763
        %v1765 = vsel %vm1457, %v1679, 0.0
        %1766 = vadd.xlane.f32.xlu0 %v1765
        %v1767 = vpop.xlane.xlu0 %1766
        %v1768 = vsel %vm1455, %v1680, 0.0
        %1769 = vadd.xlane.f32.xlu0 %v1768
        %v1770 = vpop.xlane.xlu0 %1769
        %v1771 = vsel %vm1457, %v1681, 0.0
        %1772 = vadd.xlane.f32.xlu0 %v1771
        %v1773 = vpop.xlane.xlu0 %1772
        %v1774 = vsel %vm1455, %v1682, 0.0
        %1775 = vadd.xlane.f32.xlu0 %v1774
        %v1776 = vpop.xlane.xlu0 %1775
        %v1777 = vsel %vm1457, %v1683, 0.0
        %1778 = vadd.xlane.f32.xlu0 %v1777
        %v1779 = vpop.xlane.xlu0 %1778
        %v1780 = vmul.f32 %v1686, %v1587
        %v1781 = vmul.f32 %v1689, %v1587
        %v1782 = vmul.f32 %v1692, %v1587
        %v1783 = vmul.f32 %v1695, %v1587
        %v1784 = vmul.f32 %v1698, %v1587
        %v1785 = vmul.f32 %v1701, %v1587
        %v1786 = vmul.f32 %v1704, %v1587
        %v1787 = vmul.f32 %v1707, %v1587
        %v1788 = vmul.f32 %v1710, %v1587
        %v1789 = vmul.f32 %v1713, %v1587
        %v1790 = vmul.f32 %v1716, %v1587
        %v1791 = vmul.f32 %v1719, %v1587
        %v1792 = vmul.f32 %v1722, %v1587
        %v1793 = vmul.f32 %v1725, %v1587
        %v1794 = vmul.f32 %v1728, %v1587
        %v1795 = vmul.f32 %v1731, %v1587
        %v1796 = vmul.f32 %v1734, %v1587
        %v1797 = vmul.f32 %v1737, %v1587
        %v1798 = vmul.f32 %v1740, %v1587
        %v1799 = vmul.f32 %v1743, %v1587
        %v1800 = vmul.f32 %v1746, %v1587
        %v1801 = vmul.f32 %v1749, %v1587
        %v1802 = vmul.f32 %v1752, %v1587
        %v1803 = vmul.f32 %v1755, %v1587
        %v1804 = vmul.f32 %v1758, %v1587
        %v1805 = vmul.f32 %v1761, %v1587
        %v1806 = vmul.f32 %v1764, %v1587
        %v1807 = vmul.f32 %v1767, %v1587
        %v1808 = vmul.f32 %v1770, %v1587
        %v1809 = vmul.f32 %v1773, %v1587
        %v1810 = vmul.f32 %v1776, %v1587
        %v1811 = vmul.f32 %v1779, %v1587
        %v1812 = vadd.f32 %v1780, 1e-05
        %v1813 = vadd.f32 %v1781, 1e-05
        %v1814 = vadd.f32 %v1782, 1e-05
        %v1815 = vadd.f32 %v1783, 1e-05
        %v1816 = vadd.f32 %v1784, 1e-05
        %v1817 = vadd.f32 %v1785, 1e-05
        %v1818 = vadd.f32 %v1786, 1e-05
        %v1819 = vadd.f32 %v1787, 1e-05
        %v1820 = vadd.f32 %v1788, 1e-05
        %v1821 = vadd.f32 %v1789, 1e-05
        %v1822 = vadd.f32 %v1790, 1e-05
        %v1823 = vadd.f32 %v1791, 1e-05
        %v1824 = vadd.f32 %v1792, 1e-05
        %v1825 = vadd.f32 %v1793, 1e-05
        %v1826 = vadd.f32 %v1794, 1e-05
        %v1827 = vadd.f32 %v1795, 1e-05
        %v1828 = vadd.f32 %v1796, 1e-05
        %v1829 = vadd.f32 %v1797, 1e-05
        %v1830 = vadd.f32 %v1798, 1e-05
        %v1831 = vadd.f32 %v1799, 1e-05
        %v1832 = vadd.f32 %v1800, 1e-05
        %v1833 = vadd.f32 %v1801, 1e-05
        %v1834 = vadd.f32 %v1802, 1e-05
        %v1835 = vadd.f32 %v1803, 1e-05
        %v1836 = vadd.f32 %v1804, 1e-05
        %v1837 = vadd.f32 %v1805, 1e-05
        %v1838 = vadd.f32 %v1806, 1e-05
        %v1839 = vadd.f32 %v1807, 1e-05
        %v1840 = vadd.f32 %v1808, 1e-05
        %v1841 = vadd.f32 %v1809, 1e-05
        %v1842 = vadd.f32 %v1810, 1e-05
        %v1843 = vadd.f32 %v1811, 1e-05
        %v1844 = vrsqrt.pop %v1812
        %v1845 = vmul.f32 %v1812, %v1844
        %vm1846 = vcmp.eq.f32.partialorder %v1812, inf
        %v1847 = vsel %vm1846, %v1812, %v1845
        %vm1848 = vcmp.eq.f32.partialorder %v1812, 0.0
        %v1849 = vand.u32 %v1812, 2147483648
        %v1850 = vsel %vm1848, %v1849, %v1847
        %v1851 = vrsqrt.pop %v1813
        %v1852 = vmul.f32 %v1813, %v1851
        %vm1853 = vcmp.eq.f32.partialorder %v1813, inf
        %v1854 = vsel %vm1853, %v1813, %v1852
        %vm1855 = vcmp.eq.f32.partialorder %v1813, 0.0
        %v1856 = vand.u32 %v1813, 2147483648
        %v1857 = vsel %vm1855, %v1856, %v1854
        %v1858 = vrsqrt.pop %v1814
        %v1859 = vmul.f32 %v1814, %v1858
        %vm1860 = vcmp.eq.f32.partialorder %v1814, inf
        %v1861 = vsel %vm1860, %v1814, %v1859
        %vm1862 = vcmp.eq.f32.partialorder %v1814, 0.0
        %v1863 = vand.u32 %v1814, 2147483648
        %v1864 = vsel %vm1862, %v1863, %v1861
        %v1865 = vrsqrt.pop %v1815
        %v1866 = vmul.f32 %v1815, %v1865
        %vm1867 = vcmp.eq.f32.partialorder %v1815, inf
        %v1868 = vsel %vm1867, %v1815, %v1866
        %vm1869 = vcmp.eq.f32.partialorder %v1815, 0.0
        %v1870 = vand.u32 %v1815, 2147483648
        %v1871 = vsel %vm1869, %v1870, %v1868
        %v1872 = vrsqrt.pop %v1816
        %v1873 = vmul.f32 %v1816, %v1872
        %vm1874 = vcmp.eq.f32.partialorder %v1816, inf
        %v1875 = vsel %vm1874, %v1816, %v1873
        %vm1876 = vcmp.eq.f32.partialorder %v1816, 0.0
        %v1877 = vand.u32 %v1816, 2147483648
        %v1878 = vsel %vm1876, %v1877, %v1875
        %v1879 = vrsqrt.pop %v1817
        %v1880 = vmul.f32 %v1817, %v1879
        %vm1881 = vcmp.eq.f32.partialorder %v1817, inf
        %v1882 = vsel %vm1881, %v1817, %v1880
        %vm1883 = vcmp.eq.f32.partialorder %v1817, 0.0
        %v1884 = vand.u32 %v1817, 2147483648
        %v1885 = vsel %vm1883, %v1884, %v1882
        %v1886 = vrsqrt.pop %v1818
        %v1887 = vmul.f32 %v1818, %v1886
        %vm1888 = vcmp.eq.f32.partialorder %v1818, inf
        %v1889 = vsel %vm1888, %v1818, %v1887
        %vm1890 = vcmp.eq.f32.partialorder %v1818, 0.0
        %v1891 = vand.u32 %v1818, 2147483648
        %v1892 = vsel %vm1890, %v1891, %v1889
        %v1893 = vrsqrt.pop %v1819
        %v1894 = vmul.f32 %v1819, %v1893
        %vm1895 = vcmp.eq.f32.partialorder %v1819, inf
        %v1896 = vsel %vm1895, %v1819, %v1894
        %vm1897 = vcmp.eq.f32.partialorder %v1819, 0.0
        %v1898 = vand.u32 %v1819, 2147483648
        %v1899 = vsel %vm1897, %v1898, %v1896
        %v1900 = vrsqrt.pop %v1820
        %v1901 = vmul.f32 %v1820, %v1900
        %vm1902 = vcmp.eq.f32.partialorder %v1820, inf
        %v1903 = vsel %vm1902, %v1820, %v1901
        %vm1904 = vcmp.eq.f32.partialorder %v1820, 0.0
        %v1905 = vand.u32 %v1820, 2147483648
        %v1906 = vsel %vm1904, %v1905, %v1903
        %v1907 = vrsqrt.pop %v1821
        %v1908 = vmul.f32 %v1821, %v1907
        %vm1909 = vcmp.eq.f32.partialorder %v1821, inf
        %v1910 = vsel %vm1909, %v1821, %v1908
        %vm1911 = vcmp.eq.f32.partialorder %v1821, 0.0
        %v1912 = vand.u32 %v1821, 2147483648
        %v1913 = vsel %vm1911, %v1912, %v1910
        %v1914 = vrsqrt.pop %v1822
        %v1915 = vmul.f32 %v1822, %v1914
        %vm1916 = vcmp.eq.f32.partialorder %v1822, inf
        %v1917 = vsel %vm1916, %v1822, %v1915
        %vm1918 = vcmp.eq.f32.partialorder %v1822, 0.0
        %v1919 = vand.u32 %v1822, 2147483648
        %v1920 = vsel %vm1918, %v1919, %v1917
        %v1921 = vrsqrt.pop %v1823
        %v1922 = vmul.f32 %v1823, %v1921
        %vm1923 = vcmp.eq.f32.partialorder %v1823, inf
        %v1924 = vsel %vm1923, %v1823, %v1922
        %vm1925 = vcmp.eq.f32.partialorder %v1823, 0.0
        %v1926 = vand.u32 %v1823, 2147483648
        %v1927 = vsel %vm1925, %v1926, %v1924
        %v1928 = vrsqrt.pop %v1824
        %v1929 = vmul.f32 %v1824, %v1928
        %vm1930 = vcmp.eq.f32.partialorder %v1824, inf
        %v1931 = vsel %vm1930, %v1824, %v1929
        %vm1932 = vcmp.eq.f32.partialorder %v1824, 0.0
        %v1933 = vand.u32 %v1824, 2147483648
        %v1934 = vsel %vm1932, %v1933, %v1931
        %v1935 = vrsqrt.pop %v1825
        %v1936 = vmul.f32 %v1825, %v1935
        %vm1937 = vcmp.eq.f32.partialorder %v1825, inf
        %v1938 = vsel %vm1937, %v1825, %v1936
        %vm1939 = vcmp.eq.f32.partialorder %v1825, 0.0
        %v1940 = vand.u32 %v1825, 2147483648
        %v1941 = vsel %vm1939, %v1940, %v1938
        %v1942 = vrsqrt.pop %v1826
        %v1943 = vmul.f32 %v1826, %v1942
        %vm1944 = vcmp.eq.f32.partialorder %v1826, inf
        %v1945 = vsel %vm1944, %v1826, %v1943
        %vm1946 = vcmp.eq.f32.partialorder %v1826, 0.0
        %v1947 = vand.u32 %v1826, 2147483648
        %v1948 = vsel %vm1946, %v1947, %v1945
        %v1949 = vrsqrt.pop %v1827
        %v1950 = vmul.f32 %v1827, %v1949
        %vm1951 = vcmp.eq.f32.partialorder %v1827, inf
        %v1952 = vsel %vm1951, %v1827, %v1950
        %vm1953 = vcmp.eq.f32.partialorder %v1827, 0.0
        %v1954 = vand.u32 %v1827, 2147483648
        %v1955 = vsel %vm1953, %v1954, %v1952
        %v1956 = vrsqrt.pop %v1828
        %v1957 = vmul.f32 %v1828, %v1956
        %vm1958 = vcmp.eq.f32.partialorder %v1828, inf
        %v1959 = vsel %vm1958, %v1828, %v1957
        %vm1960 = vcmp.eq.f32.partialorder %v1828, 0.0
        %v1961 = vand.u32 %v1828, 2147483648
        %v1962 = vsel %vm1960, %v1961, %v1959
        %v1963 = vrsqrt.pop %v1829
        %v1964 = vmul.f32 %v1829, %v1963
        %vm1965 = vcmp.eq.f32.partialorder %v1829, inf
        %v1966 = vsel %vm1965, %v1829, %v1964
        %vm1967 = vcmp.eq.f32.partialorder %v1829, 0.0
        %v1968 = vand.u32 %v1829, 2147483648
        %v1969 = vsel %vm1967, %v1968, %v1966
        %v1970 = vrsqrt.pop %v1830
        %v1971 = vmul.f32 %v1830, %v1970
        %vm1972 = vcmp.eq.f32.partialorder %v1830, inf
        %v1973 = vsel %vm1972, %v1830, %v1971
        %vm1974 = vcmp.eq.f32.partialorder %v1830, 0.0
        %v1975 = vand.u32 %v1830, 2147483648
        %v1976 = vsel %vm1974, %v1975, %v1973
        %v1977 = vrsqrt.pop %v1831
        %v1978 = vmul.f32 %v1831, %v1977
        %vm1979 = vcmp.eq.f32.partialorder %v1831, inf
        %v1980 = vsel %vm1979, %v1831, %v1978
        %vm1981 = vcmp.eq.f32.partialorder %v1831, 0.0
        %v1982 = vand.u32 %v1831, 2147483648
        %v1983 = vsel %vm1981, %v1982, %v1980
        %v1984 = vrsqrt.pop %v1832
        %v1985 = vmul.f32 %v1832, %v1984
        %vm1986 = vcmp.eq.f32.partialorder %v1832, inf
        %v1987 = vsel %vm1986, %v1832, %v1985
        %vm1988 = vcmp.eq.f32.partialorder %v1832, 0.0
        %v1989 = vand.u32 %v1832, 2147483648
        %v1990 = vsel %vm1988, %v1989, %v1987
        %v1991 = vrsqrt.pop %v1833
        %v1992 = vmul.f32 %v1833, %v1991
        %vm1993 = vcmp.eq.f32.partialorder %v1833, inf
        %v1994 = vsel %vm1993, %v1833, %v1992
        %vm1995 = vcmp.eq.f32.partialorder %v1833, 0.0
        %v1996 = vand.u32 %v1833, 2147483648
        %v1997 = vsel %vm1995, %v1996, %v1994
        %v1998 = vrsqrt.pop %v1834
        %v1999 = vmul.f32 %v1834, %v1998
        %vm2000 = vcmp.eq.f32.partialorder %v1834, inf
        %v2001 = vsel %vm2000, %v1834, %v1999
        %vm2002 = vcmp.eq.f32.partialorder %v1834, 0.0
        %v2003 = vand.u32 %v1834, 2147483648
        %v2004 = vsel %vm2002, %v2003, %v2001
        %v2005 = vrsqrt.pop %v1835
        %v2006 = vmul.f32 %v1835, %v2005
        %vm2007 = vcmp.eq.f32.partialorder %v1835, inf
        %v2008 = vsel %vm2007, %v1835, %v2006
        %vm2009 = vcmp.eq.f32.partialorder %v1835, 0.0
        %v2010 = vand.u32 %v1835, 2147483648
        %v2011 = vsel %vm2009, %v2010, %v2008
        %v2012 = vrsqrt.pop %v1836
        %v2013 = vmul.f32 %v1836, %v2012
        %vm2014 = vcmp.eq.f32.partialorder %v1836, inf
        %v2015 = vsel %vm2014, %v1836, %v2013
        %vm2016 = vcmp.eq.f32.partialorder %v1836, 0.0
        %v2017 = vand.u32 %v1836, 2147483648
        %v2018 = vsel %vm2016, %v2017, %v2015
        %v2019 = vrsqrt.pop %v1837
        %v2020 = vmul.f32 %v1837, %v2019
        %vm2021 = vcmp.eq.f32.partialorder %v1837, inf
        %v2022 = vsel %vm2021, %v1837, %v2020
        %vm2023 = vcmp.eq.f32.partialorder %v1837, 0.0
        %v2024 = vand.u32 %v1837, 2147483648
        %v2025 = vsel %vm2023, %v2024, %v2022
        %v2026 = vrsqrt.pop %v1838
        %v2027 = vmul.f32 %v1838, %v2026
        %vm2028 = vcmp.eq.f32.partialorder %v1838, inf
        %v2029 = vsel %vm2028, %v1838, %v2027
        %vm2030 = vcmp.eq.f32.partialorder %v1838, 0.0
        %v2031 = vand.u32 %v1838, 2147483648
        %v2032 = vsel %vm2030, %v2031, %v2029
        %v2033 = vrsqrt.pop %v1839
        %v2034 = vmul.f32 %v1839, %v2033
        %vm2035 = vcmp.eq.f32.partialorder %v1839, inf
        %v2036 = vsel %vm2035, %v1839, %v2034
        %vm2037 = vcmp.eq.f32.partialorder %v1839, 0.0
        %v2038 = vand.u32 %v1839, 2147483648
        %v2039 = vsel %vm2037, %v2038, %v2036
        %v2040 = vrsqrt.pop %v1840
        %v2041 = vmul.f32 %v1840, %v2040
        %vm2042 = vcmp.eq.f32.partialorder %v1840, inf
        %v2043 = vsel %vm2042, %v1840, %v2041
        %vm2044 = vcmp.eq.f32.partialorder %v1840, 0.0
        %v2045 = vand.u32 %v1840, 2147483648
        %v2046 = vsel %vm2044, %v2045, %v2043
        %v2047 = vrsqrt.pop %v1841
        %v2048 = vmul.f32 %v1841, %v2047
        %vm2049 = vcmp.eq.f32.partialorder %v1841, inf
        %v2050 = vsel %vm2049, %v1841, %v2048
        %vm2051 = vcmp.eq.f32.partialorder %v1841, 0.0
        %v2052 = vand.u32 %v1841, 2147483648
        %v2053 = vsel %vm2051, %v2052, %v2050
        %v2054 = vrsqrt.pop %v1842
        %v2055 = vmul.f32 %v1842, %v2054
        %vm2056 = vcmp.eq.f32.partialorder %v1842, inf
        %v2057 = vsel %vm2056, %v1842, %v2055
        %vm2058 = vcmp.eq.f32.partialorder %v1842, 0.0
        %v2059 = vand.u32 %v1842, 2147483648
        %v2060 = vsel %vm2058, %v2059, %v2057
        %v2061 = vrsqrt.pop %v1843
        %v2062 = vmul.f32 %v1843, %v2061
        %vm2063 = vcmp.eq.f32.partialorder %v1843, inf
        %v2064 = vsel %vm2063, %v1843, %v2062
        %vm2065 = vcmp.eq.f32.partialorder %v1843, 0.0
        %v2066 = vand.u32 %v1843, 2147483648
        %v2067 = vsel %vm2065, %v2066, %v2064
        %v2068 = vrcp.pop %v1850
        %v2069 = vmul.f32 %v1620, %v2068
        %v2070 = vrcp.pop %v1857
        %v2071 = vmul.f32 %v1621, %v2070
        %v2072 = vrcp.pop %v1864
        %v2073 = vmul.f32 %v1622, %v2072
        %v2074 = vrcp.pop %v1871
        %v2075 = vmul.f32 %v1623, %v2074
        %v2076 = vrcp.pop %v1878
        %v2077 = vmul.f32 %v1624, %v2076
        %v2078 = vrcp.pop %v1885
        %v2079 = vmul.f32 %v1625, %v2078
        %v2080 = vrcp.pop %v1892
        %v2081 = vmul.f32 %v1626, %v2080
        %v2082 = vrcp.pop %v1899
        %v2083 = vmul.f32 %v1627, %v2082
        %v2084 = vrcp.pop %v1906
        %v2085 = vmul.f32 %v1628, %v2084
        %v2086 = vrcp.pop %v1913
        %v2087 = vmul.f32 %v1629, %v2086
        %v2088 = vrcp.pop %v1920
        %v2089 = vmul.f32 %v1630, %v2088
        %v2090 = vrcp.pop %v1927
        %v2091 = vmul.f32 %v1631, %v2090
        %v2092 = vrcp.pop %v1934
        %v2093 = vmul.f32 %v1632, %v2092
        %v2094 = vrcp.pop %v1941
        %v2095 = vmul.f32 %v1633, %v2094
        %v2096 = vrcp.pop %v1948
        %v2097 = vmul.f32 %v1634, %v2096
        %v2098 = vrcp.pop %v1955
        %v2099 = vmul.f32 %v1635, %v2098
        %v2100 = vrcp.pop %v1962
        %v2101 = vmul.f32 %v1636, %v2100
        %v2102 = vrcp.pop %v1969
        %v2103 = vmul.f32 %v1637, %v2102
        %v2104 = vrcp.pop %v1976
        %v2105 = vmul.f32 %v1638, %v2104
        %v2106 = vrcp.pop %v1983
        %v2107 = vmul.f32 %v1639, %v2106
        %v2108 = vrcp.pop %v1990
        %v2109 = vmul.f32 %v1640, %v2108
        %v2110 = vrcp.pop %v1997
        %v2111 = vmul.f32 %v1641, %v2110
        %v2112 = vrcp.pop %v2004
        %v2113 = vmul.f32 %v1642, %v2112
        %v2114 = vrcp.pop %v2011
        %v2115 = vmul.f32 %v1643, %v2114
        %v2116 = vrcp.pop %v2018
        %v2117 = vmul.f32 %v1644, %v2116
        %v2118 = vrcp.pop %v2025
        %v2119 = vmul.f32 %v1645, %v2118
        %v2120 = vrcp.pop %v2032
        %v2121 = vmul.f32 %v1646, %v2120
        %v2122 = vrcp.pop %v2039
        %v2123 = vmul.f32 %v1647, %v2122
        %v2124 = vrcp.pop %v2046
        %v2125 = vmul.f32 %v1648, %v2124
        %v2126 = vrcp.pop %v2053
        %v2127 = vmul.f32 %v1649, %v2126
        %v2128 = vrcp.pop %v2060
        %v2129 = vmul.f32 %v1650, %v2128
        %v2130 = vrcp.pop %v2067
        %v2131 = vmul.f32 %v1651, %v2130
        %v2133 = vlaneseq
        %v2134 = vshrl.u32 %v2133, 7
        %v2135 = vsub.s32 0, %v2134
        %v2136 = vrot.slane %v1489, %v2135
        %v2138 = vmul.f32 %v2136, %v2069
        %v2139 = vmul.f32 %v2136, %v2071
        %v2140 = vmul.f32 %v2136, %v2073
        %v2141 = vmul.f32 %v2136, %v2075
        %v2142 = vmul.f32 %v2136, %v2077
        %v2143 = vmul.f32 %v2136, %v2079
        %v2144 = vmul.f32 %v2136, %v2081
        %v2145 = vmul.f32 %v2136, %v2083
        %v2146 = vmul.f32 %v2136, %v2085
        %v2147 = vmul.f32 %v2136, %v2087
        %v2148 = vmul.f32 %v2136, %v2089
        %v2149 = vmul.f32 %v2136, %v2091
        %v2150 = vmul.f32 %v2136, %v2093
        %v2151 = vmul.f32 %v2136, %v2095
        %v2152 = vmul.f32 %v2136, %v2097
        %v2153 = vmul.f32 %v2136, %v2099
        %v2154 = vmul.f32 %v2136, %v2101
        %v2155 = vmul.f32 %v2136, %v2103
        %v2156 = vmul.f32 %v2136, %v2105
        %v2157 = vmul.f32 %v2136, %v2107
        %v2158 = vmul.f32 %v2136, %v2109
        %v2159 = vmul.f32 %v2136, %v2111
        %v2160 = vmul.f32 %v2136, %v2113
        %v2161 = vmul.f32 %v2136, %v2115
        %v2162 = vmul.f32 %v2136, %v2117
        %v2163 = vmul.f32 %v2136, %v2119
        %v2164 = vmul.f32 %v2136, %v2121
        %v2165 = vmul.f32 %v2136, %v2123
        %v2166 = vmul.f32 %v2136, %v2125
        %v2167 = vmul.f32 %v2136, %v2127
        %v2168 = vmul.f32 %v2136, %v2129
        %v2169 = vmul.f32 %v2136, %v2131
        %v2171 = vlaneseq
        %v2172 = vshrl.u32 %v2171, 7
        %v2173 = vsub.s32 0, %v2172
        %v2174 = vrot.slane %v1490, %v2173
        %v2176 = vadd.f32 %v2138, %v2174
        %v2177 = vadd.f32 %v2139, %v2174
        %v2178 = vadd.f32 %v2140, %v2174
        %v2179 = vadd.f32 %v2141, %v2174
        %v2180 = vadd.f32 %v2142, %v2174
        %v2181 = vadd.f32 %v2143, %v2174
        %v2182 = vadd.f32 %v2144, %v2174
        %v2183 = vadd.f32 %v2145, %v2174
        %v2184 = vadd.f32 %v2146, %v2174
        %v2185 = vadd.f32 %v2147, %v2174
        %v2186 = vadd.f32 %v2148, %v2174
        %v2187 = vadd.f32 %v2149, %v2174
        %v2188 = vadd.f32 %v2150, %v2174
        %v2189 = vadd.f32 %v2151, %v2174
        %v2190 = vadd.f32 %v2152, %v2174
        %v2191 = vadd.f32 %v2153, %v2174
        %v2192 = vadd.f32 %v2154, %v2174
        %v2193 = vadd.f32 %v2155, %v2174
        %v2194 = vadd.f32 %v2156, %v2174
        %v2195 = vadd.f32 %v2157, %v2174
        %v2196 = vadd.f32 %v2158, %v2174
        %v2197 = vadd.f32 %v2159, %v2174
        %v2198 = vadd.f32 %v2160, %v2174
        %v2199 = vadd.f32 %v2161, %v2174
        %v2200 = vadd.f32 %v2162, %v2174
        %v2201 = vadd.f32 %v2163, %v2174
        %v2202 = vadd.f32 %v2164, %v2174
        %v2203 = vadd.f32 %v2165, %v2174
        %v2204 = vadd.f32 %v2166, %v2174
        %v2205 = vadd.f32 %v2167, %v2174
        %v2206 = vadd.f32 %v2168, %v2174
        %v2207 = vadd.f32 %v2169, %v2174
        %2208 = vst.msk [vmem:[%s327 - $0x1] sm:$0xfe] %vm1455, %v2176
        %2209 = vst.msk [vmem:[%s327 + $0x7] sm:$0x1] %vm1457, %v2177
        %2210 = vst.msk [vmem:[%s327 + $0x7] sm:$0xfe] %vm1455, %v2178
        %2211 = vst.msk [vmem:[%s327 + $0xf] sm:$0x1] %vm1457, %v2179
        %2212 = vst.msk [vmem:[%s327 + $0xf] sm:$0xfe] %vm1455, %v2180
        %2213 = vst.msk [vmem:[%s327 + $0x17] sm:$0x1] %vm1457, %v2181
        %2214 = vst.msk [vmem:[%s327 + $0x17] sm:$0xfe] %vm1455, %v2182
        %2215 = vst.msk [vmem:[%s327 + $0x1f] sm:$0x1] %vm1457, %v2183
        %2216 = vst.msk [vmem:[%s327 + $0x1f] sm:$0xfe] %vm1455, %v2184
        %2217 = vst.msk [vmem:[%s327 + $0x27] sm:$0x1] %vm1457, %v2185
        %2218 = vst.msk [vmem:[%s327 + $0x27] sm:$0xfe] %vm1455, %v2186
        %2219 = vst.msk [vmem:[%s327 + $0x2f] sm:$0x1] %vm1457, %v2187
        %2220 = vst.msk [vmem:[%s327 + $0x2f] sm:$0xfe] %vm1455, %v2188
        %2221 = vst.msk [vmem:[%s327 + $0x37] sm:$0x1] %vm1457, %v2189
        %2222 = vst.msk [vmem:[%s327 + $0x37] sm:$0xfe] %vm1455, %v2190
        %2223 = vst.msk [vmem:[%s327 + $0x3f] sm:$0x1] %vm1457, %v2191
        %2224 = vst.msk [vmem:[%s327 + $0x3f] sm:$0xfe] %vm1455, %v2192
        %2225 = vst.msk [vmem:[%s327 + $0x47] sm:$0x1] %vm1457, %v2193
        %2226 = vst.msk [vmem:[%s327 + $0x47] sm:$0xfe] %vm1455, %v2194
        %2227 = vst.msk [vmem:[%s327 + $0x4f] sm:$0x1] %vm1457, %v2195
        %2228 = vst.msk [vmem:[%s327 + $0x4f] sm:$0xfe] %vm1455, %v2196
        %2229 = vst.msk [vmem:[%s327 + $0x57] sm:$0x1] %vm1457, %v2197
        %2230 = vst.msk [vmem:[%s327 + $0x57] sm:$0xfe] %vm1455, %v2198
        %2231 = vst.msk [vmem:[%s327 + $0x5f] sm:$0x1] %vm1457, %v2199
        %2232 = vst.msk [vmem:[%s327 + $0x5f] sm:$0xfe] %vm1455, %v2200
        %2233 = vst.msk [vmem:[%s327 + $0x67] sm:$0x1] %vm1457, %v2201
        %2234 = vst.msk [vmem:[%s327 + $0x67] sm:$0xfe] %vm1455, %v2202
        %2235 = vst.msk [vmem:[%s327 + $0x6f] sm:$0x1] %vm1457, %v2203
        %2236 = vst.msk [vmem:[%s327 + $0x6f] sm:$0xfe] %vm1455, %v2204
        %2237 = vst.msk [vmem:[%s327 + $0x77] sm:$0x1] %vm1457, %v2205
        %2238 = vst.msk [vmem:[%s327 + $0x77] sm:$0xfe] %vm1455, %v2206
        %2239 = vst.msk [vmem:[%s327 + $0x7f] sm:$0x1] %vm1457, %v2207
        %s2240 = smul.u32 2, %s21
        %p2241 = scmp.lt.s32.totalorder %s2240, 3
        %s2242 = scalar_select %p2241, %s2240, 3
        %s2243 = smul.addr %s2242, 8
        %s2244 = smul.addr %s2243, 8
        %s2245 = scalar_lea.vmem %s5, %s2244
        %s2246 = smul.u32 2, %s21
        %p2247 = scmp.lt.s32.totalorder %s2246, 3
        %s2248 = scalar_select %p2247, %s2246, 3
        %s2249 = smul.addr %s2248, 8
        %s2250 = smul.addr %s2249, 8
        %s2251 = scalar_lea.vmem %s6, %s2250
        // Predicated region
        $region57: #{attention_transformer_block.5} parent=39 // pred_check
          %p2252 = pneg %p149
        $region58: #{attention_transformer_block.5} parent=39 // pred_check_branch
          %2254 = sbr.rel (%p2252) target = $region60
        $region59: #{attention_transformer_block.5} parent=39 // pred_region
          %s2255 = smul.u32 2, %s21
        $region60: #{attention_transformer_block.5} parent=39 // pred_fallthru
          _
        // Predicated region
        $region61: #{attention_transformer_block.5} parent=39 // pred_check
          %p2256 = pneg %p175
        $region62: #{attention_transformer_block.5} parent=39 // pred_check_branch
          %2258 = sbr.rel (%p2256) target = $region64
        $region63: #{attention_transformer_block.5} parent=39 // pred_region
          %s2259 = smul.u32 2, %s21
        $region64: #{attention_transformer_block.5} parent=39 // pred_fallthru
          _
      $region40: #{attention_transformer_block.5} parent=5 // pred_fallthru
        _
      %p2260 = scmp.le.s32.totalorder 2, %s16
      // Predicated region
      $region65: #{attention_transformer_block.5} parent=5 // pred_check
        %p2261 = pneg %p2260
      $region66: #{attention_transformer_block.5} parent=5 // pred_check_branch
        %2263 = sbr.rel (%p2261) target = $region68
      $region67: #{attention_transformer_block.5} parent=5 // pred_region
        %s2264 = ssub.s32 %s16, 2
        // Predicated region
        $region69: #{attention_transformer_block.5} parent=67 // pred_check
          %p2265 = pneg %p155
        $region70: #{attention_transformer_block.5} parent=67 // pred_check_branch
          %2267 = sbr.rel (%p2265) target = $region72
        $region71: #{attention_transformer_block.5} parent=67 // pred_region
          %s2268 = smul.u32 2, %s22
          %p2269 = scmp.lt.s32.totalorder %s2268, 3
          %s2270 = scalar_select %p2269, %s2268, 3
          %s2271 = smul.addr %s2270, 8
          %s2272 = smul.addr %s2271, 8
          %s2273 = scalar_lea.vmem %s5, %s2272
        $region72: #{attention_transformer_block.5} parent=67 // pred_fallthru
          _
        // Predicated region
        $region73: #{attention_transformer_block.5} parent=67 // pred_check
          %p2274 = pneg %p181
        $region74: #{attention_transformer_block.5} parent=67 // pred_check_branch
          %2276 = sbr.rel (%p2274) target = $region76
        $region75: #{attention_transformer_block.5} parent=67 // pred_region
          %s2277 = smul.u32 2, %s22
          %p2278 = scmp.lt.s32.totalorder %s2277, 3
          %s2279 = scalar_select %p2278, %s2277, 3
          %s2280 = smul.addr %s2279, 8
          %s2281 = smul.addr %s2280, 8
          %s2282 = scalar_lea.vmem %s6, %s2281
        $region76: #{attention_transformer_block.5} parent=67 // pred_fallthru
          _
      $region68: #{attention_transformer_block.5} parent=5 // pred_fallthru
        _
    $region6: #{attention_transformer_block.5} parent=1 // loop_footer
      %s20 = sadd.s32 1, %s16
    $region7: #{attention_transformer_block.5} parent=1 // loop_footer_branch
      %15 = sbr.rel target = $region3
    $region8: #{attention_transformer_block.5} parent=1 // loop_exit
      _
    %2283 = vsyncpa [#allocation3], 1
    %s2284 = scalar_lea.sflag [#allocation3], 1
    %2285 = vsyncpa %s2284, 1
    %2286 = vsyncpa [#allocation5], 1
    %2287 = vsyncpa [#allocation8], 1

// kernel: sub.16
$region0: #{sub.16}
  %s0 = inlined_call_operand.vmem [shape: s32[2,2,2], index: 0, kind: input, shape index: {}]
  %s1 = inlined_call_operand.vmem [shape: s32[2,4], index: 1, kind: output, shape index: {}]
  $region1: #{sub.16} parent=0
    #allocation0 [shape = 'u8[4096]{0}', space=vmem, size = 0x1000, scoped, tag = 'scoped mem for output reshape']
    #allocation1 [shape = 'u8[8192]{0}', space=vmem, size = 0x2000, scoped, tag = 'scoped mem for input reshape']
    %s3 = sshllo.u32 0, 2
    %s4 = scalar_lea.vmem %s0, 2
    %v5 = vld [vmem:[%s4] sm:%s3]
    %s6 = scalar_lea.vmem [#allocation1], 8
    %7 = vst [vmem:[%s6] sm:%s3] %v5
    %v8 = vld [vmem:[%s0] sm:%s3]
    %9 = vst [vmem:[#allocation1] sm:%s3] %v8
    %s10 = smov 3
    %v11 = vld [vmem:[#allocation1] ss:$8 sm:%s10]
    %vm12 = vcmask 15360
    %13 = vst.msk [vmem:[#allocation0] sm:$0x3] %vm12, %v11
    %s14 = scalar_lea.vmem [#allocation1], 1
    %s15 = smov 3
    %v16 = vld [vmem:[%s14] ss:$8 sm:%s15]
    %17 = vrot.lane.b32.xlu0 %v16, 2
    %v18 = vpop.permute.xlu0 %17
    %vm19 = vcmask 31760
    %20 = vst.msk [vmem:[#allocation0] sm:$0x3] %vm19, %v18
    %s22 = sshllo.u32 0, 2
    %v24 = vld [vmem:[#allocation0] sm:%s22]
    %s25 = sshllo.u32 0, 2
    %26 = vst [vmem:[%s1] sm:%s25] %v24

// kernel: attention_transformer_block.7
$region0: #{attention_transformer_block.7}
  #allocation0 [shape = 'u32[]', space=smem, size = 0x4, offset = 0x4, fixed_abs, tag = 'smem constant byte address 0x4 - core index']
  #allocation1 [shape = 'u32[144,128]{1,0:T(1,128)}', space=vmem, size = 0x12000, scoped, tag = 'internal scratch']
  %s0 = inlined_call_operand.vmem [shape: f32[2,4,64,16], index: 0, kind: input, shape index: {}]
  %s1 = inlined_call_operand.vmem [shape: f32[2,4,64], index: 1, kind: input, shape index: {}]
  %s2 = inlined_call_operand.vmem [shape: f32[2,4,64], index: 2, kind: input, shape index: {}]
  %s3 = inlined_call_operand.vmem [shape: f32[2,4,64,16], index: 3, kind: output, shape index: {}]
  %s4 = sld [smem:[#allocation0]]
  $region45: #{attention_transformer_block.7} parent=0
    _
  %s6 = ssub.s32 1, %s4
  %s7 = scalar_select 0, %s6, %s4
  loop: start=0, step=1, limit=4
  $region2: #{attention_transformer_block.7} parent=0 // loop_pre_header
    _
  $region3: #{attention_transformer_block.7} parent=0 // loop_header
    %s9 = sphi 0, %s13
    %p10 = scmp.ge.s32.totalorder %s9, 4
    %s19 = sphi 0, %s21
    %s22 = sphi 0, %s19
    %s23 = sphi 0, %s22
    %s39 = sphi 0, %s23
    %s45 = sphi 0, %s47
    %s48 = sphi 0, %s45
    %s49 = sphi 0, %s48
    %s65 = sphi 0, %s49
    %s71 = sphi 0, %s73
    %s74 = sphi 0, %s71
    %s75 = sphi 0, %s74
    %s91 = sphi 0, %s75
    %s97 = sphi 0, %s99
    %s100 = sphi 0, %s97
    %s101 = sphi 0, %s100
    %s117 = sphi 0, %s101
  $region4: #{attention_transformer_block.7} parent=0 // loop_header_branch
    %12 = sbr.rel (%p10) target = $region8
  $region5: #{attention_transformer_block.7} parent=0 // loop_body
    %s14 = ssub.s32 %s9, 1
    %s15 = ssub.s32 %s9, 2
    %s16 = sadd.s32 %s9, 1
    %s17 = ssub.s32 %s9, %s16
    %p18 = scmp.eq.s32.totalorder %s17, 0
    %s20 = sadd.s32 %s19, 1
    %s21 = scalar_select %p18, %s19, %s20
    %p24 = pneg %p18
    %p25 = scmp.eq.s32.totalorder %s9, 1
    %p26 = por %p24, %p25
    %p27 = scmp.ne.s32.totalorder %s19, %s22
    %p28 = scmp.eq.s32.totalorder %s9, 0
    %p29 = por %p27, %p28
    %p30 = scmp.ne.s32.totalorder %s19, %s22
    %p31 = scmp.eq.s32.totalorder %s14, 1
    %p32 = por %p30, %p31
    %p33 = scmp.ne.s32.totalorder %s22, %s23
    %p34 = scmp.eq.s32.totalorder %s14, 0
    %p35 = por %p33, %p34
    %p36 = scmp.ne.s32.totalorder %s22, %s23
    %p37 = scmp.eq.s32.totalorder %s15, 1
    %p38 = por %p36, %p37
    %p40 = scmp.ne.s32.totalorder %s23, %s39
    %p41 = scmp.eq.s32.totalorder %s15, 0
    %p42 = por %p40, %p41
    %s43 = ssub.s32 %s9, %s16
    %p44 = scmp.eq.s32.totalorder %s43, 0
    %s46 = sadd.s32 %s45, 1
    %s47 = scalar_select %p44, %s45, %s46
    %p50 = pneg %p44
    %p51 = scmp.eq.s32.totalorder %s9, 1
    %p52 = por %p50, %p51
    %p53 = scmp.ne.s32.totalorder %s45, %s48
    %p54 = scmp.eq.s32.totalorder %s9, 0
    %p55 = por %p53, %p54
    %p56 = scmp.ne.s32.totalorder %s45, %s48
    %p57 = scmp.eq.s32.totalorder %s14, 1
    %p58 = por %p56, %p57
    %p59 = scmp.ne.s32.totalorder %s48, %s49
    %p60 = scmp.eq.s32.totalorder %s14, 0
    %p61 = por %p59, %p60
    %p62 = scmp.ne.s32.totalorder %s48, %s49
    %p63 = scmp.eq.s32.totalorder %s15, 1
    %p64 = por %p62, %p63
    %p66 = scmp.ne.s32.totalorder %s49, %s65
    %p67 = scmp.eq.s32.totalorder %s15, 0
    %p68 = por %p66, %p67
    %s69 = ssub.s32 %s9, %s16
    %p70 = scmp.eq.s32.totalorder %s69, 0
    %s72 = sadd.s32 %s71, 1
    %s73 = scalar_select %p70, %s71, %s72
    %p76 = pneg %p70
    %p77 = scmp.eq.s32.totalorder %s9, 1
    %p78 = por %p76, %p77
    %p79 = scmp.ne.s32.totalorder %s71, %s74
    %p80 = scmp.eq.s32.totalorder %s9, 0
    %p81 = por %p79, %p80
    %p82 = scmp.ne.s32.totalorder %s71, %s74
    %p83 = scmp.eq.s32.totalorder %s14, 1
    %p84 = por %p82, %p83
    %p85 = scmp.ne.s32.totalorder %s74, %s75
    %p86 = scmp.eq.s32.totalorder %s14, 0
    %p87 = por %p85, %p86
    %p88 = scmp.ne.s32.totalorder %s74, %s75
    %p89 = scmp.eq.s32.totalorder %s15, 1
    %p90 = por %p88, %p89
    %p92 = scmp.ne.s32.totalorder %s75, %s91
    %p93 = scmp.eq.s32.totalorder %s15, 0
    %p94 = por %p92, %p93
    %s95 = ssub.s32 %s9, %s16
    %p96 = scmp.eq.s32.totalorder %s95, 0
    %s98 = sadd.s32 %s97, 1
    %s99 = scalar_select %p96, %s97, %s98
    %p102 = pneg %p96
    %p103 = scmp.eq.s32.totalorder %s9, 1
    %p104 = por %p102, %p103
    %p105 = scmp.ne.s32.totalorder %s97, %s100
    %p106 = scmp.eq.s32.totalorder %s9, 0
    %p107 = por %p105, %p106
    %p108 = scmp.ne.s32.totalorder %s97, %s100
    %p109 = scmp.eq.s32.totalorder %s14, 1
    %p110 = por %p108, %p109
    %p111 = scmp.ne.s32.totalorder %s100, %s101
    %p112 = scmp.eq.s32.totalorder %s14, 0
    %p113 = por %p111, %p112
    %p114 = scmp.ne.s32.totalorder %s100, %s101
    %p115 = scmp.eq.s32.totalorder %s15, 1
    %p116 = por %p114, %p115
    %p118 = scmp.ne.s32.totalorder %s101, %s117
    %p119 = scmp.eq.s32.totalorder %s15, 0
    %p120 = por %p118, %p119
    %p121 = scmp.le.s32.totalorder 1, %s9
    %p122 = scmp.lt.s32.totalorder %s9, 3
    %p123 = pnand %p121, %p122
    %p124 = pneg %p123
    // Predicated region
    $region9: #{attention_transformer_block.7} parent=5 // pred_check
      _
    $region10: #{attention_transformer_block.7} parent=5 // pred_check_branch
      %126 = sbr.rel (%p123) target = $region12
    $region11: #{attention_transformer_block.7} parent=5 // pred_region
      %s127 = ssub.s32 %s9, 1
    $region12: #{attention_transformer_block.7} parent=5 // pred_fallthru
      _
    %p128 = scmp.lt.s32.totalorder %s9, 2
    // Predicated region
    $region13: #{attention_transformer_block.7} parent=5 // pred_check
      %p129 = pneg %p128
    $region14: #{attention_transformer_block.7} parent=5 // pred_check_branch
      %131 = sbr.rel (%p129) target = $region16
    $region15: #{attention_transformer_block.7} parent=5 // pred_region
      // Predicated region
      $region17: #{attention_transformer_block.7} parent=15 // pred_check
        %p132 = pneg %p29
      $region18: #{attention_transformer_block.7} parent=15 // pred_check_branch
        %134 = sbr.rel (%p132) target = $region20
      $region19: #{attention_transformer_block.7} parent=15 // pred_region
        %p135 = scmp.lt.s32.totalorder %s9, 1
        %s136 = scalar_select %p135, %s9, 1
        %s137 = smul.addr %s136, 32
        %s138 = smul.addr %s137, 8
        %s139 = scalar_lea.vmem %s0, %s138
      $region20: #{attention_transformer_block.7} parent=15 // pred_fallthru
        _
      // Predicated region
      $region21: #{attention_transformer_block.7} parent=15 // pred_check
        %p140 = pneg %p55
      $region22: #{attention_transformer_block.7} parent=15 // pred_check_branch
        %142 = sbr.rel (%p140) target = $region24
      $region23: #{attention_transformer_block.7} parent=15 // pred_region
        %p143 = scmp.lt.s32.totalorder %s9, 1
        %s144 = scalar_select %p143, %s9, 1
        %s145 = smul.addr %s144, 4
        %s146 = scalar_lea.vmem %s1, %s145
      $region24: #{attention_transformer_block.7} parent=15 // pred_fallthru
        _
      // Predicated region
      $region25: #{attention_transformer_block.7} parent=15 // pred_check
        %p147 = pneg %p81
      $region26: #{attention_transformer_block.7} parent=15 // pred_check_branch
        %149 = sbr.rel (%p147) target = $region28
      $region27: #{attention_transformer_block.7} parent=15 // pred_region
        %p150 = scmp.lt.s32.totalorder %s9, 1
        %s151 = scalar_select %p150, %s9, 1
        %s152 = smul.addr %s151, 4
        %s153 = scalar_lea.vmem %s2, %s152
      $region28: #{attention_transformer_block.7} parent=15 // pred_fallthru
        _
    $region16: #{attention_transformer_block.7} parent=5 // pred_fallthru
      _
    %p154 = scmp.le.s32.totalorder 1, %s9
    %p155 = scmp.lt.s32.totalorder %s9, 3
    %p156 = pnand %p154, %p155
    %p157 = pneg %p156
    // Predicated region
    $region29: #{attention_transformer_block.7} parent=5 // pred_check
      _
    $region30: #{attention_transformer_block.7} parent=5 // pred_check_branch
      %159 = sbr.rel (%p156) target = $region32
    $region31: #{attention_transformer_block.7} parent=5 // pred_region
      %s160 = ssub.s32 %s9, 1
      %p161 = scmp.lt.s32.totalorder %s14, 1
      %s162 = scalar_select %p161, %s14, 1
      %s163 = smul.addr %s162, 32
      %s164 = smul.addr %s163, 8
      %s165 = scalar_lea.vmem %s0, %s164
      %p166 = pneg %p35
      %p167 = pneg %p32
      %p168 = scmp.lt.s32.totalorder %s14, 1
      %s169 = scalar_select %p168, %s14, 1
      %s170 = smul.addr %s169, 4
      %s171 = scalar_lea.vmem %s1, %s170
      %p172 = pneg %p61
      %p173 = pneg %p58
      %p174 = scmp.lt.s32.totalorder %s14, 1
      %s175 = scalar_select %p174, %s14, 1
      %s176 = smul.addr %s175, 4
      %s177 = scalar_lea.vmem %s2, %s176
      %p178 = pneg %p87
      %p179 = pneg %p84
      %p180 = pneg %p113
      %p181 = pneg %p110
      %p182 = scmp.lt.s32.totalorder %s14, 1
      %s183 = scalar_select %p182, %s14, 1
      %s184 = smul.addr %s183, 32
      %s185 = smul.addr %s184, 8
      %s186 = scalar_lea.vmem %s3, %s185
      %p187 = scmp.lt.s32.totalorder %s14, 1
      %s188 = scalar_select %p187, %s14, 1
      %s189 = smul.addr %s188, 32
      %s190 = smul.addr %s189, 8
      %s191 = scalar_lea.vmem %s0, %s190
      %p192 = scmp.lt.s32.totalorder %s14, 1
      %s193 = scalar_select %p192, %s14, 1
      %s194 = smul.addr %s193, 4
      %s195 = scalar_lea.vmem %s1, %s194
      %p196 = scmp.lt.s32.totalorder %s14, 1
      %s197 = scalar_select %p196, %s14, 1
      %s198 = smul.addr %s197, 4
      %s199 = scalar_lea.vmem %s2, %s198
      %p200 = scmp.lt.s32.totalorder %s14, 1
      %s201 = scalar_select %p200, %s14, 1
      %s202 = smul.addr %s201, 32
      %s203 = smul.addr %s202, 8
      %s204 = scalar_lea.vmem %s3, %s203
      %v205 = vld [vmem:[%s195] sm:$0xf]
      %v206 = vld [vmem:[%s199] sm:$0xf]
      %v207 = vadd.f32 %v205, 1.0
      %v208 = vmul.f32 %v207, 3.5
      %v209 = vadd.f32 %v206, 1.0
      %v210 = vmul.f32 %v209, 3.5
      %v211 = vfloor.f32 %v208
      %v212 = vfloor.f32 %v210
      %v213 = vsub.f32 %v208, %v211
      %v214 = vsub.f32 1.0, %v213
      %v215 = vsub.f32 %v210, %v212
      %v216 = vsub.f32 1.0, %v215
      %v217 = vlaneseq
      %v218 = vand.u32 %v217, 127
      %v219 = vcvt.s32.f32 %v218
      %v220 = vadd.f32 %v219, 0.5
      %v221 = vmul.f32 %v220, 0.125
      %v222 = vfloor.f32 %v221
      %v223 = vmul.f32 %v222, 8.0
      %v224 = vsub.f32 %v219, %v223
      %v225 = vlaneseq
      %v226 = vshrl.u32 %v225, 7
      %v227 = vsub.s32 0, %v226
      %v228 = vrot.slane %v214, %v227
      %230 = vbcast.lane.b32.xlu0 %v228, 256
      %v231 = vpop.permute.xlu0 %230
      %s233 = sor.u32 256, 8
      %234 = vbcast.lane.b32.xlu0 %v228, %s233
      %v235 = vpop.permute.xlu0 %234
      %s237 = sor.u32 256, 16
      %238 = vbcast.lane.b32.xlu0 %v228, %s237
      %v239 = vpop.permute.xlu0 %238
      %s241 = sor.u32 256, 24
      %242 = vbcast.lane.b32.xlu0 %v228, %s241
      %v243 = vpop.permute.xlu0 %242
      %s245 = sor.u32 256, 32
      %246 = vbcast.lane.b32.xlu0 %v228, %s245
      %v247 = vpop.permute.xlu0 %246
      %s249 = sor.u32 256, 40
      %250 = vbcast.lane.b32.xlu0 %v228, %s249
      %v251 = vpop.permute.xlu0 %250
      %s253 = sor.u32 256, 48
      %254 = vbcast.lane.b32.xlu0 %v228, %s253
      %v255 = vpop.permute.xlu0 %254
      %s257 = sor.u32 256, 56
      %258 = vbcast.lane.b32.xlu0 %v228, %s257
      %v259 = vpop.permute.xlu0 %258
      %v260 = vlaneseq
      %v261 = vshrl.u32 %v260, 7
      %v262 = vsub.s32 1, %v261
      %v263 = vrot.slane %v214, %v262
      %265 = vbcast.lane.b32.xlu0 %v263, 256
      %v266 = vpop.permute.xlu0 %265
      %s268 = sor.u32 256, 8
      %269 = vbcast.lane.b32.xlu0 %v263, %s268
      %v270 = vpop.permute.xlu0 %269
      %s272 = sor.u32 256, 16
      %273 = vbcast.lane.b32.xlu0 %v263, %s272
      %v274 = vpop.permute.xlu0 %273
      %s276 = sor.u32 256, 24
      %277 = vbcast.lane.b32.xlu0 %v263, %s276
      %v278 = vpop.permute.xlu0 %277
      %s280 = sor.u32 256, 32
      %281 = vbcast.lane.b32.xlu0 %v263, %s280
      %v282 = vpop.permute.xlu0 %281
      %s284 = sor.u32 256, 40
      %285 = vbcast.lane.b32.xlu0 %v263, %s284
      %v286 = vpop.permute.xlu0 %285
      %s288 = sor.u32 256, 48
      %289 = vbcast.lane.b32.xlu0 %v263, %s288
      %v290 = vpop.permute.xlu0 %289
      %s292 = sor.u32 256, 56
      %293 = vbcast.lane.b32.xlu0 %v263, %s292
      %v294 = vpop.permute.xlu0 %293
      %v295 = vlaneseq
      %v296 = vshrl.u32 %v295, 7
      %v297 = vsub.s32 2, %v296
      %v298 = vrot.slane %v214, %v297
      %300 = vbcast.lane.b32.xlu0 %v298, 256
      %v301 = vpop.permute.xlu0 %300
      %s303 = sor.u32 256, 8
      %304 = vbcast.lane.b32.xlu0 %v298, %s303
      %v305 = vpop.permute.xlu0 %304
      %s307 = sor.u32 256, 16
      %308 = vbcast.lane.b32.xlu0 %v298, %s307
      %v309 = vpop.permute.xlu0 %308
      %s311 = sor.u32 256, 24
      %312 = vbcast.lane.b32.xlu0 %v298, %s311
      %v313 = vpop.permute.xlu0 %312
      %s315 = sor.u32 256, 32
      %316 = vbcast.lane.b32.xlu0 %v298, %s315
      %v317 = vpop.permute.xlu0 %316
      %s319 = sor.u32 256, 40
      %320 = vbcast.lane.b32.xlu0 %v298, %s319
      %v321 = vpop.permute.xlu0 %320
      %s323 = sor.u32 256, 48
      %324 = vbcast.lane.b32.xlu0 %v298, %s323
      %v325 = vpop.permute.xlu0 %324
      %s327 = sor.u32 256, 56
      %328 = vbcast.lane.b32.xlu0 %v298, %s327
      %v329 = vpop.permute.xlu0 %328
      %v330 = vlaneseq
      %v331 = vshrl.u32 %v330, 7
      %v332 = vsub.s32 3, %v331
      %v333 = vrot.slane %v214, %v332
      %335 = vbcast.lane.b32.xlu0 %v333, 256
      %v336 = vpop.permute.xlu0 %335
      %s338 = sor.u32 256, 8
      %339 = vbcast.lane.b32.xlu0 %v333, %s338
      %v340 = vpop.permute.xlu0 %339
      %s342 = sor.u32 256, 16
      %343 = vbcast.lane.b32.xlu0 %v333, %s342
      %v344 = vpop.permute.xlu0 %343
      %s346 = sor.u32 256, 24
      %347 = vbcast.lane.b32.xlu0 %v333, %s346
      %v348 = vpop.permute.xlu0 %347
      %s350 = sor.u32 256, 32
      %351 = vbcast.lane.b32.xlu0 %v333, %s350
      %v352 = vpop.permute.xlu0 %351
      %s354 = sor.u32 256, 40
      %355 = vbcast.lane.b32.xlu0 %v333, %s354
      %v356 = vpop.permute.xlu0 %355
      %s358 = sor.u32 256, 48
      %359 = vbcast.lane.b32.xlu0 %v333, %s358
      %v360 = vpop.permute.xlu0 %359
      %s362 = sor.u32 256, 56
      %363 = vbcast.lane.b32.xlu0 %v333, %s362
      %v364 = vpop.permute.xlu0 %363
      %v365 = vlaneseq
      %v366 = vshrl.u32 %v365, 7
      %v367 = vsub.s32 0, %v366
      %v368 = vrot.slane %v211, %v367
      %370 = vbcast.lane.b32.xlu0 %v368, 256
      %v371 = vpop.permute.xlu0 %370
      %s373 = sor.u32 256, 8
      %374 = vbcast.lane.b32.xlu0 %v368, %s373
      %v375 = vpop.permute.xlu0 %374
      %s377 = sor.u32 256, 16
      %378 = vbcast.lane.b32.xlu0 %v368, %s377
      %v379 = vpop.permute.xlu0 %378
      %s381 = sor.u32 256, 24
      %382 = vbcast.lane.b32.xlu0 %v368, %s381
      %v383 = vpop.permute.xlu0 %382
      %s385 = sor.u32 256, 32
      %386 = vbcast.lane.b32.xlu0 %v368, %s385
      %v387 = vpop.permute.xlu0 %386
      %s389 = sor.u32 256, 40
      %390 = vbcast.lane.b32.xlu0 %v368, %s389
      %v391 = vpop.permute.xlu0 %390
      %s393 = sor.u32 256, 48
      %394 = vbcast.lane.b32.xlu0 %v368, %s393
      %v395 = vpop.permute.xlu0 %394
      %s397 = sor.u32 256, 56
      %398 = vbcast.lane.b32.xlu0 %v368, %s397
      %v399 = vpop.permute.xlu0 %398
      %v400 = vlaneseq
      %v401 = vshrl.u32 %v400, 7
      %v402 = vsub.s32 1, %v401
      %v403 = vrot.slane %v211, %v402
      %405 = vbcast.lane.b32.xlu0 %v403, 256
      %v406 = vpop.permute.xlu0 %405
      %s408 = sor.u32 256, 8
      %409 = vbcast.lane.b32.xlu0 %v403, %s408
      %v410 = vpop.permute.xlu0 %409
      %s412 = sor.u32 256, 16
      %413 = vbcast.lane.b32.xlu0 %v403, %s412
      %v414 = vpop.permute.xlu0 %413
      %s416 = sor.u32 256, 24
      %417 = vbcast.lane.b32.xlu0 %v403, %s416
      %v418 = vpop.permute.xlu0 %417
      %s420 = sor.u32 256, 32
      %421 = vbcast.lane.b32.xlu0 %v403, %s420
      %v422 = vpop.permute.xlu0 %421
      %s424 = sor.u32 256, 40
      %425 = vbcast.lane.b32.xlu0 %v403, %s424
      %v426 = vpop.permute.xlu0 %425
      %s428 = sor.u32 256, 48
      %429 = vbcast.lane.b32.xlu0 %v403, %s428
      %v430 = vpop.permute.xlu0 %429
      %s432 = sor.u32 256, 56
      %433 = vbcast.lane.b32.xlu0 %v403, %s432
      %v434 = vpop.permute.xlu0 %433
      %v435 = vlaneseq
      %v436 = vshrl.u32 %v435, 7
      %v437 = vsub.s32 2, %v436
      %v438 = vrot.slane %v211, %v437
      %440 = vbcast.lane.b32.xlu0 %v438, 256
      %v441 = vpop.permute.xlu0 %440
      %s443 = sor.u32 256, 8
      %444 = vbcast.lane.b32.xlu0 %v438, %s443
      %v445 = vpop.permute.xlu0 %444
      %s447 = sor.u32 256, 16
      %448 = vbcast.lane.b32.xlu0 %v438, %s447
      %v449 = vpop.permute.xlu0 %448
      %s451 = sor.u32 256, 24
      %452 = vbcast.lane.b32.xlu0 %v438, %s451
      %v453 = vpop.permute.xlu0 %452
      %s455 = sor.u32 256, 32
      %456 = vbcast.lane.b32.xlu0 %v438, %s455
      %v457 = vpop.permute.xlu0 %456
      %s459 = sor.u32 256, 40
      %460 = vbcast.lane.b32.xlu0 %v438, %s459
      %v461 = vpop.permute.xlu0 %460
      %s463 = sor.u32 256, 48
      %464 = vbcast.lane.b32.xlu0 %v438, %s463
      %v465 = vpop.permute.xlu0 %464
      %s467 = sor.u32 256, 56
      %468 = vbcast.lane.b32.xlu0 %v438, %s467
      %v469 = vpop.permute.xlu0 %468
      %v470 = vlaneseq
      %v471 = vshrl.u32 %v470, 7
      %v472 = vsub.s32 3, %v471
      %v473 = vrot.slane %v211, %v472
      %475 = vbcast.lane.b32.xlu0 %v473, 256
      %v476 = vpop.permute.xlu0 %475
      %s478 = sor.u32 256, 8
      %479 = vbcast.lane.b32.xlu0 %v473, %s478
      %v480 = vpop.permute.xlu0 %479
      %s482 = sor.u32 256, 16
      %483 = vbcast.lane.b32.xlu0 %v473, %s482
      %v484 = vpop.permute.xlu0 %483
      %s486 = sor.u32 256, 24
      %487 = vbcast.lane.b32.xlu0 %v473, %s486
      %v488 = vpop.permute.xlu0 %487
      %s490 = sor.u32 256, 32
      %491 = vbcast.lane.b32.xlu0 %v473, %s490
      %v492 = vpop.permute.xlu0 %491
      %s494 = sor.u32 256, 40
      %495 = vbcast.lane.b32.xlu0 %v473, %s494
      %v496 = vpop.permute.xlu0 %495
      %s498 = sor.u32 256, 48
      %499 = vbcast.lane.b32.xlu0 %v473, %s498
      %v500 = vpop.permute.xlu0 %499
      %s502 = sor.u32 256, 56
      %503 = vbcast.lane.b32.xlu0 %v473, %s502
      %v504 = vpop.permute.xlu0 %503
      %vm505 = vcmp.eq.f32.partialorder %v224, %v371
      %vm506 = vcmp.eq.f32.partialorder %v224, %v375
      %vm507 = vcmp.eq.f32.partialorder %v224, %v379
      %vm508 = vcmp.eq.f32.partialorder %v224, %v383
      %vm509 = vcmp.eq.f32.partialorder %v224, %v387
      %vm510 = vcmp.eq.f32.partialorder %v224, %v391
      %vm511 = vcmp.eq.f32.partialorder %v224, %v395
      %vm512 = vcmp.eq.f32.partialorder %v224, %v399
      %vm513 = vcmp.eq.f32.partialorder %v224, %v406
      %vm514 = vcmp.eq.f32.partialorder %v224, %v410
      %vm515 = vcmp.eq.f32.partialorder %v224, %v414
      %vm516 = vcmp.eq.f32.partialorder %v224, %v418
      %vm517 = vcmp.eq.f32.partialorder %v224, %v422
      %vm518 = vcmp.eq.f32.partialorder %v224, %v426
      %vm519 = vcmp.eq.f32.partialorder %v224, %v430
      %vm520 = vcmp.eq.f32.partialorder %v224, %v434
      %vm521 = vcmp.eq.f32.partialorder %v224, %v441
      %vm522 = vcmp.eq.f32.partialorder %v224, %v445
      %vm523 = vcmp.eq.f32.partialorder %v224, %v449
      %vm524 = vcmp.eq.f32.partialorder %v224, %v453
      %vm525 = vcmp.eq.f32.partialorder %v224, %v457
      %vm526 = vcmp.eq.f32.partialorder %v224, %v461
      %vm527 = vcmp.eq.f32.partialorder %v224, %v465
      %vm528 = vcmp.eq.f32.partialorder %v224, %v469
      %vm529 = vcmp.eq.f32.partialorder %v224, %v476
      %vm530 = vcmp.eq.f32.partialorder %v224, %v480
      %vm531 = vcmp.eq.f32.partialorder %v224, %v484
      %vm532 = vcmp.eq.f32.partialorder %v224, %v488
      %vm533 = vcmp.eq.f32.partialorder %v224, %v492
      %vm534 = vcmp.eq.f32.partialorder %v224, %v496
      %vm535 = vcmp.eq.f32.partialorder %v224, %v500
      %vm536 = vcmp.eq.f32.partialorder %v224, %v504
      %v537 = vsel %vm505, 1, 0
      %v538 = vsel %vm506, 1, 0
      %v539 = vsel %vm507, 1, 0
      %v540 = vsel %vm508, 1, 0
      %v541 = vsel %vm509, 1, 0
      %v542 = vsel %vm510, 1, 0
      %v543 = vsel %vm511, 1, 0
      %v544 = vsel %vm512, 1, 0
      %v545 = vsel %vm513, 1, 0
      %v546 = vsel %vm514, 1, 0
      %v547 = vsel %vm515, 1, 0
      %v548 = vsel %vm516, 1, 0
      %v549 = vsel %vm517, 1, 0
      %v550 = vsel %vm518, 1, 0
      %v551 = vsel %vm519, 1, 0
      %v552 = vsel %vm520, 1, 0
      %v553 = vsel %vm521, 1, 0
      %v554 = vsel %vm522, 1, 0
      %v555 = vsel %vm523, 1, 0
      %v556 = vsel %vm524, 1, 0
      %v557 = vsel %vm525, 1, 0
      %v558 = vsel %vm526, 1, 0
      %v559 = vsel %vm527, 1, 0
      %v560 = vsel %vm528, 1, 0
      %v561 = vsel %vm529, 1, 0
      %v562 = vsel %vm530, 1, 0
      %v563 = vsel %vm531, 1, 0
      %v564 = vsel %vm532, 1, 0
      %v565 = vsel %vm533, 1, 0
      %v566 = vsel %vm534, 1, 0
      %v567 = vsel %vm535, 1, 0
      %v568 = vsel %vm536, 1, 0
      %v569 = vcvt.s32.f32 %v537
      %v570 = vcvt.s32.f32 %v538
      %v571 = vcvt.s32.f32 %v539
      %v572 = vcvt.s32.f32 %v540
      %v573 = vcvt.s32.f32 %v541
      %v574 = vcvt.s32.f32 %v542
      %v575 = vcvt.s32.f32 %v543
      %v576 = vcvt.s32.f32 %v544
      %v577 = vcvt.s32.f32 %v545
      %v578 = vcvt.s32.f32 %v546
      %v579 = vcvt.s32.f32 %v547
      %v580 = vcvt.s32.f32 %v548
      %v581 = vcvt.s32.f32 %v549
      %v582 = vcvt.s32.f32 %v550
      %v583 = vcvt.s32.f32 %v551
      %v584 = vcvt.s32.f32 %v552
      %v585 = vcvt.s32.f32 %v553
      %v586 = vcvt.s32.f32 %v554
      %v587 = vcvt.s32.f32 %v555
      %v588 = vcvt.s32.f32 %v556
      %v589 = vcvt.s32.f32 %v557
      %v590 = vcvt.s32.f32 %v558
      %v591 = vcvt.s32.f32 %v559
      %v592 = vcvt.s32.f32 %v560
      %v593 = vcvt.s32.f32 %v561
      %v594 = vcvt.s32.f32 %v562
      %v595 = vcvt.s32.f32 %v563
      %v596 = vcvt.s32.f32 %v564
      %v597 = vcvt.s32.f32 %v565
      %v598 = vcvt.s32.f32 %v566
      %v599 = vcvt.s32.f32 %v567
      %v600 = vcvt.s32.f32 %v568
      %v601 = vmul.f32 %v231, %v569
      %v602 = vmul.f32 %v235, %v570
      %v603 = vmul.f32 %v239, %v571
      %v604 = vmul.f32 %v243, %v572
      %v605 = vmul.f32 %v247, %v573
      %v606 = vmul.f32 %v251, %v574
      %v607 = vmul.f32 %v255, %v575
      %v608 = vmul.f32 %v259, %v576
      %v609 = vmul.f32 %v266, %v577
      %v610 = vmul.f32 %v270, %v578
      %v611 = vmul.f32 %v274, %v579
      %v612 = vmul.f32 %v278, %v580
      %v613 = vmul.f32 %v282, %v581
      %v614 = vmul.f32 %v286, %v582
      %v615 = vmul.f32 %v290, %v583
      %v616 = vmul.f32 %v294, %v584
      %v617 = vmul.f32 %v301, %v585
      %v618 = vmul.f32 %v305, %v586
      %v619 = vmul.f32 %v309, %v587
      %v620 = vmul.f32 %v313, %v588
      %v621 = vmul.f32 %v317, %v589
      %v622 = vmul.f32 %v321, %v590
      %v623 = vmul.f32 %v325, %v591
      %v624 = vmul.f32 %v329, %v592
      %v625 = vmul.f32 %v336, %v593
      %v626 = vmul.f32 %v340, %v594
      %v627 = vmul.f32 %v344, %v595
      %v628 = vmul.f32 %v348, %v596
      %v629 = vmul.f32 %v352, %v597
      %v630 = vmul.f32 %v356, %v598
      %v631 = vmul.f32 %v360, %v599
      %v632 = vmul.f32 %v364, %v600
      %v633 = vlaneseq
      %v634 = vshrl.u32 %v633, 7
      %v635 = vsub.s32 0, %v634
      %v636 = vrot.slane %v213, %v635
      %638 = vbcast.lane.b32.xlu0 %v636, 256
      %v639 = vpop.permute.xlu0 %638
      %s641 = sor.u32 256, 8
      %642 = vbcast.lane.b32.xlu0 %v636, %s641
      %v643 = vpop.permute.xlu0 %642
      %s645 = sor.u32 256, 16
      %646 = vbcast.lane.b32.xlu0 %v636, %s645
      %v647 = vpop.permute.xlu0 %646
      %s649 = sor.u32 256, 24
      %650 = vbcast.lane.b32.xlu0 %v636, %s649
      %v651 = vpop.permute.xlu0 %650
      %s653 = sor.u32 256, 32
      %654 = vbcast.lane.b32.xlu0 %v636, %s653
      %v655 = vpop.permute.xlu0 %654
      %s657 = sor.u32 256, 40
      %658 = vbcast.lane.b32.xlu0 %v636, %s657
      %v659 = vpop.permute.xlu0 %658
      %s661 = sor.u32 256, 48
      %662 = vbcast.lane.b32.xlu0 %v636, %s661
      %v663 = vpop.permute.xlu0 %662
      %s665 = sor.u32 256, 56
      %666 = vbcast.lane.b32.xlu0 %v636, %s665
      %v667 = vpop.permute.xlu0 %666
      %v668 = vlaneseq
      %v669 = vshrl.u32 %v668, 7
      %v670 = vsub.s32 1, %v669
      %v671 = vrot.slane %v213, %v670
      %673 = vbcast.lane.b32.xlu0 %v671, 256
      %v674 = vpop.permute.xlu0 %673
      %s676 = sor.u32 256, 8
      %677 = vbcast.lane.b32.xlu0 %v671, %s676
      %v678 = vpop.permute.xlu0 %677
      %s680 = sor.u32 256, 16
      %681 = vbcast.lane.b32.xlu0 %v671, %s680
      %v682 = vpop.permute.xlu0 %681
      %s684 = sor.u32 256, 24
      %685 = vbcast.lane.b32.xlu0 %v671, %s684
      %v686 = vpop.permute.xlu0 %685
      %s688 = sor.u32 256, 32
      %689 = vbcast.lane.b32.xlu0 %v671, %s688
      %v690 = vpop.permute.xlu0 %689
      %s692 = sor.u32 256, 40
      %693 = vbcast.lane.b32.xlu0 %v671, %s692
      %v694 = vpop.permute.xlu0 %693
      %s696 = sor.u32 256, 48
      %697 = vbcast.lane.b32.xlu0 %v671, %s696
      %v698 = vpop.permute.xlu0 %697
      %s700 = sor.u32 256, 56
      %701 = vbcast.lane.b32.xlu0 %v671, %s700
      %v702 = vpop.permute.xlu0 %701
      %v703 = vlaneseq
      %v704 = vshrl.u32 %v703, 7
      %v705 = vsub.s32 2, %v704
      %v706 = vrot.slane %v213, %v705
      %708 = vbcast.lane.b32.xlu0 %v706, 256
      %v709 = vpop.permute.xlu0 %708
      %s711 = sor.u32 256, 8
      %712 = vbcast.lane.b32.xlu0 %v706, %s711
      %v713 = vpop.permute.xlu0 %712
      %s715 = sor.u32 256, 16
      %716 = vbcast.lane.b32.xlu0 %v706, %s715
      %v717 = vpop.permute.xlu0 %716
      %s719 = sor.u32 256, 24
      %720 = vbcast.lane.b32.xlu0 %v706, %s719
      %v721 = vpop.permute.xlu0 %720
      %s723 = sor.u32 256, 32
      %724 = vbcast.lane.b32.xlu0 %v706, %s723
      %v725 = vpop.permute.xlu0 %724
      %s727 = sor.u32 256, 40
      %728 = vbcast.lane.b32.xlu0 %v706, %s727
      %v729 = vpop.permute.xlu0 %728
      %s731 = sor.u32 256, 48
      %732 = vbcast.lane.b32.xlu0 %v706, %s731
      %v733 = vpop.permute.xlu0 %732
      %s735 = sor.u32 256, 56
      %736 = vbcast.lane.b32.xlu0 %v706, %s735
      %v737 = vpop.permute.xlu0 %736
      %v738 = vlaneseq
      %v739 = vshrl.u32 %v738, 7
      %v740 = vsub.s32 3, %v739
      %v741 = vrot.slane %v213, %v740
      %743 = vbcast.lane.b32.xlu0 %v741, 256
      %v744 = vpop.permute.xlu0 %743
      %s746 = sor.u32 256, 8
      %747 = vbcast.lane.b32.xlu0 %v741, %s746
      %v748 = vpop.permute.xlu0 %747
      %s750 = sor.u32 256, 16
      %751 = vbcast.lane.b32.xlu0 %v741, %s750
      %v752 = vpop.permute.xlu0 %751
      %s754 = sor.u32 256, 24
      %755 = vbcast.lane.b32.xlu0 %v741, %s754
      %v756 = vpop.permute.xlu0 %755
      %s758 = sor.u32 256, 32
      %759 = vbcast.lane.b32.xlu0 %v741, %s758
      %v760 = vpop.permute.xlu0 %759
      %s762 = sor.u32 256, 40
      %763 = vbcast.lane.b32.xlu0 %v741, %s762
      %v764 = vpop.permute.xlu0 %763
      %s766 = sor.u32 256, 48
      %767 = vbcast.lane.b32.xlu0 %v741, %s766
      %v768 = vpop.permute.xlu0 %767
      %s770 = sor.u32 256, 56
      %771 = vbcast.lane.b32.xlu0 %v741, %s770
      %v772 = vpop.permute.xlu0 %771
      %v773 = vadd.f32 %v371, 1.0
      %v774 = vadd.f32 %v375, 1.0
      %v775 = vadd.f32 %v379, 1.0
      %v776 = vadd.f32 %v383, 1.0
      %v777 = vadd.f32 %v387, 1.0
      %v778 = vadd.f32 %v391, 1.0
      %v779 = vadd.f32 %v395, 1.0
      %v780 = vadd.f32 %v399, 1.0
      %v781 = vadd.f32 %v406, 1.0
      %v782 = vadd.f32 %v410, 1.0
      %v783 = vadd.f32 %v414, 1.0
      %v784 = vadd.f32 %v418, 1.0
      %v785 = vadd.f32 %v422, 1.0
      %v786 = vadd.f32 %v426, 1.0
      %v787 = vadd.f32 %v430, 1.0
      %v788 = vadd.f32 %v434, 1.0
      %v789 = vadd.f32 %v441, 1.0
      %v790 = vadd.f32 %v445, 1.0
      %v791 = vadd.f32 %v449, 1.0
      %v792 = vadd.f32 %v453, 1.0
      %v793 = vadd.f32 %v457, 1.0
      %v794 = vadd.f32 %v461, 1.0
      %v795 = vadd.f32 %v465, 1.0
      %v796 = vadd.f32 %v469, 1.0
      %v797 = vadd.f32 %v476, 1.0
      %v798 = vadd.f32 %v480, 1.0
      %v799 = vadd.f32 %v484, 1.0
      %v800 = vadd.f32 %v488, 1.0
      %v801 = vadd.f32 %v492, 1.0
      %v802 = vadd.f32 %v496, 1.0
      %v803 = vadd.f32 %v500, 1.0
      %v804 = vadd.f32 %v504, 1.0
      %vm805 = vcmp.eq.f32.partialorder %v224, %v773
      %vm806 = vcmp.eq.f32.partialorder %v224, %v774
      %vm807 = vcmp.eq.f32.partialorder %v224, %v775
      %vm808 = vcmp.eq.f32.partialorder %v224, %v776
      %vm809 = vcmp.eq.f32.partialorder %v224, %v777
      %vm810 = vcmp.eq.f32.partialorder %v224, %v778
      %vm811 = vcmp.eq.f32.partialorder %v224, %v779
      %vm812 = vcmp.eq.f32.partialorder %v224, %v780
      %vm813 = vcmp.eq.f32.partialorder %v224, %v781
      %vm814 = vcmp.eq.f32.partialorder %v224, %v782
      %vm815 = vcmp.eq.f32.partialorder %v224, %v783
      %vm816 = vcmp.eq.f32.partialorder %v224, %v784
      %vm817 = vcmp.eq.f32.partialorder %v224, %v785
      %vm818 = vcmp.eq.f32.partialorder %v224, %v786
      %vm819 = vcmp.eq.f32.partialorder %v224, %v787
      %vm820 = vcmp.eq.f32.partialorder %v224, %v788
      %vm821 = vcmp.eq.f32.partialorder %v224, %v789
      %vm822 = vcmp.eq.f32.partialorder %v224, %v790
      %vm823 = vcmp.eq.f32.partialorder %v224, %v791
      %vm824 = vcmp.eq.f32.partialorder %v224, %v792
      %vm825 = vcmp.eq.f32.partialorder %v224, %v793
      %vm826 = vcmp.eq.f32.partialorder %v224, %v794
      %vm827 = vcmp.eq.f32.partialorder %v224, %v795
      %vm828 = vcmp.eq.f32.partialorder %v224, %v796
      %vm829 = vcmp.eq.f32.partialorder %v224, %v797
      %vm830 = vcmp.eq.f32.partialorder %v224, %v798
      %vm831 = vcmp.eq.f32.partialorder %v224, %v799
      %vm832 = vcmp.eq.f32.partialorder %v224, %v800
      %vm833 = vcmp.eq.f32.partialorder %v224, %v801
      %vm834 = vcmp.eq.f32.partialorder %v224, %v802
      %vm835 = vcmp.eq.f32.partialorder %v224, %v803
      %vm836 = vcmp.eq.f32.partialorder %v224, %v804
      %v837 = vsel %vm805, 1, 0
      %v838 = vsel %vm806, 1, 0
      %v839 = vsel %vm807, 1, 0
      %v840 = vsel %vm808, 1, 0
      %v841 = vsel %vm809, 1, 0
      %v842 = vsel %vm810, 1, 0
      %v843 = vsel %vm811, 1, 0
      %v844 = vsel %vm812, 1, 0
      %v845 = vsel %vm813, 1, 0
      %v846 = vsel %vm814, 1, 0
      %v847 = vsel %vm815, 1, 0
      %v848 = vsel %vm816, 1, 0
      %v849 = vsel %vm817, 1, 0
      %v850 = vsel %vm818, 1, 0
      %v851 = vsel %vm819, 1, 0
      %v852 = vsel %vm820, 1, 0
      %v853 = vsel %vm821, 1, 0
      %v854 = vsel %vm822, 1, 0
      %v855 = vsel %vm823, 1, 0
      %v856 = vsel %vm824, 1, 0
      %v857 = vsel %vm825, 1, 0
      %v858 = vsel %vm826, 1, 0
      %v859 = vsel %vm827, 1, 0
      %v860 = vsel %vm828, 1, 0
      %v861 = vsel %vm829, 1, 0
      %v862 = vsel %vm830, 1, 0
      %v863 = vsel %vm831, 1, 0
      %v864 = vsel %vm832, 1, 0
      %v865 = vsel %vm833, 1, 0
      %v866 = vsel %vm834, 1, 0
      %v867 = vsel %vm835, 1, 0
      %v868 = vsel %vm836, 1, 0
      %v869 = vcvt.s32.f32 %v837
      %v870 = vcvt.s32.f32 %v838
      %v871 = vcvt.s32.f32 %v839
      %v872 = vcvt.s32.f32 %v840
      %v873 = vcvt.s32.f32 %v841
      %v874 = vcvt.s32.f32 %v842
      %v875 = vcvt.s32.f32 %v843
      %v876 = vcvt.s32.f32 %v844
      %v877 = vcvt.s32.f32 %v845
      %v878 = vcvt.s32.f32 %v846
      %v879 = vcvt.s32.f32 %v847
      %v880 = vcvt.s32.f32 %v848
      %v881 = vcvt.s32.f32 %v849
      %v882 = vcvt.s32.f32 %v850
      %v883 = vcvt.s32.f32 %v851
      %v884 = vcvt.s32.f32 %v852
      %v885 = vcvt.s32.f32 %v853
      %v886 = vcvt.s32.f32 %v854
      %v887 = vcvt.s32.f32 %v855
      %v888 = vcvt.s32.f32 %v856
      %v889 = vcvt.s32.f32 %v857
      %v890 = vcvt.s32.f32 %v858
      %v891 = vcvt.s32.f32 %v859
      %v892 = vcvt.s32.f32 %v860
      %v893 = vcvt.s32.f32 %v861
      %v894 = vcvt.s32.f32 %v862
      %v895 = vcvt.s32.f32 %v863
      %v896 = vcvt.s32.f32 %v864
      %v897 = vcvt.s32.f32 %v865
      %v898 = vcvt.s32.f32 %v866
      %v899 = vcvt.s32.f32 %v867
      %v900 = vcvt.s32.f32 %v868
      %v901 = vmul.f32 %v639, %v869
      %v902 = vmul.f32 %v643, %v870
      %v903 = vmul.f32 %v647, %v871
      %v904 = vmul.f32 %v651, %v872
      %v905 = vmul.f32 %v655, %v873
      %v906 = vmul.f32 %v659, %v874
      %v907 = vmul.f32 %v663, %v875
      %v908 = vmul.f32 %v667, %v876
      %v909 = vmul.f32 %v674, %v877
      %v910 = vmul.f32 %v678, %v878
      %v911 = vmul.f32 %v682, %v879
      %v912 = vmul.f32 %v686, %v880
      %v913 = vmul.f32 %v690, %v881
      %v914 = vmul.f32 %v694, %v882
      %v915 = vmul.f32 %v698, %v883
      %v916 = vmul.f32 %v702, %v884
      %v917 = vmul.f32 %v709, %v885
      %v918 = vmul.f32 %v713, %v886
      %v919 = vmul.f32 %v717, %v887
      %v920 = vmul.f32 %v721, %v888
      %v921 = vmul.f32 %v725, %v889
      %v922 = vmul.f32 %v729, %v890
      %v923 = vmul.f32 %v733, %v891
      %v924 = vmul.f32 %v737, %v892
      %v925 = vmul.f32 %v744, %v893
      %v926 = vmul.f32 %v748, %v894
      %v927 = vmul.f32 %v752, %v895
      %v928 = vmul.f32 %v756, %v896
      %v929 = vmul.f32 %v760, %v897
      %v930 = vmul.f32 %v764, %v898
      %v931 = vmul.f32 %v768, %v899
      %v932 = vmul.f32 %v772, %v900
      %v933 = vadd.f32 %v601, %v901
      %v934 = vadd.f32 %v602, %v902
      %v935 = vadd.f32 %v603, %v903
      %v936 = vadd.f32 %v604, %v904
      %v937 = vadd.f32 %v605, %v905
      %v938 = vadd.f32 %v606, %v906
      %v939 = vadd.f32 %v607, %v907
      %v940 = vadd.f32 %v608, %v908
      %v941 = vadd.f32 %v609, %v909
      %v942 = vadd.f32 %v610, %v910
      %v943 = vadd.f32 %v611, %v911
      %v944 = vadd.f32 %v612, %v912
      %v945 = vadd.f32 %v613, %v913
      %v946 = vadd.f32 %v614, %v914
      %v947 = vadd.f32 %v615, %v915
      %v948 = vadd.f32 %v616, %v916
      %v949 = vadd.f32 %v617, %v917
      %v950 = vadd.f32 %v618, %v918
      %v951 = vadd.f32 %v619, %v919
      %v952 = vadd.f32 %v620, %v920
      %v953 = vadd.f32 %v621, %v921
      %v954 = vadd.f32 %v622, %v922
      %v955 = vadd.f32 %v623, %v923
      %v956 = vadd.f32 %v624, %v924
      %v957 = vadd.f32 %v625, %v925
      %v958 = vadd.f32 %v626, %v926
      %v959 = vadd.f32 %v627, %v927
      %v960 = vadd.f32 %v628, %v928
      %v961 = vadd.f32 %v629, %v929
      %v962 = vadd.f32 %v630, %v930
      %v963 = vadd.f32 %v631, %v931
      %v964 = vadd.f32 %v632, %v932
      %v965 = vlaneseq
      %v966 = vshrl.u32 %v965, 7
      %v967 = vsub.s32 0, %v966
      %v968 = vrot.slane %v216, %v967
      %970 = vbcast.lane.b32.xlu0 %v968, 256
      %v971 = vpop.permute.xlu0 %970
      %s973 = sor.u32 256, 8
      %974 = vbcast.lane.b32.xlu0 %v968, %s973
      %v975 = vpop.permute.xlu0 %974
      %s977 = sor.u32 256, 16
      %978 = vbcast.lane.b32.xlu0 %v968, %s977
      %v979 = vpop.permute.xlu0 %978
      %s981 = sor.u32 256, 24
      %982 = vbcast.lane.b32.xlu0 %v968, %s981
      %v983 = vpop.permute.xlu0 %982
      %s985 = sor.u32 256, 32
      %986 = vbcast.lane.b32.xlu0 %v968, %s985
      %v987 = vpop.permute.xlu0 %986
      %s989 = sor.u32 256, 40
      %990 = vbcast.lane.b32.xlu0 %v968, %s989
      %v991 = vpop.permute.xlu0 %990
      %s993 = sor.u32 256, 48
      %994 = vbcast.lane.b32.xlu0 %v968, %s993
      %v995 = vpop.permute.xlu0 %994
      %s997 = sor.u32 256, 56
      %998 = vbcast.lane.b32.xlu0 %v968, %s997
      %v999 = vpop.permute.xlu0 %998
      %v1000 = vlaneseq
      %v1001 = vshrl.u32 %v1000, 7
      %v1002 = vsub.s32 1, %v1001
      %v1003 = vrot.slane %v216, %v1002
      %1005 = vbcast.lane.b32.xlu0 %v1003, 256
      %v1006 = vpop.permute.xlu0 %1005
      %s1008 = sor.u32 256, 8
      %1009 = vbcast.lane.b32.xlu0 %v1003, %s1008
      %v1010 = vpop.permute.xlu0 %1009
      %s1012 = sor.u32 256, 16
      %1013 = vbcast.lane.b32.xlu0 %v1003, %s1012
      %v1014 = vpop.permute.xlu0 %1013
      %s1016 = sor.u32 256, 24
      %1017 = vbcast.lane.b32.xlu0 %v1003, %s1016
      %v1018 = vpop.permute.xlu0 %1017
      %s1020 = sor.u32 256, 32
      %1021 = vbcast.lane.b32.xlu0 %v1003, %s1020
      %v1022 = vpop.permute.xlu0 %1021
      %s1024 = sor.u32 256, 40
      %1025 = vbcast.lane.b32.xlu0 %v1003, %s1024
      %v1026 = vpop.permute.xlu0 %1025
      %s1028 = sor.u32 256, 48
      %1029 = vbcast.lane.b32.xlu0 %v1003, %s1028
      %v1030 = vpop.permute.xlu0 %1029
      %s1032 = sor.u32 256, 56
      %1033 = vbcast.lane.b32.xlu0 %v1003, %s1032
      %v1034 = vpop.permute.xlu0 %1033
      %v1035 = vlaneseq
      %v1036 = vshrl.u32 %v1035, 7
      %v1037 = vsub.s32 2, %v1036
      %v1038 = vrot.slane %v216, %v1037
      %1040 = vbcast.lane.b32.xlu0 %v1038, 256
      %v1041 = vpop.permute.xlu0 %1040
      %s1043 = sor.u32 256, 8
      %1044 = vbcast.lane.b32.xlu0 %v1038, %s1043
      %v1045 = vpop.permute.xlu0 %1044
      %s1047 = sor.u32 256, 16
      %1048 = vbcast.lane.b32.xlu0 %v1038, %s1047
      %v1049 = vpop.permute.xlu0 %1048
      %s1051 = sor.u32 256, 24
      %1052 = vbcast.lane.b32.xlu0 %v1038, %s1051
      %v1053 = vpop.permute.xlu0 %1052
      %s1055 = sor.u32 256, 32
      %1056 = vbcast.lane.b32.xlu0 %v1038, %s1055
      %v1057 = vpop.permute.xlu0 %1056
      %s1059 = sor.u32 256, 40
      %1060 = vbcast.lane.b32.xlu0 %v1038, %s1059
      %v1061 = vpop.permute.xlu0 %1060
      %s1063 = sor.u32 256, 48
      %1064 = vbcast.lane.b32.xlu0 %v1038, %s1063
      %v1065 = vpop.permute.xlu0 %1064
      %s1067 = sor.u32 256, 56
      %1068 = vbcast.lane.b32.xlu0 %v1038, %s1067
      %v1069 = vpop.permute.xlu0 %1068
      %v1070 = vlaneseq
      %v1071 = vshrl.u32 %v1070, 7
      %v1072 = vsub.s32 3, %v1071
      %v1073 = vrot.slane %v216, %v1072
      %1075 = vbcast.lane.b32.xlu0 %v1073, 256
      %v1076 = vpop.permute.xlu0 %1075
      %s1078 = sor.u32 256, 8
      %1079 = vbcast.lane.b32.xlu0 %v1073, %s1078
      %v1080 = vpop.permute.xlu0 %1079
      %s1082 = sor.u32 256, 16
      %1083 = vbcast.lane.b32.xlu0 %v1073, %s1082
      %v1084 = vpop.permute.xlu0 %1083
      %s1086 = sor.u32 256, 24
      %1087 = vbcast.lane.b32.xlu0 %v1073, %s1086
      %v1088 = vpop.permute.xlu0 %1087
      %s1090 = sor.u32 256, 32
      %1091 = vbcast.lane.b32.xlu0 %v1073, %s1090
      %v1092 = vpop.permute.xlu0 %1091
      %s1094 = sor.u32 256, 40
      %1095 = vbcast.lane.b32.xlu0 %v1073, %s1094
      %v1096 = vpop.permute.xlu0 %1095
      %s1098 = sor.u32 256, 48
      %1099 = vbcast.lane.b32.xlu0 %v1073, %s1098
      %v1100 = vpop.permute.xlu0 %1099
      %s1102 = sor.u32 256, 56
      %1103 = vbcast.lane.b32.xlu0 %v1073, %s1102
      %v1104 = vpop.permute.xlu0 %1103
      %v1105 = vlaneseq
      %v1106 = vshrl.u32 %v1105, 7
      %v1107 = vsub.s32 0, %v1106
      %v1108 = vrot.slane %v212, %v1107
      %1110 = vbcast.lane.b32.xlu0 %v1108, 256
      %v1111 = vpop.permute.xlu0 %1110
      %s1113 = sor.u32 256, 8
      %1114 = vbcast.lane.b32.xlu0 %v1108, %s1113
      %v1115 = vpop.permute.xlu0 %1114
      %s1117 = sor.u32 256, 16
      %1118 = vbcast.lane.b32.xlu0 %v1108, %s1117
      %v1119 = vpop.permute.xlu0 %1118
      %s1121 = sor.u32 256, 24
      %1122 = vbcast.lane.b32.xlu0 %v1108, %s1121
      %v1123 = vpop.permute.xlu0 %1122
      %s1125 = sor.u32 256, 32
      %1126 = vbcast.lane.b32.xlu0 %v1108, %s1125
      %v1127 = vpop.permute.xlu0 %1126
      %s1129 = sor.u32 256, 40
      %1130 = vbcast.lane.b32.xlu0 %v1108, %s1129
      %v1131 = vpop.permute.xlu0 %1130
      %s1133 = sor.u32 256, 48
      %1134 = vbcast.lane.b32.xlu0 %v1108, %s1133
      %v1135 = vpop.permute.xlu0 %1134
      %s1137 = sor.u32 256, 56
      %1138 = vbcast.lane.b32.xlu0 %v1108, %s1137
      %v1139 = vpop.permute.xlu0 %1138
      %v1140 = vlaneseq
      %v1141 = vshrl.u32 %v1140, 7
      %v1142 = vsub.s32 1, %v1141
      %v1143 = vrot.slane %v212, %v1142
      %1145 = vbcast.lane.b32.xlu0 %v1143, 256
      %v1146 = vpop.permute.xlu0 %1145
      %s1148 = sor.u32 256, 8
      %1149 = vbcast.lane.b32.xlu0 %v1143, %s1148
      %v1150 = vpop.permute.xlu0 %1149
      %s1152 = sor.u32 256, 16
      %1153 = vbcast.lane.b32.xlu0 %v1143, %s1152
      %v1154 = vpop.permute.xlu0 %1153
      %s1156 = sor.u32 256, 24
      %1157 = vbcast.lane.b32.xlu0 %v1143, %s1156
      %v1158 = vpop.permute.xlu0 %1157
      %s1160 = sor.u32 256, 32
      %1161 = vbcast.lane.b32.xlu0 %v1143, %s1160
      %v1162 = vpop.permute.xlu0 %1161
      %s1164 = sor.u32 256, 40
      %1165 = vbcast.lane.b32.xlu0 %v1143, %s1164
      %v1166 = vpop.permute.xlu0 %1165
      %s1168 = sor.u32 256, 48
      %1169 = vbcast.lane.b32.xlu0 %v1143, %s1168
      %v1170 = vpop.permute.xlu0 %1169
      %s1172 = sor.u32 256, 56
      %1173 = vbcast.lane.b32.xlu0 %v1143, %s1172
      %v1174 = vpop.permute.xlu0 %1173
      %v1175 = vlaneseq
      %v1176 = vshrl.u32 %v1175, 7
      %v1177 = vsub.s32 2, %v1176
      %v1178 = vrot.slane %v212, %v1177
      %1180 = vbcast.lane.b32.xlu0 %v1178, 256
      %v1181 = vpop.permute.xlu0 %1180
      %s1183 = sor.u32 256, 8
      %1184 = vbcast.lane.b32.xlu0 %v1178, %s1183
      %v1185 = vpop.permute.xlu0 %1184
      %s1187 = sor.u32 256, 16
      %1188 = vbcast.lane.b32.xlu0 %v1178, %s1187
      %v1189 = vpop.permute.xlu0 %1188
      %s1191 = sor.u32 256, 24
      %1192 = vbcast.lane.b32.xlu0 %v1178, %s1191
      %v1193 = vpop.permute.xlu0 %1192
      %s1195 = sor.u32 256, 32
      %1196 = vbcast.lane.b32.xlu0 %v1178, %s1195
      %v1197 = vpop.permute.xlu0 %1196
      %s1199 = sor.u32 256, 40
      %1200 = vbcast.lane.b32.xlu0 %v1178, %s1199
      %v1201 = vpop.permute.xlu0 %1200
      %s1203 = sor.u32 256, 48
      %1204 = vbcast.lane.b32.xlu0 %v1178, %s1203
      %v1205 = vpop.permute.xlu0 %1204
      %s1207 = sor.u32 256, 56
      %1208 = vbcast.lane.b32.xlu0 %v1178, %s1207
      %v1209 = vpop.permute.xlu0 %1208
      %v1210 = vlaneseq
      %v1211 = vshrl.u32 %v1210, 7
      %v1212 = vsub.s32 3, %v1211
      %v1213 = vrot.slane %v212, %v1212
      %1215 = vbcast.lane.b32.xlu0 %v1213, 256
      %v1216 = vpop.permute.xlu0 %1215
      %s1218 = sor.u32 256, 8
      %1219 = vbcast.lane.b32.xlu0 %v1213, %s1218
      %v1220 = vpop.permute.xlu0 %1219
      %s1222 = sor.u32 256, 16
      %1223 = vbcast.lane.b32.xlu0 %v1213, %s1222
      %v1224 = vpop.permute.xlu0 %1223
      %s1226 = sor.u32 256, 24
      %1227 = vbcast.lane.b32.xlu0 %v1213, %s1226
      %v1228 = vpop.permute.xlu0 %1227
      %s1230 = sor.u32 256, 32
      %1231 = vbcast.lane.b32.xlu0 %v1213, %s1230
      %v1232 = vpop.permute.xlu0 %1231
      %s1234 = sor.u32 256, 40
      %1235 = vbcast.lane.b32.xlu0 %v1213, %s1234
      %v1236 = vpop.permute.xlu0 %1235
      %s1238 = sor.u32 256, 48
      %1239 = vbcast.lane.b32.xlu0 %v1213, %s1238
      %v1240 = vpop.permute.xlu0 %1239
      %s1242 = sor.u32 256, 56
      %1243 = vbcast.lane.b32.xlu0 %v1213, %s1242
      %v1244 = vpop.permute.xlu0 %1243
      %vm1245 = vcmp.eq.f32.partialorder %v222, %v1111
      %vm1246 = vcmp.eq.f32.partialorder %v222, %v1115
      %vm1247 = vcmp.eq.f32.partialorder %v222, %v1119
      %vm1248 = vcmp.eq.f32.partialorder %v222, %v1123
      %vm1249 = vcmp.eq.f32.partialorder %v222, %v1127
      %vm1250 = vcmp.eq.f32.partialorder %v222, %v1131
      %vm1251 = vcmp.eq.f32.partialorder %v222, %v1135
      %vm1252 = vcmp.eq.f32.partialorder %v222, %v1139
      %vm1253 = vcmp.eq.f32.partialorder %v222, %v1146
      %vm1254 = vcmp.eq.f32.partialorder %v222, %v1150
      %vm1255 = vcmp.eq.f32.partialorder %v222, %v1154
      %vm1256 = vcmp.eq.f32.partialorder %v222, %v1158
      %vm1257 = vcmp.eq.f32.partialorder %v222, %v1162
      %vm1258 = vcmp.eq.f32.partialorder %v222, %v1166
      %vm1259 = vcmp.eq.f32.partialorder %v222, %v1170
      %vm1260 = vcmp.eq.f32.partialorder %v222, %v1174
      %vm1261 = vcmp.eq.f32.partialorder %v222, %v1181
      %vm1262 = vcmp.eq.f32.partialorder %v222, %v1185
      %vm1263 = vcmp.eq.f32.partialorder %v222, %v1189
      %vm1264 = vcmp.eq.f32.partialorder %v222, %v1193
      %vm1265 = vcmp.eq.f32.partialorder %v222, %v1197
      %vm1266 = vcmp.eq.f32.partialorder %v222, %v1201
      %vm1267 = vcmp.eq.f32.partialorder %v222, %v1205
      %vm1268 = vcmp.eq.f32.partialorder %v222, %v1209
      %vm1269 = vcmp.eq.f32.partialorder %v222, %v1216
      %vm1270 = vcmp.eq.f32.partialorder %v222, %v1220
      %vm1271 = vcmp.eq.f32.partialorder %v222, %v1224
      %vm1272 = vcmp.eq.f32.partialorder %v222, %v1228
      %vm1273 = vcmp.eq.f32.partialorder %v222, %v1232
      %vm1274 = vcmp.eq.f32.partialorder %v222, %v1236
      %vm1275 = vcmp.eq.f32.partialorder %v222, %v1240
      %vm1276 = vcmp.eq.f32.partialorder %v222, %v1244
      %v1277 = vsel %vm1245, 1, 0
      %v1278 = vsel %vm1246, 1, 0
      %v1279 = vsel %vm1247, 1, 0
      %v1280 = vsel %vm1248, 1, 0
      %v1281 = vsel %vm1249, 1, 0
      %v1282 = vsel %vm1250, 1, 0
      %v1283 = vsel %vm1251, 1, 0
      %v1284 = vsel %vm1252, 1, 0
      %v1285 = vsel %vm1253, 1, 0
      %v1286 = vsel %vm1254, 1, 0
      %v1287 = vsel %vm1255, 1, 0
      %v1288 = vsel %vm1256, 1, 0
      %v1289 = vsel %vm1257, 1, 0
      %v1290 = vsel %vm1258, 1, 0
      %v1291 = vsel %vm1259, 1, 0
      %v1292 = vsel %vm1260, 1, 0
      %v1293 = vsel %vm1261, 1, 0
      %v1294 = vsel %vm1262, 1, 0
      %v1295 = vsel %vm1263, 1, 0
      %v1296 = vsel %vm1264, 1, 0
      %v1297 = vsel %vm1265, 1, 0
      %v1298 = vsel %vm1266, 1, 0
      %v1299 = vsel %vm1267, 1, 0
      %v1300 = vsel %vm1268, 1, 0
      %v1301 = vsel %vm1269, 1, 0
      %v1302 = vsel %vm1270, 1, 0
      %v1303 = vsel %vm1271, 1, 0
      %v1304 = vsel %vm1272, 1, 0
      %v1305 = vsel %vm1273, 1, 0
      %v1306 = vsel %vm1274, 1, 0
      %v1307 = vsel %vm1275, 1, 0
      %v1308 = vsel %vm1276, 1, 0
      %v1309 = vcvt.s32.f32 %v1277
      %v1310 = vcvt.s32.f32 %v1278
      %v1311 = vcvt.s32.f32 %v1279
      %v1312 = vcvt.s32.f32 %v1280
      %v1313 = vcvt.s32.f32 %v1281
      %v1314 = vcvt.s32.f32 %v1282
      %v1315 = vcvt.s32.f32 %v1283
      %v1316 = vcvt.s32.f32 %v1284
      %v1317 = vcvt.s32.f32 %v1285
      %v1318 = vcvt.s32.f32 %v1286
      %v1319 = vcvt.s32.f32 %v1287
      %v1320 = vcvt.s32.f32 %v1288
      %v1321 = vcvt.s32.f32 %v1289
      %v1322 = vcvt.s32.f32 %v1290
      %v1323 = vcvt.s32.f32 %v1291
      %v1324 = vcvt.s32.f32 %v1292
      %v1325 = vcvt.s32.f32 %v1293
      %v1326 = vcvt.s32.f32 %v1294
      %v1327 = vcvt.s32.f32 %v1295
      %v1328 = vcvt.s32.f32 %v1296
      %v1329 = vcvt.s32.f32 %v1297
      %v1330 = vcvt.s32.f32 %v1298
      %v1331 = vcvt.s32.f32 %v1299
      %v1332 = vcvt.s32.f32 %v1300
      %v1333 = vcvt.s32.f32 %v1301
      %v1334 = vcvt.s32.f32 %v1302
      %v1335 = vcvt.s32.f32 %v1303
      %v1336 = vcvt.s32.f32 %v1304
      %v1337 = vcvt.s32.f32 %v1305
      %v1338 = vcvt.s32.f32 %v1306
      %v1339 = vcvt.s32.f32 %v1307
      %v1340 = vcvt.s32.f32 %v1308
      %v1341 = vmul.f32 %v971, %v1309
      %v1342 = vmul.f32 %v975, %v1310
      %v1343 = vmul.f32 %v979, %v1311
      %v1344 = vmul.f32 %v983, %v1312
      %v1345 = vmul.f32 %v987, %v1313
      %v1346 = vmul.f32 %v991, %v1314
      %v1347 = vmul.f32 %v995, %v1315
      %v1348 = vmul.f32 %v999, %v1316
      %v1349 = vmul.f32 %v1006, %v1317
      %v1350 = vmul.f32 %v1010, %v1318
      %v1351 = vmul.f32 %v1014, %v1319
      %v1352 = vmul.f32 %v1018, %v1320
      %v1353 = vmul.f32 %v1022, %v1321
      %v1354 = vmul.f32 %v1026, %v1322
      %v1355 = vmul.f32 %v1030, %v1323
      %v1356 = vmul.f32 %v1034, %v1324
      %v1357 = vmul.f32 %v1041, %v1325
      %v1358 = vmul.f32 %v1045, %v1326
      %v1359 = vmul.f32 %v1049, %v1327
      %v1360 = vmul.f32 %v1053, %v1328
      %v1361 = vmul.f32 %v1057, %v1329
      %v1362 = vmul.f32 %v1061, %v1330
      %v1363 = vmul.f32 %v1065, %v1331
      %v1364 = vmul.f32 %v1069, %v1332
      %v1365 = vmul.f32 %v1076, %v1333
      %v1366 = vmul.f32 %v1080, %v1334
      %v1367 = vmul.f32 %v1084, %v1335
      %v1368 = vmul.f32 %v1088, %v1336
      %v1369 = vmul.f32 %v1092, %v1337
      %v1370 = vmul.f32 %v1096, %v1338
      %v1371 = vmul.f32 %v1100, %v1339
      %v1372 = vmul.f32 %v1104, %v1340
      %v1373 = vlaneseq
      %v1374 = vshrl.u32 %v1373, 7
      %v1375 = vsub.s32 0, %v1374
      %v1376 = vrot.slane %v215, %v1375
      %1378 = vbcast.lane.b32.xlu0 %v1376, 256
      %v1379 = vpop.permute.xlu0 %1378
      %s1381 = sor.u32 256, 8
      %1382 = vbcast.lane.b32.xlu0 %v1376, %s1381
      %v1383 = vpop.permute.xlu0 %1382
      %s1385 = sor.u32 256, 16
      %1386 = vbcast.lane.b32.xlu0 %v1376, %s1385
      %v1387 = vpop.permute.xlu0 %1386
      %s1389 = sor.u32 256, 24
      %1390 = vbcast.lane.b32.xlu0 %v1376, %s1389
      %v1391 = vpop.permute.xlu0 %1390
      %s1393 = sor.u32 256, 32
      %1394 = vbcast.lane.b32.xlu0 %v1376, %s1393
      %v1395 = vpop.permute.xlu0 %1394
      %s1397 = sor.u32 256, 40
      %1398 = vbcast.lane.b32.xlu0 %v1376, %s1397
      %v1399 = vpop.permute.xlu0 %1398
      %s1401 = sor.u32 256, 48
      %1402 = vbcast.lane.b32.xlu0 %v1376, %s1401
      %v1403 = vpop.permute.xlu0 %1402
      %s1405 = sor.u32 256, 56
      %1406 = vbcast.lane.b32.xlu0 %v1376, %s1405
      %v1407 = vpop.permute.xlu0 %1406
      %v1408 = vlaneseq
      %v1409 = vshrl.u32 %v1408, 7
      %v1410 = vsub.s32 1, %v1409
      %v1411 = vrot.slane %v215, %v1410
      %1413 = vbcast.lane.b32.xlu0 %v1411, 256
      %v1414 = vpop.permute.xlu0 %1413
      %s1416 = sor.u32 256, 8
      %1417 = vbcast.lane.b32.xlu0 %v1411, %s1416
      %v1418 = vpop.permute.xlu0 %1417
      %s1420 = sor.u32 256, 16
      %1421 = vbcast.lane.b32.xlu0 %v1411, %s1420
      %v1422 = vpop.permute.xlu0 %1421
      %s1424 = sor.u32 256, 24
      %1425 = vbcast.lane.b32.xlu0 %v1411, %s1424
      %v1426 = vpop.permute.xlu0 %1425
      %s1428 = sor.u32 256, 32
      %1429 = vbcast.lane.b32.xlu0 %v1411, %s1428
      %v1430 = vpop.permute.xlu0 %1429
      %s1432 = sor.u32 256, 40
      %1433 = vbcast.lane.b32.xlu0 %v1411, %s1432
      %v1434 = vpop.permute.xlu0 %1433
      %s1436 = sor.u32 256, 48
      %1437 = vbcast.lane.b32.xlu0 %v1411, %s1436
      %v1438 = vpop.permute.xlu0 %1437
      %s1440 = sor.u32 256, 56
      %1441 = vbcast.lane.b32.xlu0 %v1411, %s1440
      %v1442 = vpop.permute.xlu0 %1441
      %v1443 = vlaneseq
      %v1444 = vshrl.u32 %v1443, 7
      %v1445 = vsub.s32 2, %v1444
      %v1446 = vrot.slane %v215, %v1445
      %1448 = vbcast.lane.b32.xlu0 %v1446, 256
      %v1449 = vpop.permute.xlu0 %1448
      %s1451 = sor.u32 256, 8
      %1452 = vbcast.lane.b32.xlu0 %v1446, %s1451
      %v1453 = vpop.permute.xlu0 %1452
      %s1455 = sor.u32 256, 16
      %1456 = vbcast.lane.b32.xlu0 %v1446, %s1455
      %v1457 = vpop.permute.xlu0 %1456
      %s1459 = sor.u32 256, 24
      %1460 = vbcast.lane.b32.xlu0 %v1446, %s1459
      %v1461 = vpop.permute.xlu0 %1460
      %s1463 = sor.u32 256, 32
      %1464 = vbcast.lane.b32.xlu0 %v1446, %s1463
      %v1465 = vpop.permute.xlu0 %1464
      %s1467 = sor.u32 256, 40
      %1468 = vbcast.lane.b32.xlu0 %v1446, %s1467
      %v1469 = vpop.permute.xlu0 %1468
      %s1471 = sor.u32 256, 48
      %1472 = vbcast.lane.b32.xlu0 %v1446, %s1471
      %v1473 = vpop.permute.xlu0 %1472
      %s1475 = sor.u32 256, 56
      %1476 = vbcast.lane.b32.xlu0 %v1446, %s1475
      %v1477 = vpop.permute.xlu0 %1476
      %v1478 = vlaneseq
      %v1479 = vshrl.u32 %v1478, 7
      %v1480 = vsub.s32 3, %v1479
      %v1481 = vrot.slane %v215, %v1480
      %1483 = vbcast.lane.b32.xlu0 %v1481, 256
      %v1484 = vpop.permute.xlu0 %1483
      %s1486 = sor.u32 256, 8
      %1487 = vbcast.lane.b32.xlu0 %v1481, %s1486
      %v1488 = vpop.permute.xlu0 %1487
      %s1490 = sor.u32 256, 16
      %1491 = vbcast.lane.b32.xlu0 %v1481, %s1490
      %v1492 = vpop.permute.xlu0 %1491
      %s1494 = sor.u32 256, 24
      %1495 = vbcast.lane.b32.xlu0 %v1481, %s1494
      %v1496 = vpop.permute.xlu0 %1495
      %s1498 = sor.u32 256, 32
      %1499 = vbcast.lane.b32.xlu0 %v1481, %s1498
      %v1500 = vpop.permute.xlu0 %1499
      %s1502 = sor.u32 256, 40
      %1503 = vbcast.lane.b32.xlu0 %v1481, %s1502
      %v1504 = vpop.permute.xlu0 %1503
      %s1506 = sor.u32 256, 48
      %1507 = vbcast.lane.b32.xlu0 %v1481, %s1506
      %v1508 = vpop.permute.xlu0 %1507
      %s1510 = sor.u32 256, 56
      %1511 = vbcast.lane.b32.xlu0 %v1481, %s1510
      %v1512 = vpop.permute.xlu0 %1511
      %v1513 = vadd.f32 %v1111, 1.0
      %v1514 = vadd.f32 %v1115, 1.0
      %v1515 = vadd.f32 %v1119, 1.0
      %v1516 = vadd.f32 %v1123, 1.0
      %v1517 = vadd.f32 %v1127, 1.0
      %v1518 = vadd.f32 %v1131, 1.0
      %v1519 = vadd.f32 %v1135, 1.0
      %v1520 = vadd.f32 %v1139, 1.0
      %v1521 = vadd.f32 %v1146, 1.0
      %v1522 = vadd.f32 %v1150, 1.0
      %v1523 = vadd.f32 %v1154, 1.0
      %v1524 = vadd.f32 %v1158, 1.0
      %v1525 = vadd.f32 %v1162, 1.0
      %v1526 = vadd.f32 %v1166, 1.0
      %v1527 = vadd.f32 %v1170, 1.0
      %v1528 = vadd.f32 %v1174, 1.0
      %v1529 = vadd.f32 %v1181, 1.0
      %v1530 = vadd.f32 %v1185, 1.0
      %v1531 = vadd.f32 %v1189, 1.0
      %v1532 = vadd.f32 %v1193, 1.0
      %v1533 = vadd.f32 %v1197, 1.0
      %v1534 = vadd.f32 %v1201, 1.0
      %v1535 = vadd.f32 %v1205, 1.0
      %v1536 = vadd.f32 %v1209, 1.0
      %v1537 = vadd.f32 %v1216, 1.0
      %v1538 = vadd.f32 %v1220, 1.0
      %v1539 = vadd.f32 %v1224, 1.0
      %v1540 = vadd.f32 %v1228, 1.0
      %v1541 = vadd.f32 %v1232, 1.0
      %v1542 = vadd.f32 %v1236, 1.0
      %v1543 = vadd.f32 %v1240, 1.0
      %v1544 = vadd.f32 %v1244, 1.0
      %vm1545 = vcmp.eq.f32.partialorder %v222, %v1513
      %vm1546 = vcmp.eq.f32.partialorder %v222, %v1514
      %vm1547 = vcmp.eq.f32.partialorder %v222, %v1515
      %vm1548 = vcmp.eq.f32.partialorder %v222, %v1516
      %vm1549 = vcmp.eq.f32.partialorder %v222, %v1517
      %vm1550 = vcmp.eq.f32.partialorder %v222, %v1518
      %vm1551 = vcmp.eq.f32.partialorder %v222, %v1519
      %vm1552 = vcmp.eq.f32.partialorder %v222, %v1520
      %vm1553 = vcmp.eq.f32.partialorder %v222, %v1521
      %vm1554 = vcmp.eq.f32.partialorder %v222, %v1522
      %vm1555 = vcmp.eq.f32.partialorder %v222, %v1523
      %vm1556 = vcmp.eq.f32.partialorder %v222, %v1524
      %vm1557 = vcmp.eq.f32.partialorder %v222, %v1525
      %vm1558 = vcmp.eq.f32.partialorder %v222, %v1526
      %vm1559 = vcmp.eq.f32.partialorder %v222, %v1527
      %vm1560 = vcmp.eq.f32.partialorder %v222, %v1528
      %vm1561 = vcmp.eq.f32.partialorder %v222, %v1529
      %vm1562 = vcmp.eq.f32.partialorder %v222, %v1530
      %vm1563 = vcmp.eq.f32.partialorder %v222, %v1531
      %vm1564 = vcmp.eq.f32.partialorder %v222, %v1532
      %vm1565 = vcmp.eq.f32.partialorder %v222, %v1533
      %vm1566 = vcmp.eq.f32.partialorder %v222, %v1534
      %vm1567 = vcmp.eq.f32.partialorder %v222, %v1535
      %vm1568 = vcmp.eq.f32.partialorder %v222, %v1536
      %vm1569 = vcmp.eq.f32.partialorder %v222, %v1537
      %vm1570 = vcmp.eq.f32.partialorder %v222, %v1538
      %vm1571 = vcmp.eq.f32.partialorder %v222, %v1539
      %vm1572 = vcmp.eq.f32.partialorder %v222, %v1540
      %vm1573 = vcmp.eq.f32.partialorder %v222, %v1541
      %vm1574 = vcmp.eq.f32.partialorder %v222, %v1542
      %vm1575 = vcmp.eq.f32.partialorder %v222, %v1543
      %vm1576 = vcmp.eq.f32.partialorder %v222, %v1544
      %v1577 = vsel %vm1545, 1, 0
      %v1578 = vsel %vm1546, 1, 0
      %v1579 = vsel %vm1547, 1, 0
      %v1580 = vsel %vm1548, 1, 0
      %v1581 = vsel %vm1549, 1, 0
      %v1582 = vsel %vm1550, 1, 0
      %v1583 = vsel %vm1551, 1, 0
      %v1584 = vsel %vm1552, 1, 0
      %v1585 = vsel %vm1553, 1, 0
      %v1586 = vsel %vm1554, 1, 0
      %v1587 = vsel %vm1555, 1, 0
      %v1588 = vsel %vm1556, 1, 0
      %v1589 = vsel %vm1557, 1, 0
      %v1590 = vsel %vm1558, 1, 0
      %v1591 = vsel %vm1559, 1, 0
      %v1592 = vsel %vm1560, 1, 0
      %v1593 = vsel %vm1561, 1, 0
      %v1594 = vsel %vm1562, 1, 0
      %v1595 = vsel %vm1563, 1, 0
      %v1596 = vsel %vm1564, 1, 0
      %v1597 = vsel %vm1565, 1, 0
      %v1598 = vsel %vm1566, 1, 0
      %v1599 = vsel %vm1567, 1, 0
      %v1600 = vsel %vm1568, 1, 0
      %v1601 = vsel %vm1569, 1, 0
      %v1602 = vsel %vm1570, 1, 0
      %v1603 = vsel %vm1571, 1, 0
      %v1604 = vsel %vm1572, 1, 0
      %v1605 = vsel %vm1573, 1, 0
      %v1606 = vsel %vm1574, 1, 0
      %v1607 = vsel %vm1575, 1, 0
      %v1608 = vsel %vm1576, 1, 0
      %v1609 = vcvt.s32.f32 %v1577
      %v1610 = vcvt.s32.f32 %v1578
      %v1611 = vcvt.s32.f32 %v1579
      %v1612 = vcvt.s32.f32 %v1580
      %v1613 = vcvt.s32.f32 %v1581
      %v1614 = vcvt.s32.f32 %v1582
      %v1615 = vcvt.s32.f32 %v1583
      %v1616 = vcvt.s32.f32 %v1584
      %v1617 = vcvt.s32.f32 %v1585
      %v1618 = vcvt.s32.f32 %v1586
      %v1619 = vcvt.s32.f32 %v1587
      %v1620 = vcvt.s32.f32 %v1588
      %v1621 = vcvt.s32.f32 %v1589
      %v1622 = vcvt.s32.f32 %v1590
      %v1623 = vcvt.s32.f32 %v1591
      %v1624 = vcvt.s32.f32 %v1592
      %v1625 = vcvt.s32.f32 %v1593
      %v1626 = vcvt.s32.f32 %v1594
      %v1627 = vcvt.s32.f32 %v1595
      %v1628 = vcvt.s32.f32 %v1596
      %v1629 = vcvt.s32.f32 %v1597
      %v1630 = vcvt.s32.f32 %v1598
      %v1631 = vcvt.s32.f32 %v1599
      %v1632 = vcvt.s32.f32 %v1600
      %v1633 = vcvt.s32.f32 %v1601
      %v1634 = vcvt.s32.f32 %v1602
      %v1635 = vcvt.s32.f32 %v1603
      %v1636 = vcvt.s32.f32 %v1604
      %v1637 = vcvt.s32.f32 %v1605
      %v1638 = vcvt.s32.f32 %v1606
      %v1639 = vcvt.s32.f32 %v1607
      %v1640 = vcvt.s32.f32 %v1608
      %v1641 = vmul.f32 %v1379, %v1609
      %v1642 = vmul.f32 %v1383, %v1610
      %v1643 = vmul.f32 %v1387, %v1611
      %v1644 = vmul.f32 %v1391, %v1612
      %v1645 = vmul.f32 %v1395, %v1613
      %v1646 = vmul.f32 %v1399, %v1614
      %v1647 = vmul.f32 %v1403, %v1615
      %v1648 = vmul.f32 %v1407, %v1616
      %v1649 = vmul.f32 %v1414, %v1617
      %v1650 = vmul.f32 %v1418, %v1618
      %v1651 = vmul.f32 %v1422, %v1619
      %v1652 = vmul.f32 %v1426, %v1620
      %v1653 = vmul.f32 %v1430, %v1621
      %v1654 = vmul.f32 %v1434, %v1622
      %v1655 = vmul.f32 %v1438, %v1623
      %v1656 = vmul.f32 %v1442, %v1624
      %v1657 = vmul.f32 %v1449, %v1625
      %v1658 = vmul.f32 %v1453, %v1626
      %v1659 = vmul.f32 %v1457, %v1627
      %v1660 = vmul.f32 %v1461, %v1628
      %v1661 = vmul.f32 %v1465, %v1629
      %v1662 = vmul.f32 %v1469, %v1630
      %v1663 = vmul.f32 %v1473, %v1631
      %v1664 = vmul.f32 %v1477, %v1632
      %v1665 = vmul.f32 %v1484, %v1633
      %v1666 = vmul.f32 %v1488, %v1634
      %v1667 = vmul.f32 %v1492, %v1635
      %v1668 = vmul.f32 %v1496, %v1636
      %v1669 = vmul.f32 %v1500, %v1637
      %v1670 = vmul.f32 %v1504, %v1638
      %v1671 = vmul.f32 %v1508, %v1639
      %v1672 = vmul.f32 %v1512, %v1640
      %v1673 = vadd.f32 %v1341, %v1641
      %v1674 = vadd.f32 %v1342, %v1642
      %v1675 = vadd.f32 %v1343, %v1643
      %v1676 = vadd.f32 %v1344, %v1644
      %v1677 = vadd.f32 %v1345, %v1645
      %v1678 = vadd.f32 %v1346, %v1646
      %v1679 = vadd.f32 %v1347, %v1647
      %v1680 = vadd.f32 %v1348, %v1648
      %v1681 = vadd.f32 %v1349, %v1649
      %v1682 = vadd.f32 %v1350, %v1650
      %v1683 = vadd.f32 %v1351, %v1651
      %v1684 = vadd.f32 %v1352, %v1652
      %v1685 = vadd.f32 %v1353, %v1653
      %v1686 = vadd.f32 %v1354, %v1654
      %v1687 = vadd.f32 %v1355, %v1655
      %v1688 = vadd.f32 %v1356, %v1656
      %v1689 = vadd.f32 %v1357, %v1657
      %v1690 = vadd.f32 %v1358, %v1658
      %v1691 = vadd.f32 %v1359, %v1659
      %v1692 = vadd.f32 %v1360, %v1660
      %v1693 = vadd.f32 %v1361, %v1661
      %v1694 = vadd.f32 %v1362, %v1662
      %v1695 = vadd.f32 %v1363, %v1663
      %v1696 = vadd.f32 %v1364, %v1664
      %v1697 = vadd.f32 %v1365, %v1665
      %v1698 = vadd.f32 %v1366, %v1666
      %v1699 = vadd.f32 %v1367, %v1667
      %v1700 = vadd.f32 %v1368, %v1668
      %v1701 = vadd.f32 %v1369, %v1669
      %v1702 = vadd.f32 %v1370, %v1670
      %v1703 = vadd.f32 %v1371, %v1671
      %v1704 = vadd.f32 %v1372, %v1672
      %v1705 = vmul.f32 %v933, %v1673
      %v1706 = vmul.f32 %v934, %v1674
      %v1707 = vmul.f32 %v935, %v1675
      %v1708 = vmul.f32 %v936, %v1676
      %v1709 = vmul.f32 %v937, %v1677
      %v1710 = vmul.f32 %v938, %v1678
      %v1711 = vmul.f32 %v939, %v1679
      %v1712 = vmul.f32 %v940, %v1680
      %v1713 = vmul.f32 %v941, %v1681
      %v1714 = vmul.f32 %v942, %v1682
      %v1715 = vmul.f32 %v943, %v1683
      %v1716 = vmul.f32 %v944, %v1684
      %v1717 = vmul.f32 %v945, %v1685
      %v1718 = vmul.f32 %v946, %v1686
      %v1719 = vmul.f32 %v947, %v1687
      %v1720 = vmul.f32 %v948, %v1688
      %v1721 = vmul.f32 %v949, %v1689
      %v1722 = vmul.f32 %v950, %v1690
      %v1723 = vmul.f32 %v951, %v1691
      %v1724 = vmul.f32 %v952, %v1692
      %v1725 = vmul.f32 %v953, %v1693
      %v1726 = vmul.f32 %v954, %v1694
      %v1727 = vmul.f32 %v955, %v1695
      %v1728 = vmul.f32 %v956, %v1696
      %v1729 = vmul.f32 %v957, %v1697
      %v1730 = vmul.f32 %v958, %v1698
      %v1731 = vmul.f32 %v959, %v1699
      %v1732 = vmul.f32 %v960, %v1700
      %v1733 = vmul.f32 %v961, %v1701
      %v1734 = vmul.f32 %v962, %v1702
      %v1735 = vmul.f32 %v963, %v1703
      %v1736 = vmul.f32 %v964, %v1704
      %v1737 = vld [vmem:[%s191] sm:$0xff]
      %v1738 = vld [vmem:[%s191 + $0x8] sm:$0xff]
      %v1739 = vld [vmem:[%s191 + $0x10] sm:$0xff]
      %v1740 = vld [vmem:[%s191 + $0x18] sm:$0xff]
      %v1741 = vld [vmem:[%s191 + $0x20] sm:$0xff]
      %v1742 = vld [vmem:[%s191 + $0x28] sm:$0xff]
      %v1743 = vld [vmem:[%s191 + $0x30] sm:$0xff]
      %v1744 = vld [vmem:[%s191 + $0x38] sm:$0xff]
      %v1745 = vld [vmem:[%s191 + $0x40] sm:$0xff]
      %v1746 = vld [vmem:[%s191 + $0x48] sm:$0xff]
      %v1747 = vld [vmem:[%s191 + $0x50] sm:$0xff]
      %v1748 = vld [vmem:[%s191 + $0x58] sm:$0xff]
      %v1749 = vld [vmem:[%s191 + $0x60] sm:$0xff]
      %v1750 = vld [vmem:[%s191 + $0x68] sm:$0xff]
      %v1751 = vld [vmem:[%s191 + $0x70] sm:$0xff]
      %v1752 = vld [vmem:[%s191 + $0x78] sm:$0xff]
      %v1753 = vld [vmem:[%s191 + $0x80] sm:$0xff]
      %v1754 = vld [vmem:[%s191 + $0x88] sm:$0xff]
      %v1755 = vld [vmem:[%s191 + $0x90] sm:$0xff]
      %v1756 = vld [vmem:[%s191 + $0x98] sm:$0xff]
      %v1757 = vld [vmem:[%s191 + $0xa0] sm:$0xff]
      %v1758 = vld [vmem:[%s191 + $0xa8] sm:$0xff]
      %v1759 = vld [vmem:[%s191 + $0xb0] sm:$0xff]
      %v1760 = vld [vmem:[%s191 + $0xb8] sm:$0xff]
      %v1761 = vld [vmem:[%s191 + $0xc0] sm:$0xff]
      %v1762 = vld [vmem:[%s191 + $0xc8] sm:$0xff]
      %v1763 = vld [vmem:[%s191 + $0xd0] sm:$0xff]
      %v1764 = vld [vmem:[%s191 + $0xd8] sm:$0xff]
      %v1765 = vld [vmem:[%s191 + $0xe0] sm:$0xff]
      %v1766 = vld [vmem:[%s191 + $0xe8] sm:$0xff]
      %v1767 = vld [vmem:[%s191 + $0xf0] sm:$0xff]
      %v1768 = vld [vmem:[%s191 + $0xf8] sm:$0xff]
      %vm1769 = vcmask 523264
      %v1771 = vsel %vm1769, %v1705, 0
      %v1774 = vsel %vm1769, %v1706, 0
      %v1777 = vsel %vm1769, %v1707, 0
      %v1780 = vsel %vm1769, %v1708, 0
      %v1783 = vsel %vm1769, %v1709, 0
      %v1786 = vsel %vm1769, %v1710, 0
      %v1789 = vsel %vm1769, %v1711, 0
      %v1792 = vsel %vm1769, %v1712, 0
      %1794 = vmatprep.subr.mxu0 0.0
      %1795 = vmatpush1.msra.mxu0 %v1737
      %1796 = vmatprep.subr.mxu0 0.0
      %1797 = vmatpush1.msra.mxu0 %v1738
      %1798 = vmatprep.subr.mxu0 0.0
      %1799 = vmatpush1.msra.mxu0 %v1739
      %1800 = vmatprep.subr.mxu0 0.0
      %1801 = vmatpush1.msra.mxu0 %v1740
      %1802 = vmatprep.subr.mxu0 0.0
      %1803 = vmatpush1.msra.mxu0 %v1741
      %1804 = vmatprep.subr.mxu0 0.0
      %1805 = vmatpush1.msra.mxu0 %v1742
      %1806 = vmatprep.subr.mxu0 0.0
      %1807 = vmatpush1.msra.mxu0 %v1743
      %1808 = vmatprep.subr.mxu0 0.0
      %1809 = vmatpush1.msra.mxu0 %v1744
      %1810 = vmatprep.subr.mxu0 0.0
      %1811 = vmatpush1.msra.mxu0 0.0
      %1812 = vmatprep.subr.mxu0 0.0
      %1813 = vmatpush1.msra.mxu0 0.0
      %1814 = vmatprep.subr.mxu0 0.0
      %1815 = vmatpush1.msra.mxu0 0.0
      %1816 = vmatprep.subr.mxu0 0.0
      %1817 = vmatpush1.msra.mxu0 0.0
      %1818 = vmatprep.subr.mxu0 0.0
      %1819 = vmatpush1.msra.mxu0 0.0
      %1820 = vmatprep.subr.mxu0 0.0
      %1821 = vmatpush1.msra.mxu0 0.0
      %1822 = vmatprep.subr.mxu0 0.0
      %1823 = vmatpush1.msra.mxu0 0.0
      %1824 = vmatprep.subr.mxu0 0.0
      %1825 = vmatpush1.msra.mxu0 0.0
      %1826 = vmatprep.subr.mxu0 0.0
      %1827 = vmatpush1.msra.mxu0 0.0
      %1828 = vmatprep.subr.mxu0 0.0
      %1829 = vmatpush1.msra.mxu0 0.0
      %1830 = vmatprep.subr.mxu0 0.0
      %1831 = vmatpush1.msra.mxu0 0.0
      %1832 = vmatprep.subr.mxu0 0.0
      %1833 = vmatpush1.msra.mxu0 0.0
      %1834 = vmatprep.subr.mxu0 0.0
      %1835 = vmatpush1.msra.mxu0 0.0
      %1836 = vmatprep.subr.mxu0 0.0
      %1837 = vmatpush1.msra.mxu0 0.0
      %1838 = vmatprep.subr.mxu0 0.0
      %1839 = vmatpush1.msra.mxu0 0.0
      %1840 = vmatprep.subr.mxu0 0.0
      %1841 = vmatpush1.msra.mxu0 0.0
      %1842 = vmatprep.subr.mxu0 0.0
      %1843 = vmatpush1.msra.mxu0 0.0
      %1844 = vmatprep.subr.mxu0 0.0
      %1845 = vmatpush1.msra.mxu0 0.0
      %1846 = vmatprep.subr.mxu0 0.0
      %1847 = vmatpush1.msra.mxu0 0.0
      %1848 = vmatprep.subr.mxu0 0.0
      %1849 = vmatpush1.msra.mxu0 0.0
      %1850 = vmatprep.subr.mxu0 0.0
      %1851 = vmatpush1.msra.mxu0 0.0
      %1852 = vmatprep.subr.mxu0 0.0
      %1853 = vmatpush1.msra.mxu0 0.0
      %1854 = vmatprep.subr.mxu0 0.0
      %1855 = vmatpush1.msra.mxu0 0.0
      %1856 = vmatprep.subr.mxu0 0.0
      %1857 = vmatpush1.msra.mxu0 0.0
      %1858 = vmatprep.mubr.f32.mxu0 0.0
      %1859 = vmatmul.mubr.f32.gmra.mrb[0].mxu0 %v1771
      %v1860 = vpop.f32.mrb[0].mxu0
      %v1861 = vadd.f32 0.0, %v1860
      %v1862 = vpop.f32.mrb[0].mxu0
      %1863 = vmatprep.mubr.f32.mxu0 0.0
      %1864 = vmatmul.mubr.f32.gmra.mrb[0].mxu0 %v1774
      %v1865 = vpop.f32.mrb[0].mxu0
      %v1866 = vadd.f32 0.0, %v1865
      %v1867 = vpop.f32.mrb[0].mxu0
      %1868 = vmatprep.mubr.f32.mxu0 0.0
      %1869 = vmatmul.mubr.f32.gmra.mrb[0].mxu0 %v1777
      %v1870 = vpop.f32.mrb[0].mxu0
      %v1871 = vadd.f32 0.0, %v1870
      %v1872 = vpop.f32.mrb[0].mxu0
      %1873 = vmatprep.mubr.f32.mxu0 0.0
      %1874 = vmatmul.mubr.f32.gmra.mrb[0].mxu0 %v1780
      %v1875 = vpop.f32.mrb[0].mxu0
      %v1876 = vadd.f32 0.0, %v1875
      %v1877 = vpop.f32.mrb[0].mxu0
      %1878 = vmatprep.mubr.f32.mxu0 0.0
      %1879 = vmatmul.mubr.f32.gmra.mrb[0].mxu0 %v1783
      %v1880 = vpop.f32.mrb[0].mxu0
      %v1881 = vadd.f32 0.0, %v1880
      %v1882 = vpop.f32.mrb[0].mxu0
      %1883 = vmatprep.mubr.f32.mxu0 0.0
      %1884 = vmatmul.mubr.f32.gmra.mrb[0].mxu0 %v1786
      %v1885 = vpop.f32.mrb[0].mxu0
      %v1886 = vadd.f32 0.0, %v1885
      %v1887 = vpop.f32.mrb[0].mxu0
      %1888 = vmatprep.mubr.f32.mxu0 0.0
      %1889 = vmatmul.mubr.f32.gmra.mrb[0].mxu0 %v1789
      %v1890 = vpop.f32.mrb[0].mxu0
      %v1891 = vadd.f32 0.0, %v1890
      %v1892 = vpop.f32.mrb[0].mxu0
      %1893 = vmatprep.mubr.f32.mxu0 0.0
      %1894 = vmatmul.mubr.f32.gmra.mrb[0].mxu0 %v1792
      %v1895 = vpop.f32.mrb[0].mxu0
      %v1896 = vadd.f32 0.0, %v1895
      %v1897 = vpop.f32.mrb[0].mxu0
      %1898 = vdwg.mxu0
      %v1900 = vsel %vm1769, %v1713, 0
      %v1903 = vsel %vm1769, %v1714, 0
      %v1906 = vsel %vm1769, %v1715, 0
      %v1909 = vsel %vm1769, %v1716, 0
      %v1912 = vsel %vm1769, %v1717, 0
      %v1915 = vsel %vm1769, %v1718, 0
      %v1918 = vsel %vm1769, %v1719, 0
      %v1921 = vsel %vm1769, %v1720, 0
      %1923 = vmatprep.subr.mxu0 0.0
      %1924 = vmatpush1.msra.mxu0 %v1745
      %1925 = vmatprep.subr.mxu0 0.0
      %1926 = vmatpush1.msra.mxu0 %v1746
      %1927 = vmatprep.subr.mxu0 0.0
      %1928 = vmatpush1.msra.mxu0 %v1747
      %1929 = vmatprep.subr.mxu0 0.0
      %1930 = vmatpush1.msra.mxu0 %v1748
      %1931 = vmatprep.subr.mxu0 0.0
      %1932 = vmatpush1.msra.mxu0 %v1749
      %1933 = vmatprep.subr.mxu0 0.0
      %1934 = vmatpush1.msra.mxu0 %v1750
      %1935 = vmatprep.subr.mxu0 0.0
      %1936 = vmatpush1.msra.mxu0 %v1751
      %1937 = vmatprep.subr.mxu0 0.0
      %1938 = vmatpush1.msra.mxu0 %v1752
      %1939 = vmatprep.subr.mxu0 0.0
      %1940 = vmatpush1.msra.mxu0 0.0
      %1941 = vmatprep.subr.mxu0 0.0
      %1942 = vmatpush1.msra.mxu0 0.0
      %1943 = vmatprep.subr.mxu0 0.0
      %1944 = vmatpush1.msra.mxu0 0.0
      %1945 = vmatprep.subr.mxu0 0.0
      %1946 = vmatpush1.msra.mxu0 0.0
      %1947 = vmatprep.subr.mxu0 0.0
      %1948 = vmatpush1.msra.mxu0 0.0
      %1949 = vmatprep.subr.mxu0 0.0
      %1950 = vmatpush1.msra.mxu0 0.0
      %1951 = vmatprep.subr.mxu0 0.0
      %1952 = vmatpush1.msra.mxu0 0.0
      %1953 = vmatprep.subr.mxu0 0.0
      %1954 = vmatpush1.msra.mxu0 0.0
      %1955 = vmatprep.subr.mxu0 0.0
      %1956 = vmatpush1.msra.mxu0 0.0
      %1957 = vmatprep.subr.mxu0 0.0
      %1958 = vmatpush1.msra.mxu0 0.0
      %1959 = vmatprep.subr.mxu0 0.0
      %1960 = vmatpush1.msra.mxu0 0.0
      %1961 = vmatprep.subr.mxu0 0.0
      %1962 = vmatpush1.msra.mxu0 0.0
      %1963 = vmatprep.subr.mxu0 0.0
      %1964 = vmatpush1.msra.mxu0 0.0
      %1965 = vmatprep.subr.mxu0 0.0
      %1966 = vmatpush1.msra.mxu0 0.0
      %1967 = vmatprep.subr.mxu0 0.0
      %1968 = vmatpush1.msra.mxu0 0.0
      %1969 = vmatprep.subr.mxu0 0.0
      %1970 = vmatpush1.msra.mxu0 0.0
      %1971 = vmatprep.subr.mxu0 0.0
      %1972 = vmatpush1.msra.mxu0 0.0
      %1973 = vmatprep.subr.mxu0 0.0
      %1974 = vmatpush1.msra.mxu0 0.0
      %1975 = vmatprep.subr.mxu0 0.0
      %1976 = vmatpush1.msra.mxu0 0.0
      %1977 = vmatprep.subr.mxu0 0.0
      %1978 = vmatpush1.msra.mxu0 0.0
      %1979 = vmatprep.subr.mxu0 0.0
      %1980 = vmatpush1.msra.mxu0 0.0
      %1981 = vmatprep.subr.mxu0 0.0
      %1982 = vmatpush1.msra.mxu0 0.0
      %1983 = vmatprep.subr.mxu0 0.0
      %1984 = vmatpush1.msra.mxu0 0.0
      %1985 = vmatprep.subr.mxu0 0.0
      %1986 = vmatpush1.msra.mxu0 0.0
      %1987 = vmatprep.mubr.f32.mxu0 0.0
      %1988 = vmatmul.mubr.f32.gmra.mrb[0].mxu0 %v1900
      %v1989 = vpop.f32.mrb[0].mxu0
      %v1990 = vadd.f32 0.0, %v1989
      %v1991 = vpop.f32.mrb[0].mxu0
      %1992 = vmatprep.mubr.f32.mxu0 0.0
      %1993 = vmatmul.mubr.f32.gmra.mrb[0].mxu0 %v1903
      %v1994 = vpop.f32.mrb[0].mxu0
      %v1995 = vadd.f32 0.0, %v1994
      %v1996 = vpop.f32.mrb[0].mxu0
      %1997 = vmatprep.mubr.f32.mxu0 0.0
      %1998 = vmatmul.mubr.f32.gmra.mrb[0].mxu0 %v1906
      %v1999 = vpop.f32.mrb[0].mxu0
      %v2000 = vadd.f32 0.0, %v1999
      %v2001 = vpop.f32.mrb[0].mxu0
      %2002 = vmatprep.mubr.f32.mxu0 0.0
      %2003 = vmatmul.mubr.f32.gmra.mrb[0].mxu0 %v1909
      %v2004 = vpop.f32.mrb[0].mxu0
      %v2005 = vadd.f32 0.0, %v2004
      %v2006 = vpop.f32.mrb[0].mxu0
      %2007 = vmatprep.mubr.f32.mxu0 0.0
      %2008 = vmatmul.mubr.f32.gmra.mrb[0].mxu0 %v1912
      %v2009 = vpop.f32.mrb[0].mxu0
      %v2010 = vadd.f32 0.0, %v2009
      %v2011 = vpop.f32.mrb[0].mxu0
      %2012 = vmatprep.mubr.f32.mxu0 0.0
      %2013 = vmatmul.mubr.f32.gmra.mrb[0].mxu0 %v1915
      %v2014 = vpop.f32.mrb[0].mxu0
      %v2015 = vadd.f32 0.0, %v2014
      %v2016 = vpop.f32.mrb[0].mxu0
      %2017 = vmatprep.mubr.f32.mxu0 0.0
      %2018 = vmatmul.mubr.f32.gmra.mrb[0].mxu0 %v1918
      %v2019 = vpop.f32.mrb[0].mxu0
      %v2020 = vadd.f32 0.0, %v2019
      %v2021 = vpop.f32.mrb[0].mxu0
      %2022 = vmatprep.mubr.f32.mxu0 0.0
      %2023 = vmatmul.mubr.f32.gmra.mrb[0].mxu0 %v1921
      %v2024 = vpop.f32.mrb[0].mxu0
      %v2025 = vadd.f32 0.0, %v2024
      %v2026 = vpop.f32.mrb[0].mxu0
      %2027 = vdwg.mxu0
      %v2029 = vsel %vm1769, %v1721, 0
      %v2032 = vsel %vm1769, %v1722, 0
      %v2035 = vsel %vm1769, %v1723, 0
      %v2038 = vsel %vm1769, %v1724, 0
      %v2041 = vsel %vm1769, %v1725, 0
      %v2044 = vsel %vm1769, %v1726, 0
      %v2047 = vsel %vm1769, %v1727, 0
      %v2050 = vsel %vm1769, %v1728, 0
      %2052 = vmatprep.subr.mxu0 0.0
      %2053 = vmatpush1.msra.mxu0 %v1753
      %2054 = vmatprep.subr.mxu0 0.0
      %2055 = vmatpush1.msra.mxu0 %v1754
      %2056 = vmatprep.subr.mxu0 0.0
      %2057 = vmatpush1.msra.mxu0 %v1755
      %2058 = vmatprep.subr.mxu0 0.0
      %2059 = vmatpush1.msra.mxu0 %v1756
      %2060 = vmatprep.subr.mxu0 0.0
      %2061 = vmatpush1.msra.mxu0 %v1757
      %2062 = vmatprep.subr.mxu0 0.0
      %2063 = vmatpush1.msra.mxu0 %v1758
      %2064 = vmatprep.subr.mxu0 0.0
      %2065 = vmatpush1.msra.mxu0 %v1759
      %2066 = vmatprep.subr.mxu0 0.0
      %2067 = vmatpush1.msra.mxu0 %v1760
      %2068 = vmatprep.subr.mxu0 0.0
      %2069 = vmatpush1.msra.mxu0 0.0
      %2070 = vmatprep.subr.mxu0 0.0
      %2071 = vmatpush1.msra.mxu0 0.0
      %2072 = vmatprep.subr.mxu0 0.0
      %2073 = vmatpush1.msra.mxu0 0.0
      %2074 = vmatprep.subr.mxu0 0.0
      %2075 = vmatpush1.msra.mxu0 0.0
      %2076 = vmatprep.subr.mxu0 0.0
      %2077 = vmatpush1.msra.mxu0 0.0
      %2078 = vmatprep.subr.mxu0 0.0
      %2079 = vmatpush1.msra.mxu0 0.0
      %2080 = vmatprep.subr.mxu0 0.0
      %2081 = vmatpush1.msra.mxu0 0.0
      %2082 = vmatprep.subr.mxu0 0.0
      %2083 = vmatpush1.msra.mxu0 0.0
      %2084 = vmatprep.subr.mxu0 0.0
      %2085 = vmatpush1.msra.mxu0 0.0
      %2086 = vmatprep.subr.mxu0 0.0
      %2087 = vmatpush1.msra.mxu0 0.0
      %2088 = vmatprep.subr.mxu0 0.0
      %2089 = vmatpush1.msra.mxu0 0.0
      %2090 = vmatprep.subr.mxu0 0.0
      %2091 = vmatpush1.msra.mxu0 0.0
      %2092 = vmatprep.subr.mxu0 0.0
      %2093 = vmatpush1.msra.mxu0 0.0
      %2094 = vmatprep.subr.mxu0 0.0
      %2095 = vmatpush1.msra.mxu0 0.0
      %2096 = vmatprep.subr.mxu0 0.0
      %2097 = vmatpush1.msra.mxu0 0.0
      %2098 = vmatprep.subr.mxu0 0.0
      %2099 = vmatpush1.msra.mxu0 0.0
      %2100 = vmatprep.subr.mxu0 0.0
      %2101 = vmatpush1.msra.mxu0 0.0
      %2102 = vmatprep.subr.mxu0 0.0
      %2103 = vmatpush1.msra.mxu0 0.0
      %2104 = vmatprep.subr.mxu0 0.0
      %2105 = vmatpush1.msra.mxu0 0.0
      %2106 = vmatprep.subr.mxu0 0.0
      %2107 = vmatpush1.msra.mxu0 0.0
      %2108 = vmatprep.subr.mxu0 0.0
      %2109 = vmatpush1.msra.mxu0 0.0
      %2110 = vmatprep.subr.mxu0 0.0
      %2111 = vmatpush1.msra.mxu0 0.0
      %2112 = vmatprep.subr.mxu0 0.0
      %2113 = vmatpush1.msra.mxu0 0.0
      %2114 = vmatprep.subr.mxu0 0.0
      %2115 = vmatpush1.msra.mxu0 0.0
      %2116 = vmatprep.mubr.f32.mxu0 0.0
      %2117 = vmatmul.mubr.f32.gmra.mrb[0].mxu0 %v2029
      %v2118 = vpop.f32.mrb[0].mxu0
      %v2119 = vadd.f32 0.0, %v2118
      %v2120 = vpop.f32.mrb[0].mxu0
      %2121 = vmatprep.mubr.f32.mxu0 0.0
      %2122 = vmatmul.mubr.f32.gmra.mrb[0].mxu0 %v2032
      %v2123 = vpop.f32.mrb[0].mxu0
      %v2124 = vadd.f32 0.0, %v2123
      %v2125 = vpop.f32.mrb[0].mxu0
      %2126 = vmatprep.mubr.f32.mxu0 0.0
      %2127 = vmatmul.mubr.f32.gmra.mrb[0].mxu0 %v2035
      %v2128 = vpop.f32.mrb[0].mxu0
      %v2129 = vadd.f32 0.0, %v2128
      %v2130 = vpop.f32.mrb[0].mxu0
      %2131 = vmatprep.mubr.f32.mxu0 0.0
      %2132 = vmatmul.mubr.f32.gmra.mrb[0].mxu0 %v2038
      %v2133 = vpop.f32.mrb[0].mxu0
      %v2134 = vadd.f32 0.0, %v2133
      %v2135 = vpop.f32.mrb[0].mxu0
      %2136 = vmatprep.mubr.f32.mxu0 0.0
      %2137 = vmatmul.mubr.f32.gmra.mrb[0].mxu0 %v2041
      %v2138 = vpop.f32.mrb[0].mxu0
      %v2139 = vadd.f32 0.0, %v2138
      %v2140 = vpop.f32.mrb[0].mxu0
      %2141 = vmatprep.mubr.f32.mxu0 0.0
      %2142 = vmatmul.mubr.f32.gmra.mrb[0].mxu0 %v2044
      %v2143 = vpop.f32.mrb[0].mxu0
      %v2144 = vadd.f32 0.0, %v2143
      %v2145 = vpop.f32.mrb[0].mxu0
      %2146 = vmatprep.mubr.f32.mxu0 0.0
      %2147 = vmatmul.mubr.f32.gmra.mrb[0].mxu0 %v2047
      %v2148 = vpop.f32.mrb[0].mxu0
      %v2149 = vadd.f32 0.0, %v2148
      %v2150 = vpop.f32.mrb[0].mxu0
      %2151 = vmatprep.mubr.f32.mxu0 0.0
      %2152 = vmatmul.mubr.f32.gmra.mrb[0].mxu0 %v2050
      %v2153 = vpop.f32.mrb[0].mxu0
      %v2154 = vadd.f32 0.0, %v2153
      %v2155 = vpop.f32.mrb[0].mxu0
      %2156 = vdwg.mxu0
      %v2158 = vsel %vm1769, %v1729, 0
      %v2161 = vsel %vm1769, %v1730, 0
      %v2164 = vsel %vm1769, %v1731, 0
      %v2167 = vsel %vm1769, %v1732, 0
      %v2170 = vsel %vm1769, %v1733, 0
      %v2173 = vsel %vm1769, %v1734, 0
      %v2176 = vsel %vm1769, %v1735, 0
      %v2179 = vsel %vm1769, %v1736, 0
      %2181 = vmatprep.subr.mxu0 0.0
      %2182 = vmatpush1.msra.mxu0 %v1761
      %2183 = vmatprep.subr.mxu0 0.0
      %2184 = vmatpush1.msra.mxu0 %v1762
      %2185 = vmatprep.subr.mxu0 0.0
      %2186 = vmatpush1.msra.mxu0 %v1763
      %2187 = vmatprep.subr.mxu0 0.0
      %2188 = vmatpush1.msra.mxu0 %v1764
      %2189 = vmatprep.subr.mxu0 0.0
      %2190 = vmatpush1.msra.mxu0 %v1765
      %2191 = vmatprep.subr.mxu0 0.0
      %2192 = vmatpush1.msra.mxu0 %v1766
      %2193 = vmatprep.subr.mxu0 0.0
      %2194 = vmatpush1.msra.mxu0 %v1767
      %2195 = vmatprep.subr.mxu0 0.0
      %2196 = vmatpush1.msra.mxu0 %v1768
      %2197 = vmatprep.subr.mxu0 0.0
      %2198 = vmatpush1.msra.mxu0 0.0
      %2199 = vmatprep.subr.mxu0 0.0
      %2200 = vmatpush1.msra.mxu0 0.0
      %2201 = vmatprep.subr.mxu0 0.0
      %2202 = vmatpush1.msra.mxu0 0.0
      %2203 = vmatprep.subr.mxu0 0.0
      %2204 = vmatpush1.msra.mxu0 0.0
      %2205 = vmatprep.subr.mxu0 0.0
      %2206 = vmatpush1.msra.mxu0 0.0
      %2207 = vmatprep.subr.mxu0 0.0
      %2208 = vmatpush1.msra.mxu0 0.0
      %2209 = vmatprep.subr.mxu0 0.0
      %2210 = vmatpush1.msra.mxu0 0.0
      %2211 = vmatprep.subr.mxu0 0.0
      %2212 = vmatpush1.msra.mxu0 0.0
      %2213 = vmatprep.subr.mxu0 0.0
      %2214 = vmatpush1.msra.mxu0 0.0
      %2215 = vmatprep.subr.mxu0 0.0
      %2216 = vmatpush1.msra.mxu0 0.0
      %2217 = vmatprep.subr.mxu0 0.0
      %2218 = vmatpush1.msra.mxu0 0.0
      %2219 = vmatprep.subr.mxu0 0.0
      %2220 = vmatpush1.msra.mxu0 0.0
      %2221 = vmatprep.subr.mxu0 0.0
      %2222 = vmatpush1.msra.mxu0 0.0
      %2223 = vmatprep.subr.mxu0 0.0
      %2224 = vmatpush1.msra.mxu0 0.0
      %2225 = vmatprep.subr.mxu0 0.0
      %2226 = vmatpush1.msra.mxu0 0.0
      %2227 = vmatprep.subr.mxu0 0.0
      %2228 = vmatpush1.msra.mxu0 0.0
      %2229 = vmatprep.subr.mxu0 0.0
      %2230 = vmatpush1.msra.mxu0 0.0
      %2231 = vmatprep.subr.mxu0 0.0
      %2232 = vmatpush1.msra.mxu0 0.0
      %2233 = vmatprep.subr.mxu0 0.0
      %2234 = vmatpush1.msra.mxu0 0.0
      %2235 = vmatprep.subr.mxu0 0.0
      %2236 = vmatpush1.msra.mxu0 0.0
      %2237 = vmatprep.subr.mxu0 0.0
      %2238 = vmatpush1.msra.mxu0 0.0
      %2239 = vmatprep.subr.mxu0 0.0
      %2240 = vmatpush1.msra.mxu0 0.0
      %2241 = vmatprep.subr.mxu0 0.0
      %2242 = vmatpush1.msra.mxu0 0.0
      %2243 = vmatprep.subr.mxu0 0.0
      %2244 = vmatpush1.msra.mxu0 0.0
      %2245 = vmatprep.mubr.f32.mxu0 0.0
      %2246 = vmatmul.mubr.f32.gmra.mrb[0].mxu0 %v2158
      %v2247 = vpop.f32.mrb[0].mxu0
      %v2248 = vadd.f32 0.0, %v2247
      %v2249 = vpop.f32.mrb[0].mxu0
      %2250 = vmatprep.mubr.f32.mxu0 0.0
      %2251 = vmatmul.mubr.f32.gmra.mrb[0].mxu0 %v2161
      %v2252 = vpop.f32.mrb[0].mxu0
      %v2253 = vadd.f32 0.0, %v2252
      %v2254 = vpop.f32.mrb[0].mxu0
      %2255 = vmatprep.mubr.f32.mxu0 0.0
      %2256 = vmatmul.mubr.f32.gmra.mrb[0].mxu0 %v2164
      %v2257 = vpop.f32.mrb[0].mxu0
      %v2258 = vadd.f32 0.0, %v2257
      %v2259 = vpop.f32.mrb[0].mxu0
      %2260 = vmatprep.mubr.f32.mxu0 0.0
      %2261 = vmatmul.mubr.f32.gmra.mrb[0].mxu0 %v2167
      %v2262 = vpop.f32.mrb[0].mxu0
      %v2263 = vadd.f32 0.0, %v2262
      %v2264 = vpop.f32.mrb[0].mxu0
      %2265 = vmatprep.mubr.f32.mxu0 0.0
      %2266 = vmatmul.mubr.f32.gmra.mrb[0].mxu0 %v2170
      %v2267 = vpop.f32.mrb[0].mxu0
      %v2268 = vadd.f32 0.0, %v2267
      %v2269 = vpop.f32.mrb[0].mxu0
      %2270 = vmatprep.mubr.f32.mxu0 0.0
      %2271 = vmatmul.mubr.f32.gmra.mrb[0].mxu0 %v2173
      %v2272 = vpop.f32.mrb[0].mxu0
      %v2273 = vadd.f32 0.0, %v2272
      %v2274 = vpop.f32.mrb[0].mxu0
      %2275 = vmatprep.mubr.f32.mxu0 0.0
      %2276 = vmatmul.mubr.f32.gmra.mrb[0].mxu0 %v2176
      %v2277 = vpop.f32.mrb[0].mxu0
      %v2278 = vadd.f32 0.0, %v2277
      %v2279 = vpop.f32.mrb[0].mxu0
      %2280 = vmatprep.mubr.f32.mxu0 0.0
      %2281 = vmatmul.mubr.f32.gmra.mrb[0].mxu0 %v2179
      %v2282 = vpop.f32.mrb[0].mxu0
      %v2283 = vadd.f32 0.0, %v2282
      %v2284 = vpop.f32.mrb[0].mxu0
      %2285 = vdwg.mxu0
      %vm2286 = vcmask 130048
      %2287 = vst.msk [vmem:[%s204] sm:$0xff] %vm2286, %v1861
      %2288 = vst.msk [vmem:[%s204 + $0x8] sm:$0xff] %vm2286, %v1866
      %2289 = vst.msk [vmem:[%s204 + $0x10] sm:$0xff] %vm2286, %v1871
      %2290 = vst.msk [vmem:[%s204 + $0x18] sm:$0xff] %vm2286, %v1876
      %2291 = vst.msk [vmem:[%s204 + $0x20] sm:$0xff] %vm2286, %v1881
      %2292 = vst.msk [vmem:[%s204 + $0x28] sm:$0xff] %vm2286, %v1886
      %2293 = vst.msk [vmem:[%s204 + $0x30] sm:$0xff] %vm2286, %v1891
      %2294 = vst.msk [vmem:[%s204 + $0x38] sm:$0xff] %vm2286, %v1896
      %2295 = vst.msk [vmem:[%s204 + $0x40] sm:$0xff] %vm2286, %v1990
      %2296 = vst.msk [vmem:[%s204 + $0x48] sm:$0xff] %vm2286, %v1995
      %2297 = vst.msk [vmem:[%s204 + $0x50] sm:$0xff] %vm2286, %v2000
      %2298 = vst.msk [vmem:[%s204 + $0x58] sm:$0xff] %vm2286, %v2005
      %2299 = vst.msk [vmem:[%s204 + $0x60] sm:$0xff] %vm2286, %v2010
      %2300 = vst.msk [vmem:[%s204 + $0x68] sm:$0xff] %vm2286, %v2015
      %2301 = vst.msk [vmem:[%s204 + $0x70] sm:$0xff] %vm2286, %v2020
      %2302 = vst.msk [vmem:[%s204 + $0x78] sm:$0xff] %vm2286, %v2025
      %2303 = vst.msk [vmem:[%s204 + $0x80] sm:$0xff] %vm2286, %v2119
      %2304 = vst.msk [vmem:[%s204 + $0x88] sm:$0xff] %vm2286, %v2124
      %2305 = vst.msk [vmem:[%s204 + $0x90] sm:$0xff] %vm2286, %v2129
      %2306 = vst.msk [vmem:[%s204 + $0x98] sm:$0xff] %vm2286, %v2134
      %2307 = vst.msk [vmem:[%s204 + $0xa0] sm:$0xff] %vm2286, %v2139
      %2308 = vst.msk [vmem:[%s204 + $0xa8] sm:$0xff] %vm2286, %v2144
      %2309 = vst.msk [vmem:[%s204 + $0xb0] sm:$0xff] %vm2286, %v2149
      %2310 = vst.msk [vmem:[%s204 + $0xb8] sm:$0xff] %vm2286, %v2154
      %2311 = vst.msk [vmem:[%s204 + $0xc0] sm:$0xff] %vm2286, %v2248
      %2312 = vst.msk [vmem:[%s204 + $0xc8] sm:$0xff] %vm2286, %v2253
      %2313 = vst.msk [vmem:[%s204 + $0xd0] sm:$0xff] %vm2286, %v2258
      %2314 = vst.msk [vmem:[%s204 + $0xd8] sm:$0xff] %vm2286, %v2263
      %2315 = vst.msk [vmem:[%s204 + $0xe0] sm:$0xff] %vm2286, %v2268
      %2316 = vst.msk [vmem:[%s204 + $0xe8] sm:$0xff] %vm2286, %v2273
      %2317 = vst.msk [vmem:[%s204 + $0xf0] sm:$0xff] %vm2286, %v2278
      %2318 = vst.msk [vmem:[%s204 + $0xf8] sm:$0xff] %vm2286, %v2283
      %p2319 = scmp.lt.s32.totalorder %s14, 1
      %s2320 = scalar_select %p2319, %s14, 1
      %s2321 = smul.addr %s2320, 32
      %s2322 = smul.addr %s2321, 8
      %s2323 = scalar_lea.vmem %s3, %s2322
      // Predicated region
      $region33: #{attention_transformer_block.7} parent=31 // pred_check
        %p2324 = pneg %p110
      $region34: #{attention_transformer_block.7} parent=31 // pred_check_branch
        %2326 = sbr.rel (%p2324) target = $region36
      $region35: #{attention_transformer_block.7} parent=31 // pred_region
        _
      $region36: #{attention_transformer_block.7} parent=31 // pred_fallthru
        _
    $region32: #{attention_transformer_block.7} parent=5 // pred_fallthru
      _
    %p2327 = scmp.le.s32.totalorder 2, %s9
    // Predicated region
    $region37: #{attention_transformer_block.7} parent=5 // pred_check
      %p2328 = pneg %p2327
    $region38: #{attention_transformer_block.7} parent=5 // pred_check_branch
      %2330 = sbr.rel (%p2328) target = $region40
    $region39: #{attention_transformer_block.7} parent=5 // pred_region
      %s2331 = ssub.s32 %s9, 2
      // Predicated region
      $region41: #{attention_transformer_block.7} parent=39 // pred_check
        %p2332 = pneg %p116
      $region42: #{attention_transformer_block.7} parent=39 // pred_check_branch
        %2334 = sbr.rel (%p2332) target = $region44
      $region43: #{attention_transformer_block.7} parent=39 // pred_region
        %p2335 = scmp.lt.s32.totalorder %s15, 1
        %s2336 = scalar_select %p2335, %s15, 1
        %s2337 = smul.addr %s2336, 32
        %s2338 = smul.addr %s2337, 8
        %s2339 = scalar_lea.vmem %s3, %s2338
      $region44: #{attention_transformer_block.7} parent=39 // pred_fallthru
        _
    $region40: #{attention_transformer_block.7} parent=5 // pred_fallthru
      _
  $region6: #{attention_transformer_block.7} parent=0 // loop_footer
    %s13 = sadd.s32 1, %s9
  $region7: #{attention_transformer_block.7} parent=0 // loop_footer_branch
    %8 = sbr.rel target = $region3
  $region8: #{attention_transformer_block.7} parent=0 // loop_exit
    _

// kernel: attention_transformer_block.8
$region0: #{attention_transformer_block.8}
  #allocation0 [shape = 'u32[]', space=smem, size = 0x4, offset = 0x4, fixed_abs, tag = 'smem constant byte address 0x4 - core index']
  #allocation1 [shape = 'u32[144,128]{1,0:T(1,128)}', space=vmem, size = 0x12000, scoped, tag = 'internal scratch']
  %s0 = inlined_call_operand.vmem [shape: f32[4,8,128], index: 0, kind: input, shape index: {}]
  %s1 = inlined_call_operand.vmem [shape: f32[4,8,128], index: 1, kind: input, shape index: {}]
  %s2 = inlined_call_operand.vmem [shape: f32[4,8,128], index: 2, kind: input, shape index: {}]
  %s3 = inlined_call_operand.vmem [shape: f32[4,8,128], index: 3, kind: input, shape index: {}]
  %s4 = inlined_call_operand.vmem [shape: f32[4,4,128], index: 4, kind: input, shape index: {}]
  %s5 = inlined_call_operand.vmem [shape: f32[4,8,128], index: 5, kind: output, shape index: {0}]
  %s6 = inlined_call_operand.vmem [shape: f32[4,8,128], index: 6, kind: output, shape index: {1}]
  %7 = xla_tuple %s5, %s6
  %s8 = sld [smem:[#allocation0]]
  $region38: #{attention_transformer_block.8} parent=0
    _
  %s10 = ssub.s32 1, %s8
  %s11 = scalar_select 0, %s10, %s8
  // Predicated region
  $region2: #{attention_transformer_block.8} parent=0 // pred_check
    _
  $region3: #{attention_transformer_block.8} parent=0 // pred_check_branch
    %13 = sbr.rel (0) target = $region5
  $region4: #{attention_transformer_block.8} parent=0 // pred_region
    _
  $region5: #{attention_transformer_block.8} parent=0 // pred_fallthru
    _
  // Predicated region
  $region6: #{attention_transformer_block.8} parent=0 // pred_check
    _
  $region7: #{attention_transformer_block.8} parent=0 // pred_check_branch
    %15 = sbr.rel (0) target = $region9
  $region8: #{attention_transformer_block.8} parent=0 // pred_region
    _
  $region9: #{attention_transformer_block.8} parent=0 // pred_fallthru
    _
  // Predicated region
  $region10: #{attention_transformer_block.8} parent=0 // pred_check
    _
  $region11: #{attention_transformer_block.8} parent=0 // pred_check_branch
    %17 = sbr.rel (0) target = $region13
  $region12: #{attention_transformer_block.8} parent=0 // pred_region
    _
  $region13: #{attention_transformer_block.8} parent=0 // pred_fallthru
    _
  // Predicated region
  $region14: #{attention_transformer_block.8} parent=0 // pred_check
    _
  $region15: #{attention_transformer_block.8} parent=0 // pred_check_branch
    %19 = sbr.rel (0) target = $region17
  $region16: #{attention_transformer_block.8} parent=0 // pred_region
    _
  $region17: #{attention_transformer_block.8} parent=0 // pred_fallthru
    _
  // Predicated region
  $region18: #{attention_transformer_block.8} parent=0 // pred_check
    _
  $region19: #{attention_transformer_block.8} parent=0 // pred_check_branch
    %21 = sbr.rel (0) target = $region21
  $region20: #{attention_transformer_block.8} parent=0 // pred_region
    _
  $region21: #{attention_transformer_block.8} parent=0 // pred_fallthru
    _
  %v22 = vld [vmem:[%s2] sm:$0xff]
  %v23 = vld [vmem:[%s2 + $0x8] sm:$0xff]
  %v24 = vld [vmem:[%s2 + $0x10] sm:$0xff]
  %v25 = vld [vmem:[%s2 + $0x18] sm:$0xff]
  %v26 = vld [vmem:[%s3] sm:$0xff]
  %v27 = vld [vmem:[%s3 + $0x8] sm:$0xff]
  %v28 = vld [vmem:[%s3 + $0x10] sm:$0xff]
  %v29 = vld [vmem:[%s3 + $0x18] sm:$0xff]
  %v30 = vld [vmem:[%s4] sm:$0xf]
  %v31 = vld [vmem:[%s4 + $0x4] sm:$0xf]
  %v32 = vld [vmem:[%s4 + $0x8] sm:$0xf]
  %v33 = vld [vmem:[%s4 + $0xc] sm:$0xf]
  %v34 = vld [vmem:[%s0] sm:$0xff]
  %v35 = vld [vmem:[%s0 + $0x8] sm:$0xff]
  %v36 = vld [vmem:[%s0 + $0x10] sm:$0xff]
  %v37 = vld [vmem:[%s0 + $0x18] sm:$0xff]
  %v38 = vmul.f32 %v34, %v22
  %v39 = vmul.f32 %v34, %v23
  %v40 = vmul.f32 %v34, %v24
  %v41 = vmul.f32 %v34, %v25
  %v42 = vmul.f32 %v35, %v22
  %v43 = vmul.f32 %v35, %v23
  %v44 = vmul.f32 %v35, %v24
  %v45 = vmul.f32 %v35, %v25
  %v46 = vmul.f32 %v36, %v22
  %v47 = vmul.f32 %v36, %v23
  %v48 = vmul.f32 %v36, %v24
  %v49 = vmul.f32 %v36, %v25
  %v50 = vmul.f32 %v37, %v22
  %v51 = vmul.f32 %v37, %v23
  %v52 = vmul.f32 %v37, %v24
  %v53 = vmul.f32 %v37, %v25
  %v54 = vrot.slane %v38, 4
  %v55 = vadd.f32 %v38, %v54
  %v56 = vrot.slane %v55, 2
  %v57 = vadd.f32 %v55, %v56
  %v58 = vrot.slane %v57, 1
  %v59 = vadd.f32 %v57, %v58
  %v60 = vrot.slane %v39, 4
  %v61 = vadd.f32 %v39, %v60
  %v62 = vrot.slane %v61, 2
  %v63 = vadd.f32 %v61, %v62
  %v64 = vrot.slane %v63, 1
  %v65 = vadd.f32 %v63, %v64
  %v66 = vrot.slane %v40, 4
  %v67 = vadd.f32 %v40, %v66
  %v68 = vrot.slane %v67, 2
  %v69 = vadd.f32 %v67, %v68
  %v70 = vrot.slane %v69, 1
  %v71 = vadd.f32 %v69, %v70
  %v72 = vrot.slane %v41, 4
  %v73 = vadd.f32 %v41, %v72
  %v74 = vrot.slane %v73, 2
  %v75 = vadd.f32 %v73, %v74
  %v76 = vrot.slane %v75, 1
  %v77 = vadd.f32 %v75, %v76
  %v78 = vrot.slane %v42, 4
  %v79 = vadd.f32 %v42, %v78
  %v80 = vrot.slane %v79, 2
  %v81 = vadd.f32 %v79, %v80
  %v82 = vrot.slane %v81, 1
  %v83 = vadd.f32 %v81, %v82
  %v84 = vrot.slane %v43, 4
  %v85 = vadd.f32 %v43, %v84
  %v86 = vrot.slane %v85, 2
  %v87 = vadd.f32 %v85, %v86
  %v88 = vrot.slane %v87, 1
  %v89 = vadd.f32 %v87, %v88
  %v90 = vrot.slane %v44, 4
  %v91 = vadd.f32 %v44, %v90
  %v92 = vrot.slane %v91, 2
  %v93 = vadd.f32 %v91, %v92
  %v94 = vrot.slane %v93, 1
  %v95 = vadd.f32 %v93, %v94
  %v96 = vrot.slane %v45, 4
  %v97 = vadd.f32 %v45, %v96
  %v98 = vrot.slane %v97, 2
  %v99 = vadd.f32 %v97, %v98
  %v100 = vrot.slane %v99, 1
  %v101 = vadd.f32 %v99, %v100
  %v102 = vrot.slane %v46, 4
  %v103 = vadd.f32 %v46, %v102
  %v104 = vrot.slane %v103, 2
  %v105 = vadd.f32 %v103, %v104
  %v106 = vrot.slane %v105, 1
  %v107 = vadd.f32 %v105, %v106
  %v108 = vrot.slane %v47, 4
  %v109 = vadd.f32 %v47, %v108
  %v110 = vrot.slane %v109, 2
  %v111 = vadd.f32 %v109, %v110
  %v112 = vrot.slane %v111, 1
  %v113 = vadd.f32 %v111, %v112
  %v114 = vrot.slane %v48, 4
  %v115 = vadd.f32 %v48, %v114
  %v116 = vrot.slane %v115, 2
  %v117 = vadd.f32 %v115, %v116
  %v118 = vrot.slane %v117, 1
  %v119 = vadd.f32 %v117, %v118
  %v120 = vrot.slane %v49, 4
  %v121 = vadd.f32 %v49, %v120
  %v122 = vrot.slane %v121, 2
  %v123 = vadd.f32 %v121, %v122
  %v124 = vrot.slane %v123, 1
  %v125 = vadd.f32 %v123, %v124
  %v126 = vrot.slane %v50, 4
  %v127 = vadd.f32 %v50, %v126
  %v128 = vrot.slane %v127, 2
  %v129 = vadd.f32 %v127, %v128
  %v130 = vrot.slane %v129, 1
  %v131 = vadd.f32 %v129, %v130
  %v132 = vrot.slane %v51, 4
  %v133 = vadd.f32 %v51, %v132
  %v134 = vrot.slane %v133, 2
  %v135 = vadd.f32 %v133, %v134
  %v136 = vrot.slane %v135, 1
  %v137 = vadd.f32 %v135, %v136
  %v138 = vrot.slane %v52, 4
  %v139 = vadd.f32 %v52, %v138
  %v140 = vrot.slane %v139, 2
  %v141 = vadd.f32 %v139, %v140
  %v142 = vrot.slane %v141, 1
  %v143 = vadd.f32 %v141, %v142
  %v144 = vrot.slane %v53, 4
  %v145 = vadd.f32 %v53, %v144
  %v146 = vrot.slane %v145, 2
  %v147 = vadd.f32 %v145, %v146
  %v148 = vrot.slane %v147, 1
  %v149 = vadd.f32 %v147, %v148
  %v150 = vmul.f32 %v59, 0.35355338
  %v151 = vmul.f32 %v65, 0.35355338
  %v152 = vmul.f32 %v71, 0.35355338
  %v153 = vmul.f32 %v77, 0.35355338
  %v154 = vmul.f32 %v83, 0.35355338
  %v155 = vmul.f32 %v89, 0.35355338
  %v156 = vmul.f32 %v95, 0.35355338
  %v157 = vmul.f32 %v101, 0.35355338
  %v158 = vmul.f32 %v107, 0.35355338
  %v159 = vmul.f32 %v113, 0.35355338
  %v160 = vmul.f32 %v119, 0.35355338
  %v161 = vmul.f32 %v125, 0.35355338
  %v162 = vmul.f32 %v131, 0.35355338
  %v163 = vmul.f32 %v137, 0.35355338
  %v164 = vmul.f32 %v143, 0.35355338
  %v165 = vmul.f32 %v149, 0.35355338
  %v170 = vrot.slane %v30, 1
  %v171 = vrot.slane %v30, 2
  %v172 = vrot.slane %v30, 3
  %v173 = vrot.slane %v31, 1
  %v174 = vrot.slane %v31, 2
  %v175 = vrot.slane %v31, 3
  %v176 = vrot.slane %v32, 1
  %v177 = vrot.slane %v32, 2
  %v178 = vrot.slane %v32, 3
  %v179 = vrot.slane %v33, 1
  %v180 = vrot.slane %v33, 2
  %v181 = vrot.slane %v33, 3
  %v198 = vadd.f32 %v150, %v30
  %v199 = vadd.f32 %v151, %v170
  %v200 = vadd.f32 %v152, %v171
  %v201 = vadd.f32 %v153, %v172
  %v202 = vadd.f32 %v154, %v31
  %v203 = vadd.f32 %v155, %v173
  %v204 = vadd.f32 %v156, %v174
  %v205 = vadd.f32 %v157, %v175
  %v206 = vadd.f32 %v158, %v32
  %v207 = vadd.f32 %v159, %v176
  %v208 = vadd.f32 %v160, %v177
  %v209 = vadd.f32 %v161, %v178
  %v210 = vadd.f32 %v162, %v33
  %v211 = vadd.f32 %v163, %v179
  %v212 = vadd.f32 %v164, %v180
  %v213 = vadd.f32 %v165, %v181
  %vm214 = vcmask 1040384
  %v215 = vsel %vm214, %v198, -inf
  %v216 = vsel %vm214, %v199, -inf
  %v217 = vmax.f32 %v215, %v216
  %v218 = vsel %vm214, %v200, -inf
  %v219 = vmax.f32 %v217, %v218
  %v220 = vsel %vm214, %v201, -inf
  %v221 = vmax.f32 %v219, %v220
  %v222 = vsel %vm214, %v202, -inf
  %v223 = vsel %vm214, %v203, -inf
  %v224 = vmax.f32 %v222, %v223
  %v225 = vsel %vm214, %v204, -inf
  %v226 = vmax.f32 %v224, %v225
  %v227 = vsel %vm214, %v205, -inf
  %v228 = vmax.f32 %v226, %v227
  %v229 = vsel %vm214, %v206, -inf
  %v230 = vsel %vm214, %v207, -inf
  %v231 = vmax.f32 %v229, %v230
  %v232 = vsel %vm214, %v208, -inf
  %v233 = vmax.f32 %v231, %v232
  %v234 = vsel %vm214, %v209, -inf
  %v235 = vmax.f32 %v233, %v234
  %v236 = vsel %vm214, %v210, -inf
  %v237 = vsel %vm214, %v211, -inf
  %v238 = vmax.f32 %v236, %v237
  %v239 = vsel %vm214, %v212, -inf
  %v240 = vmax.f32 %v238, %v239
  %v241 = vsel %vm214, %v213, -inf
  %v242 = vmax.f32 %v240, %v241
  %v243 = vlaneseq
  %v244 = vshrl.u32 %v243, 7
  %v245 = vsub.s32 0, %v244
  %v246 = vrot.slane %v221, %v245
  %v247 = vlaneseq
  %v248 = vshrl.u32 %v247, 7
  %v249 = vsub.s32 0, %v248
  %v250 = vrot.slane %v228, %v249
  %v251 = vlaneseq
  %v252 = vshrl.u32 %v251, 7
  %v253 = vsub.s32 0, %v252
  %v254 = vrot.slane %v235, %v253
  %v255 = vlaneseq
  %v256 = vshrl.u32 %v255, 7
  %v257 = vsub.s32 0, %v256
  %v258 = vrot.slane %v242, %v257
  %v259 = vsub.f32 %v198, %v246
  %v260 = vsub.f32 %v199, %v246
  %v261 = vsub.f32 %v200, %v246
  %v262 = vsub.f32 %v201, %v246
  %v263 = vsub.f32 %v202, %v250
  %v264 = vsub.f32 %v203, %v250
  %v265 = vsub.f32 %v204, %v250
  %v266 = vsub.f32 %v205, %v250
  %v267 = vsub.f32 %v206, %v254
  %v268 = vsub.f32 %v207, %v254
  %v269 = vsub.f32 %v208, %v254
  %v270 = vsub.f32 %v209, %v254
  %v271 = vsub.f32 %v210, %v258
  %v272 = vsub.f32 %v211, %v258
  %v273 = vsub.f32 %v212, %v258
  %v274 = vsub.f32 %v213, %v258
  %v275 = vmul.f32 %v259, 1.442695
  %v276 = vpow.pop %v275
  %v277 = vmul.f32 %v260, 1.442695
  %v278 = vpow.pop %v277
  %v279 = vmul.f32 %v261, 1.442695
  %v280 = vpow.pop %v279
  %v281 = vmul.f32 %v262, 1.442695
  %v282 = vpow.pop %v281
  %v283 = vmul.f32 %v263, 1.442695
  %v284 = vpow.pop %v283
  %v285 = vmul.f32 %v264, 1.442695
  %v286 = vpow.pop %v285
  %v287 = vmul.f32 %v265, 1.442695
  %v288 = vpow.pop %v287
  %v289 = vmul.f32 %v266, 1.442695
  %v290 = vpow.pop %v289
  %v291 = vmul.f32 %v267, 1.442695
  %v292 = vpow.pop %v291
  %v293 = vmul.f32 %v268, 1.442695
  %v294 = vpow.pop %v293
  %v295 = vmul.f32 %v269, 1.442695
  %v296 = vpow.pop %v295
  %v297 = vmul.f32 %v270, 1.442695
  %v298 = vpow.pop %v297
  %v299 = vmul.f32 %v271, 1.442695
  %v300 = vpow.pop %v299
  %v301 = vmul.f32 %v272, 1.442695
  %v302 = vpow.pop %v301
  %v303 = vmul.f32 %v273, 1.442695
  %v304 = vpow.pop %v303
  %v305 = vmul.f32 %v274, 1.442695
  %v306 = vpow.pop %v305
  %v323 = vrot.slane %v278, 7
  %vm324 = vcmask 1041409
  %v325 = vsel %vm324, %v323, %v276
  %v326 = vrot.slane %v280, 6
  %vm327 = vcmask 1042434
  %v328 = vsel %vm327, %v326, %v325
  %v329 = vrot.slane %v282, 5
  %vm330 = vcmask 1043459
  %v331 = vsel %vm330, %v329, %v328
  %v332 = vrot.slane %v286, 7
  %v333 = vsel %vm324, %v332, %v284
  %v334 = vrot.slane %v288, 6
  %v335 = vsel %vm327, %v334, %v333
  %v336 = vrot.slane %v290, 5
  %v337 = vsel %vm330, %v336, %v335
  %v338 = vrot.slane %v294, 7
  %v339 = vsel %vm324, %v338, %v292
  %v340 = vrot.slane %v296, 6
  %v341 = vsel %vm327, %v340, %v339
  %v342 = vrot.slane %v298, 5
  %v343 = vsel %vm330, %v342, %v341
  %v344 = vrot.slane %v302, 7
  %v345 = vsel %vm324, %v344, %v300
  %v346 = vrot.slane %v304, 6
  %v347 = vsel %vm327, %v346, %v345
  %v348 = vrot.slane %v306, 5
  %v349 = vsel %vm330, %v348, %v347
  %vm354 = vcmask 1043456
  %v355 = vsel %vm354, %v331, 0.0
  %v356 = vrot.slane %v355, 4
  %v357 = vadd.f32 %v355, %v356
  %v358 = vrot.slane %v357, 2
  %v359 = vadd.f32 %v357, %v358
  %v360 = vrot.slane %v359, 1
  %v361 = vadd.f32 %v359, %v360
  %v362 = vsel %vm354, %v337, 0.0
  %v363 = vrot.slane %v362, 4
  %v364 = vadd.f32 %v362, %v363
  %v365 = vrot.slane %v364, 2
  %v366 = vadd.f32 %v364, %v365
  %v367 = vrot.slane %v366, 1
  %v368 = vadd.f32 %v366, %v367
  %v369 = vsel %vm354, %v343, 0.0
  %v370 = vrot.slane %v369, 4
  %v371 = vadd.f32 %v369, %v370
  %v372 = vrot.slane %v371, 2
  %v373 = vadd.f32 %v371, %v372
  %v374 = vrot.slane %v373, 1
  %v375 = vadd.f32 %v373, %v374
  %v376 = vsel %vm354, %v349, 0.0
  %v377 = vrot.slane %v376, 4
  %v378 = vadd.f32 %v376, %v377
  %v379 = vrot.slane %v378, 2
  %v380 = vadd.f32 %v378, %v379
  %v381 = vrot.slane %v380, 1
  %v382 = vadd.f32 %v380, %v381
  %v383 = vrcp.pop %v361
  %v384 = vrcp.pop %v368
  %v385 = vrcp.pop %v375
  %v386 = vrcp.pop %v382
  %v387 = vlaneseq
  %v388 = vshrl.u32 %v387, 7
  %v389 = vsub.s32 0, %v388
  %v390 = vrot.slane %v383, %v389
  %v391 = vlaneseq
  %v392 = vshrl.u32 %v391, 7
  %v393 = vsub.s32 0, %v392
  %v394 = vrot.slane %v384, %v393
  %v395 = vlaneseq
  %v396 = vshrl.u32 %v395, 7
  %v397 = vsub.s32 0, %v396
  %v398 = vrot.slane %v385, %v397
  %v399 = vlaneseq
  %v400 = vshrl.u32 %v399, 7
  %v401 = vsub.s32 0, %v400
  %v402 = vrot.slane %v386, %v401
  %v403 = vmul.f32 %v276, %v390
  %v404 = vmul.f32 %v278, %v390
  %v405 = vmul.f32 %v280, %v390
  %v406 = vmul.f32 %v282, %v390
  %v407 = vmul.f32 %v284, %v394
  %v408 = vmul.f32 %v286, %v394
  %v409 = vmul.f32 %v288, %v394
  %v410 = vmul.f32 %v290, %v394
  %v411 = vmul.f32 %v292, %v398
  %v412 = vmul.f32 %v294, %v398
  %v413 = vmul.f32 %v296, %v398
  %v414 = vmul.f32 %v298, %v398
  %v415 = vmul.f32 %v300, %v402
  %v416 = vmul.f32 %v302, %v402
  %v417 = vmul.f32 %v304, %v402
  %v418 = vmul.f32 %v306, %v402
  %v419 = vlaneseq
  %v420 = vshrl.u32 %v419, 7
  %v421 = vsub.s32 0, %v420
  %v422 = vrot.slane %v403, %v421
  %v423 = vlaneseq
  %v424 = vshrl.u32 %v423, 7
  %v425 = vsub.s32 0, %v424
  %v426 = vrot.slane %v404, %v425
  %v427 = vlaneseq
  %v428 = vshrl.u32 %v427, 7
  %v429 = vsub.s32 0, %v428
  %v430 = vrot.slane %v405, %v429
  %v431 = vlaneseq
  %v432 = vshrl.u32 %v431, 7
  %v433 = vsub.s32 0, %v432
  %v434 = vrot.slane %v406, %v433
  %v435 = vlaneseq
  %v436 = vshrl.u32 %v435, 7
  %v437 = vsub.s32 0, %v436
  %v438 = vrot.slane %v407, %v437
  %v439 = vlaneseq
  %v440 = vshrl.u32 %v439, 7
  %v441 = vsub.s32 0, %v440
  %v442 = vrot.slane %v408, %v441
  %v443 = vlaneseq
  %v444 = vshrl.u32 %v443, 7
  %v445 = vsub.s32 0, %v444
  %v446 = vrot.slane %v409, %v445
  %v447 = vlaneseq
  %v448 = vshrl.u32 %v447, 7
  %v449 = vsub.s32 0, %v448
  %v450 = vrot.slane %v410, %v449
  %v451 = vlaneseq
  %v452 = vshrl.u32 %v451, 7
  %v453 = vsub.s32 0, %v452
  %v454 = vrot.slane %v411, %v453
  %v455 = vlaneseq
  %v456 = vshrl.u32 %v455, 7
  %v457 = vsub.s32 0, %v456
  %v458 = vrot.slane %v412, %v457
  %v459 = vlaneseq
  %v460 = vshrl.u32 %v459, 7
  %v461 = vsub.s32 0, %v460
  %v462 = vrot.slane %v413, %v461
  %v463 = vlaneseq
  %v464 = vshrl.u32 %v463, 7
  %v465 = vsub.s32 0, %v464
  %v466 = vrot.slane %v414, %v465
  %v467 = vlaneseq
  %v468 = vshrl.u32 %v467, 7
  %v469 = vsub.s32 0, %v468
  %v470 = vrot.slane %v415, %v469
  %v471 = vlaneseq
  %v472 = vshrl.u32 %v471, 7
  %v473 = vsub.s32 0, %v472
  %v474 = vrot.slane %v416, %v473
  %v475 = vlaneseq
  %v476 = vshrl.u32 %v475, 7
  %v477 = vsub.s32 0, %v476
  %v478 = vrot.slane %v417, %v477
  %v479 = vlaneseq
  %v480 = vshrl.u32 %v479, 7
  %v481 = vsub.s32 0, %v480
  %v482 = vrot.slane %v418, %v481
  %v483 = vmul.f32 %v422, %v26
  %v484 = vmul.f32 %v426, %v27
  %v485 = vmul.f32 %v430, %v28
  %v486 = vmul.f32 %v434, %v29
  %v487 = vmul.f32 %v438, %v26
  %v488 = vmul.f32 %v442, %v27
  %v489 = vmul.f32 %v446, %v28
  %v490 = vmul.f32 %v450, %v29
  %v491 = vmul.f32 %v454, %v26
  %v492 = vmul.f32 %v458, %v27
  %v493 = vmul.f32 %v462, %v28
  %v494 = vmul.f32 %v466, %v29
  %v495 = vmul.f32 %v470, %v26
  %v496 = vmul.f32 %v474, %v27
  %v497 = vmul.f32 %v478, %v28
  %v498 = vmul.f32 %v482, %v29
  %v499 = vadd.f32 %v483, %v484
  %v500 = vadd.f32 %v499, %v485
  %v501 = vadd.f32 %v500, %v486
  %v502 = vadd.f32 %v487, %v488
  %v503 = vadd.f32 %v502, %v489
  %v504 = vadd.f32 %v503, %v490
  %v505 = vadd.f32 %v491, %v492
  %v506 = vadd.f32 %v505, %v493
  %v507 = vadd.f32 %v506, %v494
  %v508 = vadd.f32 %v495, %v496
  %v509 = vadd.f32 %v508, %v497
  %v510 = vadd.f32 %v509, %v498
  %511 = vst [vmem:[%s5] sm:$0xff] %v501
  %512 = vst [vmem:[%s5 + $0x8] sm:$0xff] %v504
  %513 = vst [vmem:[%s5 + $0x10] sm:$0xff] %v507
  %514 = vst [vmem:[%s5 + $0x18] sm:$0xff] %v510
  %v515 = vld [vmem:[%s1] sm:$0xff]
  %v516 = vld [vmem:[%s1 + $0x8] sm:$0xff]
  %v517 = vld [vmem:[%s1 + $0x10] sm:$0xff]
  %v518 = vld [vmem:[%s1 + $0x18] sm:$0xff]
  %v519 = vmul.f32 %v515, %v22
  %v520 = vmul.f32 %v515, %v23
  %v521 = vmul.f32 %v515, %v24
  %v522 = vmul.f32 %v515, %v25
  %v523 = vmul.f32 %v516, %v22
  %v524 = vmul.f32 %v516, %v23
  %v525 = vmul.f32 %v516, %v24
  %v526 = vmul.f32 %v516, %v25
  %v527 = vmul.f32 %v517, %v22
  %v528 = vmul.f32 %v517, %v23
  %v529 = vmul.f32 %v517, %v24
  %v530 = vmul.f32 %v517, %v25
  %v531 = vmul.f32 %v518, %v22
  %v532 = vmul.f32 %v518, %v23
  %v533 = vmul.f32 %v518, %v24
  %v534 = vmul.f32 %v518, %v25
  %v535 = vrot.slane %v519, 4
  %v536 = vadd.f32 %v519, %v535
  %v537 = vrot.slane %v536, 2
  %v538 = vadd.f32 %v536, %v537
  %v539 = vrot.slane %v538, 1
  %v540 = vadd.f32 %v538, %v539
  %v541 = vrot.slane %v520, 4
  %v542 = vadd.f32 %v520, %v541
  %v543 = vrot.slane %v542, 2
  %v544 = vadd.f32 %v542, %v543
  %v545 = vrot.slane %v544, 1
  %v546 = vadd.f32 %v544, %v545
  %v547 = vrot.slane %v521, 4
  %v548 = vadd.f32 %v521, %v547
  %v549 = vrot.slane %v548, 2
  %v550 = vadd.f32 %v548, %v549
  %v551 = vrot.slane %v550, 1
  %v552 = vadd.f32 %v550, %v551
  %v553 = vrot.slane %v522, 4
  %v554 = vadd.f32 %v522, %v553
  %v555 = vrot.slane %v554, 2
  %v556 = vadd.f32 %v554, %v555
  %v557 = vrot.slane %v556, 1
  %v558 = vadd.f32 %v556, %v557
  %v559 = vrot.slane %v523, 4
  %v560 = vadd.f32 %v523, %v559
  %v561 = vrot.slane %v560, 2
  %v562 = vadd.f32 %v560, %v561
  %v563 = vrot.slane %v562, 1
  %v564 = vadd.f32 %v562, %v563
  %v565 = vrot.slane %v524, 4
  %v566 = vadd.f32 %v524, %v565
  %v567 = vrot.slane %v566, 2
  %v568 = vadd.f32 %v566, %v567
  %v569 = vrot.slane %v568, 1
  %v570 = vadd.f32 %v568, %v569
  %v571 = vrot.slane %v525, 4
  %v572 = vadd.f32 %v525, %v571
  %v573 = vrot.slane %v572, 2
  %v574 = vadd.f32 %v572, %v573
  %v575 = vrot.slane %v574, 1
  %v576 = vadd.f32 %v574, %v575
  %v577 = vrot.slane %v526, 4
  %v578 = vadd.f32 %v526, %v577
  %v579 = vrot.slane %v578, 2
  %v580 = vadd.f32 %v578, %v579
  %v581 = vrot.slane %v580, 1
  %v582 = vadd.f32 %v580, %v581
  %v583 = vrot.slane %v527, 4
  %v584 = vadd.f32 %v527, %v583
  %v585 = vrot.slane %v584, 2
  %v586 = vadd.f32 %v584, %v585
  %v587 = vrot.slane %v586, 1
  %v588 = vadd.f32 %v586, %v587
  %v589 = vrot.slane %v528, 4
  %v590 = vadd.f32 %v528, %v589
  %v591 = vrot.slane %v590, 2
  %v592 = vadd.f32 %v590, %v591
  %v593 = vrot.slane %v592, 1
  %v594 = vadd.f32 %v592, %v593
  %v595 = vrot.slane %v529, 4
  %v596 = vadd.f32 %v529, %v595
  %v597 = vrot.slane %v596, 2
  %v598 = vadd.f32 %v596, %v597
  %v599 = vrot.slane %v598, 1
  %v600 = vadd.f32 %v598, %v599
  %v601 = vrot.slane %v530, 4
  %v602 = vadd.f32 %v530, %v601
  %v603 = vrot.slane %v602, 2
  %v604 = vadd.f32 %v602, %v603
  %v605 = vrot.slane %v604, 1
  %v606 = vadd.f32 %v604, %v605
  %v607 = vrot.slane %v531, 4
  %v608 = vadd.f32 %v531, %v607
  %v609 = vrot.slane %v608, 2
  %v610 = vadd.f32 %v608, %v609
  %v611 = vrot.slane %v610, 1
  %v612 = vadd.f32 %v610, %v611
  %v613 = vrot.slane %v532, 4
  %v614 = vadd.f32 %v532, %v613
  %v615 = vrot.slane %v614, 2
  %v616 = vadd.f32 %v614, %v615
  %v617 = vrot.slane %v616, 1
  %v618 = vadd.f32 %v616, %v617
  %v619 = vrot.slane %v533, 4
  %v620 = vadd.f32 %v533, %v619
  %v621 = vrot.slane %v620, 2
  %v622 = vadd.f32 %v620, %v621
  %v623 = vrot.slane %v622, 1
  %v624 = vadd.f32 %v622, %v623
  %v625 = vrot.slane %v534, 4
  %v626 = vadd.f32 %v534, %v625
  %v627 = vrot.slane %v626, 2
  %v628 = vadd.f32 %v626, %v627
  %v629 = vrot.slane %v628, 1
  %v630 = vadd.f32 %v628, %v629
  %v631 = vmul.f32 %v540, 0.35355338
  %v632 = vmul.f32 %v546, 0.35355338
  %v633 = vmul.f32 %v552, 0.35355338
  %v634 = vmul.f32 %v558, 0.35355338
  %v635 = vmul.f32 %v564, 0.35355338
  %v636 = vmul.f32 %v570, 0.35355338
  %v637 = vmul.f32 %v576, 0.35355338
  %v638 = vmul.f32 %v582, 0.35355338
  %v639 = vmul.f32 %v588, 0.35355338
  %v640 = vmul.f32 %v594, 0.35355338
  %v641 = vmul.f32 %v600, 0.35355338
  %v642 = vmul.f32 %v606, 0.35355338
  %v643 = vmul.f32 %v612, 0.35355338
  %v644 = vmul.f32 %v618, 0.35355338
  %v645 = vmul.f32 %v624, 0.35355338
  %v646 = vmul.f32 %v630, 0.35355338
  %v647 = vadd.f32 %v631, %v30
  %v648 = vadd.f32 %v632, %v170
  %v649 = vadd.f32 %v633, %v171
  %v650 = vadd.f32 %v634, %v172
  %v651 = vadd.f32 %v635, %v31
  %v652 = vadd.f32 %v636, %v173
  %v653 = vadd.f32 %v637, %v174
  %v654 = vadd.f32 %v638, %v175
  %v655 = vadd.f32 %v639, %v32
  %v656 = vadd.f32 %v640, %v176
  %v657 = vadd.f32 %v641, %v177
  %v658 = vadd.f32 %v642, %v178
  %v659 = vadd.f32 %v643, %v33
  %v660 = vadd.f32 %v644, %v179
  %v661 = vadd.f32 %v645, %v180
  %v662 = vadd.f32 %v646, %v181
  %v663 = vsel %vm214, %v647, -inf
  %v664 = vsel %vm214, %v648, -inf
  %v665 = vmax.f32 %v663, %v664
  %v666 = vsel %vm214, %v649, -inf
  %v667 = vmax.f32 %v665, %v666
  %v668 = vsel %vm214, %v650, -inf
  %v669 = vmax.f32 %v667, %v668
  %v670 = vsel %vm214, %v651, -inf
  %v671 = vsel %vm214, %v652, -inf
  %v672 = vmax.f32 %v670, %v671
  %v673 = vsel %vm214, %v653, -inf
  %v674 = vmax.f32 %v672, %v673
  %v675 = vsel %vm214, %v654, -inf
  %v676 = vmax.f32 %v674, %v675
  %v677 = vsel %vm214, %v655, -inf
  %v678 = vsel %vm214, %v656, -inf
  %v679 = vmax.f32 %v677, %v678
  %v680 = vsel %vm214, %v657, -inf
  %v681 = vmax.f32 %v679, %v680
  %v682 = vsel %vm214, %v658, -inf
  %v683 = vmax.f32 %v681, %v682
  %v684 = vsel %vm214, %v659, -inf
  %v685 = vsel %vm214, %v660, -inf
  %v686 = vmax.f32 %v684, %v685
  %v687 = vsel %vm214, %v661, -inf
  %v688 = vmax.f32 %v686, %v687
  %v689 = vsel %vm214, %v662, -inf
  %v690 = vmax.f32 %v688, %v689
  %v691 = vlaneseq
  %v692 = vshrl.u32 %v691, 7
  %v693 = vsub.s32 0, %v692
  %v694 = vrot.slane %v669, %v693
  %v695 = vlaneseq
  %v696 = vshrl.u32 %v695, 7
  %v697 = vsub.s32 0, %v696
  %v698 = vrot.slane %v676, %v697
  %v699 = vlaneseq
  %v700 = vshrl.u32 %v699, 7
  %v701 = vsub.s32 0, %v700
  %v702 = vrot.slane %v683, %v701
  %v703 = vlaneseq
  %v704 = vshrl.u32 %v703, 7
  %v705 = vsub.s32 0, %v704
  %v706 = vrot.slane %v690, %v705
  %v707 = vsub.f32 %v647, %v694
  %v708 = vsub.f32 %v648, %v694
  %v709 = vsub.f32 %v649, %v694
  %v710 = vsub.f32 %v650, %v694
  %v711 = vsub.f32 %v651, %v698
  %v712 = vsub.f32 %v652, %v698
  %v713 = vsub.f32 %v653, %v698
  %v714 = vsub.f32 %v654, %v698
  %v715 = vsub.f32 %v655, %v702
  %v716 = vsub.f32 %v656, %v702
  %v717 = vsub.f32 %v657, %v702
  %v718 = vsub.f32 %v658, %v702
  %v719 = vsub.f32 %v659, %v706
  %v720 = vsub.f32 %v660, %v706
  %v721 = vsub.f32 %v661, %v706
  %v722 = vsub.f32 %v662, %v706
  %v723 = vmul.f32 %v707, 1.442695
  %v724 = vpow.pop %v723
  %v725 = vmul.f32 %v708, 1.442695
  %v726 = vpow.pop %v725
  %v727 = vmul.f32 %v709, 1.442695
  %v728 = vpow.pop %v727
  %v729 = vmul.f32 %v710, 1.442695
  %v730 = vpow.pop %v729
  %v731 = vmul.f32 %v711, 1.442695
  %v732 = vpow.pop %v731
  %v733 = vmul.f32 %v712, 1.442695
  %v734 = vpow.pop %v733
  %v735 = vmul.f32 %v713, 1.442695
  %v736 = vpow.pop %v735
  %v737 = vmul.f32 %v714, 1.442695
  %v738 = vpow.pop %v737
  %v739 = vmul.f32 %v715, 1.442695
  %v740 = vpow.pop %v739
  %v741 = vmul.f32 %v716, 1.442695
  %v742 = vpow.pop %v741
  %v743 = vmul.f32 %v717, 1.442695
  %v744 = vpow.pop %v743
  %v745 = vmul.f32 %v718, 1.442695
  %v746 = vpow.pop %v745
  %v747 = vmul.f32 %v719, 1.442695
  %v748 = vpow.pop %v747
  %v749 = vmul.f32 %v720, 1.442695
  %v750 = vpow.pop %v749
  %v751 = vmul.f32 %v721, 1.442695
  %v752 = vpow.pop %v751
  %v753 = vmul.f32 %v722, 1.442695
  %v754 = vpow.pop %v753
  %v771 = vrot.slane %v726, 7
  %v772 = vsel %vm324, %v771, %v724
  %v773 = vrot.slane %v728, 6
  %v774 = vsel %vm327, %v773, %v772
  %v775 = vrot.slane %v730, 5
  %v776 = vsel %vm330, %v775, %v774
  %v777 = vrot.slane %v734, 7
  %v778 = vsel %vm324, %v777, %v732
  %v779 = vrot.slane %v736, 6
  %v780 = vsel %vm327, %v779, %v778
  %v781 = vrot.slane %v738, 5
  %v782 = vsel %vm330, %v781, %v780
  %v783 = vrot.slane %v742, 7
  %v784 = vsel %vm324, %v783, %v740
  %v785 = vrot.slane %v744, 6
  %v786 = vsel %vm327, %v785, %v784
  %v787 = vrot.slane %v746, 5
  %v788 = vsel %vm330, %v787, %v786
  %v789 = vrot.slane %v750, 7
  %v790 = vsel %vm324, %v789, %v748
  %v791 = vrot.slane %v752, 6
  %v792 = vsel %vm327, %v791, %v790
  %v793 = vrot.slane %v754, 5
  %v794 = vsel %vm330, %v793, %v792
  %v799 = vsel %vm354, %v776, 0.0
  %v800 = vrot.slane %v799, 4
  %v801 = vadd.f32 %v799, %v800
  %v802 = vrot.slane %v801, 2
  %v803 = vadd.f32 %v801, %v802
  %v804 = vrot.slane %v803, 1
  %v805 = vadd.f32 %v803, %v804
  %v806 = vsel %vm354, %v782, 0.0
  %v807 = vrot.slane %v806, 4
  %v808 = vadd.f32 %v806, %v807
  %v809 = vrot.slane %v808, 2
  %v810 = vadd.f32 %v808, %v809
  %v811 = vrot.slane %v810, 1
  %v812 = vadd.f32 %v810, %v811
  %v813 = vsel %vm354, %v788, 0.0
  %v814 = vrot.slane %v813, 4
  %v815 = vadd.f32 %v813, %v814
  %v816 = vrot.slane %v815, 2
  %v817 = vadd.f32 %v815, %v816
  %v818 = vrot.slane %v817, 1
  %v819 = vadd.f32 %v817, %v818
  %v820 = vsel %vm354, %v794, 0.0
  %v821 = vrot.slane %v820, 4
  %v822 = vadd.f32 %v820, %v821
  %v823 = vrot.slane %v822, 2
  %v824 = vadd.f32 %v822, %v823
  %v825 = vrot.slane %v824, 1
  %v826 = vadd.f32 %v824, %v825
  %v827 = vrcp.pop %v805
  %v828 = vrcp.pop %v812
  %v829 = vrcp.pop %v819
  %v830 = vrcp.pop %v826
  %v831 = vlaneseq
  %v832 = vshrl.u32 %v831, 7
  %v833 = vsub.s32 0, %v832
  %v834 = vrot.slane %v827, %v833
  %v835 = vlaneseq
  %v836 = vshrl.u32 %v835, 7
  %v837 = vsub.s32 0, %v836
  %v838 = vrot.slane %v828, %v837
  %v839 = vlaneseq
  %v840 = vshrl.u32 %v839, 7
  %v841 = vsub.s32 0, %v840
  %v842 = vrot.slane %v829, %v841
  %v843 = vlaneseq
  %v844 = vshrl.u32 %v843, 7
  %v845 = vsub.s32 0, %v844
  %v846 = vrot.slane %v830, %v845
  %v847 = vmul.f32 %v724, %v834
  %v848 = vmul.f32 %v726, %v834
  %v849 = vmul.f32 %v728, %v834
  %v850 = vmul.f32 %v730, %v834
  %v851 = vmul.f32 %v732, %v838
  %v852 = vmul.f32 %v734, %v838
  %v853 = vmul.f32 %v736, %v838
  %v854 = vmul.f32 %v738, %v838
  %v855 = vmul.f32 %v740, %v842
  %v856 = vmul.f32 %v742, %v842
  %v857 = vmul.f32 %v744, %v842
  %v858 = vmul.f32 %v746, %v842
  %v859 = vmul.f32 %v748, %v846
  %v860 = vmul.f32 %v750, %v846
  %v861 = vmul.f32 %v752, %v846
  %v862 = vmul.f32 %v754, %v846
  %v863 = vlaneseq
  %v864 = vshrl.u32 %v863, 7
  %v865 = vsub.s32 0, %v864
  %v866 = vrot.slane %v847, %v865
  %v867 = vlaneseq
  %v868 = vshrl.u32 %v867, 7
  %v869 = vsub.s32 0, %v868
  %v870 = vrot.slane %v848, %v869
  %v871 = vlaneseq
  %v872 = vshrl.u32 %v871, 7
  %v873 = vsub.s32 0, %v872
  %v874 = vrot.slane %v849, %v873
  %v875 = vlaneseq
  %v876 = vshrl.u32 %v875, 7
  %v877 = vsub.s32 0, %v876
  %v878 = vrot.slane %v850, %v877
  %v879 = vlaneseq
  %v880 = vshrl.u32 %v879, 7
  %v881 = vsub.s32 0, %v880
  %v882 = vrot.slane %v851, %v881
  %v883 = vlaneseq
  %v884 = vshrl.u32 %v883, 7
  %v885 = vsub.s32 0, %v884
  %v886 = vrot.slane %v852, %v885
  %v887 = vlaneseq
  %v888 = vshrl.u32 %v887, 7
  %v889 = vsub.s32 0, %v888
  %v890 = vrot.slane %v853, %v889
  %v891 = vlaneseq
  %v892 = vshrl.u32 %v891, 7
  %v893 = vsub.s32 0, %v892
  %v894 = vrot.slane %v854, %v893
  %v895 = vlaneseq
  %v896 = vshrl.u32 %v895, 7
  %v897 = vsub.s32 0, %v896
  %v898 = vrot.slane %v855, %v897
  %v899 = vlaneseq
  %v900 = vshrl.u32 %v899, 7
  %v901 = vsub.s32 0, %v900
  %v902 = vrot.slane %v856, %v901
  %v903 = vlaneseq
  %v904 = vshrl.u32 %v903, 7
  %v905 = vsub.s32 0, %v904
  %v906 = vrot.slane %v857, %v905
  %v907 = vlaneseq
  %v908 = vshrl.u32 %v907, 7
  %v909 = vsub.s32 0, %v908
  %v910 = vrot.slane %v858, %v909
  %v911 = vlaneseq
  %v912 = vshrl.u32 %v911, 7
  %v913 = vsub.s32 0, %v912
  %v914 = vrot.slane %v859, %v913
  %v915 = vlaneseq
  %v916 = vshrl.u32 %v915, 7
  %v917 = vsub.s32 0, %v916
  %v918 = vrot.slane %v860, %v917
  %v919 = vlaneseq
  %v920 = vshrl.u32 %v919, 7
  %v921 = vsub.s32 0, %v920
  %v922 = vrot.slane %v861, %v921
  %v923 = vlaneseq
  %v924 = vshrl.u32 %v923, 7
  %v925 = vsub.s32 0, %v924
  %v926 = vrot.slane %v862, %v925
  %v927 = vmul.f32 %v866, %v26
  %v928 = vmul.f32 %v870, %v27
  %v929 = vmul.f32 %v874, %v28
  %v930 = vmul.f32 %v878, %v29
  %v931 = vmul.f32 %v882, %v26
  %v932 = vmul.f32 %v886, %v27
  %v933 = vmul.f32 %v890, %v28
  %v934 = vmul.f32 %v894, %v29
  %v935 = vmul.f32 %v898, %v26
  %v936 = vmul.f32 %v902, %v27
  %v937 = vmul.f32 %v906, %v28
  %v938 = vmul.f32 %v910, %v29
  %v939 = vmul.f32 %v914, %v26
  %v940 = vmul.f32 %v918, %v27
  %v941 = vmul.f32 %v922, %v28
  %v942 = vmul.f32 %v926, %v29
  %v943 = vadd.f32 %v927, %v928
  %v944 = vadd.f32 %v943, %v929
  %v945 = vadd.f32 %v944, %v930
  %v946 = vadd.f32 %v931, %v932
  %v947 = vadd.f32 %v946, %v933
  %v948 = vadd.f32 %v947, %v934
  %v949 = vadd.f32 %v935, %v936
  %v950 = vadd.f32 %v949, %v937
  %v951 = vadd.f32 %v950, %v938
  %v952 = vadd.f32 %v939, %v940
  %v953 = vadd.f32 %v952, %v941
  %v954 = vadd.f32 %v953, %v942
  %955 = vst [vmem:[%s6] sm:$0xff] %v945
  %956 = vst [vmem:[%s6 + $0x8] sm:$0xff] %v948
  %957 = vst [vmem:[%s6 + $0x10] sm:$0xff] %v951
  %958 = vst [vmem:[%s6 + $0x18] sm:$0xff] %v954
  // Predicated region
  $region22: #{attention_transformer_block.8} parent=0 // pred_check
    _
  $region23: #{attention_transformer_block.8} parent=0 // pred_check_branch
    %960 = sbr.rel (0) target = $region25
  $region24: #{attention_transformer_block.8} parent=0 // pred_region
    _
  $region25: #{attention_transformer_block.8} parent=0 // pred_fallthru
    _
  // Predicated region
  $region26: #{attention_transformer_block.8} parent=0 // pred_check
    _
  $region27: #{attention_transformer_block.8} parent=0 // pred_check_branch
    %962 = sbr.rel (0) target = $region29
  $region28: #{attention_transformer_block.8} parent=0 // pred_region
    _
  $region29: #{attention_transformer_block.8} parent=0 // pred_fallthru
    _
  // Predicated region
  $region30: #{attention_transformer_block.8} parent=0 // pred_check
    _
  $region31: #{attention_transformer_block.8} parent=0 // pred_check_branch
    %964 = sbr.rel (0) target = $region33
  $region32: #{attention_transformer_block.8} parent=0 // pred_region
    _
  $region33: #{attention_transformer_block.8} parent=0 // pred_fallthru
    _
  // Predicated region
  $region34: #{attention_transformer_block.8} parent=0 // pred_check
    _
  $region35: #{attention_transformer_block.8} parent=0 // pred_check_branch
    %966 = sbr.rel (0) target = $region37
  $region36: #{attention_transformer_block.8} parent=0 // pred_region
    _
  $region37: #{attention_transformer_block.8} parent=0 // pred_fallthru
    _

// kernel: attention_transformer_block.9
$region0: #{attention_transformer_block.9}
  #allocation0 [shape = 'u32[]', space=smem, size = 0x4, offset = 0x4, fixed_abs, tag = 'smem constant byte address 0x4 - core index']
  #allocation1 [shape = 'u32[144,128]{1,0:T(1,128)}', space=vmem, size = 0x12000, scoped, tag = 'internal scratch']
  %s0 = inlined_call_operand.vmem [shape: f32[2,128,32], index: 0, kind: input, shape index: {}]
  %s1 = inlined_call_operand.vmem [shape: f32[2,128,32], index: 1, kind: input, shape index: {}]
  %s2 = inlined_call_operand.vmem [shape: f32[2,32,32], index: 2, kind: input, shape index: {}]
  %s3 = inlined_call_operand.vmem [shape: f32[2,1,32], index: 3, kind: input, shape index: {}]
  %s4 = inlined_call_operand.vmem [shape: f32[2,1,32], index: 4, kind: input, shape index: {}]
  %s5 = inlined_call_operand.vmem [shape: f32[2,1,32], index: 5, kind: input, shape index: {}]
  %s6 = inlined_call_operand.vmem [shape: f32[32,128], index: 6, kind: input, shape index: {}]
  %s7 = inlined_call_operand.vmem [shape: f32[1,128], index: 7, kind: input, shape index: {}]
  %s8 = inlined_call_operand.vmem [shape: f32[128,32], index: 8, kind: input, shape index: {}]
  %s9 = inlined_call_operand.vmem [shape: f32[1,32], index: 9, kind: input, shape index: {}]
  %s10 = inlined_call_operand.vmem [shape: f32[2,128,32], index: 10, kind: output, shape index: {}]
  %s11 = sld [smem:[#allocation0]]
  $region73: #{attention_transformer_block.9} parent=0
    _
  %s13 = ssub.s32 1, %s11
  %s14 = scalar_select 0, %s13, %s11
  loop: start=0, step=1, limit=4
  $region2: #{attention_transformer_block.9} parent=0 // loop_pre_header
    _
  $region3: #{attention_transformer_block.9} parent=0 // loop_header
    %s16 = sphi 0, %s20
    %p17 = scmp.ge.s32.totalorder %s16, 4
    %s26 = sphi 0, %s28
    %s29 = sphi 0, %s26
    %s30 = sphi 0, %s29
    %s46 = sphi 0, %s30
    %s52 = sphi 0, %s54
    %s55 = sphi 0, %s52
    %s56 = sphi 0, %s55
    %s72 = sphi 0, %s56
    %s78 = sphi 0, %s80
    %s81 = sphi 0, %s78
    %s82 = sphi 0, %s81
    %s98 = sphi 0, %s82
    %s104 = sphi 0, %s106
    %s107 = sphi 0, %s104
    %s108 = sphi 0, %s107
    %s124 = sphi 0, %s108
    %s130 = sphi 0, %s132
    %s133 = sphi 0, %s130
    %s134 = sphi 0, %s133
    %s150 = sphi 0, %s134
    %s156 = sphi 0, %s158
    %s159 = sphi 0, %s156
    %s160 = sphi 0, %s159
    %s176 = sphi 0, %s160
    %s180 = sphi 0, %s180
    %s182 = sphi 0, %s180
    %s183 = sphi 0, %s182
    %s197 = sphi 0, %s183
    %s201 = sphi 0, %s201
    %s203 = sphi 0, %s201
    %s204 = sphi 0, %s203
    %s218 = sphi 0, %s204
    %s222 = sphi 0, %s222
    %s224 = sphi 0, %s222
    %s225 = sphi 0, %s224
    %s239 = sphi 0, %s225
    %s243 = sphi 0, %s243
    %s245 = sphi 0, %s243
    %s246 = sphi 0, %s245
    %s260 = sphi 0, %s246
    %s266 = sphi 0, %s268
    %s269 = sphi 0, %s266
    %s270 = sphi 0, %s269
    %s286 = sphi 0, %s270
  $region4: #{attention_transformer_block.9} parent=0 // loop_header_branch
    %19 = sbr.rel (%p17) target = $region8
  $region5: #{attention_transformer_block.9} parent=0 // loop_body
    %s21 = ssub.s32 %s16, 1
    %s22 = ssub.s32 %s16, 2
    %s23 = sadd.s32 %s16, 1
    %s24 = ssub.s32 %s16, %s23
    %p25 = scmp.eq.s32.totalorder %s24, 0
    %s27 = sadd.s32 %s26, 1
    %s28 = scalar_select %p25, %s26, %s27
    %p31 = pneg %p25
    %p32 = scmp.eq.s32.totalorder %s16, 1
    %p33 = por %p31, %p32
    %p34 = scmp.ne.s32.totalorder %s26, %s29
    %p35 = scmp.eq.s32.totalorder %s16, 0
    %p36 = por %p34, %p35
    %p37 = scmp.ne.s32.totalorder %s26, %s29
    %p38 = scmp.eq.s32.totalorder %s21, 1
    %p39 = por %p37, %p38
    %p40 = scmp.ne.s32.totalorder %s29, %s30
    %p41 = scmp.eq.s32.totalorder %s21, 0
    %p42 = por %p40, %p41
    %p43 = scmp.ne.s32.totalorder %s29, %s30
    %p44 = scmp.eq.s32.totalorder %s22, 1
    %p45 = por %p43, %p44
    %p47 = scmp.ne.s32.totalorder %s30, %s46
    %p48 = scmp.eq.s32.totalorder %s22, 0
    %p49 = por %p47, %p48
    %s50 = ssub.s32 %s16, %s23
    %p51 = scmp.eq.s32.totalorder %s50, 0
    %s53 = sadd.s32 %s52, 1
    %s54 = scalar_select %p51, %s52, %s53
    %p57 = pneg %p51
    %p58 = scmp.eq.s32.totalorder %s16, 1
    %p59 = por %p57, %p58
    %p60 = scmp.ne.s32.totalorder %s52, %s55
    %p61 = scmp.eq.s32.totalorder %s16, 0
    %p62 = por %p60, %p61
    %p63 = scmp.ne.s32.totalorder %s52, %s55
    %p64 = scmp.eq.s32.totalorder %s21, 1
    %p65 = por %p63, %p64
    %p66 = scmp.ne.s32.totalorder %s55, %s56
    %p67 = scmp.eq.s32.totalorder %s21, 0
    %p68 = por %p66, %p67
    %p69 = scmp.ne.s32.totalorder %s55, %s56
    %p70 = scmp.eq.s32.totalorder %s22, 1
    %p71 = por %p69, %p70
    %p73 = scmp.ne.s32.totalorder %s56, %s72
    %p74 = scmp.eq.s32.totalorder %s22, 0
    %p75 = por %p73, %p74
    %s76 = ssub.s32 %s16, %s23
    %p77 = scmp.eq.s32.totalorder %s76, 0
    %s79 = sadd.s32 %s78, 1
    %s80 = scalar_select %p77, %s78, %s79
    %p83 = pneg %p77
    %p84 = scmp.eq.s32.totalorder %s16, 1
    %p85 = por %p83, %p84
    %p86 = scmp.ne.s32.totalorder %s78, %s81
    %p87 = scmp.eq.s32.totalorder %s16, 0
    %p88 = por %p86, %p87
    %p89 = scmp.ne.s32.totalorder %s78, %s81
    %p90 = scmp.eq.s32.totalorder %s21, 1
    %p91 = por %p89, %p90
    %p92 = scmp.ne.s32.totalorder %s81, %s82
    %p93 = scmp.eq.s32.totalorder %s21, 0
    %p94 = por %p92, %p93
    %p95 = scmp.ne.s32.totalorder %s81, %s82
    %p96 = scmp.eq.s32.totalorder %s22, 1
    %p97 = por %p95, %p96
    %p99 = scmp.ne.s32.totalorder %s82, %s98
    %p100 = scmp.eq.s32.totalorder %s22, 0
    %p101 = por %p99, %p100
    %s102 = ssub.s32 %s16, %s23
    %p103 = scmp.eq.s32.totalorder %s102, 0
    %s105 = sadd.s32 %s104, 1
    %s106 = scalar_select %p103, %s104, %s105
    %p109 = pneg %p103
    %p110 = scmp.eq.s32.totalorder %s16, 1
    %p111 = por %p109, %p110
    %p112 = scmp.ne.s32.totalorder %s104, %s107
    %p113 = scmp.eq.s32.totalorder %s16, 0
    %p114 = por %p112, %p113
    %p115 = scmp.ne.s32.totalorder %s104, %s107
    %p116 = scmp.eq.s32.totalorder %s21, 1
    %p117 = por %p115, %p116
    %p118 = scmp.ne.s32.totalorder %s107, %s108
    %p119 = scmp.eq.s32.totalorder %s21, 0
    %p120 = por %p118, %p119
    %p121 = scmp.ne.s32.totalorder %s107, %s108
    %p122 = scmp.eq.s32.totalorder %s22, 1
    %p123 = por %p121, %p122
    %p125 = scmp.ne.s32.totalorder %s108, %s124
    %p126 = scmp.eq.s32.totalorder %s22, 0
    %p127 = por %p125, %p126
    %s128 = ssub.s32 %s16, %s23
    %p129 = scmp.eq.s32.totalorder %s128, 0
    %s131 = sadd.s32 %s130, 1
    %s132 = scalar_select %p129, %s130, %s131
    %p135 = pneg %p129
    %p136 = scmp.eq.s32.totalorder %s16, 1
    %p137 = por %p135, %p136
    %p138 = scmp.ne.s32.totalorder %s130, %s133
    %p139 = scmp.eq.s32.totalorder %s16, 0
    %p140 = por %p138, %p139
    %p141 = scmp.ne.s32.totalorder %s130, %s133
    %p142 = scmp.eq.s32.totalorder %s21, 1
    %p143 = por %p141, %p142
    %p144 = scmp.ne.s32.totalorder %s133, %s134
    %p145 = scmp.eq.s32.totalorder %s21, 0
    %p146 = por %p144, %p145
    %p147 = scmp.ne.s32.totalorder %s133, %s134
    %p148 = scmp.eq.s32.totalorder %s22, 1
    %p149 = por %p147, %p148
    %p151 = scmp.ne.s32.totalorder %s134, %s150
    %p152 = scmp.eq.s32.totalorder %s22, 0
    %p153 = por %p151, %p152
    %s154 = ssub.s32 %s16, %s23
    %p155 = scmp.eq.s32.totalorder %s154, 0
    %s157 = sadd.s32 %s156, 1
    %s158 = scalar_select %p155, %s156, %s157
    %p161 = pneg %p155
    %p162 = scmp.eq.s32.totalorder %s16, 1
    %p163 = por %p161, %p162
    %p164 = scmp.ne.s32.totalorder %s156, %s159
    %p165 = scmp.eq.s32.totalorder %s16, 0
    %p166 = por %p164, %p165
    %p167 = scmp.ne.s32.totalorder %s156, %s159
    %p168 = scmp.eq.s32.totalorder %s21, 1
    %p169 = por %p167, %p168
    %p170 = scmp.ne.s32.totalorder %s159, %s160
    %p171 = scmp.eq.s32.totalorder %s21, 0
    %p172 = por %p170, %p171
    %p173 = scmp.ne.s32.totalorder %s159, %s160
    %p174 = scmp.eq.s32.totalorder %s22, 1
    %p175 = por %p173, %p174
    %p177 = scmp.ne.s32.totalorder %s160, %s176
    %p178 = scmp.eq.s32.totalorder %s22, 0
    %p179 = por %p177, %p178
    %s181 = sadd.s32 %s180, 1
    %p184 = scmp.eq.s32.totalorder %s16, 1
    %p185 = scmp.ne.s32.totalorder %s180, %s182
    %p186 = scmp.eq.s32.totalorder %s16, 0
    %p187 = por %p185, %p186
    %p188 = scmp.ne.s32.totalorder %s180, %s182
    %p189 = scmp.eq.s32.totalorder %s21, 1
    %p190 = por %p188, %p189
    %p191 = scmp.ne.s32.totalorder %s182, %s183
    %p192 = scmp.eq.s32.totalorder %s21, 0
    %p193 = por %p191, %p192
    %p194 = scmp.ne.s32.totalorder %s182, %s183
    %p195 = scmp.eq.s32.totalorder %s22, 1
    %p196 = por %p194, %p195
    %p198 = scmp.ne.s32.totalorder %s183, %s197
    %p199 = scmp.eq.s32.totalorder %s22, 0
    %p200 = por %p198, %p199
    %s202 = sadd.s32 %s201, 1
    %p205 = scmp.eq.s32.totalorder %s16, 1
    %p206 = scmp.ne.s32.totalorder %s201, %s203
    %p207 = scmp.eq.s32.totalorder %s16, 0
    %p208 = por %p206, %p207
    %p209 = scmp.ne.s32.totalorder %s201, %s203
    %p210 = scmp.eq.s32.totalorder %s21, 1
    %p211 = por %p209, %p210
    %p212 = scmp.ne.s32.totalorder %s203, %s204
    %p213 = scmp.eq.s32.totalorder %s21, 0
    %p214 = por %p212, %p213
    %p215 = scmp.ne.s32.totalorder %s203, %s204
    %p216 = scmp.eq.s32.totalorder %s22, 1
    %p217 = por %p215, %p216
    %p219 = scmp.ne.s32.totalorder %s204, %s218
    %p220 = scmp.eq.s32.totalorder %s22, 0
    %p221 = por %p219, %p220
    %s223 = sadd.s32 %s222, 1
    %p226 = scmp.eq.s32.totalorder %s16, 1
    %p227 = scmp.ne.s32.totalorder %s222, %s224
    %p228 = scmp.eq.s32.totalorder %s16, 0
    %p229 = por %p227, %p228
    %p230 = scmp.ne.s32.totalorder %s222, %s224
    %p231 = scmp.eq.s32.totalorder %s21, 1
    %p232 = por %p230, %p231
    %p233 = scmp.ne.s32.totalorder %s224, %s225
    %p234 = scmp.eq.s32.totalorder %s21, 0
    %p235 = por %p233, %p234
    %p236 = scmp.ne.s32.totalorder %s224, %s225
    %p237 = scmp.eq.s32.totalorder %s22, 1
    %p238 = por %p236, %p237
    %p240 = scmp.ne.s32.totalorder %s225, %s239
    %p241 = scmp.eq.s32.totalorder %s22, 0
    %p242 = por %p240, %p241
    %s244 = sadd.s32 %s243, 1
    %p247 = scmp.eq.s32.totalorder %s16, 1
    %p248 = scmp.ne.s32.totalorder %s243, %s245
    %p249 = scmp.eq.s32.totalorder %s16, 0
    %p250 = por %p248, %p249
    %p251 = scmp.ne.s32.totalorder %s243, %s245
    %p252 = scmp.eq.s32.totalorder %s21, 1
    %p253 = por %p251, %p252
    %p254 = scmp.ne.s32.totalorder %s245, %s246
    %p255 = scmp.eq.s32.totalorder %s21, 0
    %p256 = por %p254, %p255
    %p257 = scmp.ne.s32.totalorder %s245, %s246
    %p258 = scmp.eq.s32.totalorder %s22, 1
    %p259 = por %p257, %p258
    %p261 = scmp.ne.s32.totalorder %s246, %s260
    %p262 = scmp.eq.s32.totalorder %s22, 0
    %p263 = por %p261, %p262
    %s264 = ssub.s32 %s16, %s23
    %p265 = scmp.eq.s32.totalorder %s264, 0
    %s267 = sadd.s32 %s266, 1
    %s268 = scalar_select %p265, %s266, %s267
    %p271 = pneg %p265
    %p272 = scmp.eq.s32.totalorder %s16, 1
    %p273 = por %p271, %p272
    %p274 = scmp.ne.s32.totalorder %s266, %s269
    %p275 = scmp.eq.s32.totalorder %s16, 0
    %p276 = por %p274, %p275
    %p277 = scmp.ne.s32.totalorder %s266, %s269
    %p278 = scmp.eq.s32.totalorder %s21, 1
    %p279 = por %p277, %p278
    %p280 = scmp.ne.s32.totalorder %s269, %s270
    %p281 = scmp.eq.s32.totalorder %s21, 0
    %p282 = por %p280, %p281
    %p283 = scmp.ne.s32.totalorder %s269, %s270
    %p284 = scmp.eq.s32.totalorder %s22, 1
    %p285 = por %p283, %p284
    %p287 = scmp.ne.s32.totalorder %s270, %s286
    %p288 = scmp.eq.s32.totalorder %s22, 0
    %p289 = por %p287, %p288
    %p290 = scmp.le.s32.totalorder 1, %s16
    %p291 = scmp.lt.s32.totalorder %s16, 3
    %p292 = pnand %p290, %p291
    %p293 = pneg %p292
    // Predicated region
    $region9: #{attention_transformer_block.9} parent=5 // pred_check
      _
    $region10: #{attention_transformer_block.9} parent=5 // pred_check_branch
      %295 = sbr.rel (%p292) target = $region12
    $region11: #{attention_transformer_block.9} parent=5 // pred_region
      %s296 = ssub.s32 %s16, 1
      // Predicated region
      $region13: #{attention_transformer_block.9} parent=11 // pred_check
        %p297 = pneg %p193
      $region14: #{attention_transformer_block.9} parent=11 // pred_check_branch
        %299 = sbr.rel (%p297) target = $region16
      $region15: #{attention_transformer_block.9} parent=11 // pred_region
        _
      $region16: #{attention_transformer_block.9} parent=11 // pred_fallthru
        _
      // Predicated region
      $region17: #{attention_transformer_block.9} parent=11 // pred_check
        %p300 = pneg %p214
      $region18: #{attention_transformer_block.9} parent=11 // pred_check_branch
        %302 = sbr.rel (%p300) target = $region20
      $region19: #{attention_transformer_block.9} parent=11 // pred_region
        _
      $region20: #{attention_transformer_block.9} parent=11 // pred_fallthru
        _
      // Predicated region
      $region21: #{attention_transformer_block.9} parent=11 // pred_check
        %p303 = pneg %p235
      $region22: #{attention_transformer_block.9} parent=11 // pred_check_branch
        %305 = sbr.rel (%p303) target = $region24
      $region23: #{attention_transformer_block.9} parent=11 // pred_region
        _
      $region24: #{attention_transformer_block.9} parent=11 // pred_fallthru
        _
      // Predicated region
      $region25: #{attention_transformer_block.9} parent=11 // pred_check
        %p306 = pneg %p256
      $region26: #{attention_transformer_block.9} parent=11 // pred_check_branch
        %308 = sbr.rel (%p306) target = $region28
      $region27: #{attention_transformer_block.9} parent=11 // pred_region
        _
      $region28: #{attention_transformer_block.9} parent=11 // pred_fallthru
        _
    $region12: #{attention_transformer_block.9} parent=5 // pred_fallthru
      _
    %p309 = scmp.lt.s32.totalorder %s16, 2
    // Predicated region
    $region29: #{attention_transformer_block.9} parent=5 // pred_check
      %p310 = pneg %p309
    $region30: #{attention_transformer_block.9} parent=5 // pred_check_branch
      %312 = sbr.rel (%p310) target = $region32
    $region31: #{attention_transformer_block.9} parent=5 // pred_region
      // Predicated region
      $region33: #{attention_transformer_block.9} parent=31 // pred_check
        %p313 = pneg %p36
      $region34: #{attention_transformer_block.9} parent=31 // pred_check_branch
        %315 = sbr.rel (%p313) target = $region36
      $region35: #{attention_transformer_block.9} parent=31 // pred_region
        %p316 = scmp.lt.s32.totalorder %s16, 1
        %s317 = scalar_select %p316, %s16, 1
        %s318 = smul.addr %s317, 16
        %s319 = smul.addr %s318, 8
        %s320 = scalar_lea.vmem %s0, %s319
      $region36: #{attention_transformer_block.9} parent=31 // pred_fallthru
        _
      // Predicated region
      $region37: #{attention_transformer_block.9} parent=31 // pred_check
        %p321 = pneg %p62
      $region38: #{attention_transformer_block.9} parent=31 // pred_check_branch
        %323 = sbr.rel (%p321) target = $region40
      $region39: #{attention_transformer_block.9} parent=31 // pred_region
        %p324 = scmp.lt.s32.totalorder %s16, 1
        %s325 = scalar_select %p324, %s16, 1
        %s326 = smul.addr %s325, 16
        %s327 = smul.addr %s326, 8
        %s328 = scalar_lea.vmem %s1, %s327
      $region40: #{attention_transformer_block.9} parent=31 // pred_fallthru
        _
      // Predicated region
      $region41: #{attention_transformer_block.9} parent=31 // pred_check
        %p329 = pneg %p88
      $region42: #{attention_transformer_block.9} parent=31 // pred_check_branch
        %331 = sbr.rel (%p329) target = $region44
      $region43: #{attention_transformer_block.9} parent=31 // pred_region
        %p332 = scmp.lt.s32.totalorder %s16, 1
        %s333 = scalar_select %p332, %s16, 1
        %s334 = smul.addr %s333, 4
        %s335 = smul.addr %s334, 8
        %s336 = scalar_lea.vmem %s2, %s335
      $region44: #{attention_transformer_block.9} parent=31 // pred_fallthru
        _
      // Predicated region
      $region45: #{attention_transformer_block.9} parent=31 // pred_check
        %p337 = pneg %p114
      $region46: #{attention_transformer_block.9} parent=31 // pred_check_branch
        %339 = sbr.rel (%p337) target = $region48
      $region47: #{attention_transformer_block.9} parent=31 // pred_region
        %p340 = scmp.lt.s32.totalorder %s16, 1
        %s341 = scalar_select %p340, %s16, 1
        %s342 = scalar_lea.vmem %s3, %s341
      $region48: #{attention_transformer_block.9} parent=31 // pred_fallthru
        _
      // Predicated region
      $region49: #{attention_transformer_block.9} parent=31 // pred_check
        %p343 = pneg %p140
      $region50: #{attention_transformer_block.9} parent=31 // pred_check_branch
        %345 = sbr.rel (%p343) target = $region52
      $region51: #{attention_transformer_block.9} parent=31 // pred_region
        %p346 = scmp.lt.s32.totalorder %s16, 1
        %s347 = scalar_select %p346, %s16, 1
        %s348 = scalar_lea.vmem %s4, %s347
      $region52: #{attention_transformer_block.9} parent=31 // pred_fallthru
        _
      // Predicated region
      $region53: #{attention_transformer_block.9} parent=31 // pred_check
        %p349 = pneg %p166
      $region54: #{attention_transformer_block.9} parent=31 // pred_check_branch
        %351 = sbr.rel (%p349) target = $region56
      $region55: #{attention_transformer_block.9} parent=31 // pred_region
        %p352 = scmp.lt.s32.totalorder %s16, 1
        %s353 = scalar_select %p352, %s16, 1
        %s354 = scalar_lea.vmem %s5, %s353
      $region56: #{attention_transformer_block.9} parent=31 // pred_fallthru
        _
    $region32: #{attention_transformer_block.9} parent=5 // pred_fallthru
      _
    %p355 = scmp.le.s32.totalorder 1, %s16
    %p356 = scmp.lt.s32.totalorder %s16, 3
    %p357 = pnand %p355, %p356
    %p358 = pneg %p357
    // Predicated region
    $region57: #{attention_transformer_block.9} parent=5 // pred_check
      _
    $region58: #{attention_transformer_block.9} parent=5 // pred_check_branch
      %360 = sbr.rel (%p357) target = $region60
    $region59: #{attention_transformer_block.9} parent=5 // pred_region
      %s361 = ssub.s32 %s16, 1
      %p362 = scmp.lt.s32.totalorder %s21, 1
      %s363 = scalar_select %p362, %s21, 1
      %s364 = smul.addr %s363, 16
      %s365 = smul.addr %s364, 8
      %s366 = scalar_lea.vmem %s0, %s365
      %p367 = pneg %p42
      %p368 = pneg %p39
      %p369 = scmp.lt.s32.totalorder %s21, 1
      %s370 = scalar_select %p369, %s21, 1
      %s371 = smul.addr %s370, 16
      %s372 = smul.addr %s371, 8
      %s373 = scalar_lea.vmem %s1, %s372
      %p374 = pneg %p68
      %p375 = pneg %p65
      %p376 = scmp.lt.s32.totalorder %s21, 1
      %s377 = scalar_select %p376, %s21, 1
      %s378 = smul.addr %s377, 4
      %s379 = smul.addr %s378, 8
      %s380 = scalar_lea.vmem %s2, %s379
      %p381 = pneg %p94
      %p382 = pneg %p91
      %p383 = scmp.lt.s32.totalorder %s21, 1
      %s384 = scalar_select %p383, %s21, 1
      %s385 = scalar_lea.vmem %s3, %s384
      %p386 = pneg %p120
      %p387 = pneg %p117
      %p388 = scmp.lt.s32.totalorder %s21, 1
      %s389 = scalar_select %p388, %s21, 1
      %s390 = scalar_lea.vmem %s4, %s389
      %p391 = pneg %p146
      %p392 = pneg %p143
      %p393 = scmp.lt.s32.totalorder %s21, 1
      %s394 = scalar_select %p393, %s21, 1
      %s395 = scalar_lea.vmem %s5, %s394
      %p396 = pneg %p172
      %p397 = pneg %p169
      %p398 = pneg %p193
      %p399 = pneg %p190
      %p400 = pneg %p214
      %p401 = pneg %p211
      %p402 = pneg %p235
      %p403 = pneg %p232
      %p404 = pneg %p256
      %p405 = pneg %p253
      %p406 = pneg %p282
      %p407 = pneg %p279
      %p408 = scmp.lt.s32.totalorder %s21, 1
      %s409 = scalar_select %p408, %s21, 1
      %s410 = smul.addr %s409, 16
      %s411 = smul.addr %s410, 8
      %s412 = scalar_lea.vmem %s10, %s411
      %p413 = scmp.lt.s32.totalorder %s21, 1
      %s414 = scalar_select %p413, %s21, 1
      %s415 = smul.addr %s414, 16
      %s416 = smul.addr %s415, 8
      %s417 = scalar_lea.vmem %s0, %s416
      %p418 = scmp.lt.s32.totalorder %s21, 1
      %s419 = scalar_select %p418, %s21, 1
      %s420 = smul.addr %s419, 16
      %s421 = smul.addr %s420, 8
      %s422 = scalar_lea.vmem %s1, %s421
      %p423 = scmp.lt.s32.totalorder %s21, 1
      %s424 = scalar_select %p423, %s21, 1
      %s425 = smul.addr %s424, 4
      %s426 = smul.addr %s425, 8
      %s427 = scalar_lea.vmem %s2, %s426
      %p428 = scmp.lt.s32.totalorder %s21, 1
      %s429 = scalar_select %p428, %s21, 1
      %s430 = scalar_lea.vmem %s3, %s429
      %p431 = scmp.lt.s32.totalorder %s21, 1
      %s432 = scalar_select %p431, %s21, 1
      %s433 = scalar_lea.vmem %s4, %s432
      %p434 = scmp.lt.s32.totalorder %s21, 1
      %s435 = scalar_select %p434, %s21, 1
      %s436 = scalar_lea.vmem %s5, %s435
      %p437 = scmp.lt.s32.totalorder %s21, 1
      %s438 = scalar_select %p437, %s21, 1
      %s439 = smul.addr %s438, 16
      %s440 = smul.addr %s439, 8
      %s441 = scalar_lea.vmem %s10, %s440
      %v442 = vld [vmem:[%s417] sm:$0xff]
      %v443 = vld [vmem:[%s417 + $0x8] sm:$0xff]
      %v444 = vld [vmem:[%s417 + $0x10] sm:$0xff]
      %v445 = vld [vmem:[%s417 + $0x18] sm:$0xff]
      %v446 = vld [vmem:[%s417 + $0x20] sm:$0xff]
      %v447 = vld [vmem:[%s417 + $0x28] sm:$0xff]
      %v448 = vld [vmem:[%s417 + $0x30] sm:$0xff]
      %v449 = vld [vmem:[%s417 + $0x38] sm:$0xff]
      %v450 = vld [vmem:[%s417 + $0x40] sm:$0xff]
      %v451 = vld [vmem:[%s417 + $0x48] sm:$0xff]
      %v452 = vld [vmem:[%s417 + $0x50] sm:$0xff]
      %v453 = vld [vmem:[%s417 + $0x58] sm:$0xff]
      %v454 = vld [vmem:[%s417 + $0x60] sm:$0xff]
      %v455 = vld [vmem:[%s417 + $0x68] sm:$0xff]
      %v456 = vld [vmem:[%s417 + $0x70] sm:$0xff]
      %v457 = vld [vmem:[%s417 + $0x78] sm:$0xff]
      %v458 = vld [vmem:[%s422] sm:$0xff]
      %v459 = vld [vmem:[%s422 + $0x8] sm:$0xff]
      %v460 = vld [vmem:[%s422 + $0x10] sm:$0xff]
      %v461 = vld [vmem:[%s422 + $0x18] sm:$0xff]
      %v462 = vld [vmem:[%s422 + $0x20] sm:$0xff]
      %v463 = vld [vmem:[%s422 + $0x28] sm:$0xff]
      %v464 = vld [vmem:[%s422 + $0x30] sm:$0xff]
      %v465 = vld [vmem:[%s422 + $0x38] sm:$0xff]
      %v466 = vld [vmem:[%s422 + $0x40] sm:$0xff]
      %v467 = vld [vmem:[%s422 + $0x48] sm:$0xff]
      %v468 = vld [vmem:[%s422 + $0x50] sm:$0xff]
      %v469 = vld [vmem:[%s422 + $0x58] sm:$0xff]
      %v470 = vld [vmem:[%s422 + $0x60] sm:$0xff]
      %v471 = vld [vmem:[%s422 + $0x68] sm:$0xff]
      %v472 = vld [vmem:[%s422 + $0x70] sm:$0xff]
      %v473 = vld [vmem:[%s422 + $0x78] sm:$0xff]
      %v474 = vld [vmem:[%s427] sm:$0xff]
      %v475 = vld [vmem:[%s427 + $0x8] sm:$0xff]
      %v476 = vld [vmem:[%s427 + $0x10] sm:$0xff]
      %v477 = vld [vmem:[%s427 + $0x18] sm:$0xff]
      %vm478 = vcmask 261120
      %v480 = vsel %vm478, %v458, 0
      %v483 = vsel %vm478, %v459, 0
      %v486 = vsel %vm478, %v460, 0
      %v489 = vsel %vm478, %v461, 0
      %v492 = vsel %vm478, %v462, 0
      %v495 = vsel %vm478, %v463, 0
      %v498 = vsel %vm478, %v464, 0
      %v501 = vsel %vm478, %v465, 0
      %v504 = vsel %vm478, %v466, 0
      %v507 = vsel %vm478, %v467, 0
      %v510 = vsel %vm478, %v468, 0
      %v513 = vsel %vm478, %v469, 0
      %v516 = vsel %vm478, %v470, 0
      %v519 = vsel %vm478, %v471, 0
      %v522 = vsel %vm478, %v472, 0
      %v525 = vsel %vm478, %v473, 0
      %527 = vmatprep.subr.mxu0 0.0
      %528 = vmatpush1.msra.mxu0 %v474
      %529 = vmatprep.subr.mxu0 0.0
      %530 = vmatpush1.msra.mxu0 %v475
      %531 = vmatprep.subr.mxu0 0.0
      %532 = vmatpush1.msra.mxu0 %v476
      %533 = vmatprep.subr.mxu0 0.0
      %534 = vmatpush1.msra.mxu0 %v477
      %535 = vmatprep.subr.mxu0 0.0
      %536 = vmatpush1.msra.mxu0 0.0
      %537 = vmatprep.subr.mxu0 0.0
      %538 = vmatpush1.msra.mxu0 0.0
      %539 = vmatprep.subr.mxu0 0.0
      %540 = vmatpush1.msra.mxu0 0.0
      %541 = vmatprep.subr.mxu0 0.0
      %542 = vmatpush1.msra.mxu0 0.0
      %543 = vmatprep.subr.mxu0 0.0
      %544 = vmatpush1.msra.mxu0 0.0
      %545 = vmatprep.subr.mxu0 0.0
      %546 = vmatpush1.msra.mxu0 0.0
      %547 = vmatprep.subr.mxu0 0.0
      %548 = vmatpush1.msra.mxu0 0.0
      %549 = vmatprep.subr.mxu0 0.0
      %550 = vmatpush1.msra.mxu0 0.0
      %551 = vmatprep.subr.mxu0 0.0
      %552 = vmatpush1.msra.mxu0 0.0
      %553 = vmatprep.subr.mxu0 0.0
      %554 = vmatpush1.msra.mxu0 0.0
      %555 = vmatprep.subr.mxu0 0.0
      %556 = vmatpush1.msra.mxu0 0.0
      %557 = vmatprep.subr.mxu0 0.0
      %558 = vmatpush1.msra.mxu0 0.0
      %559 = vmatprep.subr.mxu0 0.0
      %560 = vmatpush1.msra.mxu0 0.0
      %561 = vmatprep.subr.mxu0 0.0
      %562 = vmatpush1.msra.mxu0 0.0
      %563 = vmatprep.subr.mxu0 0.0
      %564 = vmatpush1.msra.mxu0 0.0
      %565 = vmatprep.subr.mxu0 0.0
      %566 = vmatpush1.msra.mxu0 0.0
      %567 = vmatprep.subr.mxu0 0.0
      %568 = vmatpush1.msra.mxu0 0.0
      %569 = vmatprep.subr.mxu0 0.0
      %570 = vmatpush1.msra.mxu0 0.0
      %571 = vmatprep.subr.mxu0 0.0
      %572 = vmatpush1.msra.mxu0 0.0
      %573 = vmatprep.subr.mxu0 0.0
      %574 = vmatpush1.msra.mxu0 0.0
      %575 = vmatprep.subr.mxu0 0.0
      %576 = vmatpush1.msra.mxu0 0.0
      %577 = vmatprep.subr.mxu0 0.0
      %578 = vmatpush1.msra.mxu0 0.0
      %579 = vmatprep.subr.mxu0 0.0
      %580 = vmatpush1.msra.mxu0 0.0
      %581 = vmatprep.subr.mxu0 0.0
      %582 = vmatpush1.msra.mxu0 0.0
      %583 = vmatprep.subr.mxu0 0.0
      %584 = vmatpush1.msra.mxu0 0.0
      %585 = vmatprep.subr.mxu0 0.0
      %586 = vmatpush1.msra.mxu0 0.0
      %587 = vmatprep.subr.mxu0 0.0
      %588 = vmatpush1.msra.mxu0 0.0
      %589 = vmatprep.subr.mxu0 0.0
      %590 = vmatpush1.msra.mxu0 0.0
      %591 = vmatprep.mubr.f32.mxu0 0.0
      %592 = vmatmul.mubr.f32.gmra.mrb[0].mxu0 %v480
      %v593 = vpop.f32.mrb[0].mxu0
      %v594 = vadd.f32 0.0, %v593
      %v595 = vpop.f32.mrb[0].mxu0
      %596 = vmatprep.mubr.f32.mxu0 0.0
      %597 = vmatmul.mubr.f32.gmra.mrb[0].mxu0 %v483
      %v598 = vpop.f32.mrb[0].mxu0
      %v599 = vadd.f32 0.0, %v598
      %v600 = vpop.f32.mrb[0].mxu0
      %601 = vmatprep.mubr.f32.mxu0 0.0
      %602 = vmatmul.mubr.f32.gmra.mrb[0].mxu0 %v486
      %v603 = vpop.f32.mrb[0].mxu0
      %v604 = vadd.f32 0.0, %v603
      %v605 = vpop.f32.mrb[0].mxu0
      %606 = vmatprep.mubr.f32.mxu0 0.0
      %607 = vmatmul.mubr.f32.gmra.mrb[0].mxu0 %v489
      %v608 = vpop.f32.mrb[0].mxu0
      %v609 = vadd.f32 0.0, %v608
      %v610 = vpop.f32.mrb[0].mxu0
      %611 = vmatprep.mubr.f32.mxu0 0.0
      %612 = vmatmul.mubr.f32.gmra.mrb[0].mxu0 %v492
      %v613 = vpop.f32.mrb[0].mxu0
      %v614 = vadd.f32 0.0, %v613
      %v615 = vpop.f32.mrb[0].mxu0
      %616 = vmatprep.mubr.f32.mxu0 0.0
      %617 = vmatmul.mubr.f32.gmra.mrb[0].mxu0 %v495
      %v618 = vpop.f32.mrb[0].mxu0
      %v619 = vadd.f32 0.0, %v618
      %v620 = vpop.f32.mrb[0].mxu0
      %621 = vmatprep.mubr.f32.mxu0 0.0
      %622 = vmatmul.mubr.f32.gmra.mrb[0].mxu0 %v498
      %v623 = vpop.f32.mrb[0].mxu0
      %v624 = vadd.f32 0.0, %v623
      %v625 = vpop.f32.mrb[0].mxu0
      %626 = vmatprep.mubr.f32.mxu0 0.0
      %627 = vmatmul.mubr.f32.gmra.mrb[0].mxu0 %v501
      %v628 = vpop.f32.mrb[0].mxu0
      %v629 = vadd.f32 0.0, %v628
      %v630 = vpop.f32.mrb[0].mxu0
      %631 = vmatprep.mubr.f32.mxu0 0.0
      %632 = vmatmul.mubr.f32.gmra.mrb[0].mxu0 %v504
      %v633 = vpop.f32.mrb[0].mxu0
      %v634 = vadd.f32 0.0, %v633
      %v635 = vpop.f32.mrb[0].mxu0
      %636 = vmatprep.mubr.f32.mxu0 0.0
      %637 = vmatmul.mubr.f32.gmra.mrb[0].mxu0 %v507
      %v638 = vpop.f32.mrb[0].mxu0
      %v639 = vadd.f32 0.0, %v638
      %v640 = vpop.f32.mrb[0].mxu0
      %641 = vmatprep.mubr.f32.mxu0 0.0
      %642 = vmatmul.mubr.f32.gmra.mrb[0].mxu0 %v510
      %v643 = vpop.f32.mrb[0].mxu0
      %v644 = vadd.f32 0.0, %v643
      %v645 = vpop.f32.mrb[0].mxu0
      %646 = vmatprep.mubr.f32.mxu0 0.0
      %647 = vmatmul.mubr.f32.gmra.mrb[0].mxu0 %v513
      %v648 = vpop.f32.mrb[0].mxu0
      %v649 = vadd.f32 0.0, %v648
      %v650 = vpop.f32.mrb[0].mxu0
      %651 = vmatprep.mubr.f32.mxu0 0.0
      %652 = vmatmul.mubr.f32.gmra.mrb[0].mxu0 %v516
      %v653 = vpop.f32.mrb[0].mxu0
      %v654 = vadd.f32 0.0, %v653
      %v655 = vpop.f32.mrb[0].mxu0
      %656 = vmatprep.mubr.f32.mxu0 0.0
      %657 = vmatmul.mubr.f32.gmra.mrb[0].mxu0 %v519
      %v658 = vpop.f32.mrb[0].mxu0
      %v659 = vadd.f32 0.0, %v658
      %v660 = vpop.f32.mrb[0].mxu0
      %661 = vmatprep.mubr.f32.mxu0 0.0
      %662 = vmatmul.mubr.f32.gmra.mrb[0].mxu0 %v522
      %v663 = vpop.f32.mrb[0].mxu0
      %v664 = vadd.f32 0.0, %v663
      %v665 = vpop.f32.mrb[0].mxu0
      %666 = vmatprep.mubr.f32.mxu0 0.0
      %667 = vmatmul.mubr.f32.gmra.mrb[0].mxu0 %v525
      %v668 = vpop.f32.mrb[0].mxu0
      %v669 = vadd.f32 0.0, %v668
      %v670 = vpop.f32.mrb[0].mxu0
      %671 = vdwg.mxu0
      %v672 = vadd.f32 %v442, %v594
      %v673 = vadd.f32 %v443, %v599
      %v674 = vadd.f32 %v444, %v604
      %v675 = vadd.f32 %v445, %v609
      %v676 = vadd.f32 %v446, %v614
      %v677 = vadd.f32 %v447, %v619
      %v678 = vadd.f32 %v448, %v624
      %v679 = vadd.f32 %v449, %v629
      %v680 = vadd.f32 %v450, %v634
      %v681 = vadd.f32 %v451, %v639
      %v682 = vadd.f32 %v452, %v644
      %v683 = vadd.f32 %v453, %v649
      %v684 = vadd.f32 %v454, %v654
      %v685 = vadd.f32 %v455, %v659
      %v686 = vadd.f32 %v456, %v664
      %v687 = vadd.f32 %v457, %v669
      %v688 = vld [vmem:[%s430] sm:$0x1]
      %v690 = vlaneseq
      %v691 = vshrl.u32 %v690, 7
      %v692 = vsub.s32 0, %v691
      %v693 = vrot.slane %v688, %v692
      %v695 = vadd.f32 %v672, %v693
      %v696 = vadd.f32 %v673, %v693
      %v697 = vadd.f32 %v674, %v693
      %v698 = vadd.f32 %v675, %v693
      %v699 = vadd.f32 %v676, %v693
      %v700 = vadd.f32 %v677, %v693
      %v701 = vadd.f32 %v678, %v693
      %v702 = vadd.f32 %v679, %v693
      %v703 = vadd.f32 %v680, %v693
      %v704 = vadd.f32 %v681, %v693
      %v705 = vadd.f32 %v682, %v693
      %v706 = vadd.f32 %v683, %v693
      %v707 = vadd.f32 %v684, %v693
      %v708 = vadd.f32 %v685, %v693
      %v709 = vadd.f32 %v686, %v693
      %v710 = vadd.f32 %v687, %v693
      %v711 = vld [vmem:[%s433] sm:$0x1]
      %v712 = vld [vmem:[%s436] sm:$0x1]
      %v713 = vsel %vm478, %v695, 0.0
      %714 = vadd.xlane.f32.xlu0 %v713
      %v715 = vpop.xlane.xlu0 %714
      %v716 = vsel %vm478, %v696, 0.0
      %717 = vadd.xlane.f32.xlu0 %v716
      %v718 = vpop.xlane.xlu0 %717
      %v719 = vsel %vm478, %v697, 0.0
      %720 = vadd.xlane.f32.xlu0 %v719
      %v721 = vpop.xlane.xlu0 %720
      %v722 = vsel %vm478, %v698, 0.0
      %723 = vadd.xlane.f32.xlu0 %v722
      %v724 = vpop.xlane.xlu0 %723
      %v725 = vsel %vm478, %v699, 0.0
      %726 = vadd.xlane.f32.xlu0 %v725
      %v727 = vpop.xlane.xlu0 %726
      %v728 = vsel %vm478, %v700, 0.0
      %729 = vadd.xlane.f32.xlu0 %v728
      %v730 = vpop.xlane.xlu0 %729
      %v731 = vsel %vm478, %v701, 0.0
      %732 = vadd.xlane.f32.xlu0 %v731
      %v733 = vpop.xlane.xlu0 %732
      %v734 = vsel %vm478, %v702, 0.0
      %735 = vadd.xlane.f32.xlu0 %v734
      %v736 = vpop.xlane.xlu0 %735
      %v737 = vsel %vm478, %v703, 0.0
      %738 = vadd.xlane.f32.xlu0 %v737
      %v739 = vpop.xlane.xlu0 %738
      %v740 = vsel %vm478, %v704, 0.0
      %741 = vadd.xlane.f32.xlu0 %v740
      %v742 = vpop.xlane.xlu0 %741
      %v743 = vsel %vm478, %v705, 0.0
      %744 = vadd.xlane.f32.xlu0 %v743
      %v745 = vpop.xlane.xlu0 %744
      %v746 = vsel %vm478, %v706, 0.0
      %747 = vadd.xlane.f32.xlu0 %v746
      %v748 = vpop.xlane.xlu0 %747
      %v749 = vsel %vm478, %v707, 0.0
      %750 = vadd.xlane.f32.xlu0 %v749
      %v751 = vpop.xlane.xlu0 %750
      %v752 = vsel %vm478, %v708, 0.0
      %753 = vadd.xlane.f32.xlu0 %v752
      %v754 = vpop.xlane.xlu0 %753
      %v755 = vsel %vm478, %v709, 0.0
      %756 = vadd.xlane.f32.xlu0 %v755
      %v757 = vpop.xlane.xlu0 %756
      %v758 = vsel %vm478, %v710, 0.0
      %759 = vadd.xlane.f32.xlu0 %v758
      %v760 = vpop.xlane.xlu0 %759
      %v761 = vrcp.pop 32.0
      %v762 = vmul.f32 %v715, %v761
      %v763 = vmul.f32 %v718, %v761
      %v764 = vmul.f32 %v721, %v761
      %v765 = vmul.f32 %v724, %v761
      %v766 = vmul.f32 %v727, %v761
      %v767 = vmul.f32 %v730, %v761
      %v768 = vmul.f32 %v733, %v761
      %v769 = vmul.f32 %v736, %v761
      %v770 = vmul.f32 %v739, %v761
      %v771 = vmul.f32 %v742, %v761
      %v772 = vmul.f32 %v745, %v761
      %v773 = vmul.f32 %v748, %v761
      %v774 = vmul.f32 %v751, %v761
      %v775 = vmul.f32 %v754, %v761
      %v776 = vmul.f32 %v757, %v761
      %v777 = vmul.f32 %v760, %v761
      %v778 = vsub.f32 %v695, %v762
      %v779 = vsub.f32 %v696, %v763
      %v780 = vsub.f32 %v697, %v764
      %v781 = vsub.f32 %v698, %v765
      %v782 = vsub.f32 %v699, %v766
      %v783 = vsub.f32 %v700, %v767
      %v784 = vsub.f32 %v701, %v768
      %v785 = vsub.f32 %v702, %v769
      %v786 = vsub.f32 %v703, %v770
      %v787 = vsub.f32 %v704, %v771
      %v788 = vsub.f32 %v705, %v772
      %v789 = vsub.f32 %v706, %v773
      %v790 = vsub.f32 %v707, %v774
      %v791 = vsub.f32 %v708, %v775
      %v792 = vsub.f32 %v709, %v776
      %v793 = vsub.f32 %v710, %v777
      %v794 = vmul.f32 %v778, %v778
      %v795 = vmul.f32 %v779, %v779
      %v796 = vmul.f32 %v780, %v780
      %v797 = vmul.f32 %v781, %v781
      %v798 = vmul.f32 %v782, %v782
      %v799 = vmul.f32 %v783, %v783
      %v800 = vmul.f32 %v784, %v784
      %v801 = vmul.f32 %v785, %v785
      %v802 = vmul.f32 %v786, %v786
      %v803 = vmul.f32 %v787, %v787
      %v804 = vmul.f32 %v788, %v788
      %v805 = vmul.f32 %v789, %v789
      %v806 = vmul.f32 %v790, %v790
      %v807 = vmul.f32 %v791, %v791
      %v808 = vmul.f32 %v792, %v792
      %v809 = vmul.f32 %v793, %v793
      %v810 = vsel %vm478, %v794, 0.0
      %811 = vadd.xlane.f32.xlu0 %v810
      %v812 = vpop.xlane.xlu0 %811
      %v813 = vsel %vm478, %v795, 0.0
      %814 = vadd.xlane.f32.xlu0 %v813
      %v815 = vpop.xlane.xlu0 %814
      %v816 = vsel %vm478, %v796, 0.0
      %817 = vadd.xlane.f32.xlu0 %v816
      %v818 = vpop.xlane.xlu0 %817
      %v819 = vsel %vm478, %v797, 0.0
      %820 = vadd.xlane.f32.xlu0 %v819
      %v821 = vpop.xlane.xlu0 %820
      %v822 = vsel %vm478, %v798, 0.0
      %823 = vadd.xlane.f32.xlu0 %v822
      %v824 = vpop.xlane.xlu0 %823
      %v825 = vsel %vm478, %v799, 0.0
      %826 = vadd.xlane.f32.xlu0 %v825
      %v827 = vpop.xlane.xlu0 %826
      %v828 = vsel %vm478, %v800, 0.0
      %829 = vadd.xlane.f32.xlu0 %v828
      %v830 = vpop.xlane.xlu0 %829
      %v831 = vsel %vm478, %v801, 0.0
      %832 = vadd.xlane.f32.xlu0 %v831
      %v833 = vpop.xlane.xlu0 %832
      %v834 = vsel %vm478, %v802, 0.0
      %835 = vadd.xlane.f32.xlu0 %v834
      %v836 = vpop.xlane.xlu0 %835
      %v837 = vsel %vm478, %v803, 0.0
      %838 = vadd.xlane.f32.xlu0 %v837
      %v839 = vpop.xlane.xlu0 %838
      %v840 = vsel %vm478, %v804, 0.0
      %841 = vadd.xlane.f32.xlu0 %v840
      %v842 = vpop.xlane.xlu0 %841
      %v843 = vsel %vm478, %v805, 0.0
      %844 = vadd.xlane.f32.xlu0 %v843
      %v845 = vpop.xlane.xlu0 %844
      %v846 = vsel %vm478, %v806, 0.0
      %847 = vadd.xlane.f32.xlu0 %v846
      %v848 = vpop.xlane.xlu0 %847
      %v849 = vsel %vm478, %v807, 0.0
      %850 = vadd.xlane.f32.xlu0 %v849
      %v851 = vpop.xlane.xlu0 %850
      %v852 = vsel %vm478, %v808, 0.0
      %853 = vadd.xlane.f32.xlu0 %v852
      %v854 = vpop.xlane.xlu0 %853
      %v855 = vsel %vm478, %v809, 0.0
      %856 = vadd.xlane.f32.xlu0 %v855
      %v857 = vpop.xlane.xlu0 %856
      %v858 = vmul.f32 %v812, %v761
      %v859 = vmul.f32 %v815, %v761
      %v860 = vmul.f32 %v818, %v761
      %v861 = vmul.f32 %v821, %v761
      %v862 = vmul.f32 %v824, %v761
      %v863 = vmul.f32 %v827, %v761
      %v864 = vmul.f32 %v830, %v761
      %v865 = vmul.f32 %v833, %v761
      %v866 = vmul.f32 %v836, %v761
      %v867 = vmul.f32 %v839, %v761
      %v868 = vmul.f32 %v842, %v761
      %v869 = vmul.f32 %v845, %v761
      %v870 = vmul.f32 %v848, %v761
      %v871 = vmul.f32 %v851, %v761
      %v872 = vmul.f32 %v854, %v761
      %v873 = vmul.f32 %v857, %v761
      %v874 = vadd.f32 %v858, 1e-05
      %v875 = vadd.f32 %v859, 1e-05
      %v876 = vadd.f32 %v860, 1e-05
      %v877 = vadd.f32 %v861, 1e-05
      %v878 = vadd.f32 %v862, 1e-05
      %v879 = vadd.f32 %v863, 1e-05
      %v880 = vadd.f32 %v864, 1e-05
      %v881 = vadd.f32 %v865, 1e-05
      %v882 = vadd.f32 %v866, 1e-05
      %v883 = vadd.f32 %v867, 1e-05
      %v884 = vadd.f32 %v868, 1e-05
      %v885 = vadd.f32 %v869, 1e-05
      %v886 = vadd.f32 %v870, 1e-05
      %v887 = vadd.f32 %v871, 1e-05
      %v888 = vadd.f32 %v872, 1e-05
      %v889 = vadd.f32 %v873, 1e-05
      %v890 = vrsqrt.pop %v874
      %v891 = vmul.f32 %v874, %v890
      %vm892 = vcmp.eq.f32.partialorder %v874, inf
      %v893 = vsel %vm892, %v874, %v891
      %vm894 = vcmp.eq.f32.partialorder %v874, 0.0
      %v895 = vand.u32 %v874, 2147483648
      %v896 = vsel %vm894, %v895, %v893
      %v897 = vrsqrt.pop %v875
      %v898 = vmul.f32 %v875, %v897
      %vm899 = vcmp.eq.f32.partialorder %v875, inf
      %v900 = vsel %vm899, %v875, %v898
      %vm901 = vcmp.eq.f32.partialorder %v875, 0.0
      %v902 = vand.u32 %v875, 2147483648
      %v903 = vsel %vm901, %v902, %v900
      %v904 = vrsqrt.pop %v876
      %v905 = vmul.f32 %v876, %v904
      %vm906 = vcmp.eq.f32.partialorder %v876, inf
      %v907 = vsel %vm906, %v876, %v905
      %vm908 = vcmp.eq.f32.partialorder %v876, 0.0
      %v909 = vand.u32 %v876, 2147483648
      %v910 = vsel %vm908, %v909, %v907
      %v911 = vrsqrt.pop %v877
      %v912 = vmul.f32 %v877, %v911
      %vm913 = vcmp.eq.f32.partialorder %v877, inf
      %v914 = vsel %vm913, %v877, %v912
      %vm915 = vcmp.eq.f32.partialorder %v877, 0.0
      %v916 = vand.u32 %v877, 2147483648
      %v917 = vsel %vm915, %v916, %v914
      %v918 = vrsqrt.pop %v878
      %v919 = vmul.f32 %v878, %v918
      %vm920 = vcmp.eq.f32.partialorder %v878, inf
      %v921 = vsel %vm920, %v878, %v919
      %vm922 = vcmp.eq.f32.partialorder %v878, 0.0
      %v923 = vand.u32 %v878, 2147483648
      %v924 = vsel %vm922, %v923, %v921
      %v925 = vrsqrt.pop %v879
      %v926 = vmul.f32 %v879, %v925
      %vm927 = vcmp.eq.f32.partialorder %v879, inf
      %v928 = vsel %vm927, %v879, %v926
      %vm929 = vcmp.eq.f32.partialorder %v879, 0.0
      %v930 = vand.u32 %v879, 2147483648
      %v931 = vsel %vm929, %v930, %v928
      %v932 = vrsqrt.pop %v880
      %v933 = vmul.f32 %v880, %v932
      %vm934 = vcmp.eq.f32.partialorder %v880, inf
      %v935 = vsel %vm934, %v880, %v933
      %vm936 = vcmp.eq.f32.partialorder %v880, 0.0
      %v937 = vand.u32 %v880, 2147483648
      %v938 = vsel %vm936, %v937, %v935
      %v939 = vrsqrt.pop %v881
      %v940 = vmul.f32 %v881, %v939
      %vm941 = vcmp.eq.f32.partialorder %v881, inf
      %v942 = vsel %vm941, %v881, %v940
      %vm943 = vcmp.eq.f32.partialorder %v881, 0.0
      %v944 = vand.u32 %v881, 2147483648
      %v945 = vsel %vm943, %v944, %v942
      %v946 = vrsqrt.pop %v882
      %v947 = vmul.f32 %v882, %v946
      %vm948 = vcmp.eq.f32.partialorder %v882, inf
      %v949 = vsel %vm948, %v882, %v947
      %vm950 = vcmp.eq.f32.partialorder %v882, 0.0
      %v951 = vand.u32 %v882, 2147483648
      %v952 = vsel %vm950, %v951, %v949
      %v953 = vrsqrt.pop %v883
      %v954 = vmul.f32 %v883, %v953
      %vm955 = vcmp.eq.f32.partialorder %v883, inf
      %v956 = vsel %vm955, %v883, %v954
      %vm957 = vcmp.eq.f32.partialorder %v883, 0.0
      %v958 = vand.u32 %v883, 2147483648
      %v959 = vsel %vm957, %v958, %v956
      %v960 = vrsqrt.pop %v884
      %v961 = vmul.f32 %v884, %v960
      %vm962 = vcmp.eq.f32.partialorder %v884, inf
      %v963 = vsel %vm962, %v884, %v961
      %vm964 = vcmp.eq.f32.partialorder %v884, 0.0
      %v965 = vand.u32 %v884, 2147483648
      %v966 = vsel %vm964, %v965, %v963
      %v967 = vrsqrt.pop %v885
      %v968 = vmul.f32 %v885, %v967
      %vm969 = vcmp.eq.f32.partialorder %v885, inf
      %v970 = vsel %vm969, %v885, %v968
      %vm971 = vcmp.eq.f32.partialorder %v885, 0.0
      %v972 = vand.u32 %v885, 2147483648
      %v973 = vsel %vm971, %v972, %v970
      %v974 = vrsqrt.pop %v886
      %v975 = vmul.f32 %v886, %v974
      %vm976 = vcmp.eq.f32.partialorder %v886, inf
      %v977 = vsel %vm976, %v886, %v975
      %vm978 = vcmp.eq.f32.partialorder %v886, 0.0
      %v979 = vand.u32 %v886, 2147483648
      %v980 = vsel %vm978, %v979, %v977
      %v981 = vrsqrt.pop %v887
      %v982 = vmul.f32 %v887, %v981
      %vm983 = vcmp.eq.f32.partialorder %v887, inf
      %v984 = vsel %vm983, %v887, %v982
      %vm985 = vcmp.eq.f32.partialorder %v887, 0.0
      %v986 = vand.u32 %v887, 2147483648
      %v987 = vsel %vm985, %v986, %v984
      %v988 = vrsqrt.pop %v888
      %v989 = vmul.f32 %v888, %v988
      %vm990 = vcmp.eq.f32.partialorder %v888, inf
      %v991 = vsel %vm990, %v888, %v989
      %vm992 = vcmp.eq.f32.partialorder %v888, 0.0
      %v993 = vand.u32 %v888, 2147483648
      %v994 = vsel %vm992, %v993, %v991
      %v995 = vrsqrt.pop %v889
      %v996 = vmul.f32 %v889, %v995
      %vm997 = vcmp.eq.f32.partialorder %v889, inf
      %v998 = vsel %vm997, %v889, %v996
      %vm999 = vcmp.eq.f32.partialorder %v889, 0.0
      %v1000 = vand.u32 %v889, 2147483648
      %v1001 = vsel %vm999, %v1000, %v998
      %v1002 = vrcp.pop %v896
      %v1003 = vmul.f32 %v778, %v1002
      %v1004 = vrcp.pop %v903
      %v1005 = vmul.f32 %v779, %v1004
      %v1006 = vrcp.pop %v910
      %v1007 = vmul.f32 %v780, %v1006
      %v1008 = vrcp.pop %v917
      %v1009 = vmul.f32 %v781, %v1008
      %v1010 = vrcp.pop %v924
      %v1011 = vmul.f32 %v782, %v1010
      %v1012 = vrcp.pop %v931
      %v1013 = vmul.f32 %v783, %v1012
      %v1014 = vrcp.pop %v938
      %v1015 = vmul.f32 %v784, %v1014
      %v1016 = vrcp.pop %v945
      %v1017 = vmul.f32 %v785, %v1016
      %v1018 = vrcp.pop %v952
      %v1019 = vmul.f32 %v786, %v1018
      %v1020 = vrcp.pop %v959
      %v1021 = vmul.f32 %v787, %v1020
      %v1022 = vrcp.pop %v966
      %v1023 = vmul.f32 %v788, %v1022
      %v1024 = vrcp.pop %v973
      %v1025 = vmul.f32 %v789, %v1024
      %v1026 = vrcp.pop %v980
      %v1027 = vmul.f32 %v790, %v1026
      %v1028 = vrcp.pop %v987
      %v1029 = vmul.f32 %v791, %v1028
      %v1030 = vrcp.pop %v994
      %v1031 = vmul.f32 %v792, %v1030
      %v1032 = vrcp.pop %v1001
      %v1033 = vmul.f32 %v793, %v1032
      %v1035 = vlaneseq
      %v1036 = vshrl.u32 %v1035, 7
      %v1037 = vsub.s32 0, %v1036
      %v1038 = vrot.slane %v711, %v1037
      %v1040 = vmul.f32 %v1038, %v1003
      %v1041 = vmul.f32 %v1038, %v1005
      %v1042 = vmul.f32 %v1038, %v1007
      %v1043 = vmul.f32 %v1038, %v1009
      %v1044 = vmul.f32 %v1038, %v1011
      %v1045 = vmul.f32 %v1038, %v1013
      %v1046 = vmul.f32 %v1038, %v1015
      %v1047 = vmul.f32 %v1038, %v1017
      %v1048 = vmul.f32 %v1038, %v1019
      %v1049 = vmul.f32 %v1038, %v1021
      %v1050 = vmul.f32 %v1038, %v1023
      %v1051 = vmul.f32 %v1038, %v1025
      %v1052 = vmul.f32 %v1038, %v1027
      %v1053 = vmul.f32 %v1038, %v1029
      %v1054 = vmul.f32 %v1038, %v1031
      %v1055 = vmul.f32 %v1038, %v1033
      %v1057 = vlaneseq
      %v1058 = vshrl.u32 %v1057, 7
      %v1059 = vsub.s32 0, %v1058
      %v1060 = vrot.slane %v712, %v1059
      %v1062 = vadd.f32 %v1040, %v1060
      %v1063 = vadd.f32 %v1041, %v1060
      %v1064 = vadd.f32 %v1042, %v1060
      %v1065 = vadd.f32 %v1043, %v1060
      %v1066 = vadd.f32 %v1044, %v1060
      %v1067 = vadd.f32 %v1045, %v1060
      %v1068 = vadd.f32 %v1046, %v1060
      %v1069 = vadd.f32 %v1047, %v1060
      %v1070 = vadd.f32 %v1048, %v1060
      %v1071 = vadd.f32 %v1049, %v1060
      %v1072 = vadd.f32 %v1050, %v1060
      %v1073 = vadd.f32 %v1051, %v1060
      %v1074 = vadd.f32 %v1052, %v1060
      %v1075 = vadd.f32 %v1053, %v1060
      %v1076 = vadd.f32 %v1054, %v1060
      %v1077 = vadd.f32 %v1055, %v1060
      %v1078 = vld [vmem:[%s6] sm:$0xff]
      %v1079 = vld [vmem:[%s6 + $0x8] sm:$0xff]
      %v1080 = vld [vmem:[%s6 + $0x10] sm:$0xff]
      %v1081 = vld [vmem:[%s6 + $0x18] sm:$0xff]
      %v1082 = vld [vmem:[%s7] sm:$0x1]
      %v1084 = vlaneseq
      %v1085 = vshrl.u32 %v1084, 7
      %v1086 = vsub.s32 0, %v1085
      %v1087 = vrot.slane %v1082, %v1086
      %v1090 = vsel %vm478, %v1062, 0
      %v1093 = vsel %vm478, %v1063, 0
      %v1096 = vsel %vm478, %v1064, 0
      %v1099 = vsel %vm478, %v1065, 0
      %v1102 = vsel %vm478, %v1066, 0
      %v1105 = vsel %vm478, %v1067, 0
      %v1108 = vsel %vm478, %v1068, 0
      %v1111 = vsel %vm478, %v1069, 0
      %v1114 = vsel %vm478, %v1070, 0
      %v1117 = vsel %vm478, %v1071, 0
      %v1120 = vsel %vm478, %v1072, 0
      %v1123 = vsel %vm478, %v1073, 0
      %v1126 = vsel %vm478, %v1074, 0
      %v1129 = vsel %vm478, %v1075, 0
      %v1132 = vsel %vm478, %v1076, 0
      %v1135 = vsel %vm478, %v1077, 0
      %1137 = vmatprep.subr.mxu0 0.0
      %1138 = vmatpush1.msra.mxu0 %v1078
      %1139 = vmatprep.subr.mxu0 0.0
      %1140 = vmatpush1.msra.mxu0 %v1079
      %1141 = vmatprep.subr.mxu0 0.0
      %1142 = vmatpush1.msra.mxu0 %v1080
      %1143 = vmatprep.subr.mxu0 0.0
      %1144 = vmatpush1.msra.mxu0 %v1081
      %1145 = vmatprep.subr.mxu0 0.0
      %1146 = vmatpush1.msra.mxu0 0.0
      %1147 = vmatprep.subr.mxu0 0.0
      %1148 = vmatpush1.msra.mxu0 0.0
      %1149 = vmatprep.subr.mxu0 0.0
      %1150 = vmatpush1.msra.mxu0 0.0
      %1151 = vmatprep.subr.mxu0 0.0
      %1152 = vmatpush1.msra.mxu0 0.0
      %1153 = vmatprep.subr.mxu0 0.0
      %1154 = vmatpush1.msra.mxu0 0.0
      %1155 = vmatprep.subr.mxu0 0.0
      %1156 = vmatpush1.msra.mxu0 0.0
      %1157 = vmatprep.subr.mxu0 0.0
      %1158 = vmatpush1.msra.mxu0 0.0
      %1159 = vmatprep.subr.mxu0 0.0
      %1160 = vmatpush1.msra.mxu0 0.0
      %1161 = vmatprep.subr.mxu0 0.0
      %1162 = vmatpush1.msra.mxu0 0.0
      %1163 = vmatprep.subr.mxu0 0.0
      %1164 = vmatpush1.msra.mxu0 0.0
      %1165 = vmatprep.subr.mxu0 0.0
      %1166 = vmatpush1.msra.mxu0 0.0
      %1167 = vmatprep.subr.mxu0 0.0
      %1168 = vmatpush1.msra.mxu0 0.0
      %1169 = vmatprep.subr.mxu0 0.0
      %1170 = vmatpush1.msra.mxu0 0.0
      %1171 = vmatprep.subr.mxu0 0.0
      %1172 = vmatpush1.msra.mxu0 0.0
      %1173 = vmatprep.subr.mxu0 0.0
      %1174 = vmatpush1.msra.mxu0 0.0
      %1175 = vmatprep.subr.mxu0 0.0
      %1176 = vmatpush1.msra.mxu0 0.0
      %1177 = vmatprep.subr.mxu0 0.0
      %1178 = vmatpush1.msra.mxu0 0.0
      %1179 = vmatprep.subr.mxu0 0.0
      %1180 = vmatpush1.msra.mxu0 0.0
      %1181 = vmatprep.subr.mxu0 0.0
      %1182 = vmatpush1.msra.mxu0 0.0
      %1183 = vmatprep.subr.mxu0 0.0
      %1184 = vmatpush1.msra.mxu0 0.0
      %1185 = vmatprep.subr.mxu0 0.0
      %1186 = vmatpush1.msra.mxu0 0.0
      %1187 = vmatprep.subr.mxu0 0.0
      %1188 = vmatpush1.msra.mxu0 0.0
      %1189 = vmatprep.subr.mxu0 0.0
      %1190 = vmatpush1.msra.mxu0 0.0
      %1191 = vmatprep.subr.mxu0 0.0
      %1192 = vmatpush1.msra.mxu0 0.0
      %1193 = vmatprep.subr.mxu0 0.0
      %1194 = vmatpush1.msra.mxu0 0.0
      %1195 = vmatprep.subr.mxu0 0.0
      %1196 = vmatpush1.msra.mxu0 0.0
      %1197 = vmatprep.subr.mxu0 0.0
      %1198 = vmatpush1.msra.mxu0 0.0
      %1199 = vmatprep.subr.mxu0 0.0
      %1200 = vmatpush1.msra.mxu0 0.0
      %1201 = vmatprep.mubr.f32.mxu0 0.0
      %1202 = vmatmul.mubr.f32.gmra.mrb[0].mxu0 %v1090
      %v1203 = vpop.f32.mrb[0].mxu0
      %v1204 = vadd.f32 %v1087, %v1203
      %v1205 = vpop.f32.mrb[0].mxu0
      %1206 = vmatprep.mubr.f32.mxu0 0.0
      %1207 = vmatmul.mubr.f32.gmra.mrb[0].mxu0 %v1093
      %v1208 = vpop.f32.mrb[0].mxu0
      %v1209 = vadd.f32 %v1087, %v1208
      %v1210 = vpop.f32.mrb[0].mxu0
      %1211 = vmatprep.mubr.f32.mxu0 0.0
      %1212 = vmatmul.mubr.f32.gmra.mrb[0].mxu0 %v1096
      %v1213 = vpop.f32.mrb[0].mxu0
      %v1214 = vadd.f32 %v1087, %v1213
      %v1215 = vpop.f32.mrb[0].mxu0
      %1216 = vmatprep.mubr.f32.mxu0 0.0
      %1217 = vmatmul.mubr.f32.gmra.mrb[0].mxu0 %v1099
      %v1218 = vpop.f32.mrb[0].mxu0
      %v1219 = vadd.f32 %v1087, %v1218
      %v1220 = vpop.f32.mrb[0].mxu0
      %1221 = vmatprep.mubr.f32.mxu0 0.0
      %1222 = vmatmul.mubr.f32.gmra.mrb[0].mxu0 %v1102
      %v1223 = vpop.f32.mrb[0].mxu0
      %v1224 = vadd.f32 %v1087, %v1223
      %v1225 = vpop.f32.mrb[0].mxu0
      %1226 = vmatprep.mubr.f32.mxu0 0.0
      %1227 = vmatmul.mubr.f32.gmra.mrb[0].mxu0 %v1105
      %v1228 = vpop.f32.mrb[0].mxu0
      %v1229 = vadd.f32 %v1087, %v1228
      %v1230 = vpop.f32.mrb[0].mxu0
      %1231 = vmatprep.mubr.f32.mxu0 0.0
      %1232 = vmatmul.mubr.f32.gmra.mrb[0].mxu0 %v1108
      %v1233 = vpop.f32.mrb[0].mxu0
      %v1234 = vadd.f32 %v1087, %v1233
      %v1235 = vpop.f32.mrb[0].mxu0
      %1236 = vmatprep.mubr.f32.mxu0 0.0
      %1237 = vmatmul.mubr.f32.gmra.mrb[0].mxu0 %v1111
      %v1238 = vpop.f32.mrb[0].mxu0
      %v1239 = vadd.f32 %v1087, %v1238
      %v1240 = vpop.f32.mrb[0].mxu0
      %1241 = vmatprep.mubr.f32.mxu0 0.0
      %1242 = vmatmul.mubr.f32.gmra.mrb[0].mxu0 %v1114
      %v1243 = vpop.f32.mrb[0].mxu0
      %v1244 = vadd.f32 %v1087, %v1243
      %v1245 = vpop.f32.mrb[0].mxu0
      %1246 = vmatprep.mubr.f32.mxu0 0.0
      %1247 = vmatmul.mubr.f32.gmra.mrb[0].mxu0 %v1117
      %v1248 = vpop.f32.mrb[0].mxu0
      %v1249 = vadd.f32 %v1087, %v1248
      %v1250 = vpop.f32.mrb[0].mxu0
      %1251 = vmatprep.mubr.f32.mxu0 0.0
      %1252 = vmatmul.mubr.f32.gmra.mrb[0].mxu0 %v1120
      %v1253 = vpop.f32.mrb[0].mxu0
      %v1254 = vadd.f32 %v1087, %v1253
      %v1255 = vpop.f32.mrb[0].mxu0
      %1256 = vmatprep.mubr.f32.mxu0 0.0
      %1257 = vmatmul.mubr.f32.gmra.mrb[0].mxu0 %v1123
      %v1258 = vpop.f32.mrb[0].mxu0
      %v1259 = vadd.f32 %v1087, %v1258
      %v1260 = vpop.f32.mrb[0].mxu0
      %1261 = vmatprep.mubr.f32.mxu0 0.0
      %1262 = vmatmul.mubr.f32.gmra.mrb[0].mxu0 %v1126
      %v1263 = vpop.f32.mrb[0].mxu0
      %v1264 = vadd.f32 %v1087, %v1263
      %v1265 = vpop.f32.mrb[0].mxu0
      %1266 = vmatprep.mubr.f32.mxu0 0.0
      %1267 = vmatmul.mubr.f32.gmra.mrb[0].mxu0 %v1129
      %v1268 = vpop.f32.mrb[0].mxu0
      %v1269 = vadd.f32 %v1087, %v1268
      %v1270 = vpop.f32.mrb[0].mxu0
      %1271 = vmatprep.mubr.f32.mxu0 0.0
      %1272 = vmatmul.mubr.f32.gmra.mrb[0].mxu0 %v1132
      %v1273 = vpop.f32.mrb[0].mxu0
      %v1274 = vadd.f32 %v1087, %v1273
      %v1275 = vpop.f32.mrb[0].mxu0
      %1276 = vmatprep.mubr.f32.mxu0 0.0
      %1277 = vmatmul.mubr.f32.gmra.mrb[0].mxu0 %v1135
      %v1278 = vpop.f32.mrb[0].mxu0
      %v1279 = vadd.f32 %v1087, %v1278
      %v1280 = vpop.f32.mrb[0].mxu0
      %1281 = vdwg.mxu0
      %v1282 = vmul.f32 %v1204, 0.5
      %v1283 = vmul.f32 %v1209, 0.5
      %v1284 = vmul.f32 %v1214, 0.5
      %v1285 = vmul.f32 %v1219, 0.5
      %v1286 = vmul.f32 %v1224, 0.5
      %v1287 = vmul.f32 %v1229, 0.5
      %v1288 = vmul.f32 %v1234, 0.5
      %v1289 = vmul.f32 %v1239, 0.5
      %v1290 = vmul.f32 %v1244, 0.5
      %v1291 = vmul.f32 %v1249, 0.5
      %v1292 = vmul.f32 %v1254, 0.5
      %v1293 = vmul.f32 %v1259, 0.5
      %v1294 = vmul.f32 %v1264, 0.5
      %v1295 = vmul.f32 %v1269, 0.5
      %v1296 = vmul.f32 %v1274, 0.5
      %v1297 = vmul.f32 %v1279, 0.5
      %v1298 = vmul.f32 %v1204, 0.70710677
      %v1299 = vmul.f32 %v1209, 0.70710677
      %v1300 = vmul.f32 %v1214, 0.70710677
      %v1301 = vmul.f32 %v1219, 0.70710677
      %v1302 = vmul.f32 %v1224, 0.70710677
      %v1303 = vmul.f32 %v1229, 0.70710677
      %v1304 = vmul.f32 %v1234, 0.70710677
      %v1305 = vmul.f32 %v1239, 0.70710677
      %v1306 = vmul.f32 %v1244, 0.70710677
      %v1307 = vmul.f32 %v1249, 0.70710677
      %v1308 = vmul.f32 %v1254, 0.70710677
      %v1309 = vmul.f32 %v1259, 0.70710677
      %v1310 = vmul.f32 %v1264, 0.70710677
      %v1311 = vmul.f32 %v1269, 0.70710677
      %v1312 = vmul.f32 %v1274, 0.70710677
      %v1313 = vmul.f32 %v1279, 0.70710677
      %vm1314 = vcmp.ge.f32.partialorder %v1298, 0.0
      %vm1315 = vcmp.ge.f32.partialorder %v1299, 0.0
      %vm1316 = vcmp.ge.f32.partialorder %v1300, 0.0
      %vm1317 = vcmp.ge.f32.partialorder %v1301, 0.0
      %vm1318 = vcmp.ge.f32.partialorder %v1302, 0.0
      %vm1319 = vcmp.ge.f32.partialorder %v1303, 0.0
      %vm1320 = vcmp.ge.f32.partialorder %v1304, 0.0
      %vm1321 = vcmp.ge.f32.partialorder %v1305, 0.0
      %vm1322 = vcmp.ge.f32.partialorder %v1306, 0.0
      %vm1323 = vcmp.ge.f32.partialorder %v1307, 0.0
      %vm1324 = vcmp.ge.f32.partialorder %v1308, 0.0
      %vm1325 = vcmp.ge.f32.partialorder %v1309, 0.0
      %vm1326 = vcmp.ge.f32.partialorder %v1310, 0.0
      %vm1327 = vcmp.ge.f32.partialorder %v1311, 0.0
      %vm1328 = vcmp.ge.f32.partialorder %v1312, 0.0
      %vm1329 = vcmp.ge.f32.partialorder %v1313, 0.0
      %v1330 = vsel %vm1314, 1.0, -1.0
      %v1331 = vsel %vm1315, 1.0, -1.0
      %v1332 = vsel %vm1316, 1.0, -1.0
      %v1333 = vsel %vm1317, 1.0, -1.0
      %v1334 = vsel %vm1318, 1.0, -1.0
      %v1335 = vsel %vm1319, 1.0, -1.0
      %v1336 = vsel %vm1320, 1.0, -1.0
      %v1337 = vsel %vm1321, 1.0, -1.0
      %v1338 = vsel %vm1322, 1.0, -1.0
      %v1339 = vsel %vm1323, 1.0, -1.0
      %v1340 = vsel %vm1324, 1.0, -1.0
      %v1341 = vsel %vm1325, 1.0, -1.0
      %v1342 = vsel %vm1326, 1.0, -1.0
      %v1343 = vsel %vm1327, 1.0, -1.0
      %v1344 = vsel %vm1328, 1.0, -1.0
      %v1345 = vsel %vm1329, 1.0, -1.0
      %v1346 = vand.u32 2147483647, %v1298
      %v1347 = vand.u32 2147483647, %v1299
      %v1348 = vand.u32 2147483647, %v1300
      %v1349 = vand.u32 2147483647, %v1301
      %v1350 = vand.u32 2147483647, %v1302
      %v1351 = vand.u32 2147483647, %v1303
      %v1352 = vand.u32 2147483647, %v1304
      %v1353 = vand.u32 2147483647, %v1305
      %v1354 = vand.u32 2147483647, %v1306
      %v1355 = vand.u32 2147483647, %v1307
      %v1356 = vand.u32 2147483647, %v1308
      %v1357 = vand.u32 2147483647, %v1309
      %v1358 = vand.u32 2147483647, %v1310
      %v1359 = vand.u32 2147483647, %v1311
      %v1360 = vand.u32 2147483647, %v1312
      %v1361 = vand.u32 2147483647, %v1313
      %v1362 = vmul.f32 %v1346, 0.3275911
      %v1363 = vmul.f32 %v1347, 0.3275911
      %v1364 = vmul.f32 %v1348, 0.3275911
      %v1365 = vmul.f32 %v1349, 0.3275911
      %v1366 = vmul.f32 %v1350, 0.3275911
      %v1367 = vmul.f32 %v1351, 0.3275911
      %v1368 = vmul.f32 %v1352, 0.3275911
      %v1369 = vmul.f32 %v1353, 0.3275911
      %v1370 = vmul.f32 %v1354, 0.3275911
      %v1371 = vmul.f32 %v1355, 0.3275911
      %v1372 = vmul.f32 %v1356, 0.3275911
      %v1373 = vmul.f32 %v1357, 0.3275911
      %v1374 = vmul.f32 %v1358, 0.3275911
      %v1375 = vmul.f32 %v1359, 0.3275911
      %v1376 = vmul.f32 %v1360, 0.3275911
      %v1377 = vmul.f32 %v1361, 0.3275911
      %v1378 = vadd.f32 %v1362, 1.0
      %v1379 = vadd.f32 %v1363, 1.0
      %v1380 = vadd.f32 %v1364, 1.0
      %v1381 = vadd.f32 %v1365, 1.0
      %v1382 = vadd.f32 %v1366, 1.0
      %v1383 = vadd.f32 %v1367, 1.0
      %v1384 = vadd.f32 %v1368, 1.0
      %v1385 = vadd.f32 %v1369, 1.0
      %v1386 = vadd.f32 %v1370, 1.0
      %v1387 = vadd.f32 %v1371, 1.0
      %v1388 = vadd.f32 %v1372, 1.0
      %v1389 = vadd.f32 %v1373, 1.0
      %v1390 = vadd.f32 %v1374, 1.0
      %v1391 = vadd.f32 %v1375, 1.0
      %v1392 = vadd.f32 %v1376, 1.0
      %v1393 = vadd.f32 %v1377, 1.0
      %v1394 = vrcp.pop %v1378
      %v1395 = vmul.f32 1.0, %v1394
      %v1396 = vrcp.pop %v1379
      %v1397 = vmul.f32 1.0, %v1396
      %v1398 = vrcp.pop %v1380
      %v1399 = vmul.f32 1.0, %v1398
      %v1400 = vrcp.pop %v1381
      %v1401 = vmul.f32 1.0, %v1400
      %v1402 = vrcp.pop %v1382
      %v1403 = vmul.f32 1.0, %v1402
      %v1404 = vrcp.pop %v1383
      %v1405 = vmul.f32 1.0, %v1404
      %v1406 = vrcp.pop %v1384
      %v1407 = vmul.f32 1.0, %v1406
      %v1408 = vrcp.pop %v1385
      %v1409 = vmul.f32 1.0, %v1408
      %v1410 = vrcp.pop %v1386
      %v1411 = vmul.f32 1.0, %v1410
      %v1412 = vrcp.pop %v1387
      %v1413 = vmul.f32 1.0, %v1412
      %v1414 = vrcp.pop %v1388
      %v1415 = vmul.f32 1.0, %v1414
      %v1416 = vrcp.pop %v1389
      %v1417 = vmul.f32 1.0, %v1416
      %v1418 = vrcp.pop %v1390
      %v1419 = vmul.f32 1.0, %v1418
      %v1420 = vrcp.pop %v1391
      %v1421 = vmul.f32 1.0, %v1420
      %v1422 = vrcp.pop %v1392
      %v1423 = vmul.f32 1.0, %v1422
      %v1424 = vrcp.pop %v1393
      %v1425 = vmul.f32 1.0, %v1424
      %v1426 = vmul.f32 %v1395, 1.0614054
      %v1427 = vmul.f32 %v1397, 1.0614054
      %v1428 = vmul.f32 %v1399, 1.0614054
      %v1429 = vmul.f32 %v1401, 1.0614054
      %v1430 = vmul.f32 %v1403, 1.0614054
      %v1431 = vmul.f32 %v1405, 1.0614054
      %v1432 = vmul.f32 %v1407, 1.0614054
      %v1433 = vmul.f32 %v1409, 1.0614054
      %v1434 = vmul.f32 %v1411, 1.0614054
      %v1435 = vmul.f32 %v1413, 1.0614054
      %v1436 = vmul.f32 %v1415, 1.0614054
      %v1437 = vmul.f32 %v1417, 1.0614054
      %v1438 = vmul.f32 %v1419, 1.0614054
      %v1439 = vmul.f32 %v1421, 1.0614054
      %v1440 = vmul.f32 %v1423, 1.0614054
      %v1441 = vmul.f32 %v1425, 1.0614054
      %v1442 = vadd.f32 %v1426, -1.4531521
      %v1443 = vadd.f32 %v1427, -1.4531521
      %v1444 = vadd.f32 %v1428, -1.4531521
      %v1445 = vadd.f32 %v1429, -1.4531521
      %v1446 = vadd.f32 %v1430, -1.4531521
      %v1447 = vadd.f32 %v1431, -1.4531521
      %v1448 = vadd.f32 %v1432, -1.4531521
      %v1449 = vadd.f32 %v1433, -1.4531521
      %v1450 = vadd.f32 %v1434, -1.4531521
      %v1451 = vadd.f32 %v1435, -1.4531521
      %v1452 = vadd.f32 %v1436, -1.4531521
      %v1453 = vadd.f32 %v1437, -1.4531521
      %v1454 = vadd.f32 %v1438, -1.4531521
      %v1455 = vadd.f32 %v1439, -1.4531521
      %v1456 = vadd.f32 %v1440, -1.4531521
      %v1457 = vadd.f32 %v1441, -1.4531521
      %v1458 = vmul.f32 %v1442, %v1395
      %v1459 = vmul.f32 %v1443, %v1397
      %v1460 = vmul.f32 %v1444, %v1399
      %v1461 = vmul.f32 %v1445, %v1401
      %v1462 = vmul.f32 %v1446, %v1403
      %v1463 = vmul.f32 %v1447, %v1405
      %v1464 = vmul.f32 %v1448, %v1407
      %v1465 = vmul.f32 %v1449, %v1409
      %v1466 = vmul.f32 %v1450, %v1411
      %v1467 = vmul.f32 %v1451, %v1413
      %v1468 = vmul.f32 %v1452, %v1415
      %v1469 = vmul.f32 %v1453, %v1417
      %v1470 = vmul.f32 %v1454, %v1419
      %v1471 = vmul.f32 %v1455, %v1421
      %v1472 = vmul.f32 %v1456, %v1423
      %v1473 = vmul.f32 %v1457, %v1425
      %v1474 = vadd.f32 %v1458, 1.4214138
      %v1475 = vadd.f32 %v1459, 1.4214138
      %v1476 = vadd.f32 %v1460, 1.4214138
      %v1477 = vadd.f32 %v1461, 1.4214138
      %v1478 = vadd.f32 %v1462, 1.4214138
      %v1479 = vadd.f32 %v1463, 1.4214138
      %v1480 = vadd.f32 %v1464, 1.4214138
      %v1481 = vadd.f32 %v1465, 1.4214138
      %v1482 = vadd.f32 %v1466, 1.4214138
      %v1483 = vadd.f32 %v1467, 1.4214138
      %v1484 = vadd.f32 %v1468, 1.4214138
      %v1485 = vadd.f32 %v1469, 1.4214138
      %v1486 = vadd.f32 %v1470, 1.4214138
      %v1487 = vadd.f32 %v1471, 1.4214138
      %v1488 = vadd.f32 %v1472, 1.4214138
      %v1489 = vadd.f32 %v1473, 1.4214138
      %v1490 = vmul.f32 %v1474, %v1395
      %v1491 = vmul.f32 %v1475, %v1397
      %v1492 = vmul.f32 %v1476, %v1399
      %v1493 = vmul.f32 %v1477, %v1401
      %v1494 = vmul.f32 %v1478, %v1403
      %v1495 = vmul.f32 %v1479, %v1405
      %v1496 = vmul.f32 %v1480, %v1407
      %v1497 = vmul.f32 %v1481, %v1409
      %v1498 = vmul.f32 %v1482, %v1411
      %v1499 = vmul.f32 %v1483, %v1413
      %v1500 = vmul.f32 %v1484, %v1415
      %v1501 = vmul.f32 %v1485, %v1417
      %v1502 = vmul.f32 %v1486, %v1419
      %v1503 = vmul.f32 %v1487, %v1421
      %v1504 = vmul.f32 %v1488, %v1423
      %v1505 = vmul.f32 %v1489, %v1425
      %v1506 = vadd.f32 %v1490, -0.28449672
      %v1507 = vadd.f32 %v1491, -0.28449672
      %v1508 = vadd.f32 %v1492, -0.28449672
      %v1509 = vadd.f32 %v1493, -0.28449672
      %v1510 = vadd.f32 %v1494, -0.28449672
      %v1511 = vadd.f32 %v1495, -0.28449672
      %v1512 = vadd.f32 %v1496, -0.28449672
      %v1513 = vadd.f32 %v1497, -0.28449672
      %v1514 = vadd.f32 %v1498, -0.28449672
      %v1515 = vadd.f32 %v1499, -0.28449672
      %v1516 = vadd.f32 %v1500, -0.28449672
      %v1517 = vadd.f32 %v1501, -0.28449672
      %v1518 = vadd.f32 %v1502, -0.28449672
      %v1519 = vadd.f32 %v1503, -0.28449672
      %v1520 = vadd.f32 %v1504, -0.28449672
      %v1521 = vadd.f32 %v1505, -0.28449672
      %v1522 = vmul.f32 %v1506, %v1395
      %v1523 = vmul.f32 %v1507, %v1397
      %v1524 = vmul.f32 %v1508, %v1399
      %v1525 = vmul.f32 %v1509, %v1401
      %v1526 = vmul.f32 %v1510, %v1403
      %v1527 = vmul.f32 %v1511, %v1405
      %v1528 = vmul.f32 %v1512, %v1407
      %v1529 = vmul.f32 %v1513, %v1409
      %v1530 = vmul.f32 %v1514, %v1411
      %v1531 = vmul.f32 %v1515, %v1413
      %v1532 = vmul.f32 %v1516, %v1415
      %v1533 = vmul.f32 %v1517, %v1417
      %v1534 = vmul.f32 %v1518, %v1419
      %v1535 = vmul.f32 %v1519, %v1421
      %v1536 = vmul.f32 %v1520, %v1423
      %v1537 = vmul.f32 %v1521, %v1425
      %v1538 = vadd.f32 %v1522, 0.2548296
      %v1539 = vadd.f32 %v1523, 0.2548296
      %v1540 = vadd.f32 %v1524, 0.2548296
      %v1541 = vadd.f32 %v1525, 0.2548296
      %v1542 = vadd.f32 %v1526, 0.2548296
      %v1543 = vadd.f32 %v1527, 0.2548296
      %v1544 = vadd.f32 %v1528, 0.2548296
      %v1545 = vadd.f32 %v1529, 0.2548296
      %v1546 = vadd.f32 %v1530, 0.2548296
      %v1547 = vadd.f32 %v1531, 0.2548296
      %v1548 = vadd.f32 %v1532, 0.2548296
      %v1549 = vadd.f32 %v1533, 0.2548296
      %v1550 = vadd.f32 %v1534, 0.2548296
      %v1551 = vadd.f32 %v1535, 0.2548296
      %v1552 = vadd.f32 %v1536, 0.2548296
      %v1553 = vadd.f32 %v1537, 0.2548296
      %v1554 = vmul.f32 %v1538, %v1395
      %v1555 = vmul.f32 %v1539, %v1397
      %v1556 = vmul.f32 %v1540, %v1399
      %v1557 = vmul.f32 %v1541, %v1401
      %v1558 = vmul.f32 %v1542, %v1403
      %v1559 = vmul.f32 %v1543, %v1405
      %v1560 = vmul.f32 %v1544, %v1407
      %v1561 = vmul.f32 %v1545, %v1409
      %v1562 = vmul.f32 %v1546, %v1411
      %v1563 = vmul.f32 %v1547, %v1413
      %v1564 = vmul.f32 %v1548, %v1415
      %v1565 = vmul.f32 %v1549, %v1417
      %v1566 = vmul.f32 %v1550, %v1419
      %v1567 = vmul.f32 %v1551, %v1421
      %v1568 = vmul.f32 %v1552, %v1423
      %v1569 = vmul.f32 %v1553, %v1425
      %v1570 = vsub.f32 0.0, %v1346
      %v1571 = vsub.f32 0.0, %v1347
      %v1572 = vsub.f32 0.0, %v1348
      %v1573 = vsub.f32 0.0, %v1349
      %v1574 = vsub.f32 0.0, %v1350
      %v1575 = vsub.f32 0.0, %v1351
      %v1576 = vsub.f32 0.0, %v1352
      %v1577 = vsub.f32 0.0, %v1353
      %v1578 = vsub.f32 0.0, %v1354
      %v1579 = vsub.f32 0.0, %v1355
      %v1580 = vsub.f32 0.0, %v1356
      %v1581 = vsub.f32 0.0, %v1357
      %v1582 = vsub.f32 0.0, %v1358
      %v1583 = vsub.f32 0.0, %v1359
      %v1584 = vsub.f32 0.0, %v1360
      %v1585 = vsub.f32 0.0, %v1361
      %v1586 = vmul.f32 %v1570, %v1346
      %v1587 = vmul.f32 %v1571, %v1347
      %v1588 = vmul.f32 %v1572, %v1348
      %v1589 = vmul.f32 %v1573, %v1349
      %v1590 = vmul.f32 %v1574, %v1350
      %v1591 = vmul.f32 %v1575, %v1351
      %v1592 = vmul.f32 %v1576, %v1352
      %v1593 = vmul.f32 %v1577, %v1353
      %v1594 = vmul.f32 %v1578, %v1354
      %v1595 = vmul.f32 %v1579, %v1355
      %v1596 = vmul.f32 %v1580, %v1356
      %v1597 = vmul.f32 %v1581, %v1357
      %v1598 = vmul.f32 %v1582, %v1358
      %v1599 = vmul.f32 %v1583, %v1359
      %v1600 = vmul.f32 %v1584, %v1360
      %v1601 = vmul.f32 %v1585, %v1361
      %v1602 = vmul.f32 %v1586, 1.442695
      %v1603 = vpow.pop %v1602
      %v1604 = vmul.f32 %v1587, 1.442695
      %v1605 = vpow.pop %v1604
      %v1606 = vmul.f32 %v1588, 1.442695
      %v1607 = vpow.pop %v1606
      %v1608 = vmul.f32 %v1589, 1.442695
      %v1609 = vpow.pop %v1608
      %v1610 = vmul.f32 %v1590, 1.442695
      %v1611 = vpow.pop %v1610
      %v1612 = vmul.f32 %v1591, 1.442695
      %v1613 = vpow.pop %v1612
      %v1614 = vmul.f32 %v1592, 1.442695
      %v1615 = vpow.pop %v1614
      %v1616 = vmul.f32 %v1593, 1.442695
      %v1617 = vpow.pop %v1616
      %v1618 = vmul.f32 %v1594, 1.442695
      %v1619 = vpow.pop %v1618
      %v1620 = vmul.f32 %v1595, 1.442695
      %v1621 = vpow.pop %v1620
      %v1622 = vmul.f32 %v1596, 1.442695
      %v1623 = vpow.pop %v1622
      %v1624 = vmul.f32 %v1597, 1.442695
      %v1625 = vpow.pop %v1624
      %v1626 = vmul.f32 %v1598, 1.442695
      %v1627 = vpow.pop %v1626
      %v1628 = vmul.f32 %v1599, 1.442695
      %v1629 = vpow.pop %v1628
      %v1630 = vmul.f32 %v1600, 1.442695
      %v1631 = vpow.pop %v1630
      %v1632 = vmul.f32 %v1601, 1.442695
      %v1633 = vpow.pop %v1632
      %v1634 = vmul.f32 %v1554, %v1603
      %v1635 = vmul.f32 %v1555, %v1605
      %v1636 = vmul.f32 %v1556, %v1607
      %v1637 = vmul.f32 %v1557, %v1609
      %v1638 = vmul.f32 %v1558, %v1611
      %v1639 = vmul.f32 %v1559, %v1613
      %v1640 = vmul.f32 %v1560, %v1615
      %v1641 = vmul.f32 %v1561, %v1617
      %v1642 = vmul.f32 %v1562, %v1619
      %v1643 = vmul.f32 %v1563, %v1621
      %v1644 = vmul.f32 %v1564, %v1623
      %v1645 = vmul.f32 %v1565, %v1625
      %v1646 = vmul.f32 %v1566, %v1627
      %v1647 = vmul.f32 %v1567, %v1629
      %v1648 = vmul.f32 %v1568, %v1631
      %v1649 = vmul.f32 %v1569, %v1633
      %v1650 = vsub.f32 1.0, %v1634
      %v1651 = vsub.f32 1.0, %v1635
      %v1652 = vsub.f32 1.0, %v1636
      %v1653 = vsub.f32 1.0, %v1637
      %v1654 = vsub.f32 1.0, %v1638
      %v1655 = vsub.f32 1.0, %v1639
      %v1656 = vsub.f32 1.0, %v1640
      %v1657 = vsub.f32 1.0, %v1641
      %v1658 = vsub.f32 1.0, %v1642
      %v1659 = vsub.f32 1.0, %v1643
      %v1660 = vsub.f32 1.0, %v1644
      %v1661 = vsub.f32 1.0, %v1645
      %v1662 = vsub.f32 1.0, %v1646
      %v1663 = vsub.f32 1.0, %v1647
      %v1664 = vsub.f32 1.0, %v1648
      %v1665 = vsub.f32 1.0, %v1649
      %v1666 = vmul.f32 %v1330, %v1650
      %v1667 = vmul.f32 %v1331, %v1651
      %v1668 = vmul.f32 %v1332, %v1652
      %v1669 = vmul.f32 %v1333, %v1653
      %v1670 = vmul.f32 %v1334, %v1654
      %v1671 = vmul.f32 %v1335, %v1655
      %v1672 = vmul.f32 %v1336, %v1656
      %v1673 = vmul.f32 %v1337, %v1657
      %v1674 = vmul.f32 %v1338, %v1658
      %v1675 = vmul.f32 %v1339, %v1659
      %v1676 = vmul.f32 %v1340, %v1660
      %v1677 = vmul.f32 %v1341, %v1661
      %v1678 = vmul.f32 %v1342, %v1662
      %v1679 = vmul.f32 %v1343, %v1663
      %v1680 = vmul.f32 %v1344, %v1664
      %v1681 = vmul.f32 %v1345, %v1665
      %v1682 = vadd.f32 %v1666, 1.0
      %v1683 = vadd.f32 %v1667, 1.0
      %v1684 = vadd.f32 %v1668, 1.0
      %v1685 = vadd.f32 %v1669, 1.0
      %v1686 = vadd.f32 %v1670, 1.0
      %v1687 = vadd.f32 %v1671, 1.0
      %v1688 = vadd.f32 %v1672, 1.0
      %v1689 = vadd.f32 %v1673, 1.0
      %v1690 = vadd.f32 %v1674, 1.0
      %v1691 = vadd.f32 %v1675, 1.0
      %v1692 = vadd.f32 %v1676, 1.0
      %v1693 = vadd.f32 %v1677, 1.0
      %v1694 = vadd.f32 %v1678, 1.0
      %v1695 = vadd.f32 %v1679, 1.0
      %v1696 = vadd.f32 %v1680, 1.0
      %v1697 = vadd.f32 %v1681, 1.0
      %v1698 = vmul.f32 %v1282, %v1682
      %v1699 = vmul.f32 %v1283, %v1683
      %v1700 = vmul.f32 %v1284, %v1684
      %v1701 = vmul.f32 %v1285, %v1685
      %v1702 = vmul.f32 %v1286, %v1686
      %v1703 = vmul.f32 %v1287, %v1687
      %v1704 = vmul.f32 %v1288, %v1688
      %v1705 = vmul.f32 %v1289, %v1689
      %v1706 = vmul.f32 %v1290, %v1690
      %v1707 = vmul.f32 %v1291, %v1691
      %v1708 = vmul.f32 %v1292, %v1692
      %v1709 = vmul.f32 %v1293, %v1693
      %v1710 = vmul.f32 %v1294, %v1694
      %v1711 = vmul.f32 %v1295, %v1695
      %v1712 = vmul.f32 %v1296, %v1696
      %v1713 = vmul.f32 %v1297, %v1697
      %v1714 = vld [vmem:[%s8] sm:$0xff]
      %v1715 = vld [vmem:[%s8 + $0x8] sm:$0xff]
      %v1716 = vld [vmem:[%s8 + $0x10] sm:$0xff]
      %v1717 = vld [vmem:[%s8 + $0x18] sm:$0xff]
      %v1718 = vld [vmem:[%s8 + $0x20] sm:$0xff]
      %v1719 = vld [vmem:[%s8 + $0x28] sm:$0xff]
      %v1720 = vld [vmem:[%s8 + $0x30] sm:$0xff]
      %v1721 = vld [vmem:[%s8 + $0x38] sm:$0xff]
      %v1722 = vld [vmem:[%s8 + $0x40] sm:$0xff]
      %v1723 = vld [vmem:[%s8 + $0x48] sm:$0xff]
      %v1724 = vld [vmem:[%s8 + $0x50] sm:$0xff]
      %v1725 = vld [vmem:[%s8 + $0x58] sm:$0xff]
      %v1726 = vld [vmem:[%s8 + $0x60] sm:$0xff]
      %v1727 = vld [vmem:[%s8 + $0x68] sm:$0xff]
      %v1728 = vld [vmem:[%s8 + $0x70] sm:$0xff]
      %v1729 = vld [vmem:[%s8 + $0x78] sm:$0xff]
      %v1730 = vld [vmem:[%s9] sm:$0x1]
      %v1732 = vlaneseq
      %v1733 = vshrl.u32 %v1732, 7
      %v1734 = vsub.s32 0, %v1733
      %v1735 = vrot.slane %v1730, %v1734
      %1737 = vmatprep.subr.mxu0 0.0
      %1738 = vmatpush1.msra.mxu0 %v1714
      %1739 = vmatprep.subr.mxu0 0.0
      %1740 = vmatpush1.msra.mxu0 %v1715
      %1741 = vmatprep.subr.mxu0 0.0
      %1742 = vmatpush1.msra.mxu0 %v1716
      %1743 = vmatprep.subr.mxu0 0.0
      %1744 = vmatpush1.msra.mxu0 %v1717
      %1745 = vmatprep.subr.mxu0 0.0
      %1746 = vmatpush1.msra.mxu0 %v1718
      %1747 = vmatprep.subr.mxu0 0.0
      %1748 = vmatpush1.msra.mxu0 %v1719
      %1749 = vmatprep.subr.mxu0 0.0
      %1750 = vmatpush1.msra.mxu0 %v1720
      %1751 = vmatprep.subr.mxu0 0.0
      %1752 = vmatpush1.msra.mxu0 %v1721
      %1753 = vmatprep.subr.mxu0 0.0
      %1754 = vmatpush1.msra.mxu0 %v1722
      %1755 = vmatprep.subr.mxu0 0.0
      %1756 = vmatpush1.msra.mxu0 %v1723
      %1757 = vmatprep.subr.mxu0 0.0
      %1758 = vmatpush1.msra.mxu0 %v1724
      %1759 = vmatprep.subr.mxu0 0.0
      %1760 = vmatpush1.msra.mxu0 %v1725
      %1761 = vmatprep.subr.mxu0 0.0
      %1762 = vmatpush1.msra.mxu0 %v1726
      %1763 = vmatprep.subr.mxu0 0.0
      %1764 = vmatpush1.msra.mxu0 %v1727
      %1765 = vmatprep.subr.mxu0 0.0
      %1766 = vmatpush1.msra.mxu0 %v1728
      %1767 = vmatprep.subr.mxu0 0.0
      %1768 = vmatpush1.msra.mxu0 %v1729
      %1769 = vmatprep.subr.mxu0 0.0
      %1770 = vmatpush1.msra.mxu0 0.0
      %1771 = vmatprep.subr.mxu0 0.0
      %1772 = vmatpush1.msra.mxu0 0.0
      %1773 = vmatprep.subr.mxu0 0.0
      %1774 = vmatpush1.msra.mxu0 0.0
      %1775 = vmatprep.subr.mxu0 0.0
      %1776 = vmatpush1.msra.mxu0 0.0
      %1777 = vmatprep.subr.mxu0 0.0
      %1778 = vmatpush1.msra.mxu0 0.0
      %1779 = vmatprep.subr.mxu0 0.0
      %1780 = vmatpush1.msra.mxu0 0.0
      %1781 = vmatprep.subr.mxu0 0.0
      %1782 = vmatpush1.msra.mxu0 0.0
      %1783 = vmatprep.subr.mxu0 0.0
      %1784 = vmatpush1.msra.mxu0 0.0
      %1785 = vmatprep.subr.mxu0 0.0
      %1786 = vmatpush1.msra.mxu0 0.0
      %1787 = vmatprep.subr.mxu0 0.0
      %1788 = vmatpush1.msra.mxu0 0.0
      %1789 = vmatprep.subr.mxu0 0.0
      %1790 = vmatpush1.msra.mxu0 0.0
      %1791 = vmatprep.subr.mxu0 0.0
      %1792 = vmatpush1.msra.mxu0 0.0
      %1793 = vmatprep.subr.mxu0 0.0
      %1794 = vmatpush1.msra.mxu0 0.0
      %1795 = vmatprep.subr.mxu0 0.0
      %1796 = vmatpush1.msra.mxu0 0.0
      %1797 = vmatprep.subr.mxu0 0.0
      %1798 = vmatpush1.msra.mxu0 0.0
      %1799 = vmatprep.subr.mxu0 0.0
      %1800 = vmatpush1.msra.mxu0 0.0
      %1801 = vmatprep.mubr.f32.mxu0 0.0
      %1802 = vmatmul.mubr.f32.gmra.mrb[0].mxu0 %v1698
      %v1803 = vpop.f32.mrb[0].mxu0
      %v1804 = vadd.f32 %v1735, %v1803
      %v1805 = vpop.f32.mrb[0].mxu0
      %1806 = vmatprep.mubr.f32.mxu0 0.0
      %1807 = vmatmul.mubr.f32.gmra.mrb[0].mxu0 %v1699
      %v1808 = vpop.f32.mrb[0].mxu0
      %v1809 = vadd.f32 %v1735, %v1808
      %v1810 = vpop.f32.mrb[0].mxu0
      %1811 = vmatprep.mubr.f32.mxu0 0.0
      %1812 = vmatmul.mubr.f32.gmra.mrb[0].mxu0 %v1700
      %v1813 = vpop.f32.mrb[0].mxu0
      %v1814 = vadd.f32 %v1735, %v1813
      %v1815 = vpop.f32.mrb[0].mxu0
      %1816 = vmatprep.mubr.f32.mxu0 0.0
      %1817 = vmatmul.mubr.f32.gmra.mrb[0].mxu0 %v1701
      %v1818 = vpop.f32.mrb[0].mxu0
      %v1819 = vadd.f32 %v1735, %v1818
      %v1820 = vpop.f32.mrb[0].mxu0
      %1821 = vmatprep.mubr.f32.mxu0 0.0
      %1822 = vmatmul.mubr.f32.gmra.mrb[0].mxu0 %v1702
      %v1823 = vpop.f32.mrb[0].mxu0
      %v1824 = vadd.f32 %v1735, %v1823
      %v1825 = vpop.f32.mrb[0].mxu0
      %1826 = vmatprep.mubr.f32.mxu0 0.0
      %1827 = vmatmul.mubr.f32.gmra.mrb[0].mxu0 %v1703
      %v1828 = vpop.f32.mrb[0].mxu0
      %v1829 = vadd.f32 %v1735, %v1828
      %v1830 = vpop.f32.mrb[0].mxu0
      %1831 = vmatprep.mubr.f32.mxu0 0.0
      %1832 = vmatmul.mubr.f32.gmra.mrb[0].mxu0 %v1704
      %v1833 = vpop.f32.mrb[0].mxu0
      %v1834 = vadd.f32 %v1735, %v1833
      %v1835 = vpop.f32.mrb[0].mxu0
      %1836 = vmatprep.mubr.f32.mxu0 0.0
      %1837 = vmatmul.mubr.f32.gmra.mrb[0].mxu0 %v1705
      %v1838 = vpop.f32.mrb[0].mxu0
      %v1839 = vadd.f32 %v1735, %v1838
      %v1840 = vpop.f32.mrb[0].mxu0
      %1841 = vmatprep.mubr.f32.mxu0 0.0
      %1842 = vmatmul.mubr.f32.gmra.mrb[0].mxu0 %v1706
      %v1843 = vpop.f32.mrb[0].mxu0
      %v1844 = vadd.f32 %v1735, %v1843
      %v1845 = vpop.f32.mrb[0].mxu0
      %1846 = vmatprep.mubr.f32.mxu0 0.0
      %1847 = vmatmul.mubr.f32.gmra.mrb[0].mxu0 %v1707
      %v1848 = vpop.f32.mrb[0].mxu0
      %v1849 = vadd.f32 %v1735, %v1848
      %v1850 = vpop.f32.mrb[0].mxu0
      %1851 = vmatprep.mubr.f32.mxu0 0.0
      %1852 = vmatmul.mubr.f32.gmra.mrb[0].mxu0 %v1708
      %v1853 = vpop.f32.mrb[0].mxu0
      %v1854 = vadd.f32 %v1735, %v1853
      %v1855 = vpop.f32.mrb[0].mxu0
      %1856 = vmatprep.mubr.f32.mxu0 0.0
      %1857 = vmatmul.mubr.f32.gmra.mrb[0].mxu0 %v1709
      %v1858 = vpop.f32.mrb[0].mxu0
      %v1859 = vadd.f32 %v1735, %v1858
      %v1860 = vpop.f32.mrb[0].mxu0
      %1861 = vmatprep.mubr.f32.mxu0 0.0
      %1862 = vmatmul.mubr.f32.gmra.mrb[0].mxu0 %v1710
      %v1863 = vpop.f32.mrb[0].mxu0
      %v1864 = vadd.f32 %v1735, %v1863
      %v1865 = vpop.f32.mrb[0].mxu0
      %1866 = vmatprep.mubr.f32.mxu0 0.0
      %1867 = vmatmul.mubr.f32.gmra.mrb[0].mxu0 %v1711
      %v1868 = vpop.f32.mrb[0].mxu0
      %v1869 = vadd.f32 %v1735, %v1868
      %v1870 = vpop.f32.mrb[0].mxu0
      %1871 = vmatprep.mubr.f32.mxu0 0.0
      %1872 = vmatmul.mubr.f32.gmra.mrb[0].mxu0 %v1712
      %v1873 = vpop.f32.mrb[0].mxu0
      %v1874 = vadd.f32 %v1735, %v1873
      %v1875 = vpop.f32.mrb[0].mxu0
      %1876 = vmatprep.mubr.f32.mxu0 0.0
      %1877 = vmatmul.mubr.f32.gmra.mrb[0].mxu0 %v1713
      %v1878 = vpop.f32.mrb[0].mxu0
      %v1879 = vadd.f32 %v1735, %v1878
      %v1880 = vpop.f32.mrb[0].mxu0
      %1881 = vdwg.mxu0
      %v1882 = vadd.f32 %v695, %v1804
      %v1883 = vadd.f32 %v696, %v1809
      %v1884 = vadd.f32 %v697, %v1814
      %v1885 = vadd.f32 %v698, %v1819
      %v1886 = vadd.f32 %v699, %v1824
      %v1887 = vadd.f32 %v700, %v1829
      %v1888 = vadd.f32 %v701, %v1834
      %v1889 = vadd.f32 %v702, %v1839
      %v1890 = vadd.f32 %v703, %v1844
      %v1891 = vadd.f32 %v704, %v1849
      %v1892 = vadd.f32 %v705, %v1854
      %v1893 = vadd.f32 %v706, %v1859
      %v1894 = vadd.f32 %v707, %v1864
      %v1895 = vadd.f32 %v708, %v1869
      %v1896 = vadd.f32 %v709, %v1874
      %v1897 = vadd.f32 %v710, %v1879
      %1898 = vst.msk [vmem:[%s441] sm:$0xff] %vm478, %v1882
      %1899 = vst.msk [vmem:[%s441 + $0x8] sm:$0xff] %vm478, %v1883
      %1900 = vst.msk [vmem:[%s441 + $0x10] sm:$0xff] %vm478, %v1884
      %1901 = vst.msk [vmem:[%s441 + $0x18] sm:$0xff] %vm478, %v1885
      %1902 = vst.msk [vmem:[%s441 + $0x20] sm:$0xff] %vm478, %v1886
      %1903 = vst.msk [vmem:[%s441 + $0x28] sm:$0xff] %vm478, %v1887
      %1904 = vst.msk [vmem:[%s441 + $0x30] sm:$0xff] %vm478, %v1888
      %1905 = vst.msk [vmem:[%s441 + $0x38] sm:$0xff] %vm478, %v1889
      %1906 = vst.msk [vmem:[%s441 + $0x40] sm:$0xff] %vm478, %v1890
      %1907 = vst.msk [vmem:[%s441 + $0x48] sm:$0xff] %vm478, %v1891
      %1908 = vst.msk [vmem:[%s441 + $0x50] sm:$0xff] %vm478, %v1892
      %1909 = vst.msk [vmem:[%s441 + $0x58] sm:$0xff] %vm478, %v1893
      %1910 = vst.msk [vmem:[%s441 + $0x60] sm:$0xff] %vm478, %v1894
      %1911 = vst.msk [vmem:[%s441 + $0x68] sm:$0xff] %vm478, %v1895
      %1912 = vst.msk [vmem:[%s441 + $0x70] sm:$0xff] %vm478, %v1896
      %1913 = vst.msk [vmem:[%s441 + $0x78] sm:$0xff] %vm478, %v1897
      %p1914 = scmp.lt.s32.totalorder %s21, 1
      %s1915 = scalar_select %p1914, %s21, 1
      %s1916 = smul.addr %s1915, 16
      %s1917 = smul.addr %s1916, 8
      %s1918 = scalar_lea.vmem %s10, %s1917
      // Predicated region
      $region61: #{attention_transformer_block.9} parent=59 // pred_check
        %p1919 = pneg %p279
      $region62: #{attention_transformer_block.9} parent=59 // pred_check_branch
        %1921 = sbr.rel (%p1919) target = $region64
      $region63: #{attention_transformer_block.9} parent=59 // pred_region
        _
      $region64: #{attention_transformer_block.9} parent=59 // pred_fallthru
        _
    $region60: #{attention_transformer_block.9} parent=5 // pred_fallthru
      _
    %p1922 = scmp.le.s32.totalorder 2, %s16
    // Predicated region
    $region65: #{attention_transformer_block.9} parent=5 // pred_check
      %p1923 = pneg %p1922
    $region66: #{attention_transformer_block.9} parent=5 // pred_check_branch
      %1925 = sbr.rel (%p1923) target = $region68
    $region67: #{attention_transformer_block.9} parent=5 // pred_region
      %s1926 = ssub.s32 %s16, 2
      // Predicated region
      $region69: #{attention_transformer_block.9} parent=67 // pred_check
        %p1927 = pneg %p285
      $region70: #{attention_transformer_block.9} parent=67 // pred_check_branch
        %1929 = sbr.rel (%p1927) target = $region72
      $region71: #{attention_transformer_block.9} parent=67 // pred_region
        %p1930 = scmp.lt.s32.totalorder %s22, 1
        %s1931 = scalar_select %p1930, %s22, 1
        %s1932 = smul.addr %s1931, 16
        %s1933 = smul.addr %s1932, 8
        %s1934 = scalar_lea.vmem %s10, %s1933
      $region72: #{attention_transformer_block.9} parent=67 // pred_fallthru
        _
    $region68: #{attention_transformer_block.9} parent=5 // pred_fallthru
      _
  $region6: #{attention_transformer_block.9} parent=0 // loop_footer
    %s20 = sadd.s32 1, %s16
  $region7: #{attention_transformer_block.9} parent=0 // loop_footer_branch
    %15 = sbr.rel target = $region3
  $region8: #{attention_transformer_block.9} parent=0 // loop_exit
    _

</llo_original>
